<compile_context>
chip_gen: v7x
topology: tpu7x:2x2x1
jax: 0.10.0
libtpu: 0.0.40
codegen_flags: <defaults>
</compile_context>

<pallas_src>
import jax
import jax.numpy as jnp
from jax.experimental import pallas as pl
from jax.experimental.pallas import tpu as pltpu


# --------------------------- in-kernel helpers ------------------------------ #

def _conv_from(src_ref, rows, c_in, w_ref, b_ref, *, relu):
    """Valid 1-D conv, batched over all windows via the constant-slot layout.

    src_ref holds activations as (rows_total, lanes) f32; callers guarantee that
    rows [k, k+rows) exist for every k < K.  Returns (rows, C_out) f32:
        out[r] = sum_k src[r + k, :c_in] @ w[k] + b
    Rows straddling a window boundary are garbage but are never consumed by any
    later *valid* row (valid regions are strict per-slot prefixes).
    K shifted MXU dots with bf16 operands, f32 accumulation.
    """
    kk = w_ref.shape[0]
    c_out = w_ref.shape[2]
    acc = jnp.zeros((rows, c_out), jnp.float32)
    for k in range(kk):
        xk = src_ref[pl.ds(k, rows), 0:c_in].astype(jnp.bfloat16)
        acc = acc + jnp.dot(xk, w_ref[k], preferred_element_type=jnp.float32)
    acc = acc + b_ref[...]
    if relu:
        acc = jnp.maximum(acc, 0.0)
    return acc


def _pool2_from(src_ref, rows_out, c):
    """MaxPool1d(kernel=2, stride=2) over the slot rows, batched over windows:
    two stride-2 sublane ref loads + one jnp.maximum (f32)."""
    even = src_ref[pl.ds(0, rows_out, stride=2), 0:c]
    odd = src_ref[pl.ds(1, rows_out, stride=2), 0:c]
    return jnp.maximum(even, odd)


# ------------------------------ fused kernel -------------------------------- #

def _pt5_fused_kernel(x_ref,
                      w1, b1, w2, b2, w3, b3, w4, b4, w5, b5,
                      wfc, bfc, wt, bt, wo, bo,
                      o_ref,
                      slab_a, slab_b, tail_ref):
    # x_ref : (S*T + 8, C_in) f32 — all S windows of one batch element, time-major
    #         rows, windows concatenated into fixed T-row slots, 8 zero pad rows.
    # o_ref : (S, 128) f32 — per-window class logits, lane-padded to 128.
    r0 = x_ref.shape[0] - 8            # S*T rows (constant-slot layout)
    c_in = x_ref.shape[1]
    n_win = o_ref.shape[0]             # S windows
    t_flat = wfc.shape[0]              # pooled time steps feeding the Linear
    slot3 = r0 // (8 * n_win)          # per-window slot size after 3 pools
    n = w1.shape[2]                    # num_neurons
    n2 = w2.shape[2]                   # 2 * num_neurons
    nn2 = w4.shape[2]                  # num_neurons ** 2

    # Hygiene: zero the slabs so out-of-valid slot rows (incl. the +8 pad rows
    # read by the K=5 conv) are well defined.  ~66 vreg stores, negligible.
    slab_a[...] = jnp.zeros(slab_a.shape, slab_a.dtype)
    slab_b[...] = jnp.zeros(slab_b.shape, slab_b.dtype)

    # ---- TimeModel: every conv/pool acts on ALL S windows at once ----
    slab_a[0:r0, 0:n] = _conv_from(x_ref, r0, c_in, w1, b1, relu=True)     # conv_input
    slab_b[0:r0, 0:n2] = _conv_from(slab_a, r0, n, w2, b2, relu=True)      # conv_16_32
    r1 = r0 // 2
    slab_a[0:r1, 0:n2] = _pool2_from(slab_b, r1, n2)                       # max_pool
    slab_b[0:r1, 0:n2] = _conv_from(slab_a, r1, n2, w3, b3, relu=True)     # conv_32
    slab_a[0:r1, 0:n2] = _conv_from(slab_b, r1, n2, w3, b3, relu=True)     # conv_32 (shared)
    r2 = r1 // 2
    slab_b[0:r2, 0:n2] = _pool2_from(slab_a, r2, n2)                       # max_pool
    slab_a[0:r2, 0:nn2] = _conv_from(slab_b, r2, n2, w4, b4, relu=True)    # conv_32_256
    slab_b[0:r2, 0:nn2] = _conv_from(slab_a, r2, nn2, w5, b5, relu=True)   # conv_256
    r3 = r2 // 2
    slab_a[0:r3, 0:nn2] = _pool2_from(slab_b, r3, nn2)                     # max_pool

    # ---- TimeModel.output Linear (+ReLU), batched over windows:
    #      feats[w, :] = relu(sum_t pooled[w, t, :] @ wfc[t] + bfc)
    #      (t_flat dots of M = S instead of S*t_flat dots of M = 1)
    feats = jnp.zeros((n_win, bfc.shape[1]), jnp.float32)
    for t in range(t_flat):
        ht = slab_a[pl.ds(t, n_win, stride=slot3), 0:nn2].astype(jnp.bfloat16)
        feats = feats + jnp.dot(ht, wfc[t], preferred_element_type=jnp.float32)
    feats = jnp.maximum(feats + bfc[...], 0.0)

    # ---- Pt5 tail: Conv1d(padding='same') twice with shared weights, then
    #      conv_output.  Zero rows 0 and S+1 of the tiny scratch provide the
    #      'same' padding; each update is a single S-row block store.
    #      No ReLU is applied between these convs in Pt5Model.forward.
    tail_ref[...] = jnp.zeros(tail_ref.shape, tail_ref.dtype)
    tail_ref[1:n_win + 1, :] = feats
    h = _conv_from(tail_ref, n_win, nn2, wt, bt, relu=False)
    tail_ref[1:n_win + 1, :] = h
    h = _conv_from(tail_ref, n_win, nn2, wt, bt, relu=False)               # shared weights
    tail_ref[1:n_win + 1, :] = h
    y = _conv_from(tail_ref, n_win, nn2, wo, bo, relu=False)               # (S, 128) padded
    # LogSoftmax is defined in __init__ but not applied in forward -> not applied.
    o_ref[...] = y.astype(o_ref.dtype)


# ------------------------------- parameters --------------------------------- #

def _conv_params(key, k, c_in, c_out):
    kw, kb = jax.random.split(key)
    scale = 1.0 / jnp.sqrt(float(c_in * k))
    # Kernel layout (K, C_in, C_out); PyTorch Conv1d weight (C_out, C_in, K)
    # maps via w_kernel[k, ci, co] = weight[co, ci, k].
    w = jax.random.uniform(kw, (k, c_in, c_out), jnp.float32, -scale, scale)
    b = jax.random.uniform(kb, (1, c_out), jnp.float32, -scale, scale)
    return w, b


def init_params(key, num_input_channels, num_neurons, num_classes, t_steps):
    n = num_neurons
    t_flat = (((t_steps - 8) // 2 - 4) // 2 - 4) // 2
    keys = jax.random.split(key, 8)
    p = {}
    # TimeModel
    p["conv_input"] = _conv_params(keys[0], 5, num_input_channels, n)
    p["conv_16_32"] = _conv_params(keys[1], 5, n, 2 * n)
    p["conv_32"] = _conv_params(keys[2], 3, 2 * n, 2 * n)
    p["conv_32_256"] = _conv_params(keys[3], 3, 2 * n, n * n)
    p["conv_256"] = _conv_params(keys[4], 3, n * n, n * n)
    # TimeModel.output: original hardcodes Linear(256*371, 64); adapted to the
    # flattened size implied by the chosen (small) input length.  Stored
    # time-major as (t_flat, C, 64); a PyTorch weight (64, C*t_flat) maps via
    #   fc_w[t, c, j] = weight[j, c * t_flat + t]    (channel-major flatten).
    kw, kb = jax.random.split(keys[5])
    ls = 1.0 / jnp.sqrt(float(t_flat * n * n))
    p["fc_w"] = jax.random.uniform(kw, (t_flat, n * n, 64), jnp.float32, -ls, ls)
    p["fc_b"] = jax.random.uniform(kb, (1, 64), jnp.float32, -ls, ls)
    # Pt5Model tail
    p["conv"] = _conv_params(keys[6], 3, n * n, n * n)
    p["conv_output"] = _conv_params(keys[7], 3, n * n, num_classes)
    return p


# --------------------------------- forward ----------------------------------- #

def _const_spec(shape):
    zeros = (0,) * len(shape)
    return pl.BlockSpec(shape, lambda i, _z=zeros: _z)


def pt5_forward(params, x):
    """x: (B, S, C_in, T) — S time-distributed windows, each in PyTorch NCW order.
    Returns (B, num_classes, S), matching the PyTorch module's NCW output."""
    b, s, c_in, t = x.shape
    n = params["conv_input"][0].shape[2]            # num_neurons
    nn2 = params["conv_32_256"][0].shape[2]         # num_neurons ** 2
    nc = params["conv_output"][0].shape[2]          # num_classes
    nc_pad = 128                                    # lane-dense output channels

    assert t % 8 == 0 and t >= 24, "per-window length must be a multiple of 8 and >= 24"
    t_flat = (((t - 8) // 2 - 4) // 2 - 4) // 2
    assert params["fc_w"].shape[0] == t_flat, (
        "fc_w leading dim must match the pooled time length implied by T")

    r0 = s * t
    # (B, S, C_in, T) -> (B, S*T, C_in): time-major rows per window, windows
    # concatenated into constant T-row slots; append 8 zero rows so every
    # shifted conv read of the first layer stays in bounds.
    x_rows = jnp.transpose(x, (0, 1, 3, 2)).astype(jnp.float32).reshape(b, r0, c_in)
    x_rows = jnp.concatenate([x_rows, jnp.zeros((b, 8, c_in), jnp.float32)], axis=1)

    def _bf16(w):
        return w.astype(jnp.bfloat16)   # dot operands only; biases stay f32

    wo, bo = params["conv_output"]
    wo_p = jnp.zeros((wo.shape[0], wo.shape[1], nc_pad), jnp.float32).at[:, :, :nc].set(wo)
    bo_p = jnp.zeros((1, nc_pad), jnp.float32).at[:, :nc].set(bo)

    weight_args = (
        _bf16(params["conv_input"][0]), params["conv_input"][1],
        _bf16(params["conv_16_32"][0]), params["conv_16_32"][1],
        _bf16(params["conv_32"][0]), params["conv_32"][1],
        _bf16(params["conv_32_256"][0]), params["conv_32_256"][1],
        _bf16(params["conv_256"][0]), params["conv_256"][1],
        _bf16(params["fc_w"]), params["fc_b"],
        _bf16(params["conv"][0]), params["conv"][1],
        _bf16(wo_p), bo_p,
    )

    out = pl.pallas_call(
        _pt5_fused_kernel,
        out_shape=jax.ShapeDtypeStruct((b, s, nc_pad), jnp.float32),
        grid=(b,),
        in_specs=[pl.BlockSpec((None, r0 + 8, c_in), lambda i: (i, 0, 0))]
                + [_const_spec(w.shape) for w in weight_args],
        out_specs=pl.BlockSpec((None, s, nc_pad), lambda i: (i, 0, 0)),
        scratch_shapes=[
            pltpu.VMEM((r0 + 8, nn2), jnp.float32),   # ping slab (constant-slot activations)
            pltpu.VMEM((r0 + 8, nn2), jnp.float32),   # pong slab
            pltpu.VMEM((s + 2, nn2), jnp.float32),    # zero-padded feature rows for the tail
        ],
        compiler_params=pltpu.CompilerParams(dimension_semantics=("parallel",)),
    )(x_rows, *weight_args)

    # Drop the lane padding and relayout (B, S, nc) -> (B, nc, S) (PyTorch NCW).
    return jnp.transpose(out[:, :, :nc], (0, 2, 1))


# ----------------------------------- main ------------------------------------ #

if __name__ == "__main__":
    B, S, C_IN, T = 2, 8, 2, 64
    NUM_NEURONS, NUM_CLASSES = 8, 5   # num_neurons**2 == 64 == TimeModel Linear out

    key = jax.random.PRNGKey(0)
    k_x, k_p = jax.random.split(key)
    x = jax.random.normal(k_x, (B, S, C_IN, T), jnp.float32)
    params = init_params(k_p, C_IN, NUM_NEURONS, NUM_CLASSES, T)

    y = jax.jit(pt5_forward)(params, x)
    jax.block_until_ready(y)
    assert y.shape == (B, NUM_CLASSES, S)
    print("KERNEL_OK")
</pallas_src>

<mosaic_0001>
module attributes {stable_mosaic.version = 11 : i64} {
  func.func @_pt5_fused_kernel(%arg0: i32, %arg1: memref<1x520x2xf32, #tpu.memory_space<vmem>>, %arg2: memref<5x2x8xbf16, #tpu.memory_space<vmem>>, %arg3: memref<1x8xf32, #tpu.memory_space<vmem>>, %arg4: memref<5x8x16xbf16, #tpu.memory_space<vmem>>, %arg5: memref<1x16xf32, #tpu.memory_space<vmem>>, %arg6: memref<3x16x16xbf16, #tpu.memory_space<vmem>>, %arg7: memref<1x16xf32, #tpu.memory_space<vmem>>, %arg8: memref<3x16x64xbf16, #tpu.memory_space<vmem>>, %arg9: memref<1x64xf32, #tpu.memory_space<vmem>>, %arg10: memref<3x64x64xbf16, #tpu.memory_space<vmem>>, %arg11: memref<1x64xf32, #tpu.memory_space<vmem>>, %arg12: memref<4x64x64xbf16, #tpu.memory_space<vmem>>, %arg13: memref<1x64xf32, #tpu.memory_space<vmem>>, %arg14: memref<3x64x64xbf16, #tpu.memory_space<vmem>>, %arg15: memref<1x64xf32, #tpu.memory_space<vmem>>, %arg16: memref<3x64x128xbf16, #tpu.memory_space<vmem>>, %arg17: memref<1x128xf32, #tpu.memory_space<vmem>>, %arg18: memref<1x8x128xf32, #tpu.memory_space<vmem>>, %arg19: memref<520x64xf32, #tpu.memory_space<vmem>>, %arg20: memref<520x64xf32, #tpu.memory_space<vmem>>, %arg21: memref<10x64xf32, #tpu.memory_space<vmem>>) attributes {dimension_semantics = [#tpu.dimension_semantics<parallel>], iteration_bounds = array<i64: 2>, scalar_prefetch = 0 : i64, scratch_operands = 3 : i64, tpu.core_type = #tpu.core_type<tc>, window_params = [{transform_indices = @transform_0, window_bounds = array<i64: 1, 520, 2>}, {pipeline_mode = #tpu.pipeline_mode<synchronous>, transform_indices = @transform_1, window_bounds = array<i64: 5, 2, 8>}, {pipeline_mode = #tpu.pipeline_mode<synchronous>, transform_indices = @transform_2, window_bounds = array<i64: 1, 8>}, {pipeline_mode = #tpu.pipeline_mode<synchronous>, transform_indices = @transform_3, window_bounds = array<i64: 5, 8, 16>}, {pipeline_mode = #tpu.pipeline_mode<synchronous>, transform_indices = @transform_4, window_bounds = array<i64: 1, 16>}, {pipeline_mode = #tpu.pipeline_mode<synchronous>, transform_indices = @transform_5, window_bounds = array<i64: 3, 16, 16>}, {pipeline_mode = #tpu.pipeline_mode<synchronous>, transform_indices = @transform_6, window_bounds = array<i64: 1, 16>}, {pipeline_mode = #tpu.pipeline_mode<synchronous>, transform_indices = @transform_7, window_bounds = array<i64: 3, 16, 64>}, {pipeline_mode = #tpu.pipeline_mode<synchronous>, transform_indices = @transform_8, window_bounds = array<i64: 1, 64>}, {pipeline_mode = #tpu.pipeline_mode<synchronous>, transform_indices = @transform_9, window_bounds = array<i64: 3, 64, 64>}, {pipeline_mode = #tpu.pipeline_mode<synchronous>, transform_indices = @transform_10, window_bounds = array<i64: 1, 64>}, {pipeline_mode = #tpu.pipeline_mode<synchronous>, transform_indices = @transform_11, window_bounds = array<i64: 4, 64, 64>}, {pipeline_mode = #tpu.pipeline_mode<synchronous>, transform_indices = @transform_12, window_bounds = array<i64: 1, 64>}, {pipeline_mode = #tpu.pipeline_mode<synchronous>, transform_indices = @transform_13, window_bounds = array<i64: 3, 64, 64>}, {pipeline_mode = #tpu.pipeline_mode<synchronous>, transform_indices = @transform_14, window_bounds = array<i64: 1, 64>}, {pipeline_mode = #tpu.pipeline_mode<synchronous>, transform_indices = @transform_15, window_bounds = array<i64: 3, 64, 128>}, {pipeline_mode = #tpu.pipeline_mode<synchronous>, transform_indices = @transform_16, window_bounds = array<i64: 1, 128>}, {transform_indices = @transform_17, window_bounds = array<i64: 1, 8, 128>}]} {
    %cst = arith.constant 0.000000e+00 : f32
    %0 = vector.broadcast %cst : f32 to vector<520x64xf32>
    %c0 = arith.constant 0 : index
    %c0_0 = arith.constant 0 : index
    %1 = vector.load %arg19[%c0, %c0_0] : memref<520x64xf32, #tpu.memory_space<vmem>>, vector<520x64xf32>
    tpu.vector_store %arg19[%c0, %c0_0], %0 {strides = array<i32>} : memref<520x64xf32, #tpu.memory_space<vmem>>, vector<520x64xf32>,
    %cst_1 = arith.constant 0.000000e+00 : f32
    %2 = vector.broadcast %cst_1 : f32 to vector<520x64xf32>
    %c0_2 = arith.constant 0 : index
    %c0_3 = arith.constant 0 : index
    %3 = vector.load %arg20[%c0_2, %c0_3] : memref<520x64xf32, #tpu.memory_space<vmem>>, vector<520x64xf32>
    tpu.vector_store %arg20[%c0_2, %c0_3], %2 {strides = array<i32>} : memref<520x64xf32, #tpu.memory_space<vmem>>, vector<520x64xf32>,
    %cst_4 = arith.constant 0.000000e+00 : f32
    %4 = vector.broadcast %cst_4 : f32 to vector<512x8xf32>
    %c0_5 = arith.constant 0 : index
    %c0_6 = arith.constant 0 : index
    %c0_7 = arith.constant 0 : index
    %5 = vector.load %arg1[%c0_5, %c0_6, %c0_7] : memref<1x520x2xf32, #tpu.memory_space<vmem>>, vector<1x512x2xf32>
    %6 = vector.shape_cast %5 : vector<1x512x2xf32> to vector<512x2xf32>
    %7 = arith.truncf %6 : vector<512x2xf32> to vector<512x2xbf16>
    %c0_8 = arith.constant 0 : index
    %c0_9 = arith.constant 0 : index
    %c0_10 = arith.constant 0 : index
    %8 = vector.load %arg2[%c0_8, %c0_9, %c0_10] : memref<5x2x8xbf16, #tpu.memory_space<vmem>>, vector<1x2x8xbf16>
    %9 = vector.shape_cast %8 : vector<1x2x8xbf16> to vector<2x8xbf16>
    %cst_11 = arith.constant dense<0.000000e+00> : vector<512x8xf32>
    %10 = tpu.matmul %7, %9, %cst_11 {dimension_numbers = #tpu.dot_dimension_numbers<[1], [0], [0], [1], [0, 0, 1, 1], [], []>} : vector<512x2xbf16>, vector<2x8xbf16>, vector<512x8xf32> -> vector<512x8xf32>
    %11 = arith.addf %4, %10 : vector<512x8xf32>
    %c0_12 = arith.constant 0 : index
    %c1 = arith.constant 1 : index
    %c0_13 = arith.constant 0 : index
    %12 = vector.load %arg1[%c0_12, %c1, %c0_13] : memref<1x520x2xf32, #tpu.memory_space<vmem>>, vector<1x512x2xf32>
    %13 = vector.shape_cast %12 : vector<1x512x2xf32> to vector<512x2xf32>
    %14 = arith.truncf %13 : vector<512x2xf32> to vector<512x2xbf16>
    %c1_14 = arith.constant 1 : index
    %c0_15 = arith.constant 0 : index
    %c0_16 = arith.constant 0 : index
    %15 = vector.load %arg2[%c1_14, %c0_15, %c0_16] : memref<5x2x8xbf16, #tpu.memory_space<vmem>>, vector<1x2x8xbf16>
    %16 = vector.shape_cast %15 : vector<1x2x8xbf16> to vector<2x8xbf16>
    %cst_17 = arith.constant dense<0.000000e+00> : vector<512x8xf32>
    %17 = tpu.matmul %14, %16, %cst_17 {dimension_numbers = #tpu.dot_dimension_numbers<[1], [0], [0], [1], [0, 0, 1, 1], [], []>} : vector<512x2xbf16>, vector<2x8xbf16>, vector<512x8xf32> -> vector<512x8xf32>
    %18 = arith.addf %11, %17 : vector<512x8xf32>
    %c0_18 = arith.constant 0 : index
    %c2 = arith.constant 2 : index
    %c0_19 = arith.constant 0 : index
    %19 = vector.load %arg1[%c0_18, %c2, %c0_19] : memref<1x520x2xf32, #tpu.memory_space<vmem>>, vector<1x512x2xf32>
    %20 = vector.shape_cast %19 : vector<1x512x2xf32> to vector<512x2xf32>
    %21 = arith.truncf %20 : vector<512x2xf32> to vector<512x2xbf16>
    %c2_20 = arith.constant 2 : index
    %c0_21 = arith.constant 0 : index
    %c0_22 = arith.constant 0 : index
    %22 = vector.load %arg2[%c2_20, %c0_21, %c0_22] : memref<5x2x8xbf16, #tpu.memory_space<vmem>>, vector<1x2x8xbf16>
    %23 = vector.shape_cast %22 : vector<1x2x8xbf16> to vector<2x8xbf16>
    %cst_23 = arith.constant dense<0.000000e+00> : vector<512x8xf32>
    %24 = tpu.matmul %21, %23, %cst_23 {dimension_numbers = #tpu.dot_dimension_numbers<[1], [0], [0], [1], [0, 0, 1, 1], [], []>} : vector<512x2xbf16>, vector<2x8xbf16>, vector<512x8xf32> -> vector<512x8xf32>
    %25 = arith.addf %18, %24 : vector<512x8xf32>
    %c0_24 = arith.constant 0 : index
    %c3 = arith.constant 3 : index
    %c0_25 = arith.constant 0 : index
    %26 = vector.load %arg1[%c0_24, %c3, %c0_25] : memref<1x520x2xf32, #tpu.memory_space<vmem>>, vector<1x512x2xf32>
    %27 = vector.shape_cast %26 : vector<1x512x2xf32> to vector<512x2xf32>
    %28 = arith.truncf %27 : vector<512x2xf32> to vector<512x2xbf16>
    %c3_26 = arith.constant 3 : index
    %c0_27 = arith.constant 0 : index
    %c0_28 = arith.constant 0 : index
    %29 = vector.load %arg2[%c3_26, %c0_27, %c0_28] : memref<5x2x8xbf16, #tpu.memory_space<vmem>>, vector<1x2x8xbf16>
    %30 = vector.shape_cast %29 : vector<1x2x8xbf16> to vector<2x8xbf16>
    %cst_29 = arith.constant dense<0.000000e+00> : vector<512x8xf32>
    %31 = tpu.matmul %28, %30, %cst_29 {dimension_numbers = #tpu.dot_dimension_numbers<[1], [0], [0], [1], [0, 0, 1, 1], [], []>} : vector<512x2xbf16>, vector<2x8xbf16>, vector<512x8xf32> -> vector<512x8xf32>
    %32 = arith.addf %25, %31 : vector<512x8xf32>
    %c0_30 = arith.constant 0 : index
    %c4 = arith.constant 4 : index
    %c0_31 = arith.constant 0 : index
    %33 = vector.load %arg1[%c0_30, %c4, %c0_31] : memref<1x520x2xf32, #tpu.memory_space<vmem>>, vector<1x512x2xf32>
    %34 = vector.shape_cast %33 : vector<1x512x2xf32> to vector<512x2xf32>
    %35 = arith.truncf %34 : vector<512x2xf32> to vector<512x2xbf16>
    %c4_32 = arith.constant 4 : index
    %c0_33 = arith.constant 0 : index
    %c0_34 = arith.constant 0 : index
    %36 = vector.load %arg2[%c4_32, %c0_33, %c0_34] : memref<5x2x8xbf16, #tpu.memory_space<vmem>>, vector<1x2x8xbf16>
    %37 = vector.shape_cast %36 : vector<1x2x8xbf16> to vector<2x8xbf16>
    %cst_35 = arith.constant dense<0.000000e+00> : vector<512x8xf32>
    %38 = tpu.matmul %35, %37, %cst_35 {dimension_numbers = #tpu.dot_dimension_numbers<[1], [0], [0], [1], [0, 0, 1, 1], [], []>} : vector<512x2xbf16>, vector<2x8xbf16>, vector<512x8xf32> -> vector<512x8xf32>
    %39 = arith.addf %32, %38 : vector<512x8xf32>
    %c0_36 = arith.constant 0 : index
    %c0_37 = arith.constant 0 : index
    %40 = vector.load %arg3[%c0_36, %c0_37] : memref<1x8xf32, #tpu.memory_space<vmem>>, vector<1x8xf32>
    %41 = vector.broadcast %40 : vector<1x8xf32> to vector<512x8xf32>
    %42 = arith.addf %39, %41 : vector<512x8xf32>
    %cst_38 = arith.constant 0.000000e+00 : f32
    %43 = vector.broadcast %cst_38 : f32 to vector<512x8xf32>
    %44 = arith.maximumf %42, %43 : vector<512x8xf32>
    %c0_39 = arith.constant 0 : index
    %c0_40 = arith.constant 0 : index
    %45 = vector.load %arg19[%c0_39, %c0_40] : memref<520x64xf32, #tpu.memory_space<vmem>>, vector<512x8xf32>
    tpu.vector_store %arg19[%c0_39, %c0_40], %44 {strides = array<i32>} : memref<520x64xf32, #tpu.memory_space<vmem>>, vector<512x8xf32>,
    %cst_41 = arith.constant 0.000000e+00 : f32
    %46 = vector.broadcast %cst_41 : f32 to vector<512x16xf32>
    %c0_42 = arith.constant 0 : index
    %c0_43 = arith.constant 0 : index
    %47 = vector.load %arg19[%c0_42, %c0_43] : memref<520x64xf32, #tpu.memory_space<vmem>>, vector<512x8xf32>
    %48 = arith.truncf %47 : vector<512x8xf32> to vector<512x8xbf16>
    %c0_44 = arith.constant 0 : index
    %c0_45 = arith.constant 0 : index
    %c0_46 = arith.constant 0 : index
    %49 = vector.load %arg4[%c0_44, %c0_45, %c0_46] : memref<5x8x16xbf16, #tpu.memory_space<vmem>>, vector<1x8x16xbf16>
    %50 = vector.shape_cast %49 : vector<1x8x16xbf16> to vector<8x16xbf16>
    %cst_47 = arith.constant dense<0.000000e+00> : vector<512x16xf32>
    %51 = tpu.matmul %48, %50, %cst_47 {dimension_numbers = #tpu.dot_dimension_numbers<[1], [0], [0], [1], [0, 0, 1, 1], [], []>} : vector<512x8xbf16>, vector<8x16xbf16>, vector<512x16xf32> -> vector<512x16xf32>
    %52 = arith.addf %46, %51 : vector<512x16xf32>
    %c1_48 = arith.constant 1 : index
    %c0_49 = arith.constant 0 : index
    %53 = vector.load %arg19[%c1_48, %c0_49] : memref<520x64xf32, #tpu.memory_space<vmem>>, vector<512x8xf32>
    %54 = arith.truncf %53 : vector<512x8xf32> to vector<512x8xbf16>
    %c1_50 = arith.constant 1 : index
    %c0_51 = arith.constant 0 : index
    %c0_52 = arith.constant 0 : index
    %55 = vector.load %arg4[%c1_50, %c0_51, %c0_52] : memref<5x8x16xbf16, #tpu.memory_space<vmem>>, vector<1x8x16xbf16>
    %56 = vector.shape_cast %55 : vector<1x8x16xbf16> to vector<8x16xbf16>
    %cst_53 = arith.constant dense<0.000000e+00> : vector<512x16xf32>
    %57 = tpu.matmul %54, %56, %cst_53 {dimension_numbers = #tpu.dot_dimension_numbers<[1], [0], [0], [1], [0, 0, 1, 1], [], []>} : vector<512x8xbf16>, vector<8x16xbf16>, vector<512x16xf32> -> vector<512x16xf32>
    %58 = arith.addf %52, %57 : vector<512x16xf32>
    %c2_54 = arith.constant 2 : index
    %c0_55 = arith.constant 0 : index
    %59 = vector.load %arg19[%c2_54, %c0_55] : memref<520x64xf32, #tpu.memory_space<vmem>>, vector<512x8xf32>
    %60 = arith.truncf %59 : vector<512x8xf32> to vector<512x8xbf16>
    %c2_56 = arith.constant 2 : index
    %c0_57 = arith.constant 0 : index
    %c0_58 = arith.constant 0 : index
    %61 = vector.load %arg4[%c2_56, %c0_57, %c0_58] : memref<5x8x16xbf16, #tpu.memory_space<vmem>>, vector<1x8x16xbf16>
    %62 = vector.shape_cast %61 : vector<1x8x16xbf16> to vector<8x16xbf16>
    %cst_59 = arith.constant dense<0.000000e+00> : vector<512x16xf32>
    %63 = tpu.matmul %60, %62, %cst_59 {dimension_numbers = #tpu.dot_dimension_numbers<[1], [0], [0], [1], [0, 0, 1, 1], [], []>} : vector<512x8xbf16>, vector<8x16xbf16>, vector<512x16xf32> -> vector<512x16xf32>
    %64 = arith.addf %58, %63 : vector<512x16xf32>
    %c3_60 = arith.constant 3 : index
    %c0_61 = arith.constant 0 : index
    %65 = vector.load %arg19[%c3_60, %c0_61] : memref<520x64xf32, #tpu.memory_space<vmem>>, vector<512x8xf32>
    %66 = arith.truncf %65 : vector<512x8xf32> to vector<512x8xbf16>
    %c3_62 = arith.constant 3 : index
    %c0_63 = arith.constant 0 : index
    %c0_64 = arith.constant 0 : index
    %67 = vector.load %arg4[%c3_62, %c0_63, %c0_64] : memref<5x8x16xbf16, #tpu.memory_space<vmem>>, vector<1x8x16xbf16>
    %68 = vector.shape_cast %67 : vector<1x8x16xbf16> to vector<8x16xbf16>
    %cst_65 = arith.constant dense<0.000000e+00> : vector<512x16xf32>
    %69 = tpu.matmul %66, %68, %cst_65 {dimension_numbers = #tpu.dot_dimension_numbers<[1], [0], [0], [1], [0, 0, 1, 1], [], []>} : vector<512x8xbf16>, vector<8x16xbf16>, vector<512x16xf32> -> vector<512x16xf32>
    %70 = arith.addf %64, %69 : vector<512x16xf32>
    %c4_66 = arith.constant 4 : index
    %c0_67 = arith.constant 0 : index
    %71 = vector.load %arg19[%c4_66, %c0_67] : memref<520x64xf32, #tpu.memory_space<vmem>>, vector<512x8xf32>
    %72 = arith.truncf %71 : vector<512x8xf32> to vector<512x8xbf16>
    %c4_68 = arith.constant 4 : index
    %c0_69 = arith.constant 0 : index
    %c0_70 = arith.constant 0 : index
    %73 = vector.load %arg4[%c4_68, %c0_69, %c0_70] : memref<5x8x16xbf16, #tpu.memory_space<vmem>>, vector<1x8x16xbf16>
    %74 = vector.shape_cast %73 : vector<1x8x16xbf16> to vector<8x16xbf16>
    %cst_71 = arith.constant dense<0.000000e+00> : vector<512x16xf32>
    %75 = tpu.matmul %72, %74, %cst_71 {dimension_numbers = #tpu.dot_dimension_numbers<[1], [0], [0], [1], [0, 0, 1, 1], [], []>} : vector<512x8xbf16>, vector<8x16xbf16>, vector<512x16xf32> -> vector<512x16xf32>
    %76 = arith.addf %70, %75 : vector<512x16xf32>
    %c0_72 = arith.constant 0 : index
    %c0_73 = arith.constant 0 : index
    %77 = vector.load %arg5[%c0_72, %c0_73] : memref<1x16xf32, #tpu.memory_space<vmem>>, vector<1x16xf32>
    %78 = vector.broadcast %77 : vector<1x16xf32> to vector<512x16xf32>
    %79 = arith.addf %76, %78 : vector<512x16xf32>
    %cst_74 = arith.constant 0.000000e+00 : f32
    %80 = vector.broadcast %cst_74 : f32 to vector<512x16xf32>
    %81 = arith.maximumf %79, %80 : vector<512x16xf32>
    %c0_75 = arith.constant 0 : index
    %c0_76 = arith.constant 0 : index
    %82 = vector.load %arg20[%c0_75, %c0_76] : memref<520x64xf32, #tpu.memory_space<vmem>>, vector<512x16xf32>
    tpu.vector_store %arg20[%c0_75, %c0_76], %81 {strides = array<i32>} : memref<520x64xf32, #tpu.memory_space<vmem>>, vector<512x16xf32>,
    %c0_77 = arith.constant 0 : index
    %c0_78 = arith.constant 0 : index
    %83 = tpu.strided_load %arg20[%c0_77, %c0_78] {strides = array<i32: 2, 1>} : memref<520x64xf32, #tpu.memory_space<vmem>>, vector<256x16xf32>
    %c1_79 = arith.constant 1 : index
    %c0_80 = arith.constant 0 : index
    %84 = tpu.strided_load %arg20[%c1_79, %c0_80] {strides = array<i32: 2, 1>} : memref<520x64xf32, #tpu.memory_space<vmem>>, vector<256x16xf32>
    %85 = arith.maximumf %83, %84 : vector<256x16xf32>
    %c0_81 = arith.constant 0 : index
    %c0_82 = arith.constant 0 : index
    %86 = vector.load %arg19[%c0_81, %c0_82] : memref<520x64xf32, #tpu.memory_space<vmem>>, vector<256x16xf32>
    tpu.vector_store %arg19[%c0_81, %c0_82], %85 {strides = array<i32>} : memref<520x64xf32, #tpu.memory_space<vmem>>, vector<256x16xf32>,
    %cst_83 = arith.constant 0.000000e+00 : f32
    %87 = vector.broadcast %cst_83 : f32 to vector<256x16xf32>
    %c0_84 = arith.constant 0 : index
    %c0_85 = arith.constant 0 : index
    %88 = vector.load %arg19[%c0_84, %c0_85] : memref<520x64xf32, #tpu.memory_space<vmem>>, vector<256x16xf32>
    %89 = arith.truncf %88 : vector<256x16xf32> to vector<256x16xbf16>
    %c0_86 = arith.constant 0 : index
    %c0_87 = arith.constant 0 : index
    %c0_88 = arith.constant 0 : index
    %90 = vector.load %arg6[%c0_86, %c0_87, %c0_88] : memref<3x16x16xbf16, #tpu.memory_space<vmem>>, vector<1x16x16xbf16>
    %91 = vector.shape_cast %90 : vector<1x16x16xbf16> to vector<16x16xbf16>
    %cst_89 = arith.constant dense<0.000000e+00> : vector<256x16xf32>
    %92 = tpu.matmul %89, %91, %cst_89 {dimension_numbers = #tpu.dot_dimension_numbers<[1], [0], [0], [1], [0, 0, 1, 1], [], []>} : vector<256x16xbf16>, vector<16x16xbf16>, vector<256x16xf32> -> vector<256x16xf32>
    %93 = arith.addf %87, %92 : vector<256x16xf32>
    %c1_90 = arith.constant 1 : index
    %c0_91 = arith.constant 0 : index
    %94 = vector.load %arg19[%c1_90, %c0_91] : memref<520x64xf32, #tpu.memory_space<vmem>>, vector<256x16xf32>
    %95 = arith.truncf %94 : vector<256x16xf32> to vector<256x16xbf16>
    %c1_92 = arith.constant 1 : index
    %c0_93 = arith.constant 0 : index
    %c0_94 = arith.constant 0 : index
    %96 = vector.load %arg6[%c1_92, %c0_93, %c0_94] : memref<3x16x16xbf16, #tpu.memory_space<vmem>>, vector<1x16x16xbf16>
    %97 = vector.shape_cast %96 : vector<1x16x16xbf16> to vector<16x16xbf16>
    %cst_95 = arith.constant dense<0.000000e+00> : vector<256x16xf32>
    %98 = tpu.matmul %95, %97, %cst_95 {dimension_numbers = #tpu.dot_dimension_numbers<[1], [0], [0], [1], [0, 0, 1, 1], [], []>} : vector<256x16xbf16>, vector<16x16xbf16>, vector<256x16xf32> -> vector<256x16xf32>
    %99 = arith.addf %93, %98 : vector<256x16xf32>
    %c2_96 = arith.constant 2 : index
    %c0_97 = arith.constant 0 : index
    %100 = vector.load %arg19[%c2_96, %c0_97] : memref<520x64xf32, #tpu.memory_space<vmem>>, vector<256x16xf32>
    %101 = arith.truncf %100 : vector<256x16xf32> to vector<256x16xbf16>
    %c2_98 = arith.constant 2 : index
    %c0_99 = arith.constant 0 : index
    %c0_100 = arith.constant 0 : index
    %102 = vector.load %arg6[%c2_98, %c0_99, %c0_100] : memref<3x16x16xbf16, #tpu.memory_space<vmem>>, vector<1x16x16xbf16>
    %103 = vector.shape_cast %102 : vector<1x16x16xbf16> to vector<16x16xbf16>
    %cst_101 = arith.constant dense<0.000000e+00> : vector<256x16xf32>
    %104 = tpu.matmul %101, %103, %cst_101 {dimension_numbers = #tpu.dot_dimension_numbers<[1], [0], [0], [1], [0, 0, 1, 1], [], []>} : vector<256x16xbf16>, vector<16x16xbf16>, vector<256x16xf32> -> vector<256x16xf32>
    %105 = arith.addf %99, %104 : vector<256x16xf32>
    %c0_102 = arith.constant 0 : index
    %c0_103 = arith.constant 0 : index
    %106 = vector.load %arg7[%c0_102, %c0_103] : memref<1x16xf32, #tpu.memory_space<vmem>>, vector<1x16xf32>
    %107 = vector.broadcast %106 : vector<1x16xf32> to vector<256x16xf32>
    %108 = arith.addf %105, %107 : vector<256x16xf32>
    %cst_104 = arith.constant 0.000000e+00 : f32
    %109 = vector.broadcast %cst_104 : f32 to vector<256x16xf32>
    %110 = arith.maximumf %108, %109 : vector<256x16xf32>
    %c0_105 = arith.constant 0 : index
    %c0_106 = arith.constant 0 : index
    %111 = vector.load %arg20[%c0_105, %c0_106] : memref<520x64xf32, #tpu.memory_space<vmem>>, vector<256x16xf32>
    tpu.vector_store %arg20[%c0_105, %c0_106], %110 {strides = array<i32>} : memref<520x64xf32, #tpu.memory_space<vmem>>, vector<256x16xf32>,
    %cst_107 = arith.constant 0.000000e+00 : f32
    %112 = vector.broadcast %cst_107 : f32 to vector<256x16xf32>
    %c0_108 = arith.constant 0 : index
    %c0_109 = arith.constant 0 : index
    %113 = vector.load %arg20[%c0_108, %c0_109] : memref<520x64xf32, #tpu.memory_space<vmem>>, vector<256x16xf32>
    %114 = arith.truncf %113 : vector<256x16xf32> to vector<256x16xbf16>
    %c0_110 = arith.constant 0 : index
    %c0_111 = arith.constant 0 : index
    %c0_112 = arith.constant 0 : index
    %115 = vector.load %arg6[%c0_110, %c0_111, %c0_112] : memref<3x16x16xbf16, #tpu.memory_space<vmem>>, vector<1x16x16xbf16>
    %116 = vector.shape_cast %115 : vector<1x16x16xbf16> to vector<16x16xbf16>
    %cst_113 = arith.constant dense<0.000000e+00> : vector<256x16xf32>
    %117 = tpu.matmul %114, %116, %cst_113 {dimension_numbers = #tpu.dot_dimension_numbers<[1], [0], [0], [1], [0, 0, 1, 1], [], []>} : vector<256x16xbf16>, vector<16x16xbf16>, vector<256x16xf32> -> vector<256x16xf32>
    %118 = arith.addf %112, %117 : vector<256x16xf32>
    %c1_114 = arith.constant 1 : index
    %c0_115 = arith.constant 0 : index
    %119 = vector.load %arg20[%c1_114, %c0_115] : memref<520x64xf32, #tpu.memory_space<vmem>>, vector<256x16xf32>
    %120 = arith.truncf %119 : vector<256x16xf32> to vector<256x16xbf16>
    %c1_116 = arith.constant 1 : index
    %c0_117 = arith.constant 0 : index
    %c0_118 = arith.constant 0 : index
    %121 = vector.load %arg6[%c1_116, %c0_117, %c0_118] : memref<3x16x16xbf16, #tpu.memory_space<vmem>>, vector<1x16x16xbf16>
    %122 = vector.shape_cast %121 : vector<1x16x16xbf16> to vector<16x16xbf16>
    %cst_119 = arith.constant dense<0.000000e+00> : vector<256x16xf32>
    %123 = tpu.matmul %120, %122, %cst_119 {dimension_numbers = #tpu.dot_dimension_numbers<[1], [0], [0], [1], [0, 0, 1, 1], [], []>} : vector<256x16xbf16>, vector<16x16xbf16>, vector<256x16xf32> -> vector<256x16xf32>
    %124 = arith.addf %118, %123 : vector<256x16xf32>
    %c2_120 = arith.constant 2 : index
    %c0_121 = arith.constant 0 : index
    %125 = vector.load %arg20[%c2_120, %c0_121] : memref<520x64xf32, #tpu.memory_space<vmem>>, vector<256x16xf32>
    %126 = arith.truncf %125 : vector<256x16xf32> to vector<256x16xbf16>
    %c2_122 = arith.constant 2 : index
    %c0_123 = arith.constant 0 : index
    %c0_124 = arith.constant 0 : index
    %127 = vector.load %arg6[%c2_122, %c0_123, %c0_124] : memref<3x16x16xbf16, #tpu.memory_space<vmem>>, vector<1x16x16xbf16>
    %128 = vector.shape_cast %127 : vector<1x16x16xbf16> to vector<16x16xbf16>
    %cst_125 = arith.constant dense<0.000000e+00> : vector<256x16xf32>
    %129 = tpu.matmul %126, %128, %cst_125 {dimension_numbers = #tpu.dot_dimension_numbers<[1], [0], [0], [1], [0, 0, 1, 1], [], []>} : vector<256x16xbf16>, vector<16x16xbf16>, vector<256x16xf32> -> vector<256x16xf32>
    %130 = arith.addf %124, %129 : vector<256x16xf32>
    %c0_126 = arith.constant 0 : index
    %c0_127 = arith.constant 0 : index
    %131 = vector.load %arg7[%c0_126, %c0_127] : memref<1x16xf32, #tpu.memory_space<vmem>>, vector<1x16xf32>
    %132 = vector.broadcast %131 : vector<1x16xf32> to vector<256x16xf32>
    %133 = arith.addf %130, %132 : vector<256x16xf32>
    %cst_128 = arith.constant 0.000000e+00 : f32
    %134 = vector.broadcast %cst_128 : f32 to vector<256x16xf32>
    %135 = arith.maximumf %133, %134 : vector<256x16xf32>
    %c0_129 = arith.constant 0 : index
    %c0_130 = arith.constant 0 : index
    %136 = vector.load %arg19[%c0_129, %c0_130] : memref<520x64xf32, #tpu.memory_space<vmem>>, vector<256x16xf32>
    tpu.vector_store %arg19[%c0_129, %c0_130], %135 {strides = array<i32>} : memref<520x64xf32, #tpu.memory_space<vmem>>, vector<256x16xf32>,
    %c0_131 = arith.constant 0 : index
    %c0_132 = arith.constant 0 : index
    %137 = tpu.strided_load %arg19[%c0_131, %c0_132] {strides = array<i32: 2, 1>} : memref<520x64xf32, #tpu.memory_space<vmem>>, vector<128x16xf32>
    %c1_133 = arith.constant 1 : index
    %c0_134 = arith.constant 0 : index
    %138 = tpu.strided_load %arg19[%c1_133, %c0_134] {strides = array<i32: 2, 1>} : memref<520x64xf32, #tpu.memory_space<vmem>>, vector<128x16xf32>
    %139 = arith.maximumf %137, %138 : vector<128x16xf32>
    %c0_135 = arith.constant 0 : index
    %c0_136 = arith.constant 0 : index
    %140 = vector.load %arg20[%c0_135, %c0_136] : memref<520x64xf32, #tpu.memory_space<vmem>>, vector<128x16xf32>
    tpu.vector_store %arg20[%c0_135, %c0_136], %139 {strides = array<i32>} : memref<520x64xf32, #tpu.memory_space<vmem>>, vector<128x16xf32>,
    %cst_137 = arith.constant 0.000000e+00 : f32
    %141 = vector.broadcast %cst_137 : f32 to vector<128x64xf32>
    %c0_138 = arith.constant 0 : index
    %c0_139 = arith.constant 0 : index
    %142 = vector.load %arg20[%c0_138, %c0_139] : memref<520x64xf32, #tpu.memory_space<vmem>>, vector<128x16xf32>
    %143 = arith.truncf %142 : vector<128x16xf32> to vector<128x16xbf16>
    %c0_140 = arith.constant 0 : index
    %c0_141 = arith.constant 0 : index
    %c0_142 = arith.constant 0 : index
    %144 = vector.load %arg8[%c0_140, %c0_141, %c0_142] : memref<3x16x64xbf16, #tpu.memory_space<vmem>>, vector<1x16x64xbf16>
    %145 = vector.shape_cast %144 : vector<1x16x64xbf16> to vector<16x64xbf16>
    %cst_143 = arith.constant dense<0.000000e+00> : vector<128x64xf32>
    %146 = tpu.matmul %143, %145, %cst_143 {dimension_numbers = #tpu.dot_dimension_numbers<[1], [0], [0], [1], [0, 0, 1, 1], [], []>} : vector<128x16xbf16>, vector<16x64xbf16>, vector<128x64xf32> -> vector<128x64xf32>
    %147 = arith.addf %141, %146 : vector<128x64xf32>
    %c1_144 = arith.constant 1 : index
    %c0_145 = arith.constant 0 : index
    %148 = vector.load %arg20[%c1_144, %c0_145] : memref<520x64xf32, #tpu.memory_space<vmem>>, vector<128x16xf32>
    %149 = arith.truncf %148 : vector<128x16xf32> to vector<128x16xbf16>
    %c1_146 = arith.constant 1 : index
    %c0_147 = arith.constant 0 : index
    %c0_148 = arith.constant 0 : index
    %150 = vector.load %arg8[%c1_146, %c0_147, %c0_148] : memref<3x16x64xbf16, #tpu.memory_space<vmem>>, vector<1x16x64xbf16>
    %151 = vector.shape_cast %150 : vector<1x16x64xbf16> to vector<16x64xbf16>
    %cst_149 = arith.constant dense<0.000000e+00> : vector<128x64xf32>
    %152 = tpu.matmul %149, %151, %cst_149 {dimension_numbers = #tpu.dot_dimension_numbers<[1], [0], [0], [1], [0, 0, 1, 1], [], []>} : vector<128x16xbf16>, vector<16x64xbf16>, vector<128x64xf32> -> vector<128x64xf32>
    %153 = arith.addf %147, %152 : vector<128x64xf32>
    %c2_150 = arith.constant 2 : index
    %c0_151 = arith.constant 0 : index
    %154 = vector.load %arg20[%c2_150, %c0_151] : memref<520x64xf32, #tpu.memory_space<vmem>>, vector<128x16xf32>
    %155 = arith.truncf %154 : vector<128x16xf32> to vector<128x16xbf16>
    %c2_152 = arith.constant 2 : index
    %c0_153 = arith.constant 0 : index
    %c0_154 = arith.constant 0 : index
    %156 = vector.load %arg8[%c2_152, %c0_153, %c0_154] : memref<3x16x64xbf16, #tpu.memory_space<vmem>>, vector<1x16x64xbf16>
    %157 = vector.shape_cast %156 : vector<1x16x64xbf16> to vector<16x64xbf16>
    %cst_155 = arith.constant dense<0.000000e+00> : vector<128x64xf32>
    %158 = tpu.matmul %155, %157, %cst_155 {dimension_numbers = #tpu.dot_dimension_numbers<[1], [0], [0], [1], [0, 0, 1, 1], [], []>} : vector<128x16xbf16>, vector<16x64xbf16>, vector<128x64xf32> -> vector<128x64xf32>
    %159 = arith.addf %153, %158 : vector<128x64xf32>
    %c0_156 = arith.constant 0 : index
    %c0_157 = arith.constant 0 : index
    %160 = vector.load %arg9[%c0_156, %c0_157] : memref<1x64xf32, #tpu.memory_space<vmem>>, vector<1x64xf32>
    %161 = vector.broadcast %160 : vector<1x64xf32> to vector<128x64xf32>
    %162 = arith.addf %159, %161 : vector<128x64xf32>
    %cst_158 = arith.constant 0.000000e+00 : f32
    %163 = vector.broadcast %cst_158 : f32 to vector<128x64xf32>
    %164 = arith.maximumf %162, %163 : vector<128x64xf32>
    %c0_159 = arith.constant 0 : index
    %c0_160 = arith.constant 0 : index
    %165 = vector.load %arg19[%c0_159, %c0_160] : memref<520x64xf32, #tpu.memory_space<vmem>>, vector<128x64xf32>
    tpu.vector_store %arg19[%c0_159, %c0_160], %164 {strides = array<i32>} : memref<520x64xf32, #tpu.memory_space<vmem>>, vector<128x64xf32>,
    %cst_161 = arith.constant 0.000000e+00 : f32
    %166 = vector.broadcast %cst_161 : f32 to vector<128x64xf32>
    %c0_162 = arith.constant 0 : index
    %c0_163 = arith.constant 0 : index
    %167 = vector.load %arg19[%c0_162, %c0_163] : memref<520x64xf32, #tpu.memory_space<vmem>>, vector<128x64xf32>
    %168 = arith.truncf %167 : vector<128x64xf32> to vector<128x64xbf16>
    %c0_164 = arith.constant 0 : index
    %c0_165 = arith.constant 0 : index
    %c0_166 = arith.constant 0 : index
    %169 = vector.load %arg10[%c0_164, %c0_165, %c0_166] : memref<3x64x64xbf16, #tpu.memory_space<vmem>>, vector<1x64x64xbf16>
    %170 = vector.shape_cast %169 : vector<1x64x64xbf16> to vector<64x64xbf16>
    %cst_167 = arith.constant dense<0.000000e+00> : vector<128x64xf32>
    %171 = tpu.matmul %168, %170, %cst_167 {dimension_numbers = #tpu.dot_dimension_numbers<[1], [0], [0], [1], [0, 0, 1, 1], [], []>} : vector<128x64xbf16>, vector<64x64xbf16>, vector<128x64xf32> -> vector<128x64xf32>
    %172 = arith.addf %166, %171 : vector<128x64xf32>
    %c1_168 = arith.constant 1 : index
    %c0_169 = arith.constant 0 : index
    %173 = vector.load %arg19[%c1_168, %c0_169] : memref<520x64xf32, #tpu.memory_space<vmem>>, vector<128x64xf32>
    %174 = arith.truncf %173 : vector<128x64xf32> to vector<128x64xbf16>
    %c1_170 = arith.constant 1 : index
    %c0_171 = arith.constant 0 : index
    %c0_172 = arith.constant 0 : index
    %175 = vector.load %arg10[%c1_170, %c0_171, %c0_172] : memref<3x64x64xbf16, #tpu.memory_space<vmem>>, vector<1x64x64xbf16>
    %176 = vector.shape_cast %175 : vector<1x64x64xbf16> to vector<64x64xbf16>
    %cst_173 = arith.constant dense<0.000000e+00> : vector<128x64xf32>
    %177 = tpu.matmul %174, %176, %cst_173 {dimension_numbers = #tpu.dot_dimension_numbers<[1], [0], [0], [1], [0, 0, 1, 1], [], []>} : vector<128x64xbf16>, vector<64x64xbf16>, vector<128x64xf32> -> vector<128x64xf32>
    %178 = arith.addf %172, %177 : vector<128x64xf32>
    %c2_174 = arith.constant 2 : index
    %c0_175 = arith.constant 0 : index
    %179 = vector.load %arg19[%c2_174, %c0_175] : memref<520x64xf32, #tpu.memory_space<vmem>>, vector<128x64xf32>
    %180 = arith.truncf %179 : vector<128x64xf32> to vector<128x64xbf16>
    %c2_176 = arith.constant 2 : index
    %c0_177 = arith.constant 0 : index
    %c0_178 = arith.constant 0 : index
    %181 = vector.load %arg10[%c2_176, %c0_177, %c0_178] : memref<3x64x64xbf16, #tpu.memory_space<vmem>>, vector<1x64x64xbf16>
    %182 = vector.shape_cast %181 : vector<1x64x64xbf16> to vector<64x64xbf16>
    %cst_179 = arith.constant dense<0.000000e+00> : vector<128x64xf32>
    %183 = tpu.matmul %180, %182, %cst_179 {dimension_numbers = #tpu.dot_dimension_numbers<[1], [0], [0], [1], [0, 0, 1, 1], [], []>} : vector<128x64xbf16>, vector<64x64xbf16>, vector<128x64xf32> -> vector<128x64xf32>
    %184 = arith.addf %178, %183 : vector<128x64xf32>
    %c0_180 = arith.constant 0 : index
    %c0_181 = arith.constant 0 : index
    %185 = vector.load %arg11[%c0_180, %c0_181] : memref<1x64xf32, #tpu.memory_space<vmem>>, vector<1x64xf32>
    %186 = vector.broadcast %185 : vector<1x64xf32> to vector<128x64xf32>
    %187 = arith.addf %184, %186 : vector<128x64xf32>
    %cst_182 = arith.constant 0.000000e+00 : f32
    %188 = vector.broadcast %cst_182 : f32 to vector<128x64xf32>
    %189 = arith.maximumf %187, %188 : vector<128x64xf32>
    %c0_183 = arith.constant 0 : index
    %c0_184 = arith.constant 0 : index
    %190 = vector.load %arg20[%c0_183, %c0_184] : memref<520x64xf32, #tpu.memory_space<vmem>>, vector<128x64xf32>
    tpu.vector_store %arg20[%c0_183, %c0_184], %189 {strides = array<i32>} : memref<520x64xf32, #tpu.memory_space<vmem>>, vector<128x64xf32>,
    %c0_185 = arith.constant 0 : index
    %c0_186 = arith.constant 0 : index
    %191 = tpu.strided_load %arg20[%c0_185, %c0_186] {strides = array<i32: 2, 1>} : memref<520x64xf32, #tpu.memory_space<vmem>>, vector<64x64xf32>
    %c1_187 = arith.constant 1 : index
    %c0_188 = arith.constant 0 : index
    %192 = tpu.strided_load %arg20[%c1_187, %c0_188] {strides = array<i32: 2, 1>} : memref<520x64xf32, #tpu.memory_space<vmem>>, vector<64x64xf32>
    %193 = arith.maximumf %191, %192 : vector<64x64xf32>
    %c0_189 = arith.constant 0 : index
    %c0_190 = arith.constant 0 : index
    %194 = vector.load %arg19[%c0_189, %c0_190] : memref<520x64xf32, #tpu.memory_space<vmem>>, vector<64x64xf32>
    tpu.vector_store %arg19[%c0_189, %c0_190], %193 {strides = array<i32>} : memref<520x64xf32, #tpu.memory_space<vmem>>, vector<64x64xf32>,
    %cst_191 = arith.constant 0.000000e+00 : f32
    %195 = vector.broadcast %cst_191 : f32 to vector<8x64xf32>
    %c0_192 = arith.constant 0 : index
    %c0_193 = arith.constant 0 : index
    %196 = tpu.strided_load %arg19[%c0_192, %c0_193] {strides = array<i32: 8, 1>} : memref<520x64xf32, #tpu.memory_space<vmem>>, vector<8x64xf32>
    %197 = arith.truncf %196 : vector<8x64xf32> to vector<8x64xbf16>
    %c0_194 = arith.constant 0 : index
    %c0_195 = arith.constant 0 : index
    %c0_196 = arith.constant 0 : index
    %198 = vector.load %arg12[%c0_194, %c0_195, %c0_196] : memref<4x64x64xbf16, #tpu.memory_space<vmem>>, vector<1x64x64xbf16>
    %199 = vector.shape_cast %198 : vector<1x64x64xbf16> to vector<64x64xbf16>
    %cst_197 = arith.constant dense<0.000000e+00> : vector<8x64xf32>
    %200 = tpu.matmul %197, %199, %cst_197 {dimension_numbers = #tpu.dot_dimension_numbers<[1], [0], [0], [1], [0, 0, 1, 1], [], []>} : vector<8x64xbf16>, vector<64x64xbf16>, vector<8x64xf32> -> vector<8x64xf32>
    %201 = arith.addf %195, %200 : vector<8x64xf32>
    %c1_198 = arith.constant 1 : index
    %c0_199 = arith.constant 0 : index
    %202 = tpu.strided_load %arg19[%c1_198, %c0_199] {strides = array<i32: 8, 1>} : memref<520x64xf32, #tpu.memory_space<vmem>>, vector<8x64xf32>
    %203 = arith.truncf %202 : vector<8x64xf32> to vector<8x64xbf16>
    %c1_200 = arith.constant 1 : index
    %c0_201 = arith.constant 0 : index
    %c0_202 = arith.constant 0 : index
    %204 = vector.load %arg12[%c1_200, %c0_201, %c0_202] : memref<4x64x64xbf16, #tpu.memory_space<vmem>>, vector<1x64x64xbf16>
    %205 = vector.shape_cast %204 : vector<1x64x64xbf16> to vector<64x64xbf16>
    %cst_203 = arith.constant dense<0.000000e+00> : vector<8x64xf32>
    %206 = tpu.matmul %203, %205, %cst_203 {dimension_numbers = #tpu.dot_dimension_numbers<[1], [0], [0], [1], [0, 0, 1, 1], [], []>} : vector<8x64xbf16>, vector<64x64xbf16>, vector<8x64xf32> -> vector<8x64xf32>
    %207 = arith.addf %201, %206 : vector<8x64xf32>
    %c2_204 = arith.constant 2 : index
    %c0_205 = arith.constant 0 : index
    %208 = tpu.strided_load %arg19[%c2_204, %c0_205] {strides = array<i32: 8, 1>} : memref<520x64xf32, #tpu.memory_space<vmem>>, vector<8x64xf32>
    %209 = arith.truncf %208 : vector<8x64xf32> to vector<8x64xbf16>
    %c2_206 = arith.constant 2 : index
    %c0_207 = arith.constant 0 : index
    %c0_208 = arith.constant 0 : index
    %210 = vector.load %arg12[%c2_206, %c0_207, %c0_208] : memref<4x64x64xbf16, #tpu.memory_space<vmem>>, vector<1x64x64xbf16>
    %211 = vector.shape_cast %210 : vector<1x64x64xbf16> to vector<64x64xbf16>
    %cst_209 = arith.constant dense<0.000000e+00> : vector<8x64xf32>
    %212 = tpu.matmul %209, %211, %cst_209 {dimension_numbers = #tpu.dot_dimension_numbers<[1], [0], [0], [1], [0, 0, 1, 1], [], []>} : vector<8x64xbf16>, vector<64x64xbf16>, vector<8x64xf32> -> vector<8x64xf32>
    %213 = arith.addf %207, %212 : vector<8x64xf32>
    %c3_210 = arith.constant 3 : index
    %c0_211 = arith.constant 0 : index
    %214 = tpu.strided_load %arg19[%c3_210, %c0_211] {strides = array<i32: 8, 1>} : memref<520x64xf32, #tpu.memory_space<vmem>>, vector<8x64xf32>
    %215 = arith.truncf %214 : vector<8x64xf32> to vector<8x64xbf16>
    %c3_212 = arith.constant 3 : index
    %c0_213 = arith.constant 0 : index
    %c0_214 = arith.constant 0 : index
    %216 = vector.load %arg12[%c3_212, %c0_213, %c0_214] : memref<4x64x64xbf16, #tpu.memory_space<vmem>>, vector<1x64x64xbf16>
    %217 = vector.shape_cast %216 : vector<1x64x64xbf16> to vector<64x64xbf16>
    %cst_215 = arith.constant dense<0.000000e+00> : vector<8x64xf32>
    %218 = tpu.matmul %215, %217, %cst_215 {dimension_numbers = #tpu.dot_dimension_numbers<[1], [0], [0], [1], [0, 0, 1, 1], [], []>} : vector<8x64xbf16>, vector<64x64xbf16>, vector<8x64xf32> -> vector<8x64xf32>
    %219 = arith.addf %213, %218 : vector<8x64xf32>
    %c0_216 = arith.constant 0 : index
    %c0_217 = arith.constant 0 : index
    %220 = vector.load %arg13[%c0_216, %c0_217] : memref<1x64xf32, #tpu.memory_space<vmem>>, vector<1x64xf32>
    %221 = vector.broadcast %220 : vector<1x64xf32> to vector<8x64xf32>
    %222 = arith.addf %219, %221 : vector<8x64xf32>
    %cst_218 = arith.constant 0.000000e+00 : f32
    %223 = vector.broadcast %cst_218 : f32 to vector<8x64xf32>
    %224 = arith.maximumf %222, %223 : vector<8x64xf32>
    %cst_219 = arith.constant 0.000000e+00 : f32
    %225 = vector.broadcast %cst_219 : f32 to vector<10x64xf32>
    %c0_220 = arith.constant 0 : index
    %c0_221 = arith.constant 0 : index
    %226 = vector.load %arg21[%c0_220, %c0_221] : memref<10x64xf32, #tpu.memory_space<vmem>>, vector<10x64xf32>
    tpu.vector_store %arg21[%c0_220, %c0_221], %225 {strides = array<i32>} : memref<10x64xf32, #tpu.memory_space<vmem>>, vector<10x64xf32>,
    %c1_222 = arith.constant 1 : index
    %c0_223 = arith.constant 0 : index
    %227 = vector.load %arg21[%c1_222, %c0_223] : memref<10x64xf32, #tpu.memory_space<vmem>>, vector<8x64xf32>
    tpu.vector_store %arg21[%c1_222, %c0_223], %224 {strides = array<i32>} : memref<10x64xf32, #tpu.memory_space<vmem>>, vector<8x64xf32>,
    %cst_224 = arith.constant 0.000000e+00 : f32
    %228 = vector.broadcast %cst_224 : f32 to vector<8x64xf32>
    %c0_225 = arith.constant 0 : index
    %c0_226 = arith.constant 0 : index
    %229 = vector.load %arg21[%c0_225, %c0_226] : memref<10x64xf32, #tpu.memory_space<vmem>>, vector<8x64xf32>
    %230 = arith.truncf %229 : vector<8x64xf32> to vector<8x64xbf16>
    %c0_227 = arith.constant 0 : index
    %c0_228 = arith.constant 0 : index
    %c0_229 = arith.constant 0 : index
    %231 = vector.load %arg14[%c0_227, %c0_228, %c0_229] : memref<3x64x64xbf16, #tpu.memory_space<vmem>>, vector<1x64x64xbf16>
    %232 = vector.shape_cast %231 : vector<1x64x64xbf16> to vector<64x64xbf16>
    %cst_230 = arith.constant dense<0.000000e+00> : vector<8x64xf32>
    %233 = tpu.matmul %230, %232, %cst_230 {dimension_numbers = #tpu.dot_dimension_numbers<[1], [0], [0], [1], [0, 0, 1, 1], [], []>} : vector<8x64xbf16>, vector<64x64xbf16>, vector<8x64xf32> -> vector<8x64xf32>
    %234 = arith.addf %228, %233 : vector<8x64xf32>
    %c1_231 = arith.constant 1 : index
    %c0_232 = arith.constant 0 : index
    %235 = vector.load %arg21[%c1_231, %c0_232] : memref<10x64xf32, #tpu.memory_space<vmem>>, vector<8x64xf32>
    %236 = arith.truncf %235 : vector<8x64xf32> to vector<8x64xbf16>
    %c1_233 = arith.constant 1 : index
    %c0_234 = arith.constant 0 : index
    %c0_235 = arith.constant 0 : index
    %237 = vector.load %arg14[%c1_233, %c0_234, %c0_235] : memref<3x64x64xbf16, #tpu.memory_space<vmem>>, vector<1x64x64xbf16>
    %238 = vector.shape_cast %237 : vector<1x64x64xbf16> to vector<64x64xbf16>
    %cst_236 = arith.constant dense<0.000000e+00> : vector<8x64xf32>
    %239 = tpu.matmul %236, %238, %cst_236 {dimension_numbers = #tpu.dot_dimension_numbers<[1], [0], [0], [1], [0, 0, 1, 1], [], []>} : vector<8x64xbf16>, vector<64x64xbf16>, vector<8x64xf32> -> vector<8x64xf32>
    %240 = arith.addf %234, %239 : vector<8x64xf32>
    %c2_237 = arith.constant 2 : index
    %c0_238 = arith.constant 0 : index
    %241 = vector.load %arg21[%c2_237, %c0_238] : memref<10x64xf32, #tpu.memory_space<vmem>>, vector<8x64xf32>
    %242 = arith.truncf %241 : vector<8x64xf32> to vector<8x64xbf16>
    %c2_239 = arith.constant 2 : index
    %c0_240 = arith.constant 0 : index
    %c0_241 = arith.constant 0 : index
    %243 = vector.load %arg14[%c2_239, %c0_240, %c0_241] : memref<3x64x64xbf16, #tpu.memory_space<vmem>>, vector<1x64x64xbf16>
    %244 = vector.shape_cast %243 : vector<1x64x64xbf16> to vector<64x64xbf16>
    %cst_242 = arith.constant dense<0.000000e+00> : vector<8x64xf32>
    %245 = tpu.matmul %242, %244, %cst_242 {dimension_numbers = #tpu.dot_dimension_numbers<[1], [0], [0], [1], [0, 0, 1, 1], [], []>} : vector<8x64xbf16>, vector<64x64xbf16>, vector<8x64xf32> -> vector<8x64xf32>
    %246 = arith.addf %240, %245 : vector<8x64xf32>
    %c0_243 = arith.constant 0 : index
    %c0_244 = arith.constant 0 : index
    %247 = vector.load %arg15[%c0_243, %c0_244] : memref<1x64xf32, #tpu.memory_space<vmem>>, vector<1x64xf32>
    %248 = vector.broadcast %247 : vector<1x64xf32> to vector<8x64xf32>
    %249 = arith.addf %246, %248 : vector<8x64xf32>
    %c1_245 = arith.constant 1 : index
    %c0_246 = arith.constant 0 : index
    %250 = vector.load %arg21[%c1_245, %c0_246] : memref<10x64xf32, #tpu.memory_space<vmem>>, vector<8x64xf32>
    tpu.vector_store %arg21[%c1_245, %c0_246], %249 {strides = array<i32>} : memref<10x64xf32, #tpu.memory_space<vmem>>, vector<8x64xf32>,
    %cst_247 = arith.constant 0.000000e+00 : f32
    %251 = vector.broadcast %cst_247 : f32 to vector<8x64xf32>
    %c0_248 = arith.constant 0 : index
    %c0_249 = arith.constant 0 : index
    %252 = vector.load %arg21[%c0_248, %c0_249] : memref<10x64xf32, #tpu.memory_space<vmem>>, vector<8x64xf32>
    %253 = arith.truncf %252 : vector<8x64xf32> to vector<8x64xbf16>
    %c0_250 = arith.constant 0 : index
    %c0_251 = arith.constant 0 : index
    %c0_252 = arith.constant 0 : index
    %254 = vector.load %arg14[%c0_250, %c0_251, %c0_252] : memref<3x64x64xbf16, #tpu.memory_space<vmem>>, vector<1x64x64xbf16>
    %255 = vector.shape_cast %254 : vector<1x64x64xbf16> to vector<64x64xbf16>
    %cst_253 = arith.constant dense<0.000000e+00> : vector<8x64xf32>
    %256 = tpu.matmul %253, %255, %cst_253 {dimension_numbers = #tpu.dot_dimension_numbers<[1], [0], [0], [1], [0, 0, 1, 1], [], []>} : vector<8x64xbf16>, vector<64x64xbf16>, vector<8x64xf32> -> vector<8x64xf32>
    %257 = arith.addf %251, %256 : vector<8x64xf32>
    %c1_254 = arith.constant 1 : index
    %c0_255 = arith.constant 0 : index
    %258 = vector.load %arg21[%c1_254, %c0_255] : memref<10x64xf32, #tpu.memory_space<vmem>>, vector<8x64xf32>
    %259 = arith.truncf %258 : vector<8x64xf32> to vector<8x64xbf16>
    %c1_256 = arith.constant 1 : index
    %c0_257 = arith.constant 0 : index
    %c0_258 = arith.constant 0 : index
    %260 = vector.load %arg14[%c1_256, %c0_257, %c0_258] : memref<3x64x64xbf16, #tpu.memory_space<vmem>>, vector<1x64x64xbf16>
    %261 = vector.shape_cast %260 : vector<1x64x64xbf16> to vector<64x64xbf16>
    %cst_259 = arith.constant dense<0.000000e+00> : vector<8x64xf32>
    %262 = tpu.matmul %259, %261, %cst_259 {dimension_numbers = #tpu.dot_dimension_numbers<[1], [0], [0], [1], [0, 0, 1, 1], [], []>} : vector<8x64xbf16>, vector<64x64xbf16>, vector<8x64xf32> -> vector<8x64xf32>
    %263 = arith.addf %257, %262 : vector<8x64xf32>
    %c2_260 = arith.constant 2 : index
    %c0_261 = arith.constant 0 : index
    %264 = vector.load %arg21[%c2_260, %c0_261] : memref<10x64xf32, #tpu.memory_space<vmem>>, vector<8x64xf32>
    %265 = arith.truncf %264 : vector<8x64xf32> to vector<8x64xbf16>
    %c2_262 = arith.constant 2 : index
    %c0_263 = arith.constant 0 : index
    %c0_264 = arith.constant 0 : index
    %266 = vector.load %arg14[%c2_262, %c0_263, %c0_264] : memref<3x64x64xbf16, #tpu.memory_space<vmem>>, vector<1x64x64xbf16>
    %267 = vector.shape_cast %266 : vector<1x64x64xbf16> to vector<64x64xbf16>
    %cst_265 = arith.constant dense<0.000000e+00> : vector<8x64xf32>
    %268 = tpu.matmul %265, %267, %cst_265 {dimension_numbers = #tpu.dot_dimension_numbers<[1], [0], [0], [1], [0, 0, 1, 1], [], []>} : vector<8x64xbf16>, vector<64x64xbf16>, vector<8x64xf32> -> vector<8x64xf32>
    %269 = arith.addf %263, %268 : vector<8x64xf32>
    %c0_266 = arith.constant 0 : index
    %c0_267 = arith.constant 0 : index
    %270 = vector.load %arg15[%c0_266, %c0_267] : memref<1x64xf32, #tpu.memory_space<vmem>>, vector<1x64xf32>
    %271 = vector.broadcast %270 : vector<1x64xf32> to vector<8x64xf32>
    %272 = arith.addf %269, %271 : vector<8x64xf32>
    %c1_268 = arith.constant 1 : index
    %c0_269 = arith.constant 0 : index
    %273 = vector.load %arg21[%c1_268, %c0_269] : memref<10x64xf32, #tpu.memory_space<vmem>>, vector<8x64xf32>
    tpu.vector_store %arg21[%c1_268, %c0_269], %272 {strides = array<i32>} : memref<10x64xf32, #tpu.memory_space<vmem>>, vector<8x64xf32>,
    %cst_270 = arith.constant 0.000000e+00 : f32
    %274 = vector.broadcast %cst_270 : f32 to vector<8x128xf32>
    %c0_271 = arith.constant 0 : index
    %c0_272 = arith.constant 0 : index
    %275 = vector.load %arg21[%c0_271, %c0_272] : memref<10x64xf32, #tpu.memory_space<vmem>>, vector<8x64xf32>
    %276 = arith.truncf %275 : vector<8x64xf32> to vector<8x64xbf16>
    %c0_273 = arith.constant 0 : index
    %c0_274 = arith.constant 0 : index
    %c0_275 = arith.constant 0 : index
    %277 = vector.load %arg16[%c0_273, %c0_274, %c0_275] : memref<3x64x128xbf16, #tpu.memory_space<vmem>>, vector<1x64x128xbf16>
    %278 = vector.shape_cast %277 : vector<1x64x128xbf16> to vector<64x128xbf16>
    %cst_276 = arith.constant dense<0.000000e+00> : vector<8x128xf32>
    %279 = tpu.matmul %276, %278, %cst_276 {dimension_numbers = #tpu.dot_dimension_numbers<[1], [0], [0], [1], [0, 0, 1, 1], [], []>} : vector<8x64xbf16>, vector<64x128xbf16>, vector<8x128xf32> -> vector<8x128xf32>
    %280 = arith.addf %274, %279 : vector<8x128xf32>
    %c1_277 = arith.constant 1 : index
    %c0_278 = arith.constant 0 : index
    %281 = vector.load %arg21[%c1_277, %c0_278] : memref<10x64xf32, #tpu.memory_space<vmem>>, vector<8x64xf32>
    %282 = arith.truncf %281 : vector<8x64xf32> to vector<8x64xbf16>
    %c1_279 = arith.constant 1 : index
    %c0_280 = arith.constant 0 : index
    %c0_281 = arith.constant 0 : index
    %283 = vector.load %arg16[%c1_279, %c0_280, %c0_281] : memref<3x64x128xbf16, #tpu.memory_space<vmem>>, vector<1x64x128xbf16>
    %284 = vector.shape_cast %283 : vector<1x64x128xbf16> to vector<64x128xbf16>
    %cst_282 = arith.constant dense<0.000000e+00> : vector<8x128xf32>
    %285 = tpu.matmul %282, %284, %cst_282 {dimension_numbers = #tpu.dot_dimension_numbers<[1], [0], [0], [1], [0, 0, 1, 1], [], []>} : vector<8x64xbf16>, vector<64x128xbf16>, vector<8x128xf32> -> vector<8x128xf32>
    %286 = arith.addf %280, %285 : vector<8x128xf32>
    %c2_283 = arith.constant 2 : index
    %c0_284 = arith.constant 0 : index
    %287 = vector.load %arg21[%c2_283, %c0_284] : memref<10x64xf32, #tpu.memory_space<vmem>>, vector<8x64xf32>
    %288 = arith.truncf %287 : vector<8x64xf32> to vector<8x64xbf16>
    %c2_285 = arith.constant 2 : index
    %c0_286 = arith.constant 0 : index
    %c0_287 = arith.constant 0 : index
    %289 = vector.load %arg16[%c2_285, %c0_286, %c0_287] : memref<3x64x128xbf16, #tpu.memory_space<vmem>>, vector<1x64x128xbf16>
    %290 = vector.shape_cast %289 : vector<1x64x128xbf16> to vector<64x128xbf16>
    %cst_288 = arith.constant dense<0.000000e+00> : vector<8x128xf32>
    %291 = tpu.matmul %288, %290, %cst_288 {dimension_numbers = #tpu.dot_dimension_numbers<[1], [0], [0], [1], [0, 0, 1, 1], [], []>} : vector<8x64xbf16>, vector<64x128xbf16>, vector<8x128xf32> -> vector<8x128xf32>
    %292 = arith.addf %286, %291 : vector<8x128xf32>
    %c0_289 = arith.constant 0 : index
    %c0_290 = arith.constant 0 : index
    %293 = vector.load %arg17[%c0_289, %c0_290] : memref<1x128xf32, #tpu.memory_space<vmem>>, vector<1x128xf32>
    %294 = vector.broadcast %293 : vector<1x128xf32> to vector<8x128xf32>
    %295 = arith.addf %292, %294 : vector<8x128xf32>
    %c0_291 = arith.constant 0 : index
    %c0_292 = arith.constant 0 : index
    %c0_293 = arith.constant 0 : index
    %296 = vector.load %arg18[%c0_291, %c0_292, %c0_293] : memref<1x8x128xf32, #tpu.memory_space<vmem>>, vector<1x8x128xf32>
    %297 = vector.shape_cast %296 : vector<1x8x128xf32> to vector<8x128xf32>
    %298 = vector.shape_cast %295 : vector<8x128xf32> to vector<1x8x128xf32>
    tpu.vector_store %arg18[%c0_291, %c0_292, %c0_293], %298 {strides = array<i32>} : memref<1x8x128xf32, #tpu.memory_space<vmem>>, vector<1x8x128xf32>,
    return
  }
  func.func @transform_0(%arg0: i32) -> (i32, i32, i32) {
    %c0_i32 = arith.constant 0 : i32
    %c0_i32_0 = arith.constant 0 : i32
    %c0_i32_1 = arith.constant 0 : i32
    return %arg0, %c0_i32, %c0_i32_0 : i32, i32, i32
  }
  func.func @transform_1(%arg0: i32) -> (i32, i32, i32) {
    %c0_i32 = arith.constant 0 : i32
    %c0_i32_0 = arith.constant 0 : i32
    %c0_i32_1 = arith.constant 0 : i32
    %c0_i32_2 = arith.constant 0 : i32
    return %c0_i32, %c0_i32_0, %c0_i32_1 : i32, i32, i32
  }
  func.func @transform_2(%arg0: i32) -> (i32, i32) {
    %c0_i32 = arith.constant 0 : i32
    %c0_i32_0 = arith.constant 0 : i32
    %c0_i32_1 = arith.constant 0 : i32
    return %c0_i32, %c0_i32_0 : i32, i32
  }
  func.func @transform_3(%arg0: i32) -> (i32, i32, i32) {
    %c0_i32 = arith.constant 0 : i32
    %c0_i32_0 = arith.constant 0 : i32
    %c0_i32_1 = arith.constant 0 : i32
    %c0_i32_2 = arith.constant 0 : i32
    return %c0_i32, %c0_i32_0, %c0_i32_1 : i32, i32, i32
  }
  func.func @transform_4(%arg0: i32) -> (i32, i32) {
    %c0_i32 = arith.constant 0 : i32
    %c0_i32_0 = arith.constant 0 : i32
    %c0_i32_1 = arith.constant 0 : i32
    return %c0_i32, %c0_i32_0 : i32, i32
  }
  func.func @transform_5(%arg0: i32) -> (i32, i32, i32) {
    %c0_i32 = arith.constant 0 : i32
    %c0_i32_0 = arith.constant 0 : i32
    %c0_i32_1 = arith.constant 0 : i32
    %c0_i32_2 = arith.constant 0 : i32
    return %c0_i32, %c0_i32_0, %c0_i32_1 : i32, i32, i32
  }
  func.func @transform_6(%arg0: i32) -> (i32, i32) {
    %c0_i32 = arith.constant 0 : i32
    %c0_i32_0 = arith.constant 0 : i32
    %c0_i32_1 = arith.constant 0 : i32
    return %c0_i32, %c0_i32_0 : i32, i32
  }
  func.func @transform_7(%arg0: i32) -> (i32, i32, i32) {
    %c0_i32 = arith.constant 0 : i32
    %c0_i32_0 = arith.constant 0 : i32
    %c0_i32_1 = arith.constant 0 : i32
    %c0_i32_2 = arith.constant 0 : i32
    return %c0_i32, %c0_i32_0, %c0_i32_1 : i32, i32, i32
  }
  func.func @transform_8(%arg0: i32) -> (i32, i32) {
    %c0_i32 = arith.constant 0 : i32
    %c0_i32_0 = arith.constant 0 : i32
    %c0_i32_1 = arith.constant 0 : i32
    return %c0_i32, %c0_i32_0 : i32, i32
  }
  func.func @transform_9(%arg0: i32) -> (i32, i32, i32) {
    %c0_i32 = arith.constant 0 : i32
    %c0_i32_0 = arith.constant 0 : i32
    %c0_i32_1 = arith.constant 0 : i32
    %c0_i32_2 = arith.constant 0 : i32
    return %c0_i32, %c0_i32_0, %c0_i32_1 : i32, i32, i32
  }
  func.func @transform_10(%arg0: i32) -> (i32, i32) {
    %c0_i32 = arith.constant 0 : i32
    %c0_i32_0 = arith.constant 0 : i32
    %c0_i32_1 = arith.constant 0 : i32
    return %c0_i32, %c0_i32_0 : i32, i32
  }
  func.func @transform_11(%arg0: i32) -> (i32, i32, i32) {
    %c0_i32 = arith.constant 0 : i32
    %c0_i32_0 = arith.constant 0 : i32
    %c0_i32_1 = arith.constant 0 : i32
    %c0_i32_2 = arith.constant 0 : i32
    return %c0_i32, %c0_i32_0, %c0_i32_1 : i32, i32, i32
  }
  func.func @transform_12(%arg0: i32) -> (i32, i32) {
    %c0_i32 = arith.constant 0 : i32
    %c0_i32_0 = arith.constant 0 : i32
    %c0_i32_1 = arith.constant 0 : i32
    return %c0_i32, %c0_i32_0 : i32, i32
  }
  func.func @transform_13(%arg0: i32) -> (i32, i32, i32) {
    %c0_i32 = arith.constant 0 : i32
    %c0_i32_0 = arith.constant 0 : i32
    %c0_i32_1 = arith.constant 0 : i32
    %c0_i32_2 = arith.constant 0 : i32
    return %c0_i32, %c0_i32_0, %c0_i32_1 : i32, i32, i32
  }
  func.func @transform_14(%arg0: i32) -> (i32, i32) {
    %c0_i32 = arith.constant 0 : i32
    %c0_i32_0 = arith.constant 0 : i32
    %c0_i32_1 = arith.constant 0 : i32
    return %c0_i32, %c0_i32_0 : i32, i32
  }
  func.func @transform_15(%arg0: i32) -> (i32, i32, i32) {
    %c0_i32 = arith.constant 0 : i32
    %c0_i32_0 = arith.constant 0 : i32
    %c0_i32_1 = arith.constant 0 : i32
    %c0_i32_2 = arith.constant 0 : i32
    return %c0_i32, %c0_i32_0, %c0_i32_1 : i32, i32, i32
  }
  func.func @transform_16(%arg0: i32) -> (i32, i32) {
    %c0_i32 = arith.constant 0 : i32
    %c0_i32_0 = arith.constant 0 : i32
    %c0_i32_1 = arith.constant 0 : i32
    return %c0_i32, %c0_i32_0 : i32, i32
  }
  func.func @transform_17(%arg0: i32) -> (i32, i32, i32) {
    %c0_i32 = arith.constant 0 : i32
    %c0_i32_0 = arith.constant 0 : i32
    %c0_i32_1 = arith.constant 0 : i32
    return %arg0, %c0_i32, %c0_i32_0 : i32, i32, i32
  }
}

</mosaic_0001>

<llo_original>
// kernel: pt5_forward.1
$region0: #{pt5_forward.1}
  #allocation0 [shape = 'u32[]', space=smem, size = 0x4, offset = 0x4, fixed_abs, tag = 'smem constant byte address 0x4 - core index']
  #allocation1 [shape = 'u32[144,128]{1,0:T(1,128)}', space=vmem, size = 0x12000, scoped, tag = 'internal scratch']
  #allocation2 [shape = 'f32[520,64]{1,0:T(8,128)}', space=vmem, size = 0x41000, scoped, tag = 'scratch operand']
  #allocation3 [shape = 'f32[520,64]{1,0:T(8,128)}', space=vmem, size = 0x41000, scoped, tag = 'scratch operand']
  #allocation4 [shape = 'f32[10,64]{1,0:T(8,128)}', space=vmem, size = 0x2000, scoped, tag = 'scratch operand']
  %s0 = inlined_call_operand.vmem [shape: f32[2,520,2], index: 0, kind: input, shape index: {}]
  %s1 = inlined_call_operand.vmem [shape: bf16[5,2,8], index: 1, kind: input, shape index: {}]
  %s2 = inlined_call_operand.vmem [shape: f32[1,8], index: 2, kind: input, shape index: {}]
  %s3 = inlined_call_operand.vmem [shape: bf16[5,8,16], index: 3, kind: input, shape index: {}]
  %s4 = inlined_call_operand.vmem [shape: f32[1,16], index: 4, kind: input, shape index: {}]
  %s5 = inlined_call_operand.vmem [shape: bf16[3,16,16], index: 5, kind: input, shape index: {}]
  %s6 = inlined_call_operand.vmem [shape: f32[1,16], index: 6, kind: input, shape index: {}]
  %s7 = inlined_call_operand.vmem [shape: bf16[3,16,64], index: 7, kind: input, shape index: {}]
  %s8 = inlined_call_operand.vmem [shape: f32[1,64], index: 8, kind: input, shape index: {}]
  %s9 = inlined_call_operand.vmem [shape: bf16[3,64,64], index: 9, kind: input, shape index: {}]
  %s10 = inlined_call_operand.vmem [shape: f32[1,64], index: 10, kind: input, shape index: {}]
  %s11 = inlined_call_operand.vmem [shape: bf16[4,64,64], index: 11, kind: input, shape index: {}]
  %s12 = inlined_call_operand.vmem [shape: f32[1,64], index: 12, kind: input, shape index: {}]
  %s13 = inlined_call_operand.vmem [shape: bf16[3,64,64], index: 13, kind: input, shape index: {}]
  %s14 = inlined_call_operand.vmem [shape: f32[1,64], index: 14, kind: input, shape index: {}]
  %s15 = inlined_call_operand.vmem [shape: bf16[3,64,128], index: 15, kind: input, shape index: {}]
  %s16 = inlined_call_operand.vmem [shape: f32[1,128], index: 16, kind: input, shape index: {}]
  %s17 = inlined_call_operand.vmem [shape: f32[2,8,128], index: 17, kind: output, shape index: {}]
  %s18 = sld [smem:[#allocation0]]
  $region101: #{pt5_forward.1} parent=0
    _
  %s20 = ssub.s32 1, %s18
  %s21 = scalar_select 0, %s20, %s18
  loop: start=0, step=1, limit=4
  $region2: #{pt5_forward.1} parent=0 // loop_pre_header
    _
  $region3: #{pt5_forward.1} parent=0 // loop_header
    %s23 = sphi 0, %s27
    %p24 = scmp.ge.s32.totalorder %s23, 4
    %s33 = sphi 0, %s35
    %s36 = sphi 0, %s33
    %s37 = sphi 0, %s36
    %s53 = sphi 0, %s37
    %s57 = sphi 0, %s57
    %s59 = sphi 0, %s57
    %s60 = sphi 0, %s59
    %s74 = sphi 0, %s60
    %s78 = sphi 0, %s78
    %s80 = sphi 0, %s78
    %s81 = sphi 0, %s80
    %s95 = sphi 0, %s81
    %s99 = sphi 0, %s99
    %s101 = sphi 0, %s99
    %s102 = sphi 0, %s101
    %s116 = sphi 0, %s102
    %s120 = sphi 0, %s120
    %s122 = sphi 0, %s120
    %s123 = sphi 0, %s122
    %s137 = sphi 0, %s123
    %s141 = sphi 0, %s141
    %s143 = sphi 0, %s141
    %s144 = sphi 0, %s143
    %s158 = sphi 0, %s144
    %s162 = sphi 0, %s162
    %s164 = sphi 0, %s162
    %s165 = sphi 0, %s164
    %s179 = sphi 0, %s165
    %s183 = sphi 0, %s183
    %s185 = sphi 0, %s183
    %s186 = sphi 0, %s185
    %s200 = sphi 0, %s186
    %s204 = sphi 0, %s204
    %s206 = sphi 0, %s204
    %s207 = sphi 0, %s206
    %s221 = sphi 0, %s207
    %s225 = sphi 0, %s225
    %s227 = sphi 0, %s225
    %s228 = sphi 0, %s227
    %s242 = sphi 0, %s228
    %s246 = sphi 0, %s246
    %s248 = sphi 0, %s246
    %s249 = sphi 0, %s248
    %s263 = sphi 0, %s249
    %s267 = sphi 0, %s267
    %s269 = sphi 0, %s267
    %s270 = sphi 0, %s269
    %s284 = sphi 0, %s270
    %s288 = sphi 0, %s288
    %s290 = sphi 0, %s288
    %s291 = sphi 0, %s290
    %s305 = sphi 0, %s291
    %s309 = sphi 0, %s309
    %s311 = sphi 0, %s309
    %s312 = sphi 0, %s311
    %s326 = sphi 0, %s312
    %s330 = sphi 0, %s330
    %s332 = sphi 0, %s330
    %s333 = sphi 0, %s332
    %s347 = sphi 0, %s333
    %s351 = sphi 0, %s351
    %s353 = sphi 0, %s351
    %s354 = sphi 0, %s353
    %s368 = sphi 0, %s354
    %s372 = sphi 0, %s372
    %s374 = sphi 0, %s372
    %s375 = sphi 0, %s374
    %s389 = sphi 0, %s375
    %s395 = sphi 0, %s397
    %s398 = sphi 0, %s395
    %s399 = sphi 0, %s398
    %s415 = sphi 0, %s399
  $region4: #{pt5_forward.1} parent=0 // loop_header_branch
    %26 = sbr.rel (%p24) target = $region8
  $region5: #{pt5_forward.1} parent=0 // loop_body
    %s28 = ssub.s32 %s23, 1
    %s29 = ssub.s32 %s23, 2
    %s30 = sadd.s32 %s23, 1
    %s31 = ssub.s32 %s23, %s30
    %p32 = scmp.eq.s32.totalorder %s31, 0
    %s34 = sadd.s32 %s33, 1
    %s35 = scalar_select %p32, %s33, %s34
    %p38 = pneg %p32
    %p39 = scmp.eq.s32.totalorder %s23, 1
    %p40 = por %p38, %p39
    %p41 = scmp.ne.s32.totalorder %s33, %s36
    %p42 = scmp.eq.s32.totalorder %s23, 0
    %p43 = por %p41, %p42
    %p44 = scmp.ne.s32.totalorder %s33, %s36
    %p45 = scmp.eq.s32.totalorder %s28, 1
    %p46 = por %p44, %p45
    %p47 = scmp.ne.s32.totalorder %s36, %s37
    %p48 = scmp.eq.s32.totalorder %s28, 0
    %p49 = por %p47, %p48
    %p50 = scmp.ne.s32.totalorder %s36, %s37
    %p51 = scmp.eq.s32.totalorder %s29, 1
    %p52 = por %p50, %p51
    %p54 = scmp.ne.s32.totalorder %s37, %s53
    %p55 = scmp.eq.s32.totalorder %s29, 0
    %p56 = por %p54, %p55
    %s58 = sadd.s32 %s57, 1
    %p61 = scmp.eq.s32.totalorder %s23, 1
    %p62 = scmp.ne.s32.totalorder %s57, %s59
    %p63 = scmp.eq.s32.totalorder %s23, 0
    %p64 = por %p62, %p63
    %p65 = scmp.ne.s32.totalorder %s57, %s59
    %p66 = scmp.eq.s32.totalorder %s28, 1
    %p67 = por %p65, %p66
    %p68 = scmp.ne.s32.totalorder %s59, %s60
    %p69 = scmp.eq.s32.totalorder %s28, 0
    %p70 = por %p68, %p69
    %p71 = scmp.ne.s32.totalorder %s59, %s60
    %p72 = scmp.eq.s32.totalorder %s29, 1
    %p73 = por %p71, %p72
    %p75 = scmp.ne.s32.totalorder %s60, %s74
    %p76 = scmp.eq.s32.totalorder %s29, 0
    %p77 = por %p75, %p76
    %s79 = sadd.s32 %s78, 1
    %p82 = scmp.eq.s32.totalorder %s23, 1
    %p83 = scmp.ne.s32.totalorder %s78, %s80
    %p84 = scmp.eq.s32.totalorder %s23, 0
    %p85 = por %p83, %p84
    %p86 = scmp.ne.s32.totalorder %s78, %s80
    %p87 = scmp.eq.s32.totalorder %s28, 1
    %p88 = por %p86, %p87
    %p89 = scmp.ne.s32.totalorder %s80, %s81
    %p90 = scmp.eq.s32.totalorder %s28, 0
    %p91 = por %p89, %p90
    %p92 = scmp.ne.s32.totalorder %s80, %s81
    %p93 = scmp.eq.s32.totalorder %s29, 1
    %p94 = por %p92, %p93
    %p96 = scmp.ne.s32.totalorder %s81, %s95
    %p97 = scmp.eq.s32.totalorder %s29, 0
    %p98 = por %p96, %p97
    %s100 = sadd.s32 %s99, 1
    %p103 = scmp.eq.s32.totalorder %s23, 1
    %p104 = scmp.ne.s32.totalorder %s99, %s101
    %p105 = scmp.eq.s32.totalorder %s23, 0
    %p106 = por %p104, %p105
    %p107 = scmp.ne.s32.totalorder %s99, %s101
    %p108 = scmp.eq.s32.totalorder %s28, 1
    %p109 = por %p107, %p108
    %p110 = scmp.ne.s32.totalorder %s101, %s102
    %p111 = scmp.eq.s32.totalorder %s28, 0
    %p112 = por %p110, %p111
    %p113 = scmp.ne.s32.totalorder %s101, %s102
    %p114 = scmp.eq.s32.totalorder %s29, 1
    %p115 = por %p113, %p114
    %p117 = scmp.ne.s32.totalorder %s102, %s116
    %p118 = scmp.eq.s32.totalorder %s29, 0
    %p119 = por %p117, %p118
    %s121 = sadd.s32 %s120, 1
    %p124 = scmp.eq.s32.totalorder %s23, 1
    %p125 = scmp.ne.s32.totalorder %s120, %s122
    %p126 = scmp.eq.s32.totalorder %s23, 0
    %p127 = por %p125, %p126
    %p128 = scmp.ne.s32.totalorder %s120, %s122
    %p129 = scmp.eq.s32.totalorder %s28, 1
    %p130 = por %p128, %p129
    %p131 = scmp.ne.s32.totalorder %s122, %s123
    %p132 = scmp.eq.s32.totalorder %s28, 0
    %p133 = por %p131, %p132
    %p134 = scmp.ne.s32.totalorder %s122, %s123
    %p135 = scmp.eq.s32.totalorder %s29, 1
    %p136 = por %p134, %p135
    %p138 = scmp.ne.s32.totalorder %s123, %s137
    %p139 = scmp.eq.s32.totalorder %s29, 0
    %p140 = por %p138, %p139
    %s142 = sadd.s32 %s141, 1
    %p145 = scmp.eq.s32.totalorder %s23, 1
    %p146 = scmp.ne.s32.totalorder %s141, %s143
    %p147 = scmp.eq.s32.totalorder %s23, 0
    %p148 = por %p146, %p147
    %p149 = scmp.ne.s32.totalorder %s141, %s143
    %p150 = scmp.eq.s32.totalorder %s28, 1
    %p151 = por %p149, %p150
    %p152 = scmp.ne.s32.totalorder %s143, %s144
    %p153 = scmp.eq.s32.totalorder %s28, 0
    %p154 = por %p152, %p153
    %p155 = scmp.ne.s32.totalorder %s143, %s144
    %p156 = scmp.eq.s32.totalorder %s29, 1
    %p157 = por %p155, %p156
    %p159 = scmp.ne.s32.totalorder %s144, %s158
    %p160 = scmp.eq.s32.totalorder %s29, 0
    %p161 = por %p159, %p160
    %s163 = sadd.s32 %s162, 1
    %p166 = scmp.eq.s32.totalorder %s23, 1
    %p167 = scmp.ne.s32.totalorder %s162, %s164
    %p168 = scmp.eq.s32.totalorder %s23, 0
    %p169 = por %p167, %p168
    %p170 = scmp.ne.s32.totalorder %s162, %s164
    %p171 = scmp.eq.s32.totalorder %s28, 1
    %p172 = por %p170, %p171
    %p173 = scmp.ne.s32.totalorder %s164, %s165
    %p174 = scmp.eq.s32.totalorder %s28, 0
    %p175 = por %p173, %p174
    %p176 = scmp.ne.s32.totalorder %s164, %s165
    %p177 = scmp.eq.s32.totalorder %s29, 1
    %p178 = por %p176, %p177
    %p180 = scmp.ne.s32.totalorder %s165, %s179
    %p181 = scmp.eq.s32.totalorder %s29, 0
    %p182 = por %p180, %p181
    %s184 = sadd.s32 %s183, 1
    %p187 = scmp.eq.s32.totalorder %s23, 1
    %p188 = scmp.ne.s32.totalorder %s183, %s185
    %p189 = scmp.eq.s32.totalorder %s23, 0
    %p190 = por %p188, %p189
    %p191 = scmp.ne.s32.totalorder %s183, %s185
    %p192 = scmp.eq.s32.totalorder %s28, 1
    %p193 = por %p191, %p192
    %p194 = scmp.ne.s32.totalorder %s185, %s186
    %p195 = scmp.eq.s32.totalorder %s28, 0
    %p196 = por %p194, %p195
    %p197 = scmp.ne.s32.totalorder %s185, %s186
    %p198 = scmp.eq.s32.totalorder %s29, 1
    %p199 = por %p197, %p198
    %p201 = scmp.ne.s32.totalorder %s186, %s200
    %p202 = scmp.eq.s32.totalorder %s29, 0
    %p203 = por %p201, %p202
    %s205 = sadd.s32 %s204, 1
    %p208 = scmp.eq.s32.totalorder %s23, 1
    %p209 = scmp.ne.s32.totalorder %s204, %s206
    %p210 = scmp.eq.s32.totalorder %s23, 0
    %p211 = por %p209, %p210
    %p212 = scmp.ne.s32.totalorder %s204, %s206
    %p213 = scmp.eq.s32.totalorder %s28, 1
    %p214 = por %p212, %p213
    %p215 = scmp.ne.s32.totalorder %s206, %s207
    %p216 = scmp.eq.s32.totalorder %s28, 0
    %p217 = por %p215, %p216
    %p218 = scmp.ne.s32.totalorder %s206, %s207
    %p219 = scmp.eq.s32.totalorder %s29, 1
    %p220 = por %p218, %p219
    %p222 = scmp.ne.s32.totalorder %s207, %s221
    %p223 = scmp.eq.s32.totalorder %s29, 0
    %p224 = por %p222, %p223
    %s226 = sadd.s32 %s225, 1
    %p229 = scmp.eq.s32.totalorder %s23, 1
    %p230 = scmp.ne.s32.totalorder %s225, %s227
    %p231 = scmp.eq.s32.totalorder %s23, 0
    %p232 = por %p230, %p231
    %p233 = scmp.ne.s32.totalorder %s225, %s227
    %p234 = scmp.eq.s32.totalorder %s28, 1
    %p235 = por %p233, %p234
    %p236 = scmp.ne.s32.totalorder %s227, %s228
    %p237 = scmp.eq.s32.totalorder %s28, 0
    %p238 = por %p236, %p237
    %p239 = scmp.ne.s32.totalorder %s227, %s228
    %p240 = scmp.eq.s32.totalorder %s29, 1
    %p241 = por %p239, %p240
    %p243 = scmp.ne.s32.totalorder %s228, %s242
    %p244 = scmp.eq.s32.totalorder %s29, 0
    %p245 = por %p243, %p244
    %s247 = sadd.s32 %s246, 1
    %p250 = scmp.eq.s32.totalorder %s23, 1
    %p251 = scmp.ne.s32.totalorder %s246, %s248
    %p252 = scmp.eq.s32.totalorder %s23, 0
    %p253 = por %p251, %p252
    %p254 = scmp.ne.s32.totalorder %s246, %s248
    %p255 = scmp.eq.s32.totalorder %s28, 1
    %p256 = por %p254, %p255
    %p257 = scmp.ne.s32.totalorder %s248, %s249
    %p258 = scmp.eq.s32.totalorder %s28, 0
    %p259 = por %p257, %p258
    %p260 = scmp.ne.s32.totalorder %s248, %s249
    %p261 = scmp.eq.s32.totalorder %s29, 1
    %p262 = por %p260, %p261
    %p264 = scmp.ne.s32.totalorder %s249, %s263
    %p265 = scmp.eq.s32.totalorder %s29, 0
    %p266 = por %p264, %p265
    %s268 = sadd.s32 %s267, 1
    %p271 = scmp.eq.s32.totalorder %s23, 1
    %p272 = scmp.ne.s32.totalorder %s267, %s269
    %p273 = scmp.eq.s32.totalorder %s23, 0
    %p274 = por %p272, %p273
    %p275 = scmp.ne.s32.totalorder %s267, %s269
    %p276 = scmp.eq.s32.totalorder %s28, 1
    %p277 = por %p275, %p276
    %p278 = scmp.ne.s32.totalorder %s269, %s270
    %p279 = scmp.eq.s32.totalorder %s28, 0
    %p280 = por %p278, %p279
    %p281 = scmp.ne.s32.totalorder %s269, %s270
    %p282 = scmp.eq.s32.totalorder %s29, 1
    %p283 = por %p281, %p282
    %p285 = scmp.ne.s32.totalorder %s270, %s284
    %p286 = scmp.eq.s32.totalorder %s29, 0
    %p287 = por %p285, %p286
    %s289 = sadd.s32 %s288, 1
    %p292 = scmp.eq.s32.totalorder %s23, 1
    %p293 = scmp.ne.s32.totalorder %s288, %s290
    %p294 = scmp.eq.s32.totalorder %s23, 0
    %p295 = por %p293, %p294
    %p296 = scmp.ne.s32.totalorder %s288, %s290
    %p297 = scmp.eq.s32.totalorder %s28, 1
    %p298 = por %p296, %p297
    %p299 = scmp.ne.s32.totalorder %s290, %s291
    %p300 = scmp.eq.s32.totalorder %s28, 0
    %p301 = por %p299, %p300
    %p302 = scmp.ne.s32.totalorder %s290, %s291
    %p303 = scmp.eq.s32.totalorder %s29, 1
    %p304 = por %p302, %p303
    %p306 = scmp.ne.s32.totalorder %s291, %s305
    %p307 = scmp.eq.s32.totalorder %s29, 0
    %p308 = por %p306, %p307
    %s310 = sadd.s32 %s309, 1
    %p313 = scmp.eq.s32.totalorder %s23, 1
    %p314 = scmp.ne.s32.totalorder %s309, %s311
    %p315 = scmp.eq.s32.totalorder %s23, 0
    %p316 = por %p314, %p315
    %p317 = scmp.ne.s32.totalorder %s309, %s311
    %p318 = scmp.eq.s32.totalorder %s28, 1
    %p319 = por %p317, %p318
    %p320 = scmp.ne.s32.totalorder %s311, %s312
    %p321 = scmp.eq.s32.totalorder %s28, 0
    %p322 = por %p320, %p321
    %p323 = scmp.ne.s32.totalorder %s311, %s312
    %p324 = scmp.eq.s32.totalorder %s29, 1
    %p325 = por %p323, %p324
    %p327 = scmp.ne.s32.totalorder %s312, %s326
    %p328 = scmp.eq.s32.totalorder %s29, 0
    %p329 = por %p327, %p328
    %s331 = sadd.s32 %s330, 1
    %p334 = scmp.eq.s32.totalorder %s23, 1
    %p335 = scmp.ne.s32.totalorder %s330, %s332
    %p336 = scmp.eq.s32.totalorder %s23, 0
    %p337 = por %p335, %p336
    %p338 = scmp.ne.s32.totalorder %s330, %s332
    %p339 = scmp.eq.s32.totalorder %s28, 1
    %p340 = por %p338, %p339
    %p341 = scmp.ne.s32.totalorder %s332, %s333
    %p342 = scmp.eq.s32.totalorder %s28, 0
    %p343 = por %p341, %p342
    %p344 = scmp.ne.s32.totalorder %s332, %s333
    %p345 = scmp.eq.s32.totalorder %s29, 1
    %p346 = por %p344, %p345
    %p348 = scmp.ne.s32.totalorder %s333, %s347
    %p349 = scmp.eq.s32.totalorder %s29, 0
    %p350 = por %p348, %p349
    %s352 = sadd.s32 %s351, 1
    %p355 = scmp.eq.s32.totalorder %s23, 1
    %p356 = scmp.ne.s32.totalorder %s351, %s353
    %p357 = scmp.eq.s32.totalorder %s23, 0
    %p358 = por %p356, %p357
    %p359 = scmp.ne.s32.totalorder %s351, %s353
    %p360 = scmp.eq.s32.totalorder %s28, 1
    %p361 = por %p359, %p360
    %p362 = scmp.ne.s32.totalorder %s353, %s354
    %p363 = scmp.eq.s32.totalorder %s28, 0
    %p364 = por %p362, %p363
    %p365 = scmp.ne.s32.totalorder %s353, %s354
    %p366 = scmp.eq.s32.totalorder %s29, 1
    %p367 = por %p365, %p366
    %p369 = scmp.ne.s32.totalorder %s354, %s368
    %p370 = scmp.eq.s32.totalorder %s29, 0
    %p371 = por %p369, %p370
    %s373 = sadd.s32 %s372, 1
    %p376 = scmp.eq.s32.totalorder %s23, 1
    %p377 = scmp.ne.s32.totalorder %s372, %s374
    %p378 = scmp.eq.s32.totalorder %s23, 0
    %p379 = por %p377, %p378
    %p380 = scmp.ne.s32.totalorder %s372, %s374
    %p381 = scmp.eq.s32.totalorder %s28, 1
    %p382 = por %p380, %p381
    %p383 = scmp.ne.s32.totalorder %s374, %s375
    %p384 = scmp.eq.s32.totalorder %s28, 0
    %p385 = por %p383, %p384
    %p386 = scmp.ne.s32.totalorder %s374, %s375
    %p387 = scmp.eq.s32.totalorder %s29, 1
    %p388 = por %p386, %p387
    %p390 = scmp.ne.s32.totalorder %s375, %s389
    %p391 = scmp.eq.s32.totalorder %s29, 0
    %p392 = por %p390, %p391
    %s393 = ssub.s32 %s23, %s30
    %p394 = scmp.eq.s32.totalorder %s393, 0
    %s396 = sadd.s32 %s395, 1
    %s397 = scalar_select %p394, %s395, %s396
    %p400 = pneg %p394
    %p401 = scmp.eq.s32.totalorder %s23, 1
    %p402 = por %p400, %p401
    %p403 = scmp.ne.s32.totalorder %s395, %s398
    %p404 = scmp.eq.s32.totalorder %s23, 0
    %p405 = por %p403, %p404
    %p406 = scmp.ne.s32.totalorder %s395, %s398
    %p407 = scmp.eq.s32.totalorder %s28, 1
    %p408 = por %p406, %p407
    %p409 = scmp.ne.s32.totalorder %s398, %s399
    %p410 = scmp.eq.s32.totalorder %s28, 0
    %p411 = por %p409, %p410
    %p412 = scmp.ne.s32.totalorder %s398, %s399
    %p413 = scmp.eq.s32.totalorder %s29, 1
    %p414 = por %p412, %p413
    %p416 = scmp.ne.s32.totalorder %s399, %s415
    %p417 = scmp.eq.s32.totalorder %s29, 0
    %p418 = por %p416, %p417
    %p419 = scmp.le.s32.totalorder 1, %s23
    %p420 = scmp.lt.s32.totalorder %s23, 3
    %p421 = pnand %p419, %p420
    %p422 = pneg %p421
    // Predicated region
    $region9: #{pt5_forward.1} parent=5 // pred_check
      _
    $region10: #{pt5_forward.1} parent=5 // pred_check_branch
      %424 = sbr.rel (%p421) target = $region12
    $region11: #{pt5_forward.1} parent=5 // pred_region
      %s425 = ssub.s32 %s23, 1
      // Predicated region
      $region13: #{pt5_forward.1} parent=11 // pred_check
        %p426 = pneg %p70
      $region14: #{pt5_forward.1} parent=11 // pred_check_branch
        %428 = sbr.rel (%p426) target = $region16
      $region15: #{pt5_forward.1} parent=11 // pred_region
        _
      $region16: #{pt5_forward.1} parent=11 // pred_fallthru
        _
      // Predicated region
      $region17: #{pt5_forward.1} parent=11 // pred_check
        %p429 = pneg %p91
      $region18: #{pt5_forward.1} parent=11 // pred_check_branch
        %431 = sbr.rel (%p429) target = $region20
      $region19: #{pt5_forward.1} parent=11 // pred_region
        _
      $region20: #{pt5_forward.1} parent=11 // pred_fallthru
        _
      // Predicated region
      $region21: #{pt5_forward.1} parent=11 // pred_check
        %p432 = pneg %p112
      $region22: #{pt5_forward.1} parent=11 // pred_check_branch
        %434 = sbr.rel (%p432) target = $region24
      $region23: #{pt5_forward.1} parent=11 // pred_region
        _
      $region24: #{pt5_forward.1} parent=11 // pred_fallthru
        _
      // Predicated region
      $region25: #{pt5_forward.1} parent=11 // pred_check
        %p435 = pneg %p133
      $region26: #{pt5_forward.1} parent=11 // pred_check_branch
        %437 = sbr.rel (%p435) target = $region28
      $region27: #{pt5_forward.1} parent=11 // pred_region
        _
      $region28: #{pt5_forward.1} parent=11 // pred_fallthru
        _
      // Predicated region
      $region29: #{pt5_forward.1} parent=11 // pred_check
        %p438 = pneg %p154
      $region30: #{pt5_forward.1} parent=11 // pred_check_branch
        %440 = sbr.rel (%p438) target = $region32
      $region31: #{pt5_forward.1} parent=11 // pred_region
        _
      $region32: #{pt5_forward.1} parent=11 // pred_fallthru
        _
      // Predicated region
      $region33: #{pt5_forward.1} parent=11 // pred_check
        %p441 = pneg %p175
      $region34: #{pt5_forward.1} parent=11 // pred_check_branch
        %443 = sbr.rel (%p441) target = $region36
      $region35: #{pt5_forward.1} parent=11 // pred_region
        _
      $region36: #{pt5_forward.1} parent=11 // pred_fallthru
        _
      // Predicated region
      $region37: #{pt5_forward.1} parent=11 // pred_check
        %p444 = pneg %p196
      $region38: #{pt5_forward.1} parent=11 // pred_check_branch
        %446 = sbr.rel (%p444) target = $region40
      $region39: #{pt5_forward.1} parent=11 // pred_region
        _
      $region40: #{pt5_forward.1} parent=11 // pred_fallthru
        _
      // Predicated region
      $region41: #{pt5_forward.1} parent=11 // pred_check
        %p447 = pneg %p217
      $region42: #{pt5_forward.1} parent=11 // pred_check_branch
        %449 = sbr.rel (%p447) target = $region44
      $region43: #{pt5_forward.1} parent=11 // pred_region
        _
      $region44: #{pt5_forward.1} parent=11 // pred_fallthru
        _
      // Predicated region
      $region45: #{pt5_forward.1} parent=11 // pred_check
        %p450 = pneg %p238
      $region46: #{pt5_forward.1} parent=11 // pred_check_branch
        %452 = sbr.rel (%p450) target = $region48
      $region47: #{pt5_forward.1} parent=11 // pred_region
        _
      $region48: #{pt5_forward.1} parent=11 // pred_fallthru
        _
      // Predicated region
      $region49: #{pt5_forward.1} parent=11 // pred_check
        %p453 = pneg %p259
      $region50: #{pt5_forward.1} parent=11 // pred_check_branch
        %455 = sbr.rel (%p453) target = $region52
      $region51: #{pt5_forward.1} parent=11 // pred_region
        _
      $region52: #{pt5_forward.1} parent=11 // pred_fallthru
        _
      // Predicated region
      $region53: #{pt5_forward.1} parent=11 // pred_check
        %p456 = pneg %p280
      $region54: #{pt5_forward.1} parent=11 // pred_check_branch
        %458 = sbr.rel (%p456) target = $region56
      $region55: #{pt5_forward.1} parent=11 // pred_region
        _
      $region56: #{pt5_forward.1} parent=11 // pred_fallthru
        _
      // Predicated region
      $region57: #{pt5_forward.1} parent=11 // pred_check
        %p459 = pneg %p301
      $region58: #{pt5_forward.1} parent=11 // pred_check_branch
        %461 = sbr.rel (%p459) target = $region60
      $region59: #{pt5_forward.1} parent=11 // pred_region
        _
      $region60: #{pt5_forward.1} parent=11 // pred_fallthru
        _
      // Predicated region
      $region61: #{pt5_forward.1} parent=11 // pred_check
        %p462 = pneg %p322
      $region62: #{pt5_forward.1} parent=11 // pred_check_branch
        %464 = sbr.rel (%p462) target = $region64
      $region63: #{pt5_forward.1} parent=11 // pred_region
        _
      $region64: #{pt5_forward.1} parent=11 // pred_fallthru
        _
      // Predicated region
      $region65: #{pt5_forward.1} parent=11 // pred_check
        %p465 = pneg %p343
      $region66: #{pt5_forward.1} parent=11 // pred_check_branch
        %467 = sbr.rel (%p465) target = $region68
      $region67: #{pt5_forward.1} parent=11 // pred_region
        _
      $region68: #{pt5_forward.1} parent=11 // pred_fallthru
        _
      // Predicated region
      $region69: #{pt5_forward.1} parent=11 // pred_check
        %p468 = pneg %p364
      $region70: #{pt5_forward.1} parent=11 // pred_check_branch
        %470 = sbr.rel (%p468) target = $region72
      $region71: #{pt5_forward.1} parent=11 // pred_region
        _
      $region72: #{pt5_forward.1} parent=11 // pred_fallthru
        _
      // Predicated region
      $region73: #{pt5_forward.1} parent=11 // pred_check
        %p471 = pneg %p385
      $region74: #{pt5_forward.1} parent=11 // pred_check_branch
        %473 = sbr.rel (%p471) target = $region76
      $region75: #{pt5_forward.1} parent=11 // pred_region
        _
      $region76: #{pt5_forward.1} parent=11 // pred_fallthru
        _
    $region12: #{pt5_forward.1} parent=5 // pred_fallthru
      _
    %p474 = scmp.lt.s32.totalorder %s23, 2
    // Predicated region
    $region77: #{pt5_forward.1} parent=5 // pred_check
      %p475 = pneg %p474
    $region78: #{pt5_forward.1} parent=5 // pred_check_branch
      %477 = sbr.rel (%p475) target = $region80
    $region79: #{pt5_forward.1} parent=5 // pred_region
      // Predicated region
      $region81: #{pt5_forward.1} parent=79 // pred_check
        %p478 = pneg %p43
      $region82: #{pt5_forward.1} parent=79 // pred_check_branch
        %480 = sbr.rel (%p478) target = $region84
      $region83: #{pt5_forward.1} parent=79 // pred_region
        %p481 = scmp.lt.s32.totalorder %s23, 1
        %s482 = scalar_select %p481, %s23, 1
        %s483 = smul.addr %s482, 65
        %s484 = smul.addr %s483, 8
        %s485 = scalar_lea.vmem %s0, %s484
      $region84: #{pt5_forward.1} parent=79 // pred_fallthru
        _
    $region80: #{pt5_forward.1} parent=5 // pred_fallthru
      _
    %p486 = scmp.le.s32.totalorder 1, %s23
    %p487 = scmp.lt.s32.totalorder %s23, 3
    %p488 = pnand %p486, %p487
    %p489 = pneg %p488
    // Predicated region
    $region85: #{pt5_forward.1} parent=5 // pred_check
      _
    $region86: #{pt5_forward.1} parent=5 // pred_check_branch
      %491 = sbr.rel (%p488) target = $region88
    $region87: #{pt5_forward.1} parent=5 // pred_region
      %s492 = ssub.s32 %s23, 1
      %p493 = scmp.lt.s32.totalorder %s28, 1
      %s494 = scalar_select %p493, %s28, 1
      %s495 = smul.addr %s494, 65
      %s496 = smul.addr %s495, 8
      %s497 = scalar_lea.vmem %s0, %s496
      %p498 = pneg %p49
      %p499 = pneg %p46
      %p500 = pneg %p70
      %p501 = pneg %p67
      %p502 = pneg %p91
      %p503 = pneg %p88
      %p504 = pneg %p112
      %p505 = pneg %p109
      %p506 = pneg %p133
      %p507 = pneg %p130
      %p508 = pneg %p154
      %p509 = pneg %p151
      %p510 = pneg %p175
      %p511 = pneg %p172
      %p512 = pneg %p196
      %p513 = pneg %p193
      %p514 = pneg %p217
      %p515 = pneg %p214
      %p516 = pneg %p238
      %p517 = pneg %p235
      %p518 = pneg %p259
      %p519 = pneg %p256
      %p520 = pneg %p280
      %p521 = pneg %p277
      %p522 = pneg %p301
      %p523 = pneg %p298
      %p524 = pneg %p322
      %p525 = pneg %p319
      %p526 = pneg %p343
      %p527 = pneg %p340
      %p528 = pneg %p364
      %p529 = pneg %p361
      %p530 = pneg %p385
      %p531 = pneg %p382
      %p532 = pneg %p411
      %p533 = pneg %p408
      %p534 = scmp.lt.s32.totalorder %s28, 1
      %s535 = scalar_select %p534, %s28, 1
      %s536 = smul.addr %s535, 8
      %s537 = scalar_lea.vmem %s17, %s536
      %p538 = scmp.lt.s32.totalorder %s28, 1
      %s539 = scalar_select %p538, %s28, 1
      %s540 = smul.addr %s539, 65
      %s541 = smul.addr %s540, 8
      %s542 = scalar_lea.vmem %s0, %s541
      %p543 = scmp.lt.s32.totalorder %s28, 1
      %s544 = scalar_select %p543, %s28, 1
      %s545 = smul.addr %s544, 8
      %s546 = scalar_lea.vmem %s17, %s545
      %vm548 = vcmask 523264
      %549 = vst.msk [vmem:[#allocation2] sm:$0xff] %vm548, 0.0
      %550 = vst.msk [vmem:[#allocation2 + $0x8] sm:$0xff] %vm548, 0.0
      %551 = vst.msk [vmem:[#allocation2 + $0x10] sm:$0xff] %vm548, 0.0
      %552 = vst.msk [vmem:[#allocation2 + $0x18] sm:$0xff] %vm548, 0.0
      %553 = vst.msk [vmem:[#allocation2 + $0x20] sm:$0xff] %vm548, 0.0
      %554 = vst.msk [vmem:[#allocation2 + $0x28] sm:$0xff] %vm548, 0.0
      %555 = vst.msk [vmem:[#allocation2 + $0x30] sm:$0xff] %vm548, 0.0
      %556 = vst.msk [vmem:[#allocation2 + $0x38] sm:$0xff] %vm548, 0.0
      %557 = vst.msk [vmem:[#allocation2 + $0x40] sm:$0xff] %vm548, 0.0
      %558 = vst.msk [vmem:[#allocation2 + $0x48] sm:$0xff] %vm548, 0.0
      %559 = vst.msk [vmem:[#allocation2 + $0x50] sm:$0xff] %vm548, 0.0
      %560 = vst.msk [vmem:[#allocation2 + $0x58] sm:$0xff] %vm548, 0.0
      %561 = vst.msk [vmem:[#allocation2 + $0x60] sm:$0xff] %vm548, 0.0
      %562 = vst.msk [vmem:[#allocation2 + $0x68] sm:$0xff] %vm548, 0.0
      %563 = vst.msk [vmem:[#allocation2 + $0x70] sm:$0xff] %vm548, 0.0
      %564 = vst.msk [vmem:[#allocation2 + $0x78] sm:$0xff] %vm548, 0.0
      %565 = vst.msk [vmem:[#allocation2 + $0x80] sm:$0xff] %vm548, 0.0
      %566 = vst.msk [vmem:[#allocation2 + $0x88] sm:$0xff] %vm548, 0.0
      %567 = vst.msk [vmem:[#allocation2 + $0x90] sm:$0xff] %vm548, 0.0
      %568 = vst.msk [vmem:[#allocation2 + $0x98] sm:$0xff] %vm548, 0.0
      %569 = vst.msk [vmem:[#allocation2 + $0xa0] sm:$0xff] %vm548, 0.0
      %570 = vst.msk [vmem:[#allocation2 + $0xa8] sm:$0xff] %vm548, 0.0
      %571 = vst.msk [vmem:[#allocation2 + $0xb0] sm:$0xff] %vm548, 0.0
      %572 = vst.msk [vmem:[#allocation2 + $0xb8] sm:$0xff] %vm548, 0.0
      %573 = vst.msk [vmem:[#allocation2 + $0xc0] sm:$0xff] %vm548, 0.0
      %574 = vst.msk [vmem:[#allocation2 + $0xc8] sm:$0xff] %vm548, 0.0
      %575 = vst.msk [vmem:[#allocation2 + $0xd0] sm:$0xff] %vm548, 0.0
      %576 = vst.msk [vmem:[#allocation2 + $0xd8] sm:$0xff] %vm548, 0.0
      %577 = vst.msk [vmem:[#allocation2 + $0xe0] sm:$0xff] %vm548, 0.0
      %578 = vst.msk [vmem:[#allocation2 + $0xe8] sm:$0xff] %vm548, 0.0
      %579 = vst.msk [vmem:[#allocation2 + $0xf0] sm:$0xff] %vm548, 0.0
      %580 = vst.msk [vmem:[#allocation2 + $0xf8] sm:$0xff] %vm548, 0.0
      %581 = vst.msk [vmem:[#allocation2 + $0x100] sm:$0xff] %vm548, 0.0
      %582 = vst.msk [vmem:[#allocation2 + $0x108] sm:$0xff] %vm548, 0.0
      %583 = vst.msk [vmem:[#allocation2 + $0x110] sm:$0xff] %vm548, 0.0
      %584 = vst.msk [vmem:[#allocation2 + $0x118] sm:$0xff] %vm548, 0.0
      %585 = vst.msk [vmem:[#allocation2 + $0x120] sm:$0xff] %vm548, 0.0
      %586 = vst.msk [vmem:[#allocation2 + $0x128] sm:$0xff] %vm548, 0.0
      %587 = vst.msk [vmem:[#allocation2 + $0x130] sm:$0xff] %vm548, 0.0
      %588 = vst.msk [vmem:[#allocation2 + $0x138] sm:$0xff] %vm548, 0.0
      %589 = vst.msk [vmem:[#allocation2 + $0x140] sm:$0xff] %vm548, 0.0
      %590 = vst.msk [vmem:[#allocation2 + $0x148] sm:$0xff] %vm548, 0.0
      %591 = vst.msk [vmem:[#allocation2 + $0x150] sm:$0xff] %vm548, 0.0
      %592 = vst.msk [vmem:[#allocation2 + $0x158] sm:$0xff] %vm548, 0.0
      %593 = vst.msk [vmem:[#allocation2 + $0x160] sm:$0xff] %vm548, 0.0
      %594 = vst.msk [vmem:[#allocation2 + $0x168] sm:$0xff] %vm548, 0.0
      %595 = vst.msk [vmem:[#allocation2 + $0x170] sm:$0xff] %vm548, 0.0
      %596 = vst.msk [vmem:[#allocation2 + $0x178] sm:$0xff] %vm548, 0.0
      %597 = vst.msk [vmem:[#allocation2 + $0x180] sm:$0xff] %vm548, 0.0
      %598 = vst.msk [vmem:[#allocation2 + $0x188] sm:$0xff] %vm548, 0.0
      %599 = vst.msk [vmem:[#allocation2 + $0x190] sm:$0xff] %vm548, 0.0
      %600 = vst.msk [vmem:[#allocation2 + $0x198] sm:$0xff] %vm548, 0.0
      %601 = vst.msk [vmem:[#allocation2 + $0x1a0] sm:$0xff] %vm548, 0.0
      %602 = vst.msk [vmem:[#allocation2 + $0x1a8] sm:$0xff] %vm548, 0.0
      %603 = vst.msk [vmem:[#allocation2 + $0x1b0] sm:$0xff] %vm548, 0.0
      %604 = vst.msk [vmem:[#allocation2 + $0x1b8] sm:$0xff] %vm548, 0.0
      %605 = vst.msk [vmem:[#allocation2 + $0x1c0] sm:$0xff] %vm548, 0.0
      %606 = vst.msk [vmem:[#allocation2 + $0x1c8] sm:$0xff] %vm548, 0.0
      %607 = vst.msk [vmem:[#allocation2 + $0x1d0] sm:$0xff] %vm548, 0.0
      %608 = vst.msk [vmem:[#allocation2 + $0x1d8] sm:$0xff] %vm548, 0.0
      %609 = vst.msk [vmem:[#allocation2 + $0x1e0] sm:$0xff] %vm548, 0.0
      %610 = vst.msk [vmem:[#allocation2 + $0x1e8] sm:$0xff] %vm548, 0.0
      %611 = vst.msk [vmem:[#allocation2 + $0x1f0] sm:$0xff] %vm548, 0.0
      %612 = vst.msk [vmem:[#allocation2 + $0x1f8] sm:$0xff] %vm548, 0.0
      %613 = vst.msk [vmem:[#allocation2 + $0x200] sm:$0xff] %vm548, 0.0
      %614 = vst.msk [vmem:[#allocation3] sm:$0xff] %vm548, 0.0
      %615 = vst.msk [vmem:[#allocation3 + $0x8] sm:$0xff] %vm548, 0.0
      %616 = vst.msk [vmem:[#allocation3 + $0x10] sm:$0xff] %vm548, 0.0
      %617 = vst.msk [vmem:[#allocation3 + $0x18] sm:$0xff] %vm548, 0.0
      %618 = vst.msk [vmem:[#allocation3 + $0x20] sm:$0xff] %vm548, 0.0
      %619 = vst.msk [vmem:[#allocation3 + $0x28] sm:$0xff] %vm548, 0.0
      %620 = vst.msk [vmem:[#allocation3 + $0x30] sm:$0xff] %vm548, 0.0
      %621 = vst.msk [vmem:[#allocation3 + $0x38] sm:$0xff] %vm548, 0.0
      %622 = vst.msk [vmem:[#allocation3 + $0x40] sm:$0xff] %vm548, 0.0
      %623 = vst.msk [vmem:[#allocation3 + $0x48] sm:$0xff] %vm548, 0.0
      %624 = vst.msk [vmem:[#allocation3 + $0x50] sm:$0xff] %vm548, 0.0
      %625 = vst.msk [vmem:[#allocation3 + $0x58] sm:$0xff] %vm548, 0.0
      %626 = vst.msk [vmem:[#allocation3 + $0x60] sm:$0xff] %vm548, 0.0
      %627 = vst.msk [vmem:[#allocation3 + $0x68] sm:$0xff] %vm548, 0.0
      %628 = vst.msk [vmem:[#allocation3 + $0x70] sm:$0xff] %vm548, 0.0
      %629 = vst.msk [vmem:[#allocation3 + $0x78] sm:$0xff] %vm548, 0.0
      %630 = vst.msk [vmem:[#allocation3 + $0x80] sm:$0xff] %vm548, 0.0
      %631 = vst.msk [vmem:[#allocation3 + $0x88] sm:$0xff] %vm548, 0.0
      %632 = vst.msk [vmem:[#allocation3 + $0x90] sm:$0xff] %vm548, 0.0
      %633 = vst.msk [vmem:[#allocation3 + $0x98] sm:$0xff] %vm548, 0.0
      %634 = vst.msk [vmem:[#allocation3 + $0xa0] sm:$0xff] %vm548, 0.0
      %635 = vst.msk [vmem:[#allocation3 + $0xa8] sm:$0xff] %vm548, 0.0
      %636 = vst.msk [vmem:[#allocation3 + $0xb0] sm:$0xff] %vm548, 0.0
      %637 = vst.msk [vmem:[#allocation3 + $0xb8] sm:$0xff] %vm548, 0.0
      %638 = vst.msk [vmem:[#allocation3 + $0xc0] sm:$0xff] %vm548, 0.0
      %639 = vst.msk [vmem:[#allocation3 + $0xc8] sm:$0xff] %vm548, 0.0
      %640 = vst.msk [vmem:[#allocation3 + $0xd0] sm:$0xff] %vm548, 0.0
      %641 = vst.msk [vmem:[#allocation3 + $0xd8] sm:$0xff] %vm548, 0.0
      %642 = vst.msk [vmem:[#allocation3 + $0xe0] sm:$0xff] %vm548, 0.0
      %643 = vst.msk [vmem:[#allocation3 + $0xe8] sm:$0xff] %vm548, 0.0
      %644 = vst.msk [vmem:[#allocation3 + $0xf0] sm:$0xff] %vm548, 0.0
      %645 = vst.msk [vmem:[#allocation3 + $0xf8] sm:$0xff] %vm548, 0.0
      %646 = vst.msk [vmem:[#allocation3 + $0x100] sm:$0xff] %vm548, 0.0
      %647 = vst.msk [vmem:[#allocation3 + $0x108] sm:$0xff] %vm548, 0.0
      %648 = vst.msk [vmem:[#allocation3 + $0x110] sm:$0xff] %vm548, 0.0
      %649 = vst.msk [vmem:[#allocation3 + $0x118] sm:$0xff] %vm548, 0.0
      %650 = vst.msk [vmem:[#allocation3 + $0x120] sm:$0xff] %vm548, 0.0
      %651 = vst.msk [vmem:[#allocation3 + $0x128] sm:$0xff] %vm548, 0.0
      %652 = vst.msk [vmem:[#allocation3 + $0x130] sm:$0xff] %vm548, 0.0
      %653 = vst.msk [vmem:[#allocation3 + $0x138] sm:$0xff] %vm548, 0.0
      %654 = vst.msk [vmem:[#allocation3 + $0x140] sm:$0xff] %vm548, 0.0
      %655 = vst.msk [vmem:[#allocation3 + $0x148] sm:$0xff] %vm548, 0.0
      %656 = vst.msk [vmem:[#allocation3 + $0x150] sm:$0xff] %vm548, 0.0
      %657 = vst.msk [vmem:[#allocation3 + $0x158] sm:$0xff] %vm548, 0.0
      %658 = vst.msk [vmem:[#allocation3 + $0x160] sm:$0xff] %vm548, 0.0
      %659 = vst.msk [vmem:[#allocation3 + $0x168] sm:$0xff] %vm548, 0.0
      %660 = vst.msk [vmem:[#allocation3 + $0x170] sm:$0xff] %vm548, 0.0
      %661 = vst.msk [vmem:[#allocation3 + $0x178] sm:$0xff] %vm548, 0.0
      %662 = vst.msk [vmem:[#allocation3 + $0x180] sm:$0xff] %vm548, 0.0
      %663 = vst.msk [vmem:[#allocation3 + $0x188] sm:$0xff] %vm548, 0.0
      %664 = vst.msk [vmem:[#allocation3 + $0x190] sm:$0xff] %vm548, 0.0
      %665 = vst.msk [vmem:[#allocation3 + $0x198] sm:$0xff] %vm548, 0.0
      %666 = vst.msk [vmem:[#allocation3 + $0x1a0] sm:$0xff] %vm548, 0.0
      %667 = vst.msk [vmem:[#allocation3 + $0x1a8] sm:$0xff] %vm548, 0.0
      %668 = vst.msk [vmem:[#allocation3 + $0x1b0] sm:$0xff] %vm548, 0.0
      %669 = vst.msk [vmem:[#allocation3 + $0x1b8] sm:$0xff] %vm548, 0.0
      %670 = vst.msk [vmem:[#allocation3 + $0x1c0] sm:$0xff] %vm548, 0.0
      %671 = vst.msk [vmem:[#allocation3 + $0x1c8] sm:$0xff] %vm548, 0.0
      %672 = vst.msk [vmem:[#allocation3 + $0x1d0] sm:$0xff] %vm548, 0.0
      %673 = vst.msk [vmem:[#allocation3 + $0x1d8] sm:$0xff] %vm548, 0.0
      %674 = vst.msk [vmem:[#allocation3 + $0x1e0] sm:$0xff] %vm548, 0.0
      %675 = vst.msk [vmem:[#allocation3 + $0x1e8] sm:$0xff] %vm548, 0.0
      %676 = vst.msk [vmem:[#allocation3 + $0x1f0] sm:$0xff] %vm548, 0.0
      %677 = vst.msk [vmem:[#allocation3 + $0x1f8] sm:$0xff] %vm548, 0.0
      %678 = vst.msk [vmem:[#allocation3 + $0x200] sm:$0xff] %vm548, 0.0
      %v679 = vld [vmem:[%s542] sm:$0xff]
      %v680 = vld [vmem:[%s542 + $0x8] sm:$0xff]
      %v681 = vld [vmem:[%s542 + $0x10] sm:$0xff]
      %v682 = vld [vmem:[%s542 + $0x18] sm:$0xff]
      %v683 = vld [vmem:[%s542 + $0x20] sm:$0xff]
      %v684 = vld [vmem:[%s542 + $0x28] sm:$0xff]
      %v685 = vld [vmem:[%s542 + $0x30] sm:$0xff]
      %v686 = vld [vmem:[%s542 + $0x38] sm:$0xff]
      %v687 = vld [vmem:[%s542 + $0x40] sm:$0xff]
      %v688 = vld [vmem:[%s542 + $0x48] sm:$0xff]
      %v689 = vld [vmem:[%s542 + $0x50] sm:$0xff]
      %v690 = vld [vmem:[%s542 + $0x58] sm:$0xff]
      %v691 = vld [vmem:[%s542 + $0x60] sm:$0xff]
      %v692 = vld [vmem:[%s542 + $0x68] sm:$0xff]
      %v693 = vld [vmem:[%s542 + $0x70] sm:$0xff]
      %v694 = vld [vmem:[%s542 + $0x78] sm:$0xff]
      %v695 = vld [vmem:[%s542 + $0x80] sm:$0xff]
      %v696 = vld [vmem:[%s542 + $0x88] sm:$0xff]
      %v697 = vld [vmem:[%s542 + $0x90] sm:$0xff]
      %v698 = vld [vmem:[%s542 + $0x98] sm:$0xff]
      %v699 = vld [vmem:[%s542 + $0xa0] sm:$0xff]
      %v700 = vld [vmem:[%s542 + $0xa8] sm:$0xff]
      %v701 = vld [vmem:[%s542 + $0xb0] sm:$0xff]
      %v702 = vld [vmem:[%s542 + $0xb8] sm:$0xff]
      %v703 = vld [vmem:[%s542 + $0xc0] sm:$0xff]
      %v704 = vld [vmem:[%s542 + $0xc8] sm:$0xff]
      %v705 = vld [vmem:[%s542 + $0xd0] sm:$0xff]
      %v706 = vld [vmem:[%s542 + $0xd8] sm:$0xff]
      %v707 = vld [vmem:[%s542 + $0xe0] sm:$0xff]
      %v708 = vld [vmem:[%s542 + $0xe8] sm:$0xff]
      %v709 = vld [vmem:[%s542 + $0xf0] sm:$0xff]
      %v710 = vld [vmem:[%s542 + $0xf8] sm:$0xff]
      %v711 = vld [vmem:[%s542 + $0x100] sm:$0xff]
      %v712 = vld [vmem:[%s542 + $0x108] sm:$0xff]
      %v713 = vld [vmem:[%s542 + $0x110] sm:$0xff]
      %v714 = vld [vmem:[%s542 + $0x118] sm:$0xff]
      %v715 = vld [vmem:[%s542 + $0x120] sm:$0xff]
      %v716 = vld [vmem:[%s542 + $0x128] sm:$0xff]
      %v717 = vld [vmem:[%s542 + $0x130] sm:$0xff]
      %v718 = vld [vmem:[%s542 + $0x138] sm:$0xff]
      %v719 = vld [vmem:[%s542 + $0x140] sm:$0xff]
      %v720 = vld [vmem:[%s542 + $0x148] sm:$0xff]
      %v721 = vld [vmem:[%s542 + $0x150] sm:$0xff]
      %v722 = vld [vmem:[%s542 + $0x158] sm:$0xff]
      %v723 = vld [vmem:[%s542 + $0x160] sm:$0xff]
      %v724 = vld [vmem:[%s542 + $0x168] sm:$0xff]
      %v725 = vld [vmem:[%s542 + $0x170] sm:$0xff]
      %v726 = vld [vmem:[%s542 + $0x178] sm:$0xff]
      %v727 = vld [vmem:[%s542 + $0x180] sm:$0xff]
      %v728 = vld [vmem:[%s542 + $0x188] sm:$0xff]
      %v729 = vld [vmem:[%s542 + $0x190] sm:$0xff]
      %v730 = vld [vmem:[%s542 + $0x198] sm:$0xff]
      %v731 = vld [vmem:[%s542 + $0x1a0] sm:$0xff]
      %v732 = vld [vmem:[%s542 + $0x1a8] sm:$0xff]
      %v733 = vld [vmem:[%s542 + $0x1b0] sm:$0xff]
      %v734 = vld [vmem:[%s542 + $0x1b8] sm:$0xff]
      %v735 = vld [vmem:[%s542 + $0x1c0] sm:$0xff]
      %v736 = vld [vmem:[%s542 + $0x1c8] sm:$0xff]
      %v737 = vld [vmem:[%s542 + $0x1d0] sm:$0xff]
      %v738 = vld [vmem:[%s542 + $0x1d8] sm:$0xff]
      %v739 = vld [vmem:[%s542 + $0x1e0] sm:$0xff]
      %v740 = vld [vmem:[%s542 + $0x1e8] sm:$0xff]
      %v741 = vld [vmem:[%s542 + $0x1f0] sm:$0xff]
      %v742 = vld [vmem:[%s542 + $0x1f8] sm:$0xff]
      %v743 = vpack.c.bf16 %v680, %v679
      %v744 = vpack.c.bf16 %v682, %v681
      %v745 = vpack.c.bf16 %v684, %v683
      %v746 = vpack.c.bf16 %v686, %v685
      %v747 = vpack.c.bf16 %v688, %v687
      %v748 = vpack.c.bf16 %v690, %v689
      %v749 = vpack.c.bf16 %v692, %v691
      %v750 = vpack.c.bf16 %v694, %v693
      %v751 = vpack.c.bf16 %v696, %v695
      %v752 = vpack.c.bf16 %v698, %v697
      %v753 = vpack.c.bf16 %v700, %v699
      %v754 = vpack.c.bf16 %v702, %v701
      %v755 = vpack.c.bf16 %v704, %v703
      %v756 = vpack.c.bf16 %v706, %v705
      %v757 = vpack.c.bf16 %v708, %v707
      %v758 = vpack.c.bf16 %v710, %v709
      %v759 = vpack.c.bf16 %v712, %v711
      %v760 = vpack.c.bf16 %v714, %v713
      %v761 = vpack.c.bf16 %v716, %v715
      %v762 = vpack.c.bf16 %v718, %v717
      %v763 = vpack.c.bf16 %v720, %v719
      %v764 = vpack.c.bf16 %v722, %v721
      %v765 = vpack.c.bf16 %v724, %v723
      %v766 = vpack.c.bf16 %v726, %v725
      %v767 = vpack.c.bf16 %v728, %v727
      %v768 = vpack.c.bf16 %v730, %v729
      %v769 = vpack.c.bf16 %v732, %v731
      %v770 = vpack.c.bf16 %v734, %v733
      %v771 = vpack.c.bf16 %v736, %v735
      %v772 = vpack.c.bf16 %v738, %v737
      %v773 = vpack.c.bf16 %v740, %v739
      %v774 = vpack.c.bf16 %v742, %v741
      %v775 = vld [vmem:[%s1] sm:$0x1]
      %v776 = vld [vmem:[%s542 + $0x1] sm:$0xff]
      %v777 = vld [vmem:[%s542 + $0x9] sm:$0xff]
      %v778 = vld [vmem:[%s542 + $0x11] sm:$0xff]
      %v779 = vld [vmem:[%s542 + $0x19] sm:$0xff]
      %v780 = vld [vmem:[%s542 + $0x21] sm:$0xff]
      %v781 = vld [vmem:[%s542 + $0x29] sm:$0xff]
      %v782 = vld [vmem:[%s542 + $0x31] sm:$0xff]
      %v783 = vld [vmem:[%s542 + $0x39] sm:$0xff]
      %v784 = vld [vmem:[%s542 + $0x41] sm:$0xff]
      %v785 = vld [vmem:[%s542 + $0x49] sm:$0xff]
      %v786 = vld [vmem:[%s542 + $0x51] sm:$0xff]
      %v787 = vld [vmem:[%s542 + $0x59] sm:$0xff]
      %v788 = vld [vmem:[%s542 + $0x61] sm:$0xff]
      %v789 = vld [vmem:[%s542 + $0x69] sm:$0xff]
      %v790 = vld [vmem:[%s542 + $0x71] sm:$0xff]
      %v791 = vld [vmem:[%s542 + $0x79] sm:$0xff]
      %v792 = vld [vmem:[%s542 + $0x81] sm:$0xff]
      %v793 = vld [vmem:[%s542 + $0x89] sm:$0xff]
      %v794 = vld [vmem:[%s542 + $0x91] sm:$0xff]
      %v795 = vld [vmem:[%s542 + $0x99] sm:$0xff]
      %v796 = vld [vmem:[%s542 + $0xa1] sm:$0xff]
      %v797 = vld [vmem:[%s542 + $0xa9] sm:$0xff]
      %v798 = vld [vmem:[%s542 + $0xb1] sm:$0xff]
      %v799 = vld [vmem:[%s542 + $0xb9] sm:$0xff]
      %v800 = vld [vmem:[%s542 + $0xc1] sm:$0xff]
      %v801 = vld [vmem:[%s542 + $0xc9] sm:$0xff]
      %v802 = vld [vmem:[%s542 + $0xd1] sm:$0xff]
      %v803 = vld [vmem:[%s542 + $0xd9] sm:$0xff]
      %v804 = vld [vmem:[%s542 + $0xe1] sm:$0xff]
      %v805 = vld [vmem:[%s542 + $0xe9] sm:$0xff]
      %v806 = vld [vmem:[%s542 + $0xf1] sm:$0xff]
      %v807 = vld [vmem:[%s542 + $0xf9] sm:$0xff]
      %v808 = vld [vmem:[%s542 + $0x101] sm:$0xff]
      %v809 = vld [vmem:[%s542 + $0x109] sm:$0xff]
      %v810 = vld [vmem:[%s542 + $0x111] sm:$0xff]
      %v811 = vld [vmem:[%s542 + $0x119] sm:$0xff]
      %v812 = vld [vmem:[%s542 + $0x121] sm:$0xff]
      %v813 = vld [vmem:[%s542 + $0x129] sm:$0xff]
      %v814 = vld [vmem:[%s542 + $0x131] sm:$0xff]
      %v815 = vld [vmem:[%s542 + $0x139] sm:$0xff]
      %v816 = vld [vmem:[%s542 + $0x141] sm:$0xff]
      %v817 = vld [vmem:[%s542 + $0x149] sm:$0xff]
      %v818 = vld [vmem:[%s542 + $0x151] sm:$0xff]
      %v819 = vld [vmem:[%s542 + $0x159] sm:$0xff]
      %v820 = vld [vmem:[%s542 + $0x161] sm:$0xff]
      %v821 = vld [vmem:[%s542 + $0x169] sm:$0xff]
      %v822 = vld [vmem:[%s542 + $0x171] sm:$0xff]
      %v823 = vld [vmem:[%s542 + $0x179] sm:$0xff]
      %v824 = vld [vmem:[%s542 + $0x181] sm:$0xff]
      %v825 = vld [vmem:[%s542 + $0x189] sm:$0xff]
      %v826 = vld [vmem:[%s542 + $0x191] sm:$0xff]
      %v827 = vld [vmem:[%s542 + $0x199] sm:$0xff]
      %v828 = vld [vmem:[%s542 + $0x1a1] sm:$0xff]
      %v829 = vld [vmem:[%s542 + $0x1a9] sm:$0xff]
      %v830 = vld [vmem:[%s542 + $0x1b1] sm:$0xff]
      %v831 = vld [vmem:[%s542 + $0x1b9] sm:$0xff]
      %v832 = vld [vmem:[%s542 + $0x1c1] sm:$0xff]
      %v833 = vld [vmem:[%s542 + $0x1c9] sm:$0xff]
      %v834 = vld [vmem:[%s542 + $0x1d1] sm:$0xff]
      %v835 = vld [vmem:[%s542 + $0x1d9] sm:$0xff]
      %v836 = vld [vmem:[%s542 + $0x1e1] sm:$0xff]
      %v837 = vld [vmem:[%s542 + $0x1e9] sm:$0xff]
      %v838 = vld [vmem:[%s542 + $0x1f1] sm:$0xff]
      %v839 = vld [vmem:[%s542 + $0x1f9] sm:$0xff]
      %v840 = vpack.c.bf16 %v777, %v776
      %v841 = vpack.c.bf16 %v779, %v778
      %v842 = vpack.c.bf16 %v781, %v780
      %v843 = vpack.c.bf16 %v783, %v782
      %v844 = vpack.c.bf16 %v785, %v784
      %v845 = vpack.c.bf16 %v787, %v786
      %v846 = vpack.c.bf16 %v789, %v788
      %v847 = vpack.c.bf16 %v791, %v790
      %v848 = vpack.c.bf16 %v793, %v792
      %v849 = vpack.c.bf16 %v795, %v794
      %v850 = vpack.c.bf16 %v797, %v796
      %v851 = vpack.c.bf16 %v799, %v798
      %v852 = vpack.c.bf16 %v801, %v800
      %v853 = vpack.c.bf16 %v803, %v802
      %v854 = vpack.c.bf16 %v805, %v804
      %v855 = vpack.c.bf16 %v807, %v806
      %v856 = vpack.c.bf16 %v809, %v808
      %v857 = vpack.c.bf16 %v811, %v810
      %v858 = vpack.c.bf16 %v813, %v812
      %v859 = vpack.c.bf16 %v815, %v814
      %v860 = vpack.c.bf16 %v817, %v816
      %v861 = vpack.c.bf16 %v819, %v818
      %v862 = vpack.c.bf16 %v821, %v820
      %v863 = vpack.c.bf16 %v823, %v822
      %v864 = vpack.c.bf16 %v825, %v824
      %v865 = vpack.c.bf16 %v827, %v826
      %v866 = vpack.c.bf16 %v829, %v828
      %v867 = vpack.c.bf16 %v831, %v830
      %v868 = vpack.c.bf16 %v833, %v832
      %v869 = vpack.c.bf16 %v835, %v834
      %v870 = vpack.c.bf16 %v837, %v836
      %v871 = vpack.c.bf16 %v839, %v838
      %s872 = scalar_lea.vmem %s1, 1
      %v873 = vld [vmem:[%s872] sm:$0x1]
      %vm874 = vcmask 15360
      %v876 = vsel %vm874, %v840, 0
      %v879 = vsel %vm874, %v841, 0
      %v882 = vsel %vm874, %v842, 0
      %v885 = vsel %vm874, %v843, 0
      %v888 = vsel %vm874, %v844, 0
      %v891 = vsel %vm874, %v845, 0
      %v894 = vsel %vm874, %v846, 0
      %v897 = vsel %vm874, %v847, 0
      %v900 = vsel %vm874, %v848, 0
      %v903 = vsel %vm874, %v849, 0
      %v906 = vsel %vm874, %v850, 0
      %v909 = vsel %vm874, %v851, 0
      %v912 = vsel %vm874, %v852, 0
      %v915 = vsel %vm874, %v853, 0
      %v918 = vsel %vm874, %v854, 0
      %v921 = vsel %vm874, %v855, 0
      %v924 = vsel %vm874, %v856, 0
      %v927 = vsel %vm874, %v857, 0
      %v930 = vsel %vm874, %v858, 0
      %v933 = vsel %vm874, %v859, 0
      %v936 = vsel %vm874, %v860, 0
      %v939 = vsel %vm874, %v861, 0
      %v942 = vsel %vm874, %v862, 0
      %v945 = vsel %vm874, %v863, 0
      %v948 = vsel %vm874, %v864, 0
      %v951 = vsel %vm874, %v865, 0
      %v954 = vsel %vm874, %v866, 0
      %v957 = vsel %vm874, %v867, 0
      %v960 = vsel %vm874, %v868, 0
      %v963 = vsel %vm874, %v869, 0
      %v966 = vsel %vm874, %v870, 0
      %v969 = vsel %vm874, %v871, 0
      %vm971 = vcmask 1040384
      %v973 = vsel %vm971, %v873, 0
      %975 = vmatprep.subr.bf16.mxu0 0
      %976 = vmatpush1.bf16.msra.mxu0 %v973
      %977 = vmatprep.subr.bf16.mxu0 0
      %978 = vmatpush1.bf16.msra.mxu0 0
      %979 = vmatprep.subr.bf16.mxu0 0
      %980 = vmatpush1.bf16.msra.mxu0 0
      %981 = vmatprep.subr.bf16.mxu0 0
      %982 = vmatpush1.bf16.msra.mxu0 0
      %983 = vmatprep.subr.bf16.mxu0 0
      %984 = vmatpush1.bf16.msra.mxu0 0
      %985 = vmatprep.subr.bf16.mxu0 0
      %986 = vmatpush1.bf16.msra.mxu0 0
      %987 = vmatprep.subr.bf16.mxu0 0
      %988 = vmatpush1.bf16.msra.mxu0 0
      %989 = vmatprep.subr.bf16.mxu0 0
      %990 = vmatpush1.bf16.msra.mxu0 0
      %991 = vmatprep.subr.bf16.mxu0 0
      %992 = vmatpush1.bf16.msra.mxu0 0
      %993 = vmatprep.subr.bf16.mxu0 0
      %994 = vmatpush1.bf16.msra.mxu0 0
      %995 = vmatprep.subr.bf16.mxu0 0
      %996 = vmatpush1.bf16.msra.mxu0 0
      %997 = vmatprep.subr.bf16.mxu0 0
      %998 = vmatpush1.bf16.msra.mxu0 0
      %999 = vmatprep.subr.bf16.mxu0 0
      %1000 = vmatpush1.bf16.msra.mxu0 0
      %1001 = vmatprep.subr.bf16.mxu0 0
      %1002 = vmatpush1.bf16.msra.mxu0 0
      %1003 = vmatprep.subr.bf16.mxu0 0
      %1004 = vmatpush1.bf16.msra.mxu0 0
      %1005 = vmatprep.subr.bf16.mxu0 0
      %1006 = vmatpush1.bf16.msra.mxu0 0
      %1007 = vmatprep.mubr.bf16.mxu0 0
      %1008 = vmatmul.mubr.bf16.gmra.mrb[0].mxu0 %v876
      %v1009 = vpop.f32.mrb[0].mxu0
      %v1010 = vadd.f32 0.0, %v1009
      %v1011 = vpop.f32.mrb[0].mxu0
      %v1012 = vpop.f32.mrb[0].mxu0
      %v1013 = vadd.f32 0.0, %v1012
      %v1014 = vpop.f32.mrb[0].mxu0
      %1015 = vmatprep.mubr.bf16.mxu0 0
      %1016 = vmatmul.mubr.bf16.gmra.mrb[0].mxu0 %v879
      %v1017 = vpop.f32.mrb[0].mxu0
      %v1018 = vadd.f32 0.0, %v1017
      %v1019 = vpop.f32.mrb[0].mxu0
      %v1020 = vpop.f32.mrb[0].mxu0
      %v1021 = vadd.f32 0.0, %v1020
      %v1022 = vpop.f32.mrb[0].mxu0
      %1023 = vmatprep.mubr.bf16.mxu0 0
      %1024 = vmatmul.mubr.bf16.gmra.mrb[0].mxu0 %v882
      %v1025 = vpop.f32.mrb[0].mxu0
      %v1026 = vadd.f32 0.0, %v1025
      %v1027 = vpop.f32.mrb[0].mxu0
      %v1028 = vpop.f32.mrb[0].mxu0
      %v1029 = vadd.f32 0.0, %v1028
      %v1030 = vpop.f32.mrb[0].mxu0
      %1031 = vmatprep.mubr.bf16.mxu0 0
      %1032 = vmatmul.mubr.bf16.gmra.mrb[0].mxu0 %v885
      %v1033 = vpop.f32.mrb[0].mxu0
      %v1034 = vadd.f32 0.0, %v1033
      %v1035 = vpop.f32.mrb[0].mxu0
      %v1036 = vpop.f32.mrb[0].mxu0
      %v1037 = vadd.f32 0.0, %v1036
      %v1038 = vpop.f32.mrb[0].mxu0
      %1039 = vmatprep.mubr.bf16.mxu0 0
      %1040 = vmatmul.mubr.bf16.gmra.mrb[0].mxu0 %v888
      %v1041 = vpop.f32.mrb[0].mxu0
      %v1042 = vadd.f32 0.0, %v1041
      %v1043 = vpop.f32.mrb[0].mxu0
      %v1044 = vpop.f32.mrb[0].mxu0
      %v1045 = vadd.f32 0.0, %v1044
      %v1046 = vpop.f32.mrb[0].mxu0
      %1047 = vmatprep.mubr.bf16.mxu0 0
      %1048 = vmatmul.mubr.bf16.gmra.mrb[0].mxu0 %v891
      %v1049 = vpop.f32.mrb[0].mxu0
      %v1050 = vadd.f32 0.0, %v1049
      %v1051 = vpop.f32.mrb[0].mxu0
      %v1052 = vpop.f32.mrb[0].mxu0
      %v1053 = vadd.f32 0.0, %v1052
      %v1054 = vpop.f32.mrb[0].mxu0
      %1055 = vmatprep.mubr.bf16.mxu0 0
      %1056 = vmatmul.mubr.bf16.gmra.mrb[0].mxu0 %v894
      %v1057 = vpop.f32.mrb[0].mxu0
      %v1058 = vadd.f32 0.0, %v1057
      %v1059 = vpop.f32.mrb[0].mxu0
      %v1060 = vpop.f32.mrb[0].mxu0
      %v1061 = vadd.f32 0.0, %v1060
      %v1062 = vpop.f32.mrb[0].mxu0
      %1063 = vmatprep.mubr.bf16.mxu0 0
      %1064 = vmatmul.mubr.bf16.gmra.mrb[0].mxu0 %v897
      %v1065 = vpop.f32.mrb[0].mxu0
      %v1066 = vadd.f32 0.0, %v1065
      %v1067 = vpop.f32.mrb[0].mxu0
      %v1068 = vpop.f32.mrb[0].mxu0
      %v1069 = vadd.f32 0.0, %v1068
      %v1070 = vpop.f32.mrb[0].mxu0
      %1071 = vmatprep.mubr.bf16.mxu0 0
      %1072 = vmatmul.mubr.bf16.gmra.mrb[0].mxu0 %v900
      %v1073 = vpop.f32.mrb[0].mxu0
      %v1074 = vadd.f32 0.0, %v1073
      %v1075 = vpop.f32.mrb[0].mxu0
      %v1076 = vpop.f32.mrb[0].mxu0
      %v1077 = vadd.f32 0.0, %v1076
      %v1078 = vpop.f32.mrb[0].mxu0
      %1079 = vmatprep.mubr.bf16.mxu0 0
      %1080 = vmatmul.mubr.bf16.gmra.mrb[0].mxu0 %v903
      %v1081 = vpop.f32.mrb[0].mxu0
      %v1082 = vadd.f32 0.0, %v1081
      %v1083 = vpop.f32.mrb[0].mxu0
      %v1084 = vpop.f32.mrb[0].mxu0
      %v1085 = vadd.f32 0.0, %v1084
      %v1086 = vpop.f32.mrb[0].mxu0
      %1087 = vmatprep.mubr.bf16.mxu0 0
      %1088 = vmatmul.mubr.bf16.gmra.mrb[0].mxu0 %v906
      %v1089 = vpop.f32.mrb[0].mxu0
      %v1090 = vadd.f32 0.0, %v1089
      %v1091 = vpop.f32.mrb[0].mxu0
      %v1092 = vpop.f32.mrb[0].mxu0
      %v1093 = vadd.f32 0.0, %v1092
      %v1094 = vpop.f32.mrb[0].mxu0
      %1095 = vmatprep.mubr.bf16.mxu0 0
      %1096 = vmatmul.mubr.bf16.gmra.mrb[0].mxu0 %v909
      %v1097 = vpop.f32.mrb[0].mxu0
      %v1098 = vadd.f32 0.0, %v1097
      %v1099 = vpop.f32.mrb[0].mxu0
      %v1100 = vpop.f32.mrb[0].mxu0
      %v1101 = vadd.f32 0.0, %v1100
      %v1102 = vpop.f32.mrb[0].mxu0
      %1103 = vmatprep.mubr.bf16.mxu0 0
      %1104 = vmatmul.mubr.bf16.gmra.mrb[0].mxu0 %v912
      %v1105 = vpop.f32.mrb[0].mxu0
      %v1106 = vadd.f32 0.0, %v1105
      %v1107 = vpop.f32.mrb[0].mxu0
      %v1108 = vpop.f32.mrb[0].mxu0
      %v1109 = vadd.f32 0.0, %v1108
      %v1110 = vpop.f32.mrb[0].mxu0
      %1111 = vmatprep.mubr.bf16.mxu0 0
      %1112 = vmatmul.mubr.bf16.gmra.mrb[0].mxu0 %v915
      %v1113 = vpop.f32.mrb[0].mxu0
      %v1114 = vadd.f32 0.0, %v1113
      %v1115 = vpop.f32.mrb[0].mxu0
      %v1116 = vpop.f32.mrb[0].mxu0
      %v1117 = vadd.f32 0.0, %v1116
      %v1118 = vpop.f32.mrb[0].mxu0
      %1119 = vmatprep.mubr.bf16.mxu0 0
      %1120 = vmatmul.mubr.bf16.gmra.mrb[0].mxu0 %v918
      %v1121 = vpop.f32.mrb[0].mxu0
      %v1122 = vadd.f32 0.0, %v1121
      %v1123 = vpop.f32.mrb[0].mxu0
      %v1124 = vpop.f32.mrb[0].mxu0
      %v1125 = vadd.f32 0.0, %v1124
      %v1126 = vpop.f32.mrb[0].mxu0
      %1127 = vmatprep.mubr.bf16.mxu0 0
      %1128 = vmatmul.mubr.bf16.gmra.mrb[0].mxu0 %v921
      %v1129 = vpop.f32.mrb[0].mxu0
      %v1130 = vadd.f32 0.0, %v1129
      %v1131 = vpop.f32.mrb[0].mxu0
      %v1132 = vpop.f32.mrb[0].mxu0
      %v1133 = vadd.f32 0.0, %v1132
      %v1134 = vpop.f32.mrb[0].mxu0
      %1135 = vmatprep.mubr.bf16.mxu0 0
      %1136 = vmatmul.mubr.bf16.gmra.mrb[0].mxu0 %v924
      %v1137 = vpop.f32.mrb[0].mxu0
      %v1138 = vadd.f32 0.0, %v1137
      %v1139 = vpop.f32.mrb[0].mxu0
      %v1140 = vpop.f32.mrb[0].mxu0
      %v1141 = vadd.f32 0.0, %v1140
      %v1142 = vpop.f32.mrb[0].mxu0
      %1143 = vmatprep.mubr.bf16.mxu0 0
      %1144 = vmatmul.mubr.bf16.gmra.mrb[0].mxu0 %v927
      %v1145 = vpop.f32.mrb[0].mxu0
      %v1146 = vadd.f32 0.0, %v1145
      %v1147 = vpop.f32.mrb[0].mxu0
      %v1148 = vpop.f32.mrb[0].mxu0
      %v1149 = vadd.f32 0.0, %v1148
      %v1150 = vpop.f32.mrb[0].mxu0
      %1151 = vmatprep.mubr.bf16.mxu0 0
      %1152 = vmatmul.mubr.bf16.gmra.mrb[0].mxu0 %v930
      %v1153 = vpop.f32.mrb[0].mxu0
      %v1154 = vadd.f32 0.0, %v1153
      %v1155 = vpop.f32.mrb[0].mxu0
      %v1156 = vpop.f32.mrb[0].mxu0
      %v1157 = vadd.f32 0.0, %v1156
      %v1158 = vpop.f32.mrb[0].mxu0
      %1159 = vmatprep.mubr.bf16.mxu0 0
      %1160 = vmatmul.mubr.bf16.gmra.mrb[0].mxu0 %v933
      %v1161 = vpop.f32.mrb[0].mxu0
      %v1162 = vadd.f32 0.0, %v1161
      %v1163 = vpop.f32.mrb[0].mxu0
      %v1164 = vpop.f32.mrb[0].mxu0
      %v1165 = vadd.f32 0.0, %v1164
      %v1166 = vpop.f32.mrb[0].mxu0
      %1167 = vmatprep.mubr.bf16.mxu0 0
      %1168 = vmatmul.mubr.bf16.gmra.mrb[0].mxu0 %v936
      %v1169 = vpop.f32.mrb[0].mxu0
      %v1170 = vadd.f32 0.0, %v1169
      %v1171 = vpop.f32.mrb[0].mxu0
      %v1172 = vpop.f32.mrb[0].mxu0
      %v1173 = vadd.f32 0.0, %v1172
      %v1174 = vpop.f32.mrb[0].mxu0
      %1175 = vmatprep.mubr.bf16.mxu0 0
      %1176 = vmatmul.mubr.bf16.gmra.mrb[0].mxu0 %v939
      %v1177 = vpop.f32.mrb[0].mxu0
      %v1178 = vadd.f32 0.0, %v1177
      %v1179 = vpop.f32.mrb[0].mxu0
      %v1180 = vpop.f32.mrb[0].mxu0
      %v1181 = vadd.f32 0.0, %v1180
      %v1182 = vpop.f32.mrb[0].mxu0
      %1183 = vmatprep.mubr.bf16.mxu0 0
      %1184 = vmatmul.mubr.bf16.gmra.mrb[0].mxu0 %v942
      %v1185 = vpop.f32.mrb[0].mxu0
      %v1186 = vadd.f32 0.0, %v1185
      %v1187 = vpop.f32.mrb[0].mxu0
      %v1188 = vpop.f32.mrb[0].mxu0
      %v1189 = vadd.f32 0.0, %v1188
      %v1190 = vpop.f32.mrb[0].mxu0
      %1191 = vmatprep.mubr.bf16.mxu0 0
      %1192 = vmatmul.mubr.bf16.gmra.mrb[0].mxu0 %v945
      %v1193 = vpop.f32.mrb[0].mxu0
      %v1194 = vadd.f32 0.0, %v1193
      %v1195 = vpop.f32.mrb[0].mxu0
      %v1196 = vpop.f32.mrb[0].mxu0
      %v1197 = vadd.f32 0.0, %v1196
      %v1198 = vpop.f32.mrb[0].mxu0
      %1199 = vmatprep.mubr.bf16.mxu0 0
      %1200 = vmatmul.mubr.bf16.gmra.mrb[0].mxu0 %v948
      %v1201 = vpop.f32.mrb[0].mxu0
      %v1202 = vadd.f32 0.0, %v1201
      %v1203 = vpop.f32.mrb[0].mxu0
      %v1204 = vpop.f32.mrb[0].mxu0
      %v1205 = vadd.f32 0.0, %v1204
      %v1206 = vpop.f32.mrb[0].mxu0
      %1207 = vmatprep.mubr.bf16.mxu0 0
      %1208 = vmatmul.mubr.bf16.gmra.mrb[0].mxu0 %v951
      %v1209 = vpop.f32.mrb[0].mxu0
      %v1210 = vadd.f32 0.0, %v1209
      %v1211 = vpop.f32.mrb[0].mxu0
      %v1212 = vpop.f32.mrb[0].mxu0
      %v1213 = vadd.f32 0.0, %v1212
      %v1214 = vpop.f32.mrb[0].mxu0
      %1215 = vmatprep.mubr.bf16.mxu0 0
      %1216 = vmatmul.mubr.bf16.gmra.mrb[0].mxu0 %v954
      %v1217 = vpop.f32.mrb[0].mxu0
      %v1218 = vadd.f32 0.0, %v1217
      %v1219 = vpop.f32.mrb[0].mxu0
      %v1220 = vpop.f32.mrb[0].mxu0
      %v1221 = vadd.f32 0.0, %v1220
      %v1222 = vpop.f32.mrb[0].mxu0
      %1223 = vmatprep.mubr.bf16.mxu0 0
      %1224 = vmatmul.mubr.bf16.gmra.mrb[0].mxu0 %v957
      %v1225 = vpop.f32.mrb[0].mxu0
      %v1226 = vadd.f32 0.0, %v1225
      %v1227 = vpop.f32.mrb[0].mxu0
      %v1228 = vpop.f32.mrb[0].mxu0
      %v1229 = vadd.f32 0.0, %v1228
      %v1230 = vpop.f32.mrb[0].mxu0
      %1231 = vmatprep.mubr.bf16.mxu0 0
      %1232 = vmatmul.mubr.bf16.gmra.mrb[0].mxu0 %v960
      %v1233 = vpop.f32.mrb[0].mxu0
      %v1234 = vadd.f32 0.0, %v1233
      %v1235 = vpop.f32.mrb[0].mxu0
      %v1236 = vpop.f32.mrb[0].mxu0
      %v1237 = vadd.f32 0.0, %v1236
      %v1238 = vpop.f32.mrb[0].mxu0
      %1239 = vmatprep.mubr.bf16.mxu0 0
      %1240 = vmatmul.mubr.bf16.gmra.mrb[0].mxu0 %v963
      %v1241 = vpop.f32.mrb[0].mxu0
      %v1242 = vadd.f32 0.0, %v1241
      %v1243 = vpop.f32.mrb[0].mxu0
      %v1244 = vpop.f32.mrb[0].mxu0
      %v1245 = vadd.f32 0.0, %v1244
      %v1246 = vpop.f32.mrb[0].mxu0
      %1247 = vmatprep.mubr.bf16.mxu0 0
      %1248 = vmatmul.mubr.bf16.gmra.mrb[0].mxu0 %v966
      %v1249 = vpop.f32.mrb[0].mxu0
      %v1250 = vadd.f32 0.0, %v1249
      %v1251 = vpop.f32.mrb[0].mxu0
      %v1252 = vpop.f32.mrb[0].mxu0
      %v1253 = vadd.f32 0.0, %v1252
      %v1254 = vpop.f32.mrb[0].mxu0
      %1255 = vmatprep.mubr.bf16.mxu0 0
      %1256 = vmatmul.mubr.bf16.gmra.mrb[0].mxu0 %v969
      %v1257 = vpop.f32.mrb[0].mxu0
      %v1258 = vadd.f32 0.0, %v1257
      %v1259 = vpop.f32.mrb[0].mxu0
      %v1260 = vpop.f32.mrb[0].mxu0
      %v1261 = vadd.f32 0.0, %v1260
      %v1262 = vpop.f32.mrb[0].mxu0
      %1263 = vdwg.mxu0
      %v1265 = vsel %vm874, %v743, 0
      %v1268 = vsel %vm874, %v744, 0
      %v1271 = vsel %vm874, %v745, 0
      %v1274 = vsel %vm874, %v746, 0
      %v1277 = vsel %vm874, %v747, 0
      %v1280 = vsel %vm874, %v748, 0
      %v1283 = vsel %vm874, %v749, 0
      %v1286 = vsel %vm874, %v750, 0
      %v1289 = vsel %vm874, %v751, 0
      %v1292 = vsel %vm874, %v752, 0
      %v1295 = vsel %vm874, %v753, 0
      %v1298 = vsel %vm874, %v754, 0
      %v1301 = vsel %vm874, %v755, 0
      %v1304 = vsel %vm874, %v756, 0
      %v1307 = vsel %vm874, %v757, 0
      %v1310 = vsel %vm874, %v758, 0
      %v1313 = vsel %vm874, %v759, 0
      %v1316 = vsel %vm874, %v760, 0
      %v1319 = vsel %vm874, %v761, 0
      %v1322 = vsel %vm874, %v762, 0
      %v1325 = vsel %vm874, %v763, 0
      %v1328 = vsel %vm874, %v764, 0
      %v1331 = vsel %vm874, %v765, 0
      %v1334 = vsel %vm874, %v766, 0
      %v1337 = vsel %vm874, %v767, 0
      %v1340 = vsel %vm874, %v768, 0
      %v1343 = vsel %vm874, %v769, 0
      %v1346 = vsel %vm874, %v770, 0
      %v1349 = vsel %vm874, %v771, 0
      %v1352 = vsel %vm874, %v772, 0
      %v1355 = vsel %vm874, %v773, 0
      %v1358 = vsel %vm874, %v774, 0
      %v1361 = vsel %vm971, %v775, 0
      %1363 = vmatprep.subr.bf16.mxu0 0
      %1364 = vmatpush1.bf16.msra.mxu0 %v1361
      %1365 = vmatprep.subr.bf16.mxu0 0
      %1366 = vmatpush1.bf16.msra.mxu0 0
      %1367 = vmatprep.subr.bf16.mxu0 0
      %1368 = vmatpush1.bf16.msra.mxu0 0
      %1369 = vmatprep.subr.bf16.mxu0 0
      %1370 = vmatpush1.bf16.msra.mxu0 0
      %1371 = vmatprep.subr.bf16.mxu0 0
      %1372 = vmatpush1.bf16.msra.mxu0 0
      %1373 = vmatprep.subr.bf16.mxu0 0
      %1374 = vmatpush1.bf16.msra.mxu0 0
      %1375 = vmatprep.subr.bf16.mxu0 0
      %1376 = vmatpush1.bf16.msra.mxu0 0
      %1377 = vmatprep.subr.bf16.mxu0 0
      %1378 = vmatpush1.bf16.msra.mxu0 0
      %1379 = vmatprep.subr.bf16.mxu0 0
      %1380 = vmatpush1.bf16.msra.mxu0 0
      %1381 = vmatprep.subr.bf16.mxu0 0
      %1382 = vmatpush1.bf16.msra.mxu0 0
      %1383 = vmatprep.subr.bf16.mxu0 0
      %1384 = vmatpush1.bf16.msra.mxu0 0
      %1385 = vmatprep.subr.bf16.mxu0 0
      %1386 = vmatpush1.bf16.msra.mxu0 0
      %1387 = vmatprep.subr.bf16.mxu0 0
      %1388 = vmatpush1.bf16.msra.mxu0 0
      %1389 = vmatprep.subr.bf16.mxu0 0
      %1390 = vmatpush1.bf16.msra.mxu0 0
      %1391 = vmatprep.subr.bf16.mxu0 0
      %1392 = vmatpush1.bf16.msra.mxu0 0
      %1393 = vmatprep.subr.bf16.mxu0 0
      %1394 = vmatpush1.bf16.msra.mxu0 0
      %1395 = vmatprep.mubr.bf16.mxu0 0
      %1396 = vmatmul.mubr.bf16.gmra.mrb[0].mxu0 %v1265
      %v1397 = vpop.f32.mrb[0].mxu0
      %v1398 = vadd.f32 %v1010, %v1397
      %v1399 = vpop.f32.mrb[0].mxu0
      %v1400 = vpop.f32.mrb[0].mxu0
      %v1401 = vadd.f32 %v1013, %v1400
      %v1402 = vpop.f32.mrb[0].mxu0
      %1403 = vmatprep.mubr.bf16.mxu0 0
      %1404 = vmatmul.mubr.bf16.gmra.mrb[0].mxu0 %v1268
      %v1405 = vpop.f32.mrb[0].mxu0
      %v1406 = vadd.f32 %v1018, %v1405
      %v1407 = vpop.f32.mrb[0].mxu0
      %v1408 = vpop.f32.mrb[0].mxu0
      %v1409 = vadd.f32 %v1021, %v1408
      %v1410 = vpop.f32.mrb[0].mxu0
      %1411 = vmatprep.mubr.bf16.mxu0 0
      %1412 = vmatmul.mubr.bf16.gmra.mrb[0].mxu0 %v1271
      %v1413 = vpop.f32.mrb[0].mxu0
      %v1414 = vadd.f32 %v1026, %v1413
      %v1415 = vpop.f32.mrb[0].mxu0
      %v1416 = vpop.f32.mrb[0].mxu0
      %v1417 = vadd.f32 %v1029, %v1416
      %v1418 = vpop.f32.mrb[0].mxu0
      %1419 = vmatprep.mubr.bf16.mxu0 0
      %1420 = vmatmul.mubr.bf16.gmra.mrb[0].mxu0 %v1274
      %v1421 = vpop.f32.mrb[0].mxu0
      %v1422 = vadd.f32 %v1034, %v1421
      %v1423 = vpop.f32.mrb[0].mxu0
      %v1424 = vpop.f32.mrb[0].mxu0
      %v1425 = vadd.f32 %v1037, %v1424
      %v1426 = vpop.f32.mrb[0].mxu0
      %1427 = vmatprep.mubr.bf16.mxu0 0
      %1428 = vmatmul.mubr.bf16.gmra.mrb[0].mxu0 %v1277
      %v1429 = vpop.f32.mrb[0].mxu0
      %v1430 = vadd.f32 %v1042, %v1429
      %v1431 = vpop.f32.mrb[0].mxu0
      %v1432 = vpop.f32.mrb[0].mxu0
      %v1433 = vadd.f32 %v1045, %v1432
      %v1434 = vpop.f32.mrb[0].mxu0
      %1435 = vmatprep.mubr.bf16.mxu0 0
      %1436 = vmatmul.mubr.bf16.gmra.mrb[0].mxu0 %v1280
      %v1437 = vpop.f32.mrb[0].mxu0
      %v1438 = vadd.f32 %v1050, %v1437
      %v1439 = vpop.f32.mrb[0].mxu0
      %v1440 = vpop.f32.mrb[0].mxu0
      %v1441 = vadd.f32 %v1053, %v1440
      %v1442 = vpop.f32.mrb[0].mxu0
      %1443 = vmatprep.mubr.bf16.mxu0 0
      %1444 = vmatmul.mubr.bf16.gmra.mrb[0].mxu0 %v1283
      %v1445 = vpop.f32.mrb[0].mxu0
      %v1446 = vadd.f32 %v1058, %v1445
      %v1447 = vpop.f32.mrb[0].mxu0
      %v1448 = vpop.f32.mrb[0].mxu0
      %v1449 = vadd.f32 %v1061, %v1448
      %v1450 = vpop.f32.mrb[0].mxu0
      %1451 = vmatprep.mubr.bf16.mxu0 0
      %1452 = vmatmul.mubr.bf16.gmra.mrb[0].mxu0 %v1286
      %v1453 = vpop.f32.mrb[0].mxu0
      %v1454 = vadd.f32 %v1066, %v1453
      %v1455 = vpop.f32.mrb[0].mxu0
      %v1456 = vpop.f32.mrb[0].mxu0
      %v1457 = vadd.f32 %v1069, %v1456
      %v1458 = vpop.f32.mrb[0].mxu0
      %1459 = vmatprep.mubr.bf16.mxu0 0
      %1460 = vmatmul.mubr.bf16.gmra.mrb[0].mxu0 %v1289
      %v1461 = vpop.f32.mrb[0].mxu0
      %v1462 = vadd.f32 %v1074, %v1461
      %v1463 = vpop.f32.mrb[0].mxu0
      %v1464 = vpop.f32.mrb[0].mxu0
      %v1465 = vadd.f32 %v1077, %v1464
      %v1466 = vpop.f32.mrb[0].mxu0
      %1467 = vmatprep.mubr.bf16.mxu0 0
      %1468 = vmatmul.mubr.bf16.gmra.mrb[0].mxu0 %v1292
      %v1469 = vpop.f32.mrb[0].mxu0
      %v1470 = vadd.f32 %v1082, %v1469
      %v1471 = vpop.f32.mrb[0].mxu0
      %v1472 = vpop.f32.mrb[0].mxu0
      %v1473 = vadd.f32 %v1085, %v1472
      %v1474 = vpop.f32.mrb[0].mxu0
      %1475 = vmatprep.mubr.bf16.mxu0 0
      %1476 = vmatmul.mubr.bf16.gmra.mrb[0].mxu0 %v1295
      %v1477 = vpop.f32.mrb[0].mxu0
      %v1478 = vadd.f32 %v1090, %v1477
      %v1479 = vpop.f32.mrb[0].mxu0
      %v1480 = vpop.f32.mrb[0].mxu0
      %v1481 = vadd.f32 %v1093, %v1480
      %v1482 = vpop.f32.mrb[0].mxu0
      %1483 = vmatprep.mubr.bf16.mxu0 0
      %1484 = vmatmul.mubr.bf16.gmra.mrb[0].mxu0 %v1298
      %v1485 = vpop.f32.mrb[0].mxu0
      %v1486 = vadd.f32 %v1098, %v1485
      %v1487 = vpop.f32.mrb[0].mxu0
      %v1488 = vpop.f32.mrb[0].mxu0
      %v1489 = vadd.f32 %v1101, %v1488
      %v1490 = vpop.f32.mrb[0].mxu0
      %1491 = vmatprep.mubr.bf16.mxu0 0
      %1492 = vmatmul.mubr.bf16.gmra.mrb[0].mxu0 %v1301
      %v1493 = vpop.f32.mrb[0].mxu0
      %v1494 = vadd.f32 %v1106, %v1493
      %v1495 = vpop.f32.mrb[0].mxu0
      %v1496 = vpop.f32.mrb[0].mxu0
      %v1497 = vadd.f32 %v1109, %v1496
      %v1498 = vpop.f32.mrb[0].mxu0
      %1499 = vmatprep.mubr.bf16.mxu0 0
      %1500 = vmatmul.mubr.bf16.gmra.mrb[0].mxu0 %v1304
      %v1501 = vpop.f32.mrb[0].mxu0
      %v1502 = vadd.f32 %v1114, %v1501
      %v1503 = vpop.f32.mrb[0].mxu0
      %v1504 = vpop.f32.mrb[0].mxu0
      %v1505 = vadd.f32 %v1117, %v1504
      %v1506 = vpop.f32.mrb[0].mxu0
      %1507 = vmatprep.mubr.bf16.mxu0 0
      %1508 = vmatmul.mubr.bf16.gmra.mrb[0].mxu0 %v1307
      %v1509 = vpop.f32.mrb[0].mxu0
      %v1510 = vadd.f32 %v1122, %v1509
      %v1511 = vpop.f32.mrb[0].mxu0
      %v1512 = vpop.f32.mrb[0].mxu0
      %v1513 = vadd.f32 %v1125, %v1512
      %v1514 = vpop.f32.mrb[0].mxu0
      %1515 = vmatprep.mubr.bf16.mxu0 0
      %1516 = vmatmul.mubr.bf16.gmra.mrb[0].mxu0 %v1310
      %v1517 = vpop.f32.mrb[0].mxu0
      %v1518 = vadd.f32 %v1130, %v1517
      %v1519 = vpop.f32.mrb[0].mxu0
      %v1520 = vpop.f32.mrb[0].mxu0
      %v1521 = vadd.f32 %v1133, %v1520
      %v1522 = vpop.f32.mrb[0].mxu0
      %1523 = vmatprep.mubr.bf16.mxu0 0
      %1524 = vmatmul.mubr.bf16.gmra.mrb[0].mxu0 %v1313
      %v1525 = vpop.f32.mrb[0].mxu0
      %v1526 = vadd.f32 %v1138, %v1525
      %v1527 = vpop.f32.mrb[0].mxu0
      %v1528 = vpop.f32.mrb[0].mxu0
      %v1529 = vadd.f32 %v1141, %v1528
      %v1530 = vpop.f32.mrb[0].mxu0
      %1531 = vmatprep.mubr.bf16.mxu0 0
      %1532 = vmatmul.mubr.bf16.gmra.mrb[0].mxu0 %v1316
      %v1533 = vpop.f32.mrb[0].mxu0
      %v1534 = vadd.f32 %v1146, %v1533
      %v1535 = vpop.f32.mrb[0].mxu0
      %v1536 = vpop.f32.mrb[0].mxu0
      %v1537 = vadd.f32 %v1149, %v1536
      %v1538 = vpop.f32.mrb[0].mxu0
      %1539 = vmatprep.mubr.bf16.mxu0 0
      %1540 = vmatmul.mubr.bf16.gmra.mrb[0].mxu0 %v1319
      %v1541 = vpop.f32.mrb[0].mxu0
      %v1542 = vadd.f32 %v1154, %v1541
      %v1543 = vpop.f32.mrb[0].mxu0
      %v1544 = vpop.f32.mrb[0].mxu0
      %v1545 = vadd.f32 %v1157, %v1544
      %v1546 = vpop.f32.mrb[0].mxu0
      %1547 = vmatprep.mubr.bf16.mxu0 0
      %1548 = vmatmul.mubr.bf16.gmra.mrb[0].mxu0 %v1322
      %v1549 = vpop.f32.mrb[0].mxu0
      %v1550 = vadd.f32 %v1162, %v1549
      %v1551 = vpop.f32.mrb[0].mxu0
      %v1552 = vpop.f32.mrb[0].mxu0
      %v1553 = vadd.f32 %v1165, %v1552
      %v1554 = vpop.f32.mrb[0].mxu0
      %1555 = vmatprep.mubr.bf16.mxu0 0
      %1556 = vmatmul.mubr.bf16.gmra.mrb[0].mxu0 %v1325
      %v1557 = vpop.f32.mrb[0].mxu0
      %v1558 = vadd.f32 %v1170, %v1557
      %v1559 = vpop.f32.mrb[0].mxu0
      %v1560 = vpop.f32.mrb[0].mxu0
      %v1561 = vadd.f32 %v1173, %v1560
      %v1562 = vpop.f32.mrb[0].mxu0
      %1563 = vmatprep.mubr.bf16.mxu0 0
      %1564 = vmatmul.mubr.bf16.gmra.mrb[0].mxu0 %v1328
      %v1565 = vpop.f32.mrb[0].mxu0
      %v1566 = vadd.f32 %v1178, %v1565
      %v1567 = vpop.f32.mrb[0].mxu0
      %v1568 = vpop.f32.mrb[0].mxu0
      %v1569 = vadd.f32 %v1181, %v1568
      %v1570 = vpop.f32.mrb[0].mxu0
      %1571 = vmatprep.mubr.bf16.mxu0 0
      %1572 = vmatmul.mubr.bf16.gmra.mrb[0].mxu0 %v1331
      %v1573 = vpop.f32.mrb[0].mxu0
      %v1574 = vadd.f32 %v1186, %v1573
      %v1575 = vpop.f32.mrb[0].mxu0
      %v1576 = vpop.f32.mrb[0].mxu0
      %v1577 = vadd.f32 %v1189, %v1576
      %v1578 = vpop.f32.mrb[0].mxu0
      %1579 = vmatprep.mubr.bf16.mxu0 0
      %1580 = vmatmul.mubr.bf16.gmra.mrb[0].mxu0 %v1334
      %v1581 = vpop.f32.mrb[0].mxu0
      %v1582 = vadd.f32 %v1194, %v1581
      %v1583 = vpop.f32.mrb[0].mxu0
      %v1584 = vpop.f32.mrb[0].mxu0
      %v1585 = vadd.f32 %v1197, %v1584
      %v1586 = vpop.f32.mrb[0].mxu0
      %1587 = vmatprep.mubr.bf16.mxu0 0
      %1588 = vmatmul.mubr.bf16.gmra.mrb[0].mxu0 %v1337
      %v1589 = vpop.f32.mrb[0].mxu0
      %v1590 = vadd.f32 %v1202, %v1589
      %v1591 = vpop.f32.mrb[0].mxu0
      %v1592 = vpop.f32.mrb[0].mxu0
      %v1593 = vadd.f32 %v1205, %v1592
      %v1594 = vpop.f32.mrb[0].mxu0
      %1595 = vmatprep.mubr.bf16.mxu0 0
      %1596 = vmatmul.mubr.bf16.gmra.mrb[0].mxu0 %v1340
      %v1597 = vpop.f32.mrb[0].mxu0
      %v1598 = vadd.f32 %v1210, %v1597
      %v1599 = vpop.f32.mrb[0].mxu0
      %v1600 = vpop.f32.mrb[0].mxu0
      %v1601 = vadd.f32 %v1213, %v1600
      %v1602 = vpop.f32.mrb[0].mxu0
      %1603 = vmatprep.mubr.bf16.mxu0 0
      %1604 = vmatmul.mubr.bf16.gmra.mrb[0].mxu0 %v1343
      %v1605 = vpop.f32.mrb[0].mxu0
      %v1606 = vadd.f32 %v1218, %v1605
      %v1607 = vpop.f32.mrb[0].mxu0
      %v1608 = vpop.f32.mrb[0].mxu0
      %v1609 = vadd.f32 %v1221, %v1608
      %v1610 = vpop.f32.mrb[0].mxu0
      %1611 = vmatprep.mubr.bf16.mxu0 0
      %1612 = vmatmul.mubr.bf16.gmra.mrb[0].mxu0 %v1346
      %v1613 = vpop.f32.mrb[0].mxu0
      %v1614 = vadd.f32 %v1226, %v1613
      %v1615 = vpop.f32.mrb[0].mxu0
      %v1616 = vpop.f32.mrb[0].mxu0
      %v1617 = vadd.f32 %v1229, %v1616
      %v1618 = vpop.f32.mrb[0].mxu0
      %1619 = vmatprep.mubr.bf16.mxu0 0
      %1620 = vmatmul.mubr.bf16.gmra.mrb[0].mxu0 %v1349
      %v1621 = vpop.f32.mrb[0].mxu0
      %v1622 = vadd.f32 %v1234, %v1621
      %v1623 = vpop.f32.mrb[0].mxu0
      %v1624 = vpop.f32.mrb[0].mxu0
      %v1625 = vadd.f32 %v1237, %v1624
      %v1626 = vpop.f32.mrb[0].mxu0
      %1627 = vmatprep.mubr.bf16.mxu0 0
      %1628 = vmatmul.mubr.bf16.gmra.mrb[0].mxu0 %v1352
      %v1629 = vpop.f32.mrb[0].mxu0
      %v1630 = vadd.f32 %v1242, %v1629
      %v1631 = vpop.f32.mrb[0].mxu0
      %v1632 = vpop.f32.mrb[0].mxu0
      %v1633 = vadd.f32 %v1245, %v1632
      %v1634 = vpop.f32.mrb[0].mxu0
      %1635 = vmatprep.mubr.bf16.mxu0 0
      %1636 = vmatmul.mubr.bf16.gmra.mrb[0].mxu0 %v1355
      %v1637 = vpop.f32.mrb[0].mxu0
      %v1638 = vadd.f32 %v1250, %v1637
      %v1639 = vpop.f32.mrb[0].mxu0
      %v1640 = vpop.f32.mrb[0].mxu0
      %v1641 = vadd.f32 %v1253, %v1640
      %v1642 = vpop.f32.mrb[0].mxu0
      %1643 = vmatprep.mubr.bf16.mxu0 0
      %1644 = vmatmul.mubr.bf16.gmra.mrb[0].mxu0 %v1358
      %v1645 = vpop.f32.mrb[0].mxu0
      %v1646 = vadd.f32 %v1258, %v1645
      %v1647 = vpop.f32.mrb[0].mxu0
      %v1648 = vpop.f32.mrb[0].mxu0
      %v1649 = vadd.f32 %v1261, %v1648
      %v1650 = vpop.f32.mrb[0].mxu0
      %1651 = vdwg.mxu0
      %v1652 = vld [vmem:[%s542 + $0x2] sm:$0xff]
      %v1653 = vld [vmem:[%s542 + $0xa] sm:$0xff]
      %v1654 = vld [vmem:[%s542 + $0x12] sm:$0xff]
      %v1655 = vld [vmem:[%s542 + $0x1a] sm:$0xff]
      %v1656 = vld [vmem:[%s542 + $0x22] sm:$0xff]
      %v1657 = vld [vmem:[%s542 + $0x2a] sm:$0xff]
      %v1658 = vld [vmem:[%s542 + $0x32] sm:$0xff]
      %v1659 = vld [vmem:[%s542 + $0x3a] sm:$0xff]
      %v1660 = vld [vmem:[%s542 + $0x42] sm:$0xff]
      %v1661 = vld [vmem:[%s542 + $0x4a] sm:$0xff]
      %v1662 = vld [vmem:[%s542 + $0x52] sm:$0xff]
      %v1663 = vld [vmem:[%s542 + $0x5a] sm:$0xff]
      %v1664 = vld [vmem:[%s542 + $0x62] sm:$0xff]
      %v1665 = vld [vmem:[%s542 + $0x6a] sm:$0xff]
      %v1666 = vld [vmem:[%s542 + $0x72] sm:$0xff]
      %v1667 = vld [vmem:[%s542 + $0x7a] sm:$0xff]
      %v1668 = vld [vmem:[%s542 + $0x82] sm:$0xff]
      %v1669 = vld [vmem:[%s542 + $0x8a] sm:$0xff]
      %v1670 = vld [vmem:[%s542 + $0x92] sm:$0xff]
      %v1671 = vld [vmem:[%s542 + $0x9a] sm:$0xff]
      %v1672 = vld [vmem:[%s542 + $0xa2] sm:$0xff]
      %v1673 = vld [vmem:[%s542 + $0xaa] sm:$0xff]
      %v1674 = vld [vmem:[%s542 + $0xb2] sm:$0xff]
      %v1675 = vld [vmem:[%s542 + $0xba] sm:$0xff]
      %v1676 = vld [vmem:[%s542 + $0xc2] sm:$0xff]
      %v1677 = vld [vmem:[%s542 + $0xca] sm:$0xff]
      %v1678 = vld [vmem:[%s542 + $0xd2] sm:$0xff]
      %v1679 = vld [vmem:[%s542 + $0xda] sm:$0xff]
      %v1680 = vld [vmem:[%s542 + $0xe2] sm:$0xff]
      %v1681 = vld [vmem:[%s542 + $0xea] sm:$0xff]
      %v1682 = vld [vmem:[%s542 + $0xf2] sm:$0xff]
      %v1683 = vld [vmem:[%s542 + $0xfa] sm:$0xff]
      %v1684 = vld [vmem:[%s542 + $0x102] sm:$0xff]
      %v1685 = vld [vmem:[%s542 + $0x10a] sm:$0xff]
      %v1686 = vld [vmem:[%s542 + $0x112] sm:$0xff]
      %v1687 = vld [vmem:[%s542 + $0x11a] sm:$0xff]
      %v1688 = vld [vmem:[%s542 + $0x122] sm:$0xff]
      %v1689 = vld [vmem:[%s542 + $0x12a] sm:$0xff]
      %v1690 = vld [vmem:[%s542 + $0x132] sm:$0xff]
      %v1691 = vld [vmem:[%s542 + $0x13a] sm:$0xff]
      %v1692 = vld [vmem:[%s542 + $0x142] sm:$0xff]
      %v1693 = vld [vmem:[%s542 + $0x14a] sm:$0xff]
      %v1694 = vld [vmem:[%s542 + $0x152] sm:$0xff]
      %v1695 = vld [vmem:[%s542 + $0x15a] sm:$0xff]
      %v1696 = vld [vmem:[%s542 + $0x162] sm:$0xff]
      %v1697 = vld [vmem:[%s542 + $0x16a] sm:$0xff]
      %v1698 = vld [vmem:[%s542 + $0x172] sm:$0xff]
      %v1699 = vld [vmem:[%s542 + $0x17a] sm:$0xff]
      %v1700 = vld [vmem:[%s542 + $0x182] sm:$0xff]
      %v1701 = vld [vmem:[%s542 + $0x18a] sm:$0xff]
      %v1702 = vld [vmem:[%s542 + $0x192] sm:$0xff]
      %v1703 = vld [vmem:[%s542 + $0x19a] sm:$0xff]
      %v1704 = vld [vmem:[%s542 + $0x1a2] sm:$0xff]
      %v1705 = vld [vmem:[%s542 + $0x1aa] sm:$0xff]
      %v1706 = vld [vmem:[%s542 + $0x1b2] sm:$0xff]
      %v1707 = vld [vmem:[%s542 + $0x1ba] sm:$0xff]
      %v1708 = vld [vmem:[%s542 + $0x1c2] sm:$0xff]
      %v1709 = vld [vmem:[%s542 + $0x1ca] sm:$0xff]
      %v1710 = vld [vmem:[%s542 + $0x1d2] sm:$0xff]
      %v1711 = vld [vmem:[%s542 + $0x1da] sm:$0xff]
      %v1712 = vld [vmem:[%s542 + $0x1e2] sm:$0xff]
      %v1713 = vld [vmem:[%s542 + $0x1ea] sm:$0xff]
      %v1714 = vld [vmem:[%s542 + $0x1f2] sm:$0xff]
      %v1715 = vld [vmem:[%s542 + $0x1fa] sm:$0xff]
      %v1716 = vpack.c.bf16 %v1653, %v1652
      %v1717 = vpack.c.bf16 %v1655, %v1654
      %v1718 = vpack.c.bf16 %v1657, %v1656
      %v1719 = vpack.c.bf16 %v1659, %v1658
      %v1720 = vpack.c.bf16 %v1661, %v1660
      %v1721 = vpack.c.bf16 %v1663, %v1662
      %v1722 = vpack.c.bf16 %v1665, %v1664
      %v1723 = vpack.c.bf16 %v1667, %v1666
      %v1724 = vpack.c.bf16 %v1669, %v1668
      %v1725 = vpack.c.bf16 %v1671, %v1670
      %v1726 = vpack.c.bf16 %v1673, %v1672
      %v1727 = vpack.c.bf16 %v1675, %v1674
      %v1728 = vpack.c.bf16 %v1677, %v1676
      %v1729 = vpack.c.bf16 %v1679, %v1678
      %v1730 = vpack.c.bf16 %v1681, %v1680
      %v1731 = vpack.c.bf16 %v1683, %v1682
      %v1732 = vpack.c.bf16 %v1685, %v1684
      %v1733 = vpack.c.bf16 %v1687, %v1686
      %v1734 = vpack.c.bf16 %v1689, %v1688
      %v1735 = vpack.c.bf16 %v1691, %v1690
      %v1736 = vpack.c.bf16 %v1693, %v1692
      %v1737 = vpack.c.bf16 %v1695, %v1694
      %v1738 = vpack.c.bf16 %v1697, %v1696
      %v1739 = vpack.c.bf16 %v1699, %v1698
      %v1740 = vpack.c.bf16 %v1701, %v1700
      %v1741 = vpack.c.bf16 %v1703, %v1702
      %v1742 = vpack.c.bf16 %v1705, %v1704
      %v1743 = vpack.c.bf16 %v1707, %v1706
      %v1744 = vpack.c.bf16 %v1709, %v1708
      %v1745 = vpack.c.bf16 %v1711, %v1710
      %v1746 = vpack.c.bf16 %v1713, %v1712
      %v1747 = vpack.c.bf16 %v1715, %v1714
      %s1748 = scalar_lea.vmem %s1, 2
      %v1749 = vld [vmem:[%s1748] sm:$0x1]
      %v1751 = vsel %vm874, %v1716, 0
      %v1754 = vsel %vm874, %v1717, 0
      %v1757 = vsel %vm874, %v1718, 0
      %v1760 = vsel %vm874, %v1719, 0
      %v1763 = vsel %vm874, %v1720, 0
      %v1766 = vsel %vm874, %v1721, 0
      %v1769 = vsel %vm874, %v1722, 0
      %v1772 = vsel %vm874, %v1723, 0
      %v1775 = vsel %vm874, %v1724, 0
      %v1778 = vsel %vm874, %v1725, 0
      %v1781 = vsel %vm874, %v1726, 0
      %v1784 = vsel %vm874, %v1727, 0
      %v1787 = vsel %vm874, %v1728, 0
      %v1790 = vsel %vm874, %v1729, 0
      %v1793 = vsel %vm874, %v1730, 0
      %v1796 = vsel %vm874, %v1731, 0
      %v1799 = vsel %vm874, %v1732, 0
      %v1802 = vsel %vm874, %v1733, 0
      %v1805 = vsel %vm874, %v1734, 0
      %v1808 = vsel %vm874, %v1735, 0
      %v1811 = vsel %vm874, %v1736, 0
      %v1814 = vsel %vm874, %v1737, 0
      %v1817 = vsel %vm874, %v1738, 0
      %v1820 = vsel %vm874, %v1739, 0
      %v1823 = vsel %vm874, %v1740, 0
      %v1826 = vsel %vm874, %v1741, 0
      %v1829 = vsel %vm874, %v1742, 0
      %v1832 = vsel %vm874, %v1743, 0
      %v1835 = vsel %vm874, %v1744, 0
      %v1838 = vsel %vm874, %v1745, 0
      %v1841 = vsel %vm874, %v1746, 0
      %v1844 = vsel %vm874, %v1747, 0
      %v1847 = vsel %vm971, %v1749, 0
      %1849 = vmatprep.subr.bf16.mxu0 0
      %1850 = vmatpush1.bf16.msra.mxu0 %v1847
      %1851 = vmatprep.subr.bf16.mxu0 0
      %1852 = vmatpush1.bf16.msra.mxu0 0
      %1853 = vmatprep.subr.bf16.mxu0 0
      %1854 = vmatpush1.bf16.msra.mxu0 0
      %1855 = vmatprep.subr.bf16.mxu0 0
      %1856 = vmatpush1.bf16.msra.mxu0 0
      %1857 = vmatprep.subr.bf16.mxu0 0
      %1858 = vmatpush1.bf16.msra.mxu0 0
      %1859 = vmatprep.subr.bf16.mxu0 0
      %1860 = vmatpush1.bf16.msra.mxu0 0
      %1861 = vmatprep.subr.bf16.mxu0 0
      %1862 = vmatpush1.bf16.msra.mxu0 0
      %1863 = vmatprep.subr.bf16.mxu0 0
      %1864 = vmatpush1.bf16.msra.mxu0 0
      %1865 = vmatprep.subr.bf16.mxu0 0
      %1866 = vmatpush1.bf16.msra.mxu0 0
      %1867 = vmatprep.subr.bf16.mxu0 0
      %1868 = vmatpush1.bf16.msra.mxu0 0
      %1869 = vmatprep.subr.bf16.mxu0 0
      %1870 = vmatpush1.bf16.msra.mxu0 0
      %1871 = vmatprep.subr.bf16.mxu0 0
      %1872 = vmatpush1.bf16.msra.mxu0 0
      %1873 = vmatprep.subr.bf16.mxu0 0
      %1874 = vmatpush1.bf16.msra.mxu0 0
      %1875 = vmatprep.subr.bf16.mxu0 0
      %1876 = vmatpush1.bf16.msra.mxu0 0
      %1877 = vmatprep.subr.bf16.mxu0 0
      %1878 = vmatpush1.bf16.msra.mxu0 0
      %1879 = vmatprep.subr.bf16.mxu0 0
      %1880 = vmatpush1.bf16.msra.mxu0 0
      %1881 = vmatprep.mubr.bf16.mxu0 0
      %1882 = vmatmul.mubr.bf16.gmra.mrb[0].mxu0 %v1751
      %v1883 = vpop.f32.mrb[0].mxu0
      %v1884 = vadd.f32 0.0, %v1883
      %v1885 = vpop.f32.mrb[0].mxu0
      %v1886 = vpop.f32.mrb[0].mxu0
      %v1887 = vadd.f32 0.0, %v1886
      %v1888 = vpop.f32.mrb[0].mxu0
      %1889 = vmatprep.mubr.bf16.mxu0 0
      %1890 = vmatmul.mubr.bf16.gmra.mrb[0].mxu0 %v1754
      %v1891 = vpop.f32.mrb[0].mxu0
      %v1892 = vadd.f32 0.0, %v1891
      %v1893 = vpop.f32.mrb[0].mxu0
      %v1894 = vpop.f32.mrb[0].mxu0
      %v1895 = vadd.f32 0.0, %v1894
      %v1896 = vpop.f32.mrb[0].mxu0
      %1897 = vmatprep.mubr.bf16.mxu0 0
      %1898 = vmatmul.mubr.bf16.gmra.mrb[0].mxu0 %v1757
      %v1899 = vpop.f32.mrb[0].mxu0
      %v1900 = vadd.f32 0.0, %v1899
      %v1901 = vpop.f32.mrb[0].mxu0
      %v1902 = vpop.f32.mrb[0].mxu0
      %v1903 = vadd.f32 0.0, %v1902
      %v1904 = vpop.f32.mrb[0].mxu0
      %1905 = vmatprep.mubr.bf16.mxu0 0
      %1906 = vmatmul.mubr.bf16.gmra.mrb[0].mxu0 %v1760
      %v1907 = vpop.f32.mrb[0].mxu0
      %v1908 = vadd.f32 0.0, %v1907
      %v1909 = vpop.f32.mrb[0].mxu0
      %v1910 = vpop.f32.mrb[0].mxu0
      %v1911 = vadd.f32 0.0, %v1910
      %v1912 = vpop.f32.mrb[0].mxu0
      %1913 = vmatprep.mubr.bf16.mxu0 0
      %1914 = vmatmul.mubr.bf16.gmra.mrb[0].mxu0 %v1763
      %v1915 = vpop.f32.mrb[0].mxu0
      %v1916 = vadd.f32 0.0, %v1915
      %v1917 = vpop.f32.mrb[0].mxu0
      %v1918 = vpop.f32.mrb[0].mxu0
      %v1919 = vadd.f32 0.0, %v1918
      %v1920 = vpop.f32.mrb[0].mxu0
      %1921 = vmatprep.mubr.bf16.mxu0 0
      %1922 = vmatmul.mubr.bf16.gmra.mrb[0].mxu0 %v1766
      %v1923 = vpop.f32.mrb[0].mxu0
      %v1924 = vadd.f32 0.0, %v1923
      %v1925 = vpop.f32.mrb[0].mxu0
      %v1926 = vpop.f32.mrb[0].mxu0
      %v1927 = vadd.f32 0.0, %v1926
      %v1928 = vpop.f32.mrb[0].mxu0
      %1929 = vmatprep.mubr.bf16.mxu0 0
      %1930 = vmatmul.mubr.bf16.gmra.mrb[0].mxu0 %v1769
      %v1931 = vpop.f32.mrb[0].mxu0
      %v1932 = vadd.f32 0.0, %v1931
      %v1933 = vpop.f32.mrb[0].mxu0
      %v1934 = vpop.f32.mrb[0].mxu0
      %v1935 = vadd.f32 0.0, %v1934
      %v1936 = vpop.f32.mrb[0].mxu0
      %1937 = vmatprep.mubr.bf16.mxu0 0
      %1938 = vmatmul.mubr.bf16.gmra.mrb[0].mxu0 %v1772
      %v1939 = vpop.f32.mrb[0].mxu0
      %v1940 = vadd.f32 0.0, %v1939
      %v1941 = vpop.f32.mrb[0].mxu0
      %v1942 = vpop.f32.mrb[0].mxu0
      %v1943 = vadd.f32 0.0, %v1942
      %v1944 = vpop.f32.mrb[0].mxu0
      %1945 = vmatprep.mubr.bf16.mxu0 0
      %1946 = vmatmul.mubr.bf16.gmra.mrb[0].mxu0 %v1775
      %v1947 = vpop.f32.mrb[0].mxu0
      %v1948 = vadd.f32 0.0, %v1947
      %v1949 = vpop.f32.mrb[0].mxu0
      %v1950 = vpop.f32.mrb[0].mxu0
      %v1951 = vadd.f32 0.0, %v1950
      %v1952 = vpop.f32.mrb[0].mxu0
      %1953 = vmatprep.mubr.bf16.mxu0 0
      %1954 = vmatmul.mubr.bf16.gmra.mrb[0].mxu0 %v1778
      %v1955 = vpop.f32.mrb[0].mxu0
      %v1956 = vadd.f32 0.0, %v1955
      %v1957 = vpop.f32.mrb[0].mxu0
      %v1958 = vpop.f32.mrb[0].mxu0
      %v1959 = vadd.f32 0.0, %v1958
      %v1960 = vpop.f32.mrb[0].mxu0
      %1961 = vmatprep.mubr.bf16.mxu0 0
      %1962 = vmatmul.mubr.bf16.gmra.mrb[0].mxu0 %v1781
      %v1963 = vpop.f32.mrb[0].mxu0
      %v1964 = vadd.f32 0.0, %v1963
      %v1965 = vpop.f32.mrb[0].mxu0
      %v1966 = vpop.f32.mrb[0].mxu0
      %v1967 = vadd.f32 0.0, %v1966
      %v1968 = vpop.f32.mrb[0].mxu0
      %1969 = vmatprep.mubr.bf16.mxu0 0
      %1970 = vmatmul.mubr.bf16.gmra.mrb[0].mxu0 %v1784
      %v1971 = vpop.f32.mrb[0].mxu0
      %v1972 = vadd.f32 0.0, %v1971
      %v1973 = vpop.f32.mrb[0].mxu0
      %v1974 = vpop.f32.mrb[0].mxu0
      %v1975 = vadd.f32 0.0, %v1974
      %v1976 = vpop.f32.mrb[0].mxu0
      %1977 = vmatprep.mubr.bf16.mxu0 0
      %1978 = vmatmul.mubr.bf16.gmra.mrb[0].mxu0 %v1787
      %v1979 = vpop.f32.mrb[0].mxu0
      %v1980 = vadd.f32 0.0, %v1979
      %v1981 = vpop.f32.mrb[0].mxu0
      %v1982 = vpop.f32.mrb[0].mxu0
      %v1983 = vadd.f32 0.0, %v1982
      %v1984 = vpop.f32.mrb[0].mxu0
      %1985 = vmatprep.mubr.bf16.mxu0 0
      %1986 = vmatmul.mubr.bf16.gmra.mrb[0].mxu0 %v1790
      %v1987 = vpop.f32.mrb[0].mxu0
      %v1988 = vadd.f32 0.0, %v1987
      %v1989 = vpop.f32.mrb[0].mxu0
      %v1990 = vpop.f32.mrb[0].mxu0
      %v1991 = vadd.f32 0.0, %v1990
      %v1992 = vpop.f32.mrb[0].mxu0
      %1993 = vmatprep.mubr.bf16.mxu0 0
      %1994 = vmatmul.mubr.bf16.gmra.mrb[0].mxu0 %v1793
      %v1995 = vpop.f32.mrb[0].mxu0
      %v1996 = vadd.f32 0.0, %v1995
      %v1997 = vpop.f32.mrb[0].mxu0
      %v1998 = vpop.f32.mrb[0].mxu0
      %v1999 = vadd.f32 0.0, %v1998
      %v2000 = vpop.f32.mrb[0].mxu0
      %2001 = vmatprep.mubr.bf16.mxu0 0
      %2002 = vmatmul.mubr.bf16.gmra.mrb[0].mxu0 %v1796
      %v2003 = vpop.f32.mrb[0].mxu0
      %v2004 = vadd.f32 0.0, %v2003
      %v2005 = vpop.f32.mrb[0].mxu0
      %v2006 = vpop.f32.mrb[0].mxu0
      %v2007 = vadd.f32 0.0, %v2006
      %v2008 = vpop.f32.mrb[0].mxu0
      %2009 = vmatprep.mubr.bf16.mxu0 0
      %2010 = vmatmul.mubr.bf16.gmra.mrb[0].mxu0 %v1799
      %v2011 = vpop.f32.mrb[0].mxu0
      %v2012 = vadd.f32 0.0, %v2011
      %v2013 = vpop.f32.mrb[0].mxu0
      %v2014 = vpop.f32.mrb[0].mxu0
      %v2015 = vadd.f32 0.0, %v2014
      %v2016 = vpop.f32.mrb[0].mxu0
      %2017 = vmatprep.mubr.bf16.mxu0 0
      %2018 = vmatmul.mubr.bf16.gmra.mrb[0].mxu0 %v1802
      %v2019 = vpop.f32.mrb[0].mxu0
      %v2020 = vadd.f32 0.0, %v2019
      %v2021 = vpop.f32.mrb[0].mxu0
      %v2022 = vpop.f32.mrb[0].mxu0
      %v2023 = vadd.f32 0.0, %v2022
      %v2024 = vpop.f32.mrb[0].mxu0
      %2025 = vmatprep.mubr.bf16.mxu0 0
      %2026 = vmatmul.mubr.bf16.gmra.mrb[0].mxu0 %v1805
      %v2027 = vpop.f32.mrb[0].mxu0
      %v2028 = vadd.f32 0.0, %v2027
      %v2029 = vpop.f32.mrb[0].mxu0
      %v2030 = vpop.f32.mrb[0].mxu0
      %v2031 = vadd.f32 0.0, %v2030
      %v2032 = vpop.f32.mrb[0].mxu0
      %2033 = vmatprep.mubr.bf16.mxu0 0
      %2034 = vmatmul.mubr.bf16.gmra.mrb[0].mxu0 %v1808
      %v2035 = vpop.f32.mrb[0].mxu0
      %v2036 = vadd.f32 0.0, %v2035
      %v2037 = vpop.f32.mrb[0].mxu0
      %v2038 = vpop.f32.mrb[0].mxu0
      %v2039 = vadd.f32 0.0, %v2038
      %v2040 = vpop.f32.mrb[0].mxu0
      %2041 = vmatprep.mubr.bf16.mxu0 0
      %2042 = vmatmul.mubr.bf16.gmra.mrb[0].mxu0 %v1811
      %v2043 = vpop.f32.mrb[0].mxu0
      %v2044 = vadd.f32 0.0, %v2043
      %v2045 = vpop.f32.mrb[0].mxu0
      %v2046 = vpop.f32.mrb[0].mxu0
      %v2047 = vadd.f32 0.0, %v2046
      %v2048 = vpop.f32.mrb[0].mxu0
      %2049 = vmatprep.mubr.bf16.mxu0 0
      %2050 = vmatmul.mubr.bf16.gmra.mrb[0].mxu0 %v1814
      %v2051 = vpop.f32.mrb[0].mxu0
      %v2052 = vadd.f32 0.0, %v2051
      %v2053 = vpop.f32.mrb[0].mxu0
      %v2054 = vpop.f32.mrb[0].mxu0
      %v2055 = vadd.f32 0.0, %v2054
      %v2056 = vpop.f32.mrb[0].mxu0
      %2057 = vmatprep.mubr.bf16.mxu0 0
      %2058 = vmatmul.mubr.bf16.gmra.mrb[0].mxu0 %v1817
      %v2059 = vpop.f32.mrb[0].mxu0
      %v2060 = vadd.f32 0.0, %v2059
      %v2061 = vpop.f32.mrb[0].mxu0
      %v2062 = vpop.f32.mrb[0].mxu0
      %v2063 = vadd.f32 0.0, %v2062
      %v2064 = vpop.f32.mrb[0].mxu0
      %2065 = vmatprep.mubr.bf16.mxu0 0
      %2066 = vmatmul.mubr.bf16.gmra.mrb[0].mxu0 %v1820
      %v2067 = vpop.f32.mrb[0].mxu0
      %v2068 = vadd.f32 0.0, %v2067
      %v2069 = vpop.f32.mrb[0].mxu0
      %v2070 = vpop.f32.mrb[0].mxu0
      %v2071 = vadd.f32 0.0, %v2070
      %v2072 = vpop.f32.mrb[0].mxu0
      %2073 = vmatprep.mubr.bf16.mxu0 0
      %2074 = vmatmul.mubr.bf16.gmra.mrb[0].mxu0 %v1823
      %v2075 = vpop.f32.mrb[0].mxu0
      %v2076 = vadd.f32 0.0, %v2075
      %v2077 = vpop.f32.mrb[0].mxu0
      %v2078 = vpop.f32.mrb[0].mxu0
      %v2079 = vadd.f32 0.0, %v2078
      %v2080 = vpop.f32.mrb[0].mxu0
      %2081 = vmatprep.mubr.bf16.mxu0 0
      %2082 = vmatmul.mubr.bf16.gmra.mrb[0].mxu0 %v1826
      %v2083 = vpop.f32.mrb[0].mxu0
      %v2084 = vadd.f32 0.0, %v2083
      %v2085 = vpop.f32.mrb[0].mxu0
      %v2086 = vpop.f32.mrb[0].mxu0
      %v2087 = vadd.f32 0.0, %v2086
      %v2088 = vpop.f32.mrb[0].mxu0
      %2089 = vmatprep.mubr.bf16.mxu0 0
      %2090 = vmatmul.mubr.bf16.gmra.mrb[0].mxu0 %v1829
      %v2091 = vpop.f32.mrb[0].mxu0
      %v2092 = vadd.f32 0.0, %v2091
      %v2093 = vpop.f32.mrb[0].mxu0
      %v2094 = vpop.f32.mrb[0].mxu0
      %v2095 = vadd.f32 0.0, %v2094
      %v2096 = vpop.f32.mrb[0].mxu0
      %2097 = vmatprep.mubr.bf16.mxu0 0
      %2098 = vmatmul.mubr.bf16.gmra.mrb[0].mxu0 %v1832
      %v2099 = vpop.f32.mrb[0].mxu0
      %v2100 = vadd.f32 0.0, %v2099
      %v2101 = vpop.f32.mrb[0].mxu0
      %v2102 = vpop.f32.mrb[0].mxu0
      %v2103 = vadd.f32 0.0, %v2102
      %v2104 = vpop.f32.mrb[0].mxu0
      %2105 = vmatprep.mubr.bf16.mxu0 0
      %2106 = vmatmul.mubr.bf16.gmra.mrb[0].mxu0 %v1835
      %v2107 = vpop.f32.mrb[0].mxu0
      %v2108 = vadd.f32 0.0, %v2107
      %v2109 = vpop.f32.mrb[0].mxu0
      %v2110 = vpop.f32.mrb[0].mxu0
      %v2111 = vadd.f32 0.0, %v2110
      %v2112 = vpop.f32.mrb[0].mxu0
      %2113 = vmatprep.mubr.bf16.mxu0 0
      %2114 = vmatmul.mubr.bf16.gmra.mrb[0].mxu0 %v1838
      %v2115 = vpop.f32.mrb[0].mxu0
      %v2116 = vadd.f32 0.0, %v2115
      %v2117 = vpop.f32.mrb[0].mxu0
      %v2118 = vpop.f32.mrb[0].mxu0
      %v2119 = vadd.f32 0.0, %v2118
      %v2120 = vpop.f32.mrb[0].mxu0
      %2121 = vmatprep.mubr.bf16.mxu0 0
      %2122 = vmatmul.mubr.bf16.gmra.mrb[0].mxu0 %v1841
      %v2123 = vpop.f32.mrb[0].mxu0
      %v2124 = vadd.f32 0.0, %v2123
      %v2125 = vpop.f32.mrb[0].mxu0
      %v2126 = vpop.f32.mrb[0].mxu0
      %v2127 = vadd.f32 0.0, %v2126
      %v2128 = vpop.f32.mrb[0].mxu0
      %2129 = vmatprep.mubr.bf16.mxu0 0
      %2130 = vmatmul.mubr.bf16.gmra.mrb[0].mxu0 %v1844
      %v2131 = vpop.f32.mrb[0].mxu0
      %v2132 = vadd.f32 0.0, %v2131
      %v2133 = vpop.f32.mrb[0].mxu0
      %v2134 = vpop.f32.mrb[0].mxu0
      %v2135 = vadd.f32 0.0, %v2134
      %v2136 = vpop.f32.mrb[0].mxu0
      %2137 = vdwg.mxu0
      %v2138 = vadd.f32 %v1398, %v1884
      %v2139 = vadd.f32 %v1401, %v1887
      %v2140 = vadd.f32 %v1406, %v1892
      %v2141 = vadd.f32 %v1409, %v1895
      %v2142 = vadd.f32 %v1414, %v1900
      %v2143 = vadd.f32 %v1417, %v1903
      %v2144 = vadd.f32 %v1422, %v1908
      %v2145 = vadd.f32 %v1425, %v1911
      %v2146 = vadd.f32 %v1430, %v1916
      %v2147 = vadd.f32 %v1433, %v1919
      %v2148 = vadd.f32 %v1438, %v1924
      %v2149 = vadd.f32 %v1441, %v1927
      %v2150 = vadd.f32 %v1446, %v1932
      %v2151 = vadd.f32 %v1449, %v1935
      %v2152 = vadd.f32 %v1454, %v1940
      %v2153 = vadd.f32 %v1457, %v1943
      %v2154 = vadd.f32 %v1462, %v1948
      %v2155 = vadd.f32 %v1465, %v1951
      %v2156 = vadd.f32 %v1470, %v1956
      %v2157 = vadd.f32 %v1473, %v1959
      %v2158 = vadd.f32 %v1478, %v1964
      %v2159 = vadd.f32 %v1481, %v1967
      %v2160 = vadd.f32 %v1486, %v1972
      %v2161 = vadd.f32 %v1489, %v1975
      %v2162 = vadd.f32 %v1494, %v1980
      %v2163 = vadd.f32 %v1497, %v1983
      %v2164 = vadd.f32 %v1502, %v1988
      %v2165 = vadd.f32 %v1505, %v1991
      %v2166 = vadd.f32 %v1510, %v1996
      %v2167 = vadd.f32 %v1513, %v1999
      %v2168 = vadd.f32 %v1518, %v2004
      %v2169 = vadd.f32 %v1521, %v2007
      %v2170 = vadd.f32 %v1526, %v2012
      %v2171 = vadd.f32 %v1529, %v2015
      %v2172 = vadd.f32 %v1534, %v2020
      %v2173 = vadd.f32 %v1537, %v2023
      %v2174 = vadd.f32 %v1542, %v2028
      %v2175 = vadd.f32 %v1545, %v2031
      %v2176 = vadd.f32 %v1550, %v2036
      %v2177 = vadd.f32 %v1553, %v2039
      %v2178 = vadd.f32 %v1558, %v2044
      %v2179 = vadd.f32 %v1561, %v2047
      %v2180 = vadd.f32 %v1566, %v2052
      %v2181 = vadd.f32 %v1569, %v2055
      %v2182 = vadd.f32 %v1574, %v2060
      %v2183 = vadd.f32 %v1577, %v2063
      %v2184 = vadd.f32 %v1582, %v2068
      %v2185 = vadd.f32 %v1585, %v2071
      %v2186 = vadd.f32 %v1590, %v2076
      %v2187 = vadd.f32 %v1593, %v2079
      %v2188 = vadd.f32 %v1598, %v2084
      %v2189 = vadd.f32 %v1601, %v2087
      %v2190 = vadd.f32 %v1606, %v2092
      %v2191 = vadd.f32 %v1609, %v2095
      %v2192 = vadd.f32 %v1614, %v2100
      %v2193 = vadd.f32 %v1617, %v2103
      %v2194 = vadd.f32 %v1622, %v2108
      %v2195 = vadd.f32 %v1625, %v2111
      %v2196 = vadd.f32 %v1630, %v2116
      %v2197 = vadd.f32 %v1633, %v2119
      %v2198 = vadd.f32 %v1638, %v2124
      %v2199 = vadd.f32 %v1641, %v2127
      %v2200 = vadd.f32 %v1646, %v2132
      %v2201 = vadd.f32 %v1649, %v2135
      %v2202 = vld [vmem:[%s542 + $0x3] sm:$0xff]
      %v2203 = vld [vmem:[%s542 + $0xb] sm:$0xff]
      %v2204 = vld [vmem:[%s542 + $0x13] sm:$0xff]
      %v2205 = vld [vmem:[%s542 + $0x1b] sm:$0xff]
      %v2206 = vld [vmem:[%s542 + $0x23] sm:$0xff]
      %v2207 = vld [vmem:[%s542 + $0x2b] sm:$0xff]
      %v2208 = vld [vmem:[%s542 + $0x33] sm:$0xff]
      %v2209 = vld [vmem:[%s542 + $0x3b] sm:$0xff]
      %v2210 = vld [vmem:[%s542 + $0x43] sm:$0xff]
      %v2211 = vld [vmem:[%s542 + $0x4b] sm:$0xff]
      %v2212 = vld [vmem:[%s542 + $0x53] sm:$0xff]
      %v2213 = vld [vmem:[%s542 + $0x5b] sm:$0xff]
      %v2214 = vld [vmem:[%s542 + $0x63] sm:$0xff]
      %v2215 = vld [vmem:[%s542 + $0x6b] sm:$0xff]
      %v2216 = vld [vmem:[%s542 + $0x73] sm:$0xff]
      %v2217 = vld [vmem:[%s542 + $0x7b] sm:$0xff]
      %v2218 = vld [vmem:[%s542 + $0x83] sm:$0xff]
      %v2219 = vld [vmem:[%s542 + $0x8b] sm:$0xff]
      %v2220 = vld [vmem:[%s542 + $0x93] sm:$0xff]
      %v2221 = vld [vmem:[%s542 + $0x9b] sm:$0xff]
      %v2222 = vld [vmem:[%s542 + $0xa3] sm:$0xff]
      %v2223 = vld [vmem:[%s542 + $0xab] sm:$0xff]
      %v2224 = vld [vmem:[%s542 + $0xb3] sm:$0xff]
      %v2225 = vld [vmem:[%s542 + $0xbb] sm:$0xff]
      %v2226 = vld [vmem:[%s542 + $0xc3] sm:$0xff]
      %v2227 = vld [vmem:[%s542 + $0xcb] sm:$0xff]
      %v2228 = vld [vmem:[%s542 + $0xd3] sm:$0xff]
      %v2229 = vld [vmem:[%s542 + $0xdb] sm:$0xff]
      %v2230 = vld [vmem:[%s542 + $0xe3] sm:$0xff]
      %v2231 = vld [vmem:[%s542 + $0xeb] sm:$0xff]
      %v2232 = vld [vmem:[%s542 + $0xf3] sm:$0xff]
      %v2233 = vld [vmem:[%s542 + $0xfb] sm:$0xff]
      %v2234 = vld [vmem:[%s542 + $0x103] sm:$0xff]
      %v2235 = vld [vmem:[%s542 + $0x10b] sm:$0xff]
      %v2236 = vld [vmem:[%s542 + $0x113] sm:$0xff]
      %v2237 = vld [vmem:[%s542 + $0x11b] sm:$0xff]
      %v2238 = vld [vmem:[%s542 + $0x123] sm:$0xff]
      %v2239 = vld [vmem:[%s542 + $0x12b] sm:$0xff]
      %v2240 = vld [vmem:[%s542 + $0x133] sm:$0xff]
      %v2241 = vld [vmem:[%s542 + $0x13b] sm:$0xff]
      %v2242 = vld [vmem:[%s542 + $0x143] sm:$0xff]
      %v2243 = vld [vmem:[%s542 + $0x14b] sm:$0xff]
      %v2244 = vld [vmem:[%s542 + $0x153] sm:$0xff]
      %v2245 = vld [vmem:[%s542 + $0x15b] sm:$0xff]
      %v2246 = vld [vmem:[%s542 + $0x163] sm:$0xff]
      %v2247 = vld [vmem:[%s542 + $0x16b] sm:$0xff]
      %v2248 = vld [vmem:[%s542 + $0x173] sm:$0xff]
      %v2249 = vld [vmem:[%s542 + $0x17b] sm:$0xff]
      %v2250 = vld [vmem:[%s542 + $0x183] sm:$0xff]
      %v2251 = vld [vmem:[%s542 + $0x18b] sm:$0xff]
      %v2252 = vld [vmem:[%s542 + $0x193] sm:$0xff]
      %v2253 = vld [vmem:[%s542 + $0x19b] sm:$0xff]
      %v2254 = vld [vmem:[%s542 + $0x1a3] sm:$0xff]
      %v2255 = vld [vmem:[%s542 + $0x1ab] sm:$0xff]
      %v2256 = vld [vmem:[%s542 + $0x1b3] sm:$0xff]
      %v2257 = vld [vmem:[%s542 + $0x1bb] sm:$0xff]
      %v2258 = vld [vmem:[%s542 + $0x1c3] sm:$0xff]
      %v2259 = vld [vmem:[%s542 + $0x1cb] sm:$0xff]
      %v2260 = vld [vmem:[%s542 + $0x1d3] sm:$0xff]
      %v2261 = vld [vmem:[%s542 + $0x1db] sm:$0xff]
      %v2262 = vld [vmem:[%s542 + $0x1e3] sm:$0xff]
      %v2263 = vld [vmem:[%s542 + $0x1eb] sm:$0xff]
      %v2264 = vld [vmem:[%s542 + $0x1f3] sm:$0xff]
      %v2265 = vld [vmem:[%s542 + $0x1fb] sm:$0xff]
      %v2266 = vpack.c.bf16 %v2203, %v2202
      %v2267 = vpack.c.bf16 %v2205, %v2204
      %v2268 = vpack.c.bf16 %v2207, %v2206
      %v2269 = vpack.c.bf16 %v2209, %v2208
      %v2270 = vpack.c.bf16 %v2211, %v2210
      %v2271 = vpack.c.bf16 %v2213, %v2212
      %v2272 = vpack.c.bf16 %v2215, %v2214
      %v2273 = vpack.c.bf16 %v2217, %v2216
      %v2274 = vpack.c.bf16 %v2219, %v2218
      %v2275 = vpack.c.bf16 %v2221, %v2220
      %v2276 = vpack.c.bf16 %v2223, %v2222
      %v2277 = vpack.c.bf16 %v2225, %v2224
      %v2278 = vpack.c.bf16 %v2227, %v2226
      %v2279 = vpack.c.bf16 %v2229, %v2228
      %v2280 = vpack.c.bf16 %v2231, %v2230
      %v2281 = vpack.c.bf16 %v2233, %v2232
      %v2282 = vpack.c.bf16 %v2235, %v2234
      %v2283 = vpack.c.bf16 %v2237, %v2236
      %v2284 = vpack.c.bf16 %v2239, %v2238
      %v2285 = vpack.c.bf16 %v2241, %v2240
      %v2286 = vpack.c.bf16 %v2243, %v2242
      %v2287 = vpack.c.bf16 %v2245, %v2244
      %v2288 = vpack.c.bf16 %v2247, %v2246
      %v2289 = vpack.c.bf16 %v2249, %v2248
      %v2290 = vpack.c.bf16 %v2251, %v2250
      %v2291 = vpack.c.bf16 %v2253, %v2252
      %v2292 = vpack.c.bf16 %v2255, %v2254
      %v2293 = vpack.c.bf16 %v2257, %v2256
      %v2294 = vpack.c.bf16 %v2259, %v2258
      %v2295 = vpack.c.bf16 %v2261, %v2260
      %v2296 = vpack.c.bf16 %v2263, %v2262
      %v2297 = vpack.c.bf16 %v2265, %v2264
      %s2298 = scalar_lea.vmem %s1, 3
      %v2299 = vld [vmem:[%s2298] sm:$0x1]
      %v2301 = vsel %vm874, %v2266, 0
      %v2304 = vsel %vm874, %v2267, 0
      %v2307 = vsel %vm874, %v2268, 0
      %v2310 = vsel %vm874, %v2269, 0
      %v2313 = vsel %vm874, %v2270, 0
      %v2316 = vsel %vm874, %v2271, 0
      %v2319 = vsel %vm874, %v2272, 0
      %v2322 = vsel %vm874, %v2273, 0
      %v2325 = vsel %vm874, %v2274, 0
      %v2328 = vsel %vm874, %v2275, 0
      %v2331 = vsel %vm874, %v2276, 0
      %v2334 = vsel %vm874, %v2277, 0
      %v2337 = vsel %vm874, %v2278, 0
      %v2340 = vsel %vm874, %v2279, 0
      %v2343 = vsel %vm874, %v2280, 0
      %v2346 = vsel %vm874, %v2281, 0
      %v2349 = vsel %vm874, %v2282, 0
      %v2352 = vsel %vm874, %v2283, 0
      %v2355 = vsel %vm874, %v2284, 0
      %v2358 = vsel %vm874, %v2285, 0
      %v2361 = vsel %vm874, %v2286, 0
      %v2364 = vsel %vm874, %v2287, 0
      %v2367 = vsel %vm874, %v2288, 0
      %v2370 = vsel %vm874, %v2289, 0
      %v2373 = vsel %vm874, %v2290, 0
      %v2376 = vsel %vm874, %v2291, 0
      %v2379 = vsel %vm874, %v2292, 0
      %v2382 = vsel %vm874, %v2293, 0
      %v2385 = vsel %vm874, %v2294, 0
      %v2388 = vsel %vm874, %v2295, 0
      %v2391 = vsel %vm874, %v2296, 0
      %v2394 = vsel %vm874, %v2297, 0
      %v2397 = vsel %vm971, %v2299, 0
      %2399 = vmatprep.subr.bf16.mxu0 0
      %2400 = vmatpush1.bf16.msra.mxu0 %v2397
      %2401 = vmatprep.subr.bf16.mxu0 0
      %2402 = vmatpush1.bf16.msra.mxu0 0
      %2403 = vmatprep.subr.bf16.mxu0 0
      %2404 = vmatpush1.bf16.msra.mxu0 0
      %2405 = vmatprep.subr.bf16.mxu0 0
      %2406 = vmatpush1.bf16.msra.mxu0 0
      %2407 = vmatprep.subr.bf16.mxu0 0
      %2408 = vmatpush1.bf16.msra.mxu0 0
      %2409 = vmatprep.subr.bf16.mxu0 0
      %2410 = vmatpush1.bf16.msra.mxu0 0
      %2411 = vmatprep.subr.bf16.mxu0 0
      %2412 = vmatpush1.bf16.msra.mxu0 0
      %2413 = vmatprep.subr.bf16.mxu0 0
      %2414 = vmatpush1.bf16.msra.mxu0 0
      %2415 = vmatprep.subr.bf16.mxu0 0
      %2416 = vmatpush1.bf16.msra.mxu0 0
      %2417 = vmatprep.subr.bf16.mxu0 0
      %2418 = vmatpush1.bf16.msra.mxu0 0
      %2419 = vmatprep.subr.bf16.mxu0 0
      %2420 = vmatpush1.bf16.msra.mxu0 0
      %2421 = vmatprep.subr.bf16.mxu0 0
      %2422 = vmatpush1.bf16.msra.mxu0 0
      %2423 = vmatprep.subr.bf16.mxu0 0
      %2424 = vmatpush1.bf16.msra.mxu0 0
      %2425 = vmatprep.subr.bf16.mxu0 0
      %2426 = vmatpush1.bf16.msra.mxu0 0
      %2427 = vmatprep.subr.bf16.mxu0 0
      %2428 = vmatpush1.bf16.msra.mxu0 0
      %2429 = vmatprep.subr.bf16.mxu0 0
      %2430 = vmatpush1.bf16.msra.mxu0 0
      %2431 = vmatprep.mubr.bf16.mxu0 0
      %2432 = vmatmul.mubr.bf16.gmra.mrb[0].mxu0 %v2301
      %v2433 = vpop.f32.mrb[0].mxu0
      %v2434 = vadd.f32 0.0, %v2433
      %v2435 = vpop.f32.mrb[0].mxu0
      %v2436 = vpop.f32.mrb[0].mxu0
      %v2437 = vadd.f32 0.0, %v2436
      %v2438 = vpop.f32.mrb[0].mxu0
      %2439 = vmatprep.mubr.bf16.mxu0 0
      %2440 = vmatmul.mubr.bf16.gmra.mrb[0].mxu0 %v2304
      %v2441 = vpop.f32.mrb[0].mxu0
      %v2442 = vadd.f32 0.0, %v2441
      %v2443 = vpop.f32.mrb[0].mxu0
      %v2444 = vpop.f32.mrb[0].mxu0
      %v2445 = vadd.f32 0.0, %v2444
      %v2446 = vpop.f32.mrb[0].mxu0
      %2447 = vmatprep.mubr.bf16.mxu0 0
      %2448 = vmatmul.mubr.bf16.gmra.mrb[0].mxu0 %v2307
      %v2449 = vpop.f32.mrb[0].mxu0
      %v2450 = vadd.f32 0.0, %v2449
      %v2451 = vpop.f32.mrb[0].mxu0
      %v2452 = vpop.f32.mrb[0].mxu0
      %v2453 = vadd.f32 0.0, %v2452
      %v2454 = vpop.f32.mrb[0].mxu0
      %2455 = vmatprep.mubr.bf16.mxu0 0
      %2456 = vmatmul.mubr.bf16.gmra.mrb[0].mxu0 %v2310
      %v2457 = vpop.f32.mrb[0].mxu0
      %v2458 = vadd.f32 0.0, %v2457
      %v2459 = vpop.f32.mrb[0].mxu0
      %v2460 = vpop.f32.mrb[0].mxu0
      %v2461 = vadd.f32 0.0, %v2460
      %v2462 = vpop.f32.mrb[0].mxu0
      %2463 = vmatprep.mubr.bf16.mxu0 0
      %2464 = vmatmul.mubr.bf16.gmra.mrb[0].mxu0 %v2313
      %v2465 = vpop.f32.mrb[0].mxu0
      %v2466 = vadd.f32 0.0, %v2465
      %v2467 = vpop.f32.mrb[0].mxu0
      %v2468 = vpop.f32.mrb[0].mxu0
      %v2469 = vadd.f32 0.0, %v2468
      %v2470 = vpop.f32.mrb[0].mxu0
      %2471 = vmatprep.mubr.bf16.mxu0 0
      %2472 = vmatmul.mubr.bf16.gmra.mrb[0].mxu0 %v2316
      %v2473 = vpop.f32.mrb[0].mxu0
      %v2474 = vadd.f32 0.0, %v2473
      %v2475 = vpop.f32.mrb[0].mxu0
      %v2476 = vpop.f32.mrb[0].mxu0
      %v2477 = vadd.f32 0.0, %v2476
      %v2478 = vpop.f32.mrb[0].mxu0
      %2479 = vmatprep.mubr.bf16.mxu0 0
      %2480 = vmatmul.mubr.bf16.gmra.mrb[0].mxu0 %v2319
      %v2481 = vpop.f32.mrb[0].mxu0
      %v2482 = vadd.f32 0.0, %v2481
      %v2483 = vpop.f32.mrb[0].mxu0
      %v2484 = vpop.f32.mrb[0].mxu0
      %v2485 = vadd.f32 0.0, %v2484
      %v2486 = vpop.f32.mrb[0].mxu0
      %2487 = vmatprep.mubr.bf16.mxu0 0
      %2488 = vmatmul.mubr.bf16.gmra.mrb[0].mxu0 %v2322
      %v2489 = vpop.f32.mrb[0].mxu0
      %v2490 = vadd.f32 0.0, %v2489
      %v2491 = vpop.f32.mrb[0].mxu0
      %v2492 = vpop.f32.mrb[0].mxu0
      %v2493 = vadd.f32 0.0, %v2492
      %v2494 = vpop.f32.mrb[0].mxu0
      %2495 = vmatprep.mubr.bf16.mxu0 0
      %2496 = vmatmul.mubr.bf16.gmra.mrb[0].mxu0 %v2325
      %v2497 = vpop.f32.mrb[0].mxu0
      %v2498 = vadd.f32 0.0, %v2497
      %v2499 = vpop.f32.mrb[0].mxu0
      %v2500 = vpop.f32.mrb[0].mxu0
      %v2501 = vadd.f32 0.0, %v2500
      %v2502 = vpop.f32.mrb[0].mxu0
      %2503 = vmatprep.mubr.bf16.mxu0 0
      %2504 = vmatmul.mubr.bf16.gmra.mrb[0].mxu0 %v2328
      %v2505 = vpop.f32.mrb[0].mxu0
      %v2506 = vadd.f32 0.0, %v2505
      %v2507 = vpop.f32.mrb[0].mxu0
      %v2508 = vpop.f32.mrb[0].mxu0
      %v2509 = vadd.f32 0.0, %v2508
      %v2510 = vpop.f32.mrb[0].mxu0
      %2511 = vmatprep.mubr.bf16.mxu0 0
      %2512 = vmatmul.mubr.bf16.gmra.mrb[0].mxu0 %v2331
      %v2513 = vpop.f32.mrb[0].mxu0
      %v2514 = vadd.f32 0.0, %v2513
      %v2515 = vpop.f32.mrb[0].mxu0
      %v2516 = vpop.f32.mrb[0].mxu0
      %v2517 = vadd.f32 0.0, %v2516
      %v2518 = vpop.f32.mrb[0].mxu0
      %2519 = vmatprep.mubr.bf16.mxu0 0
      %2520 = vmatmul.mubr.bf16.gmra.mrb[0].mxu0 %v2334
      %v2521 = vpop.f32.mrb[0].mxu0
      %v2522 = vadd.f32 0.0, %v2521
      %v2523 = vpop.f32.mrb[0].mxu0
      %v2524 = vpop.f32.mrb[0].mxu0
      %v2525 = vadd.f32 0.0, %v2524
      %v2526 = vpop.f32.mrb[0].mxu0
      %2527 = vmatprep.mubr.bf16.mxu0 0
      %2528 = vmatmul.mubr.bf16.gmra.mrb[0].mxu0 %v2337
      %v2529 = vpop.f32.mrb[0].mxu0
      %v2530 = vadd.f32 0.0, %v2529
      %v2531 = vpop.f32.mrb[0].mxu0
      %v2532 = vpop.f32.mrb[0].mxu0
      %v2533 = vadd.f32 0.0, %v2532
      %v2534 = vpop.f32.mrb[0].mxu0
      %2535 = vmatprep.mubr.bf16.mxu0 0
      %2536 = vmatmul.mubr.bf16.gmra.mrb[0].mxu0 %v2340
      %v2537 = vpop.f32.mrb[0].mxu0
      %v2538 = vadd.f32 0.0, %v2537
      %v2539 = vpop.f32.mrb[0].mxu0
      %v2540 = vpop.f32.mrb[0].mxu0
      %v2541 = vadd.f32 0.0, %v2540
      %v2542 = vpop.f32.mrb[0].mxu0
      %2543 = vmatprep.mubr.bf16.mxu0 0
      %2544 = vmatmul.mubr.bf16.gmra.mrb[0].mxu0 %v2343
      %v2545 = vpop.f32.mrb[0].mxu0
      %v2546 = vadd.f32 0.0, %v2545
      %v2547 = vpop.f32.mrb[0].mxu0
      %v2548 = vpop.f32.mrb[0].mxu0
      %v2549 = vadd.f32 0.0, %v2548
      %v2550 = vpop.f32.mrb[0].mxu0
      %2551 = vmatprep.mubr.bf16.mxu0 0
      %2552 = vmatmul.mubr.bf16.gmra.mrb[0].mxu0 %v2346
      %v2553 = vpop.f32.mrb[0].mxu0
      %v2554 = vadd.f32 0.0, %v2553
      %v2555 = vpop.f32.mrb[0].mxu0
      %v2556 = vpop.f32.mrb[0].mxu0
      %v2557 = vadd.f32 0.0, %v2556
      %v2558 = vpop.f32.mrb[0].mxu0
      %2559 = vmatprep.mubr.bf16.mxu0 0
      %2560 = vmatmul.mubr.bf16.gmra.mrb[0].mxu0 %v2349
      %v2561 = vpop.f32.mrb[0].mxu0
      %v2562 = vadd.f32 0.0, %v2561
      %v2563 = vpop.f32.mrb[0].mxu0
      %v2564 = vpop.f32.mrb[0].mxu0
      %v2565 = vadd.f32 0.0, %v2564
      %v2566 = vpop.f32.mrb[0].mxu0
      %2567 = vmatprep.mubr.bf16.mxu0 0
      %2568 = vmatmul.mubr.bf16.gmra.mrb[0].mxu0 %v2352
      %v2569 = vpop.f32.mrb[0].mxu0
      %v2570 = vadd.f32 0.0, %v2569
      %v2571 = vpop.f32.mrb[0].mxu0
      %v2572 = vpop.f32.mrb[0].mxu0
      %v2573 = vadd.f32 0.0, %v2572
      %v2574 = vpop.f32.mrb[0].mxu0
      %2575 = vmatprep.mubr.bf16.mxu0 0
      %2576 = vmatmul.mubr.bf16.gmra.mrb[0].mxu0 %v2355
      %v2577 = vpop.f32.mrb[0].mxu0
      %v2578 = vadd.f32 0.0, %v2577
      %v2579 = vpop.f32.mrb[0].mxu0
      %v2580 = vpop.f32.mrb[0].mxu0
      %v2581 = vadd.f32 0.0, %v2580
      %v2582 = vpop.f32.mrb[0].mxu0
      %2583 = vmatprep.mubr.bf16.mxu0 0
      %2584 = vmatmul.mubr.bf16.gmra.mrb[0].mxu0 %v2358
      %v2585 = vpop.f32.mrb[0].mxu0
      %v2586 = vadd.f32 0.0, %v2585
      %v2587 = vpop.f32.mrb[0].mxu0
      %v2588 = vpop.f32.mrb[0].mxu0
      %v2589 = vadd.f32 0.0, %v2588
      %v2590 = vpop.f32.mrb[0].mxu0
      %2591 = vmatprep.mubr.bf16.mxu0 0
      %2592 = vmatmul.mubr.bf16.gmra.mrb[0].mxu0 %v2361
      %v2593 = vpop.f32.mrb[0].mxu0
      %v2594 = vadd.f32 0.0, %v2593
      %v2595 = vpop.f32.mrb[0].mxu0
      %v2596 = vpop.f32.mrb[0].mxu0
      %v2597 = vadd.f32 0.0, %v2596
      %v2598 = vpop.f32.mrb[0].mxu0
      %2599 = vmatprep.mubr.bf16.mxu0 0
      %2600 = vmatmul.mubr.bf16.gmra.mrb[0].mxu0 %v2364
      %v2601 = vpop.f32.mrb[0].mxu0
      %v2602 = vadd.f32 0.0, %v2601
      %v2603 = vpop.f32.mrb[0].mxu0
      %v2604 = vpop.f32.mrb[0].mxu0
      %v2605 = vadd.f32 0.0, %v2604
      %v2606 = vpop.f32.mrb[0].mxu0
      %2607 = vmatprep.mubr.bf16.mxu0 0
      %2608 = vmatmul.mubr.bf16.gmra.mrb[0].mxu0 %v2367
      %v2609 = vpop.f32.mrb[0].mxu0
      %v2610 = vadd.f32 0.0, %v2609
      %v2611 = vpop.f32.mrb[0].mxu0
      %v2612 = vpop.f32.mrb[0].mxu0
      %v2613 = vadd.f32 0.0, %v2612
      %v2614 = vpop.f32.mrb[0].mxu0
      %2615 = vmatprep.mubr.bf16.mxu0 0
      %2616 = vmatmul.mubr.bf16.gmra.mrb[0].mxu0 %v2370
      %v2617 = vpop.f32.mrb[0].mxu0
      %v2618 = vadd.f32 0.0, %v2617
      %v2619 = vpop.f32.mrb[0].mxu0
      %v2620 = vpop.f32.mrb[0].mxu0
      %v2621 = vadd.f32 0.0, %v2620
      %v2622 = vpop.f32.mrb[0].mxu0
      %2623 = vmatprep.mubr.bf16.mxu0 0
      %2624 = vmatmul.mubr.bf16.gmra.mrb[0].mxu0 %v2373
      %v2625 = vpop.f32.mrb[0].mxu0
      %v2626 = vadd.f32 0.0, %v2625
      %v2627 = vpop.f32.mrb[0].mxu0
      %v2628 = vpop.f32.mrb[0].mxu0
      %v2629 = vadd.f32 0.0, %v2628
      %v2630 = vpop.f32.mrb[0].mxu0
      %2631 = vmatprep.mubr.bf16.mxu0 0
      %2632 = vmatmul.mubr.bf16.gmra.mrb[0].mxu0 %v2376
      %v2633 = vpop.f32.mrb[0].mxu0
      %v2634 = vadd.f32 0.0, %v2633
      %v2635 = vpop.f32.mrb[0].mxu0
      %v2636 = vpop.f32.mrb[0].mxu0
      %v2637 = vadd.f32 0.0, %v2636
      %v2638 = vpop.f32.mrb[0].mxu0
      %2639 = vmatprep.mubr.bf16.mxu0 0
      %2640 = vmatmul.mubr.bf16.gmra.mrb[0].mxu0 %v2379
      %v2641 = vpop.f32.mrb[0].mxu0
      %v2642 = vadd.f32 0.0, %v2641
      %v2643 = vpop.f32.mrb[0].mxu0
      %v2644 = vpop.f32.mrb[0].mxu0
      %v2645 = vadd.f32 0.0, %v2644
      %v2646 = vpop.f32.mrb[0].mxu0
      %2647 = vmatprep.mubr.bf16.mxu0 0
      %2648 = vmatmul.mubr.bf16.gmra.mrb[0].mxu0 %v2382
      %v2649 = vpop.f32.mrb[0].mxu0
      %v2650 = vadd.f32 0.0, %v2649
      %v2651 = vpop.f32.mrb[0].mxu0
      %v2652 = vpop.f32.mrb[0].mxu0
      %v2653 = vadd.f32 0.0, %v2652
      %v2654 = vpop.f32.mrb[0].mxu0
      %2655 = vmatprep.mubr.bf16.mxu0 0
      %2656 = vmatmul.mubr.bf16.gmra.mrb[0].mxu0 %v2385
      %v2657 = vpop.f32.mrb[0].mxu0
      %v2658 = vadd.f32 0.0, %v2657
      %v2659 = vpop.f32.mrb[0].mxu0
      %v2660 = vpop.f32.mrb[0].mxu0
      %v2661 = vadd.f32 0.0, %v2660
      %v2662 = vpop.f32.mrb[0].mxu0
      %2663 = vmatprep.mubr.bf16.mxu0 0
      %2664 = vmatmul.mubr.bf16.gmra.mrb[0].mxu0 %v2388
      %v2665 = vpop.f32.mrb[0].mxu0
      %v2666 = vadd.f32 0.0, %v2665
      %v2667 = vpop.f32.mrb[0].mxu0
      %v2668 = vpop.f32.mrb[0].mxu0
      %v2669 = vadd.f32 0.0, %v2668
      %v2670 = vpop.f32.mrb[0].mxu0
      %2671 = vmatprep.mubr.bf16.mxu0 0
      %2672 = vmatmul.mubr.bf16.gmra.mrb[0].mxu0 %v2391
      %v2673 = vpop.f32.mrb[0].mxu0
      %v2674 = vadd.f32 0.0, %v2673
      %v2675 = vpop.f32.mrb[0].mxu0
      %v2676 = vpop.f32.mrb[0].mxu0
      %v2677 = vadd.f32 0.0, %v2676
      %v2678 = vpop.f32.mrb[0].mxu0
      %2679 = vmatprep.mubr.bf16.mxu0 0
      %2680 = vmatmul.mubr.bf16.gmra.mrb[0].mxu0 %v2394
      %v2681 = vpop.f32.mrb[0].mxu0
      %v2682 = vadd.f32 0.0, %v2681
      %v2683 = vpop.f32.mrb[0].mxu0
      %v2684 = vpop.f32.mrb[0].mxu0
      %v2685 = vadd.f32 0.0, %v2684
      %v2686 = vpop.f32.mrb[0].mxu0
      %2687 = vdwg.mxu0
      %v2688 = vadd.f32 %v2138, %v2434
      %v2689 = vadd.f32 %v2139, %v2437
      %v2690 = vadd.f32 %v2140, %v2442
      %v2691 = vadd.f32 %v2141, %v2445
      %v2692 = vadd.f32 %v2142, %v2450
      %v2693 = vadd.f32 %v2143, %v2453
      %v2694 = vadd.f32 %v2144, %v2458
      %v2695 = vadd.f32 %v2145, %v2461
      %v2696 = vadd.f32 %v2146, %v2466
      %v2697 = vadd.f32 %v2147, %v2469
      %v2698 = vadd.f32 %v2148, %v2474
      %v2699 = vadd.f32 %v2149, %v2477
      %v2700 = vadd.f32 %v2150, %v2482
      %v2701 = vadd.f32 %v2151, %v2485
      %v2702 = vadd.f32 %v2152, %v2490
      %v2703 = vadd.f32 %v2153, %v2493
      %v2704 = vadd.f32 %v2154, %v2498
      %v2705 = vadd.f32 %v2155, %v2501
      %v2706 = vadd.f32 %v2156, %v2506
      %v2707 = vadd.f32 %v2157, %v2509
      %v2708 = vadd.f32 %v2158, %v2514
      %v2709 = vadd.f32 %v2159, %v2517
      %v2710 = vadd.f32 %v2160, %v2522
      %v2711 = vadd.f32 %v2161, %v2525
      %v2712 = vadd.f32 %v2162, %v2530
      %v2713 = vadd.f32 %v2163, %v2533
      %v2714 = vadd.f32 %v2164, %v2538
      %v2715 = vadd.f32 %v2165, %v2541
      %v2716 = vadd.f32 %v2166, %v2546
      %v2717 = vadd.f32 %v2167, %v2549
      %v2718 = vadd.f32 %v2168, %v2554
      %v2719 = vadd.f32 %v2169, %v2557
      %v2720 = vadd.f32 %v2170, %v2562
      %v2721 = vadd.f32 %v2171, %v2565
      %v2722 = vadd.f32 %v2172, %v2570
      %v2723 = vadd.f32 %v2173, %v2573
      %v2724 = vadd.f32 %v2174, %v2578
      %v2725 = vadd.f32 %v2175, %v2581
      %v2726 = vadd.f32 %v2176, %v2586
      %v2727 = vadd.f32 %v2177, %v2589
      %v2728 = vadd.f32 %v2178, %v2594
      %v2729 = vadd.f32 %v2179, %v2597
      %v2730 = vadd.f32 %v2180, %v2602
      %v2731 = vadd.f32 %v2181, %v2605
      %v2732 = vadd.f32 %v2182, %v2610
      %v2733 = vadd.f32 %v2183, %v2613
      %v2734 = vadd.f32 %v2184, %v2618
      %v2735 = vadd.f32 %v2185, %v2621
      %v2736 = vadd.f32 %v2186, %v2626
      %v2737 = vadd.f32 %v2187, %v2629
      %v2738 = vadd.f32 %v2188, %v2634
      %v2739 = vadd.f32 %v2189, %v2637
      %v2740 = vadd.f32 %v2190, %v2642
      %v2741 = vadd.f32 %v2191, %v2645
      %v2742 = vadd.f32 %v2192, %v2650
      %v2743 = vadd.f32 %v2193, %v2653
      %v2744 = vadd.f32 %v2194, %v2658
      %v2745 = vadd.f32 %v2195, %v2661
      %v2746 = vadd.f32 %v2196, %v2666
      %v2747 = vadd.f32 %v2197, %v2669
      %v2748 = vadd.f32 %v2198, %v2674
      %v2749 = vadd.f32 %v2199, %v2677
      %v2750 = vadd.f32 %v2200, %v2682
      %v2751 = vadd.f32 %v2201, %v2685
      %v2752 = vld [vmem:[%s542 + $0x4] sm:$0xff]
      %v2753 = vld [vmem:[%s542 + $0xc] sm:$0xff]
      %v2754 = vld [vmem:[%s542 + $0x14] sm:$0xff]
      %v2755 = vld [vmem:[%s542 + $0x1c] sm:$0xff]
      %v2756 = vld [vmem:[%s542 + $0x24] sm:$0xff]
      %v2757 = vld [vmem:[%s542 + $0x2c] sm:$0xff]
      %v2758 = vld [vmem:[%s542 + $0x34] sm:$0xff]
      %v2759 = vld [vmem:[%s542 + $0x3c] sm:$0xff]
      %v2760 = vld [vmem:[%s542 + $0x44] sm:$0xff]
      %v2761 = vld [vmem:[%s542 + $0x4c] sm:$0xff]
      %v2762 = vld [vmem:[%s542 + $0x54] sm:$0xff]
      %v2763 = vld [vmem:[%s542 + $0x5c] sm:$0xff]
      %v2764 = vld [vmem:[%s542 + $0x64] sm:$0xff]
      %v2765 = vld [vmem:[%s542 + $0x6c] sm:$0xff]
      %v2766 = vld [vmem:[%s542 + $0x74] sm:$0xff]
      %v2767 = vld [vmem:[%s542 + $0x7c] sm:$0xff]
      %v2768 = vld [vmem:[%s542 + $0x84] sm:$0xff]
      %v2769 = vld [vmem:[%s542 + $0x8c] sm:$0xff]
      %v2770 = vld [vmem:[%s542 + $0x94] sm:$0xff]
      %v2771 = vld [vmem:[%s542 + $0x9c] sm:$0xff]
      %v2772 = vld [vmem:[%s542 + $0xa4] sm:$0xff]
      %v2773 = vld [vmem:[%s542 + $0xac] sm:$0xff]
      %v2774 = vld [vmem:[%s542 + $0xb4] sm:$0xff]
      %v2775 = vld [vmem:[%s542 + $0xbc] sm:$0xff]
      %v2776 = vld [vmem:[%s542 + $0xc4] sm:$0xff]
      %v2777 = vld [vmem:[%s542 + $0xcc] sm:$0xff]
      %v2778 = vld [vmem:[%s542 + $0xd4] sm:$0xff]
      %v2779 = vld [vmem:[%s542 + $0xdc] sm:$0xff]
      %v2780 = vld [vmem:[%s542 + $0xe4] sm:$0xff]
      %v2781 = vld [vmem:[%s542 + $0xec] sm:$0xff]
      %v2782 = vld [vmem:[%s542 + $0xf4] sm:$0xff]
      %v2783 = vld [vmem:[%s542 + $0xfc] sm:$0xff]
      %v2784 = vld [vmem:[%s542 + $0x104] sm:$0xff]
      %v2785 = vld [vmem:[%s542 + $0x10c] sm:$0xff]
      %v2786 = vld [vmem:[%s542 + $0x114] sm:$0xff]
      %v2787 = vld [vmem:[%s542 + $0x11c] sm:$0xff]
      %v2788 = vld [vmem:[%s542 + $0x124] sm:$0xff]
      %v2789 = vld [vmem:[%s542 + $0x12c] sm:$0xff]
      %v2790 = vld [vmem:[%s542 + $0x134] sm:$0xff]
      %v2791 = vld [vmem:[%s542 + $0x13c] sm:$0xff]
      %v2792 = vld [vmem:[%s542 + $0x144] sm:$0xff]
      %v2793 = vld [vmem:[%s542 + $0x14c] sm:$0xff]
      %v2794 = vld [vmem:[%s542 + $0x154] sm:$0xff]
      %v2795 = vld [vmem:[%s542 + $0x15c] sm:$0xff]
      %v2796 = vld [vmem:[%s542 + $0x164] sm:$0xff]
      %v2797 = vld [vmem:[%s542 + $0x16c] sm:$0xff]
      %v2798 = vld [vmem:[%s542 + $0x174] sm:$0xff]
      %v2799 = vld [vmem:[%s542 + $0x17c] sm:$0xff]
      %v2800 = vld [vmem:[%s542 + $0x184] sm:$0xff]
      %v2801 = vld [vmem:[%s542 + $0x18c] sm:$0xff]
      %v2802 = vld [vmem:[%s542 + $0x194] sm:$0xff]
      %v2803 = vld [vmem:[%s542 + $0x19c] sm:$0xff]
      %v2804 = vld [vmem:[%s542 + $0x1a4] sm:$0xff]
      %v2805 = vld [vmem:[%s542 + $0x1ac] sm:$0xff]
      %v2806 = vld [vmem:[%s542 + $0x1b4] sm:$0xff]
      %v2807 = vld [vmem:[%s542 + $0x1bc] sm:$0xff]
      %v2808 = vld [vmem:[%s542 + $0x1c4] sm:$0xff]
      %v2809 = vld [vmem:[%s542 + $0x1cc] sm:$0xff]
      %v2810 = vld [vmem:[%s542 + $0x1d4] sm:$0xff]
      %v2811 = vld [vmem:[%s542 + $0x1dc] sm:$0xff]
      %v2812 = vld [vmem:[%s542 + $0x1e4] sm:$0xff]
      %v2813 = vld [vmem:[%s542 + $0x1ec] sm:$0xff]
      %v2814 = vld [vmem:[%s542 + $0x1f4] sm:$0xff]
      %v2815 = vld [vmem:[%s542 + $0x1fc] sm:$0xff]
      %v2816 = vpack.c.bf16 %v2753, %v2752
      %v2817 = vpack.c.bf16 %v2755, %v2754
      %v2818 = vpack.c.bf16 %v2757, %v2756
      %v2819 = vpack.c.bf16 %v2759, %v2758
      %v2820 = vpack.c.bf16 %v2761, %v2760
      %v2821 = vpack.c.bf16 %v2763, %v2762
      %v2822 = vpack.c.bf16 %v2765, %v2764
      %v2823 = vpack.c.bf16 %v2767, %v2766
      %v2824 = vpack.c.bf16 %v2769, %v2768
      %v2825 = vpack.c.bf16 %v2771, %v2770
      %v2826 = vpack.c.bf16 %v2773, %v2772
      %v2827 = vpack.c.bf16 %v2775, %v2774
      %v2828 = vpack.c.bf16 %v2777, %v2776
      %v2829 = vpack.c.bf16 %v2779, %v2778
      %v2830 = vpack.c.bf16 %v2781, %v2780
      %v2831 = vpack.c.bf16 %v2783, %v2782
      %v2832 = vpack.c.bf16 %v2785, %v2784
      %v2833 = vpack.c.bf16 %v2787, %v2786
      %v2834 = vpack.c.bf16 %v2789, %v2788
      %v2835 = vpack.c.bf16 %v2791, %v2790
      %v2836 = vpack.c.bf16 %v2793, %v2792
      %v2837 = vpack.c.bf16 %v2795, %v2794
      %v2838 = vpack.c.bf16 %v2797, %v2796
      %v2839 = vpack.c.bf16 %v2799, %v2798
      %v2840 = vpack.c.bf16 %v2801, %v2800
      %v2841 = vpack.c.bf16 %v2803, %v2802
      %v2842 = vpack.c.bf16 %v2805, %v2804
      %v2843 = vpack.c.bf16 %v2807, %v2806
      %v2844 = vpack.c.bf16 %v2809, %v2808
      %v2845 = vpack.c.bf16 %v2811, %v2810
      %v2846 = vpack.c.bf16 %v2813, %v2812
      %v2847 = vpack.c.bf16 %v2815, %v2814
      %s2848 = scalar_lea.vmem %s1, 4
      %v2849 = vld [vmem:[%s2848] sm:$0x1]
      %v2851 = vsel %vm874, %v2816, 0
      %v2854 = vsel %vm874, %v2817, 0
      %v2857 = vsel %vm874, %v2818, 0
      %v2860 = vsel %vm874, %v2819, 0
      %v2863 = vsel %vm874, %v2820, 0
      %v2866 = vsel %vm874, %v2821, 0
      %v2869 = vsel %vm874, %v2822, 0
      %v2872 = vsel %vm874, %v2823, 0
      %v2875 = vsel %vm874, %v2824, 0
      %v2878 = vsel %vm874, %v2825, 0
      %v2881 = vsel %vm874, %v2826, 0
      %v2884 = vsel %vm874, %v2827, 0
      %v2887 = vsel %vm874, %v2828, 0
      %v2890 = vsel %vm874, %v2829, 0
      %v2893 = vsel %vm874, %v2830, 0
      %v2896 = vsel %vm874, %v2831, 0
      %v2899 = vsel %vm874, %v2832, 0
      %v2902 = vsel %vm874, %v2833, 0
      %v2905 = vsel %vm874, %v2834, 0
      %v2908 = vsel %vm874, %v2835, 0
      %v2911 = vsel %vm874, %v2836, 0
      %v2914 = vsel %vm874, %v2837, 0
      %v2917 = vsel %vm874, %v2838, 0
      %v2920 = vsel %vm874, %v2839, 0
      %v2923 = vsel %vm874, %v2840, 0
      %v2926 = vsel %vm874, %v2841, 0
      %v2929 = vsel %vm874, %v2842, 0
      %v2932 = vsel %vm874, %v2843, 0
      %v2935 = vsel %vm874, %v2844, 0
      %v2938 = vsel %vm874, %v2845, 0
      %v2941 = vsel %vm874, %v2846, 0
      %v2944 = vsel %vm874, %v2847, 0
      %v2947 = vsel %vm971, %v2849, 0
      %2949 = vmatprep.subr.bf16.mxu0 0
      %2950 = vmatpush1.bf16.msra.mxu0 %v2947
      %2951 = vmatprep.subr.bf16.mxu0 0
      %2952 = vmatpush1.bf16.msra.mxu0 0
      %2953 = vmatprep.subr.bf16.mxu0 0
      %2954 = vmatpush1.bf16.msra.mxu0 0
      %2955 = vmatprep.subr.bf16.mxu0 0
      %2956 = vmatpush1.bf16.msra.mxu0 0
      %2957 = vmatprep.subr.bf16.mxu0 0
      %2958 = vmatpush1.bf16.msra.mxu0 0
      %2959 = vmatprep.subr.bf16.mxu0 0
      %2960 = vmatpush1.bf16.msra.mxu0 0
      %2961 = vmatprep.subr.bf16.mxu0 0
      %2962 = vmatpush1.bf16.msra.mxu0 0
      %2963 = vmatprep.subr.bf16.mxu0 0
      %2964 = vmatpush1.bf16.msra.mxu0 0
      %2965 = vmatprep.subr.bf16.mxu0 0
      %2966 = vmatpush1.bf16.msra.mxu0 0
      %2967 = vmatprep.subr.bf16.mxu0 0
      %2968 = vmatpush1.bf16.msra.mxu0 0
      %2969 = vmatprep.subr.bf16.mxu0 0
      %2970 = vmatpush1.bf16.msra.mxu0 0
      %2971 = vmatprep.subr.bf16.mxu0 0
      %2972 = vmatpush1.bf16.msra.mxu0 0
      %2973 = vmatprep.subr.bf16.mxu0 0
      %2974 = vmatpush1.bf16.msra.mxu0 0
      %2975 = vmatprep.subr.bf16.mxu0 0
      %2976 = vmatpush1.bf16.msra.mxu0 0
      %2977 = vmatprep.subr.bf16.mxu0 0
      %2978 = vmatpush1.bf16.msra.mxu0 0
      %2979 = vmatprep.subr.bf16.mxu0 0
      %2980 = vmatpush1.bf16.msra.mxu0 0
      %2981 = vmatprep.mubr.bf16.mxu0 0
      %2982 = vmatmul.mubr.bf16.gmra.mrb[0].mxu0 %v2851
      %v2983 = vpop.f32.mrb[0].mxu0
      %v2984 = vadd.f32 0.0, %v2983
      %v2985 = vpop.f32.mrb[0].mxu0
      %v2986 = vpop.f32.mrb[0].mxu0
      %v2987 = vadd.f32 0.0, %v2986
      %v2988 = vpop.f32.mrb[0].mxu0
      %2989 = vmatprep.mubr.bf16.mxu0 0
      %2990 = vmatmul.mubr.bf16.gmra.mrb[0].mxu0 %v2854
      %v2991 = vpop.f32.mrb[0].mxu0
      %v2992 = vadd.f32 0.0, %v2991
      %v2993 = vpop.f32.mrb[0].mxu0
      %v2994 = vpop.f32.mrb[0].mxu0
      %v2995 = vadd.f32 0.0, %v2994
      %v2996 = vpop.f32.mrb[0].mxu0
      %2997 = vmatprep.mubr.bf16.mxu0 0
      %2998 = vmatmul.mubr.bf16.gmra.mrb[0].mxu0 %v2857
      %v2999 = vpop.f32.mrb[0].mxu0
      %v3000 = vadd.f32 0.0, %v2999
      %v3001 = vpop.f32.mrb[0].mxu0
      %v3002 = vpop.f32.mrb[0].mxu0
      %v3003 = vadd.f32 0.0, %v3002
      %v3004 = vpop.f32.mrb[0].mxu0
      %3005 = vmatprep.mubr.bf16.mxu0 0
      %3006 = vmatmul.mubr.bf16.gmra.mrb[0].mxu0 %v2860
      %v3007 = vpop.f32.mrb[0].mxu0
      %v3008 = vadd.f32 0.0, %v3007
      %v3009 = vpop.f32.mrb[0].mxu0
      %v3010 = vpop.f32.mrb[0].mxu0
      %v3011 = vadd.f32 0.0, %v3010
      %v3012 = vpop.f32.mrb[0].mxu0
      %3013 = vmatprep.mubr.bf16.mxu0 0
      %3014 = vmatmul.mubr.bf16.gmra.mrb[0].mxu0 %v2863
      %v3015 = vpop.f32.mrb[0].mxu0
      %v3016 = vadd.f32 0.0, %v3015
      %v3017 = vpop.f32.mrb[0].mxu0
      %v3018 = vpop.f32.mrb[0].mxu0
      %v3019 = vadd.f32 0.0, %v3018
      %v3020 = vpop.f32.mrb[0].mxu0
      %3021 = vmatprep.mubr.bf16.mxu0 0
      %3022 = vmatmul.mubr.bf16.gmra.mrb[0].mxu0 %v2866
      %v3023 = vpop.f32.mrb[0].mxu0
      %v3024 = vadd.f32 0.0, %v3023
      %v3025 = vpop.f32.mrb[0].mxu0
      %v3026 = vpop.f32.mrb[0].mxu0
      %v3027 = vadd.f32 0.0, %v3026
      %v3028 = vpop.f32.mrb[0].mxu0
      %3029 = vmatprep.mubr.bf16.mxu0 0
      %3030 = vmatmul.mubr.bf16.gmra.mrb[0].mxu0 %v2869
      %v3031 = vpop.f32.mrb[0].mxu0
      %v3032 = vadd.f32 0.0, %v3031
      %v3033 = vpop.f32.mrb[0].mxu0
      %v3034 = vpop.f32.mrb[0].mxu0
      %v3035 = vadd.f32 0.0, %v3034
      %v3036 = vpop.f32.mrb[0].mxu0
      %3037 = vmatprep.mubr.bf16.mxu0 0
      %3038 = vmatmul.mubr.bf16.gmra.mrb[0].mxu0 %v2872
      %v3039 = vpop.f32.mrb[0].mxu0
      %v3040 = vadd.f32 0.0, %v3039
      %v3041 = vpop.f32.mrb[0].mxu0
      %v3042 = vpop.f32.mrb[0].mxu0
      %v3043 = vadd.f32 0.0, %v3042
      %v3044 = vpop.f32.mrb[0].mxu0
      %3045 = vmatprep.mubr.bf16.mxu0 0
      %3046 = vmatmul.mubr.bf16.gmra.mrb[0].mxu0 %v2875
      %v3047 = vpop.f32.mrb[0].mxu0
      %v3048 = vadd.f32 0.0, %v3047
      %v3049 = vpop.f32.mrb[0].mxu0
      %v3050 = vpop.f32.mrb[0].mxu0
      %v3051 = vadd.f32 0.0, %v3050
      %v3052 = vpop.f32.mrb[0].mxu0
      %3053 = vmatprep.mubr.bf16.mxu0 0
      %3054 = vmatmul.mubr.bf16.gmra.mrb[0].mxu0 %v2878
      %v3055 = vpop.f32.mrb[0].mxu0
      %v3056 = vadd.f32 0.0, %v3055
      %v3057 = vpop.f32.mrb[0].mxu0
      %v3058 = vpop.f32.mrb[0].mxu0
      %v3059 = vadd.f32 0.0, %v3058
      %v3060 = vpop.f32.mrb[0].mxu0
      %3061 = vmatprep.mubr.bf16.mxu0 0
      %3062 = vmatmul.mubr.bf16.gmra.mrb[0].mxu0 %v2881
      %v3063 = vpop.f32.mrb[0].mxu0
      %v3064 = vadd.f32 0.0, %v3063
      %v3065 = vpop.f32.mrb[0].mxu0
      %v3066 = vpop.f32.mrb[0].mxu0
      %v3067 = vadd.f32 0.0, %v3066
      %v3068 = vpop.f32.mrb[0].mxu0
      %3069 = vmatprep.mubr.bf16.mxu0 0
      %3070 = vmatmul.mubr.bf16.gmra.mrb[0].mxu0 %v2884
      %v3071 = vpop.f32.mrb[0].mxu0
      %v3072 = vadd.f32 0.0, %v3071
      %v3073 = vpop.f32.mrb[0].mxu0
      %v3074 = vpop.f32.mrb[0].mxu0
      %v3075 = vadd.f32 0.0, %v3074
      %v3076 = vpop.f32.mrb[0].mxu0
      %3077 = vmatprep.mubr.bf16.mxu0 0
      %3078 = vmatmul.mubr.bf16.gmra.mrb[0].mxu0 %v2887
      %v3079 = vpop.f32.mrb[0].mxu0
      %v3080 = vadd.f32 0.0, %v3079
      %v3081 = vpop.f32.mrb[0].mxu0
      %v3082 = vpop.f32.mrb[0].mxu0
      %v3083 = vadd.f32 0.0, %v3082
      %v3084 = vpop.f32.mrb[0].mxu0
      %3085 = vmatprep.mubr.bf16.mxu0 0
      %3086 = vmatmul.mubr.bf16.gmra.mrb[0].mxu0 %v2890
      %v3087 = vpop.f32.mrb[0].mxu0
      %v3088 = vadd.f32 0.0, %v3087
      %v3089 = vpop.f32.mrb[0].mxu0
      %v3090 = vpop.f32.mrb[0].mxu0
      %v3091 = vadd.f32 0.0, %v3090
      %v3092 = vpop.f32.mrb[0].mxu0
      %3093 = vmatprep.mubr.bf16.mxu0 0
      %3094 = vmatmul.mubr.bf16.gmra.mrb[0].mxu0 %v2893
      %v3095 = vpop.f32.mrb[0].mxu0
      %v3096 = vadd.f32 0.0, %v3095
      %v3097 = vpop.f32.mrb[0].mxu0
      %v3098 = vpop.f32.mrb[0].mxu0
      %v3099 = vadd.f32 0.0, %v3098
      %v3100 = vpop.f32.mrb[0].mxu0
      %3101 = vmatprep.mubr.bf16.mxu0 0
      %3102 = vmatmul.mubr.bf16.gmra.mrb[0].mxu0 %v2896
      %v3103 = vpop.f32.mrb[0].mxu0
      %v3104 = vadd.f32 0.0, %v3103
      %v3105 = vpop.f32.mrb[0].mxu0
      %v3106 = vpop.f32.mrb[0].mxu0
      %v3107 = vadd.f32 0.0, %v3106
      %v3108 = vpop.f32.mrb[0].mxu0
      %3109 = vmatprep.mubr.bf16.mxu0 0
      %3110 = vmatmul.mubr.bf16.gmra.mrb[0].mxu0 %v2899
      %v3111 = vpop.f32.mrb[0].mxu0
      %v3112 = vadd.f32 0.0, %v3111
      %v3113 = vpop.f32.mrb[0].mxu0
      %v3114 = vpop.f32.mrb[0].mxu0
      %v3115 = vadd.f32 0.0, %v3114
      %v3116 = vpop.f32.mrb[0].mxu0
      %3117 = vmatprep.mubr.bf16.mxu0 0
      %3118 = vmatmul.mubr.bf16.gmra.mrb[0].mxu0 %v2902
      %v3119 = vpop.f32.mrb[0].mxu0
      %v3120 = vadd.f32 0.0, %v3119
      %v3121 = vpop.f32.mrb[0].mxu0
      %v3122 = vpop.f32.mrb[0].mxu0
      %v3123 = vadd.f32 0.0, %v3122
      %v3124 = vpop.f32.mrb[0].mxu0
      %3125 = vmatprep.mubr.bf16.mxu0 0
      %3126 = vmatmul.mubr.bf16.gmra.mrb[0].mxu0 %v2905
      %v3127 = vpop.f32.mrb[0].mxu0
      %v3128 = vadd.f32 0.0, %v3127
      %v3129 = vpop.f32.mrb[0].mxu0
      %v3130 = vpop.f32.mrb[0].mxu0
      %v3131 = vadd.f32 0.0, %v3130
      %v3132 = vpop.f32.mrb[0].mxu0
      %3133 = vmatprep.mubr.bf16.mxu0 0
      %3134 = vmatmul.mubr.bf16.gmra.mrb[0].mxu0 %v2908
      %v3135 = vpop.f32.mrb[0].mxu0
      %v3136 = vadd.f32 0.0, %v3135
      %v3137 = vpop.f32.mrb[0].mxu0
      %v3138 = vpop.f32.mrb[0].mxu0
      %v3139 = vadd.f32 0.0, %v3138
      %v3140 = vpop.f32.mrb[0].mxu0
      %3141 = vmatprep.mubr.bf16.mxu0 0
      %3142 = vmatmul.mubr.bf16.gmra.mrb[0].mxu0 %v2911
      %v3143 = vpop.f32.mrb[0].mxu0
      %v3144 = vadd.f32 0.0, %v3143
      %v3145 = vpop.f32.mrb[0].mxu0
      %v3146 = vpop.f32.mrb[0].mxu0
      %v3147 = vadd.f32 0.0, %v3146
      %v3148 = vpop.f32.mrb[0].mxu0
      %3149 = vmatprep.mubr.bf16.mxu0 0
      %3150 = vmatmul.mubr.bf16.gmra.mrb[0].mxu0 %v2914
      %v3151 = vpop.f32.mrb[0].mxu0
      %v3152 = vadd.f32 0.0, %v3151
      %v3153 = vpop.f32.mrb[0].mxu0
      %v3154 = vpop.f32.mrb[0].mxu0
      %v3155 = vadd.f32 0.0, %v3154
      %v3156 = vpop.f32.mrb[0].mxu0
      %3157 = vmatprep.mubr.bf16.mxu0 0
      %3158 = vmatmul.mubr.bf16.gmra.mrb[0].mxu0 %v2917
      %v3159 = vpop.f32.mrb[0].mxu0
      %v3160 = vadd.f32 0.0, %v3159
      %v3161 = vpop.f32.mrb[0].mxu0
      %v3162 = vpop.f32.mrb[0].mxu0
      %v3163 = vadd.f32 0.0, %v3162
      %v3164 = vpop.f32.mrb[0].mxu0
      %3165 = vmatprep.mubr.bf16.mxu0 0
      %3166 = vmatmul.mubr.bf16.gmra.mrb[0].mxu0 %v2920
      %v3167 = vpop.f32.mrb[0].mxu0
      %v3168 = vadd.f32 0.0, %v3167
      %v3169 = vpop.f32.mrb[0].mxu0
      %v3170 = vpop.f32.mrb[0].mxu0
      %v3171 = vadd.f32 0.0, %v3170
      %v3172 = vpop.f32.mrb[0].mxu0
      %3173 = vmatprep.mubr.bf16.mxu0 0
      %3174 = vmatmul.mubr.bf16.gmra.mrb[0].mxu0 %v2923
      %v3175 = vpop.f32.mrb[0].mxu0
      %v3176 = vadd.f32 0.0, %v3175
      %v3177 = vpop.f32.mrb[0].mxu0
      %v3178 = vpop.f32.mrb[0].mxu0
      %v3179 = vadd.f32 0.0, %v3178
      %v3180 = vpop.f32.mrb[0].mxu0
      %3181 = vmatprep.mubr.bf16.mxu0 0
      %3182 = vmatmul.mubr.bf16.gmra.mrb[0].mxu0 %v2926
      %v3183 = vpop.f32.mrb[0].mxu0
      %v3184 = vadd.f32 0.0, %v3183
      %v3185 = vpop.f32.mrb[0].mxu0
      %v3186 = vpop.f32.mrb[0].mxu0
      %v3187 = vadd.f32 0.0, %v3186
      %v3188 = vpop.f32.mrb[0].mxu0
      %3189 = vmatprep.mubr.bf16.mxu0 0
      %3190 = vmatmul.mubr.bf16.gmra.mrb[0].mxu0 %v2929
      %v3191 = vpop.f32.mrb[0].mxu0
      %v3192 = vadd.f32 0.0, %v3191
      %v3193 = vpop.f32.mrb[0].mxu0
      %v3194 = vpop.f32.mrb[0].mxu0
      %v3195 = vadd.f32 0.0, %v3194
      %v3196 = vpop.f32.mrb[0].mxu0
      %3197 = vmatprep.mubr.bf16.mxu0 0
      %3198 = vmatmul.mubr.bf16.gmra.mrb[0].mxu0 %v2932
      %v3199 = vpop.f32.mrb[0].mxu0
      %v3200 = vadd.f32 0.0, %v3199
      %v3201 = vpop.f32.mrb[0].mxu0
      %v3202 = vpop.f32.mrb[0].mxu0
      %v3203 = vadd.f32 0.0, %v3202
      %v3204 = vpop.f32.mrb[0].mxu0
      %3205 = vmatprep.mubr.bf16.mxu0 0
      %3206 = vmatmul.mubr.bf16.gmra.mrb[0].mxu0 %v2935
      %v3207 = vpop.f32.mrb[0].mxu0
      %v3208 = vadd.f32 0.0, %v3207
      %v3209 = vpop.f32.mrb[0].mxu0
      %v3210 = vpop.f32.mrb[0].mxu0
      %v3211 = vadd.f32 0.0, %v3210
      %v3212 = vpop.f32.mrb[0].mxu0
      %3213 = vmatprep.mubr.bf16.mxu0 0
      %3214 = vmatmul.mubr.bf16.gmra.mrb[0].mxu0 %v2938
      %v3215 = vpop.f32.mrb[0].mxu0
      %v3216 = vadd.f32 0.0, %v3215
      %v3217 = vpop.f32.mrb[0].mxu0
      %v3218 = vpop.f32.mrb[0].mxu0
      %v3219 = vadd.f32 0.0, %v3218
      %v3220 = vpop.f32.mrb[0].mxu0
      %3221 = vmatprep.mubr.bf16.mxu0 0
      %3222 = vmatmul.mubr.bf16.gmra.mrb[0].mxu0 %v2941
      %v3223 = vpop.f32.mrb[0].mxu0
      %v3224 = vadd.f32 0.0, %v3223
      %v3225 = vpop.f32.mrb[0].mxu0
      %v3226 = vpop.f32.mrb[0].mxu0
      %v3227 = vadd.f32 0.0, %v3226
      %v3228 = vpop.f32.mrb[0].mxu0
      %3229 = vmatprep.mubr.bf16.mxu0 0
      %3230 = vmatmul.mubr.bf16.gmra.mrb[0].mxu0 %v2944
      %v3231 = vpop.f32.mrb[0].mxu0
      %v3232 = vadd.f32 0.0, %v3231
      %v3233 = vpop.f32.mrb[0].mxu0
      %v3234 = vpop.f32.mrb[0].mxu0
      %v3235 = vadd.f32 0.0, %v3234
      %v3236 = vpop.f32.mrb[0].mxu0
      %3237 = vdwg.mxu0
      %v3238 = vadd.f32 %v2688, %v2984
      %v3239 = vadd.f32 %v2689, %v2987
      %v3240 = vadd.f32 %v2690, %v2992
      %v3241 = vadd.f32 %v2691, %v2995
      %v3242 = vadd.f32 %v2692, %v3000
      %v3243 = vadd.f32 %v2693, %v3003
      %v3244 = vadd.f32 %v2694, %v3008
      %v3245 = vadd.f32 %v2695, %v3011
      %v3246 = vadd.f32 %v2696, %v3016
      %v3247 = vadd.f32 %v2697, %v3019
      %v3248 = vadd.f32 %v2698, %v3024
      %v3249 = vadd.f32 %v2699, %v3027
      %v3250 = vadd.f32 %v2700, %v3032
      %v3251 = vadd.f32 %v2701, %v3035
      %v3252 = vadd.f32 %v2702, %v3040
      %v3253 = vadd.f32 %v2703, %v3043
      %v3254 = vadd.f32 %v2704, %v3048
      %v3255 = vadd.f32 %v2705, %v3051
      %v3256 = vadd.f32 %v2706, %v3056
      %v3257 = vadd.f32 %v2707, %v3059
      %v3258 = vadd.f32 %v2708, %v3064
      %v3259 = vadd.f32 %v2709, %v3067
      %v3260 = vadd.f32 %v2710, %v3072
      %v3261 = vadd.f32 %v2711, %v3075
      %v3262 = vadd.f32 %v2712, %v3080
      %v3263 = vadd.f32 %v2713, %v3083
      %v3264 = vadd.f32 %v2714, %v3088
      %v3265 = vadd.f32 %v2715, %v3091
      %v3266 = vadd.f32 %v2716, %v3096
      %v3267 = vadd.f32 %v2717, %v3099
      %v3268 = vadd.f32 %v2718, %v3104
      %v3269 = vadd.f32 %v2719, %v3107
      %v3270 = vadd.f32 %v2720, %v3112
      %v3271 = vadd.f32 %v2721, %v3115
      %v3272 = vadd.f32 %v2722, %v3120
      %v3273 = vadd.f32 %v2723, %v3123
      %v3274 = vadd.f32 %v2724, %v3128
      %v3275 = vadd.f32 %v2725, %v3131
      %v3276 = vadd.f32 %v2726, %v3136
      %v3277 = vadd.f32 %v2727, %v3139
      %v3278 = vadd.f32 %v2728, %v3144
      %v3279 = vadd.f32 %v2729, %v3147
      %v3280 = vadd.f32 %v2730, %v3152
      %v3281 = vadd.f32 %v2731, %v3155
      %v3282 = vadd.f32 %v2732, %v3160
      %v3283 = vadd.f32 %v2733, %v3163
      %v3284 = vadd.f32 %v2734, %v3168
      %v3285 = vadd.f32 %v2735, %v3171
      %v3286 = vadd.f32 %v2736, %v3176
      %v3287 = vadd.f32 %v2737, %v3179
      %v3288 = vadd.f32 %v2738, %v3184
      %v3289 = vadd.f32 %v2739, %v3187
      %v3290 = vadd.f32 %v2740, %v3192
      %v3291 = vadd.f32 %v2741, %v3195
      %v3292 = vadd.f32 %v2742, %v3200
      %v3293 = vadd.f32 %v2743, %v3203
      %v3294 = vadd.f32 %v2744, %v3208
      %v3295 = vadd.f32 %v2745, %v3211
      %v3296 = vadd.f32 %v2746, %v3216
      %v3297 = vadd.f32 %v2747, %v3219
      %v3298 = vadd.f32 %v2748, %v3224
      %v3299 = vadd.f32 %v2749, %v3227
      %v3300 = vadd.f32 %v2750, %v3232
      %v3301 = vadd.f32 %v2751, %v3235
      %v3302 = vld [vmem:[%s2] sm:$0x1]
      %v3304 = vlaneseq
      %v3305 = vshrl.u32 %v3304, 7
      %v3306 = vsub.s32 0, %v3305
      %v3307 = vrot.slane %v3302, %v3306
      %v3309 = vadd.f32 %v3238, %v3307
      %v3310 = vadd.f32 %v3239, %v3307
      %v3311 = vadd.f32 %v3240, %v3307
      %v3312 = vadd.f32 %v3241, %v3307
      %v3313 = vadd.f32 %v3242, %v3307
      %v3314 = vadd.f32 %v3243, %v3307
      %v3315 = vadd.f32 %v3244, %v3307
      %v3316 = vadd.f32 %v3245, %v3307
      %v3317 = vadd.f32 %v3246, %v3307
      %v3318 = vadd.f32 %v3247, %v3307
      %v3319 = vadd.f32 %v3248, %v3307
      %v3320 = vadd.f32 %v3249, %v3307
      %v3321 = vadd.f32 %v3250, %v3307
      %v3322 = vadd.f32 %v3251, %v3307
      %v3323 = vadd.f32 %v3252, %v3307
      %v3324 = vadd.f32 %v3253, %v3307
      %v3325 = vadd.f32 %v3254, %v3307
      %v3326 = vadd.f32 %v3255, %v3307
      %v3327 = vadd.f32 %v3256, %v3307
      %v3328 = vadd.f32 %v3257, %v3307
      %v3329 = vadd.f32 %v3258, %v3307
      %v3330 = vadd.f32 %v3259, %v3307
      %v3331 = vadd.f32 %v3260, %v3307
      %v3332 = vadd.f32 %v3261, %v3307
      %v3333 = vadd.f32 %v3262, %v3307
      %v3334 = vadd.f32 %v3263, %v3307
      %v3335 = vadd.f32 %v3264, %v3307
      %v3336 = vadd.f32 %v3265, %v3307
      %v3337 = vadd.f32 %v3266, %v3307
      %v3338 = vadd.f32 %v3267, %v3307
      %v3339 = vadd.f32 %v3268, %v3307
      %v3340 = vadd.f32 %v3269, %v3307
      %v3341 = vadd.f32 %v3270, %v3307
      %v3342 = vadd.f32 %v3271, %v3307
      %v3343 = vadd.f32 %v3272, %v3307
      %v3344 = vadd.f32 %v3273, %v3307
      %v3345 = vadd.f32 %v3274, %v3307
      %v3346 = vadd.f32 %v3275, %v3307
      %v3347 = vadd.f32 %v3276, %v3307
      %v3348 = vadd.f32 %v3277, %v3307
      %v3349 = vadd.f32 %v3278, %v3307
      %v3350 = vadd.f32 %v3279, %v3307
      %v3351 = vadd.f32 %v3280, %v3307
      %v3352 = vadd.f32 %v3281, %v3307
      %v3353 = vadd.f32 %v3282, %v3307
      %v3354 = vadd.f32 %v3283, %v3307
      %v3355 = vadd.f32 %v3284, %v3307
      %v3356 = vadd.f32 %v3285, %v3307
      %v3357 = vadd.f32 %v3286, %v3307
      %v3358 = vadd.f32 %v3287, %v3307
      %v3359 = vadd.f32 %v3288, %v3307
      %v3360 = vadd.f32 %v3289, %v3307
      %v3361 = vadd.f32 %v3290, %v3307
      %v3362 = vadd.f32 %v3291, %v3307
      %v3363 = vadd.f32 %v3292, %v3307
      %v3364 = vadd.f32 %v3293, %v3307
      %v3365 = vadd.f32 %v3294, %v3307
      %v3366 = vadd.f32 %v3295, %v3307
      %v3367 = vadd.f32 %v3296, %v3307
      %v3368 = vadd.f32 %v3297, %v3307
      %v3369 = vadd.f32 %v3298, %v3307
      %v3370 = vadd.f32 %v3299, %v3307
      %v3371 = vadd.f32 %v3300, %v3307
      %v3372 = vadd.f32 %v3301, %v3307
      %v3373 = vmax.f32 %v3309, 0.0
      %v3374 = vmax.f32 %v3310, 0.0
      %v3375 = vmax.f32 %v3311, 0.0
      %v3376 = vmax.f32 %v3312, 0.0
      %v3377 = vmax.f32 %v3313, 0.0
      %v3378 = vmax.f32 %v3314, 0.0
      %v3379 = vmax.f32 %v3315, 0.0
      %v3380 = vmax.f32 %v3316, 0.0
      %v3381 = vmax.f32 %v3317, 0.0
      %v3382 = vmax.f32 %v3318, 0.0
      %v3383 = vmax.f32 %v3319, 0.0
      %v3384 = vmax.f32 %v3320, 0.0
      %v3385 = vmax.f32 %v3321, 0.0
      %v3386 = vmax.f32 %v3322, 0.0
      %v3387 = vmax.f32 %v3323, 0.0
      %v3388 = vmax.f32 %v3324, 0.0
      %v3389 = vmax.f32 %v3325, 0.0
      %v3390 = vmax.f32 %v3326, 0.0
      %v3391 = vmax.f32 %v3327, 0.0
      %v3392 = vmax.f32 %v3328, 0.0
      %v3393 = vmax.f32 %v3329, 0.0
      %v3394 = vmax.f32 %v3330, 0.0
      %v3395 = vmax.f32 %v3331, 0.0
      %v3396 = vmax.f32 %v3332, 0.0
      %v3397 = vmax.f32 %v3333, 0.0
      %v3398 = vmax.f32 %v3334, 0.0
      %v3399 = vmax.f32 %v3335, 0.0
      %v3400 = vmax.f32 %v3336, 0.0
      %v3401 = vmax.f32 %v3337, 0.0
      %v3402 = vmax.f32 %v3338, 0.0
      %v3403 = vmax.f32 %v3339, 0.0
      %v3404 = vmax.f32 %v3340, 0.0
      %v3405 = vmax.f32 %v3341, 0.0
      %v3406 = vmax.f32 %v3342, 0.0
      %v3407 = vmax.f32 %v3343, 0.0
      %v3408 = vmax.f32 %v3344, 0.0
      %v3409 = vmax.f32 %v3345, 0.0
      %v3410 = vmax.f32 %v3346, 0.0
      %v3411 = vmax.f32 %v3347, 0.0
      %v3412 = vmax.f32 %v3348, 0.0
      %v3413 = vmax.f32 %v3349, 0.0
      %v3414 = vmax.f32 %v3350, 0.0
      %v3415 = vmax.f32 %v3351, 0.0
      %v3416 = vmax.f32 %v3352, 0.0
      %v3417 = vmax.f32 %v3353, 0.0
      %v3418 = vmax.f32 %v3354, 0.0
      %v3419 = vmax.f32 %v3355, 0.0
      %v3420 = vmax.f32 %v3356, 0.0
      %v3421 = vmax.f32 %v3357, 0.0
      %v3422 = vmax.f32 %v3358, 0.0
      %v3423 = vmax.f32 %v3359, 0.0
      %v3424 = vmax.f32 %v3360, 0.0
      %v3425 = vmax.f32 %v3361, 0.0
      %v3426 = vmax.f32 %v3362, 0.0
      %v3427 = vmax.f32 %v3363, 0.0
      %v3428 = vmax.f32 %v3364, 0.0
      %v3429 = vmax.f32 %v3365, 0.0
      %v3430 = vmax.f32 %v3366, 0.0
      %v3431 = vmax.f32 %v3367, 0.0
      %v3432 = vmax.f32 %v3368, 0.0
      %v3433 = vmax.f32 %v3369, 0.0
      %v3434 = vmax.f32 %v3370, 0.0
      %v3435 = vmax.f32 %v3371, 0.0
      %v3436 = vmax.f32 %v3372, 0.0
      %vm3437 = vcmask 64512
      %3438 = vst.msk [vmem:[#allocation2] sm:$0xff] %vm3437, %v3373
      %3439 = vst.msk [vmem:[#allocation2 + $0x8] sm:$0xff] %vm3437, %v3374
      %3440 = vst.msk [vmem:[#allocation2 + $0x10] sm:$0xff] %vm3437, %v3375
      %3441 = vst.msk [vmem:[#allocation2 + $0x18] sm:$0xff] %vm3437, %v3376
      %3442 = vst.msk [vmem:[#allocation2 + $0x20] sm:$0xff] %vm3437, %v3377
      %3443 = vst.msk [vmem:[#allocation2 + $0x28] sm:$0xff] %vm3437, %v3378
      %3444 = vst.msk [vmem:[#allocation2 + $0x30] sm:$0xff] %vm3437, %v3379
      %3445 = vst.msk [vmem:[#allocation2 + $0x38] sm:$0xff] %vm3437, %v3380
      %3446 = vst.msk [vmem:[#allocation2 + $0x40] sm:$0xff] %vm3437, %v3381
      %3447 = vst.msk [vmem:[#allocation2 + $0x48] sm:$0xff] %vm3437, %v3382
      %3448 = vst.msk [vmem:[#allocation2 + $0x50] sm:$0xff] %vm3437, %v3383
      %3449 = vst.msk [vmem:[#allocation2 + $0x58] sm:$0xff] %vm3437, %v3384
      %3450 = vst.msk [vmem:[#allocation2 + $0x60] sm:$0xff] %vm3437, %v3385
      %3451 = vst.msk [vmem:[#allocation2 + $0x68] sm:$0xff] %vm3437, %v3386
      %3452 = vst.msk [vmem:[#allocation2 + $0x70] sm:$0xff] %vm3437, %v3387
      %3453 = vst.msk [vmem:[#allocation2 + $0x78] sm:$0xff] %vm3437, %v3388
      %3454 = vst.msk [vmem:[#allocation2 + $0x80] sm:$0xff] %vm3437, %v3389
      %3455 = vst.msk [vmem:[#allocation2 + $0x88] sm:$0xff] %vm3437, %v3390
      %3456 = vst.msk [vmem:[#allocation2 + $0x90] sm:$0xff] %vm3437, %v3391
      %3457 = vst.msk [vmem:[#allocation2 + $0x98] sm:$0xff] %vm3437, %v3392
      %3458 = vst.msk [vmem:[#allocation2 + $0xa0] sm:$0xff] %vm3437, %v3393
      %3459 = vst.msk [vmem:[#allocation2 + $0xa8] sm:$0xff] %vm3437, %v3394
      %3460 = vst.msk [vmem:[#allocation2 + $0xb0] sm:$0xff] %vm3437, %v3395
      %3461 = vst.msk [vmem:[#allocation2 + $0xb8] sm:$0xff] %vm3437, %v3396
      %3462 = vst.msk [vmem:[#allocation2 + $0xc0] sm:$0xff] %vm3437, %v3397
      %3463 = vst.msk [vmem:[#allocation2 + $0xc8] sm:$0xff] %vm3437, %v3398
      %3464 = vst.msk [vmem:[#allocation2 + $0xd0] sm:$0xff] %vm3437, %v3399
      %3465 = vst.msk [vmem:[#allocation2 + $0xd8] sm:$0xff] %vm3437, %v3400
      %3466 = vst.msk [vmem:[#allocation2 + $0xe0] sm:$0xff] %vm3437, %v3401
      %3467 = vst.msk [vmem:[#allocation2 + $0xe8] sm:$0xff] %vm3437, %v3402
      %3468 = vst.msk [vmem:[#allocation2 + $0xf0] sm:$0xff] %vm3437, %v3403
      %3469 = vst.msk [vmem:[#allocation2 + $0xf8] sm:$0xff] %vm3437, %v3404
      %3470 = vst.msk [vmem:[#allocation2 + $0x100] sm:$0xff] %vm3437, %v3405
      %3471 = vst.msk [vmem:[#allocation2 + $0x108] sm:$0xff] %vm3437, %v3406
      %3472 = vst.msk [vmem:[#allocation2 + $0x110] sm:$0xff] %vm3437, %v3407
      %3473 = vst.msk [vmem:[#allocation2 + $0x118] sm:$0xff] %vm3437, %v3408
      %3474 = vst.msk [vmem:[#allocation2 + $0x120] sm:$0xff] %vm3437, %v3409
      %3475 = vst.msk [vmem:[#allocation2 + $0x128] sm:$0xff] %vm3437, %v3410
      %3476 = vst.msk [vmem:[#allocation2 + $0x130] sm:$0xff] %vm3437, %v3411
      %3477 = vst.msk [vmem:[#allocation2 + $0x138] sm:$0xff] %vm3437, %v3412
      %3478 = vst.msk [vmem:[#allocation2 + $0x140] sm:$0xff] %vm3437, %v3413
      %3479 = vst.msk [vmem:[#allocation2 + $0x148] sm:$0xff] %vm3437, %v3414
      %3480 = vst.msk [vmem:[#allocation2 + $0x150] sm:$0xff] %vm3437, %v3415
      %3481 = vst.msk [vmem:[#allocation2 + $0x158] sm:$0xff] %vm3437, %v3416
      %3482 = vst.msk [vmem:[#allocation2 + $0x160] sm:$0xff] %vm3437, %v3417
      %3483 = vst.msk [vmem:[#allocation2 + $0x168] sm:$0xff] %vm3437, %v3418
      %3484 = vst.msk [vmem:[#allocation2 + $0x170] sm:$0xff] %vm3437, %v3419
      %3485 = vst.msk [vmem:[#allocation2 + $0x178] sm:$0xff] %vm3437, %v3420
      %3486 = vst.msk [vmem:[#allocation2 + $0x180] sm:$0xff] %vm3437, %v3421
      %3487 = vst.msk [vmem:[#allocation2 + $0x188] sm:$0xff] %vm3437, %v3422
      %3488 = vst.msk [vmem:[#allocation2 + $0x190] sm:$0xff] %vm3437, %v3423
      %3489 = vst.msk [vmem:[#allocation2 + $0x198] sm:$0xff] %vm3437, %v3424
      %3490 = vst.msk [vmem:[#allocation2 + $0x1a0] sm:$0xff] %vm3437, %v3425
      %3491 = vst.msk [vmem:[#allocation2 + $0x1a8] sm:$0xff] %vm3437, %v3426
      %3492 = vst.msk [vmem:[#allocation2 + $0x1b0] sm:$0xff] %vm3437, %v3427
      %3493 = vst.msk [vmem:[#allocation2 + $0x1b8] sm:$0xff] %vm3437, %v3428
      %3494 = vst.msk [vmem:[#allocation2 + $0x1c0] sm:$0xff] %vm3437, %v3429
      %3495 = vst.msk [vmem:[#allocation2 + $0x1c8] sm:$0xff] %vm3437, %v3430
      %3496 = vst.msk [vmem:[#allocation2 + $0x1d0] sm:$0xff] %vm3437, %v3431
      %3497 = vst.msk [vmem:[#allocation2 + $0x1d8] sm:$0xff] %vm3437, %v3432
      %3498 = vst.msk [vmem:[#allocation2 + $0x1e0] sm:$0xff] %vm3437, %v3433
      %3499 = vst.msk [vmem:[#allocation2 + $0x1e8] sm:$0xff] %vm3437, %v3434
      %3500 = vst.msk [vmem:[#allocation2 + $0x1f0] sm:$0xff] %vm3437, %v3435
      %3501 = vst.msk [vmem:[#allocation2 + $0x1f8] sm:$0xff] %vm3437, %v3436
      %v3502 = vld [vmem:[#allocation2] sm:$0xff]
      %v3503 = vld [vmem:[#allocation2 + $0x8] sm:$0xff]
      %v3504 = vld [vmem:[#allocation2 + $0x10] sm:$0xff]
      %v3505 = vld [vmem:[#allocation2 + $0x18] sm:$0xff]
      %v3506 = vld [vmem:[#allocation2 + $0x20] sm:$0xff]
      %v3507 = vld [vmem:[#allocation2 + $0x28] sm:$0xff]
      %v3508 = vld [vmem:[#allocation2 + $0x30] sm:$0xff]
      %v3509 = vld [vmem:[#allocation2 + $0x38] sm:$0xff]
      %v3510 = vld [vmem:[#allocation2 + $0x40] sm:$0xff]
      %v3511 = vld [vmem:[#allocation2 + $0x48] sm:$0xff]
      %v3512 = vld [vmem:[#allocation2 + $0x50] sm:$0xff]
      %v3513 = vld [vmem:[#allocation2 + $0x58] sm:$0xff]
      %v3514 = vld [vmem:[#allocation2 + $0x60] sm:$0xff]
      %v3515 = vld [vmem:[#allocation2 + $0x68] sm:$0xff]
      %v3516 = vld [vmem:[#allocation2 + $0x70] sm:$0xff]
      %v3517 = vld [vmem:[#allocation2 + $0x78] sm:$0xff]
      %v3518 = vld [vmem:[#allocation2 + $0x80] sm:$0xff]
      %v3519 = vld [vmem:[#allocation2 + $0x88] sm:$0xff]
      %v3520 = vld [vmem:[#allocation2 + $0x90] sm:$0xff]
      %v3521 = vld [vmem:[#allocation2 + $0x98] sm:$0xff]
      %v3522 = vld [vmem:[#allocation2 + $0xa0] sm:$0xff]
      %v3523 = vld [vmem:[#allocation2 + $0xa8] sm:$0xff]
      %v3524 = vld [vmem:[#allocation2 + $0xb0] sm:$0xff]
      %v3525 = vld [vmem:[#allocation2 + $0xb8] sm:$0xff]
      %v3526 = vld [vmem:[#allocation2 + $0xc0] sm:$0xff]
      %v3527 = vld [vmem:[#allocation2 + $0xc8] sm:$0xff]
      %v3528 = vld [vmem:[#allocation2 + $0xd0] sm:$0xff]
      %v3529 = vld [vmem:[#allocation2 + $0xd8] sm:$0xff]
      %v3530 = vld [vmem:[#allocation2 + $0xe0] sm:$0xff]
      %v3531 = vld [vmem:[#allocation2 + $0xe8] sm:$0xff]
      %v3532 = vld [vmem:[#allocation2 + $0xf0] sm:$0xff]
      %v3533 = vld [vmem:[#allocation2 + $0xf8] sm:$0xff]
      %v3534 = vld [vmem:[#allocation2 + $0x100] sm:$0xff]
      %v3535 = vld [vmem:[#allocation2 + $0x108] sm:$0xff]
      %v3536 = vld [vmem:[#allocation2 + $0x110] sm:$0xff]
      %v3537 = vld [vmem:[#allocation2 + $0x118] sm:$0xff]
      %v3538 = vld [vmem:[#allocation2 + $0x120] sm:$0xff]
      %v3539 = vld [vmem:[#allocation2 + $0x128] sm:$0xff]
      %v3540 = vld [vmem:[#allocation2 + $0x130] sm:$0xff]
      %v3541 = vld [vmem:[#allocation2 + $0x138] sm:$0xff]
      %v3542 = vld [vmem:[#allocation2 + $0x140] sm:$0xff]
      %v3543 = vld [vmem:[#allocation2 + $0x148] sm:$0xff]
      %v3544 = vld [vmem:[#allocation2 + $0x150] sm:$0xff]
      %v3545 = vld [vmem:[#allocation2 + $0x158] sm:$0xff]
      %v3546 = vld [vmem:[#allocation2 + $0x160] sm:$0xff]
      %v3547 = vld [vmem:[#allocation2 + $0x168] sm:$0xff]
      %v3548 = vld [vmem:[#allocation2 + $0x170] sm:$0xff]
      %v3549 = vld [vmem:[#allocation2 + $0x178] sm:$0xff]
      %v3550 = vld [vmem:[#allocation2 + $0x180] sm:$0xff]
      %v3551 = vld [vmem:[#allocation2 + $0x188] sm:$0xff]
      %v3552 = vld [vmem:[#allocation2 + $0x190] sm:$0xff]
      %v3553 = vld [vmem:[#allocation2 + $0x198] sm:$0xff]
      %v3554 = vld [vmem:[#allocation2 + $0x1a0] sm:$0xff]
      %v3555 = vld [vmem:[#allocation2 + $0x1a8] sm:$0xff]
      %v3556 = vld [vmem:[#allocation2 + $0x1b0] sm:$0xff]
      %v3557 = vld [vmem:[#allocation2 + $0x1b8] sm:$0xff]
      %v3558 = vld [vmem:[#allocation2 + $0x1c0] sm:$0xff]
      %v3559 = vld [vmem:[#allocation2 + $0x1c8] sm:$0xff]
      %v3560 = vld [vmem:[#allocation2 + $0x1d0] sm:$0xff]
      %v3561 = vld [vmem:[#allocation2 + $0x1d8] sm:$0xff]
      %v3562 = vld [vmem:[#allocation2 + $0x1e0] sm:$0xff]
      %v3563 = vld [vmem:[#allocation2 + $0x1e8] sm:$0xff]
      %v3564 = vld [vmem:[#allocation2 + $0x1f0] sm:$0xff]
      %v3565 = vld [vmem:[#allocation2 + $0x1f8] sm:$0xff]
      %v3566 = vpack.c.bf16 %v3503, %v3502
      %v3567 = vpack.c.bf16 %v3505, %v3504
      %v3568 = vpack.c.bf16 %v3507, %v3506
      %v3569 = vpack.c.bf16 %v3509, %v3508
      %v3570 = vpack.c.bf16 %v3511, %v3510
      %v3571 = vpack.c.bf16 %v3513, %v3512
      %v3572 = vpack.c.bf16 %v3515, %v3514
      %v3573 = vpack.c.bf16 %v3517, %v3516
      %v3574 = vpack.c.bf16 %v3519, %v3518
      %v3575 = vpack.c.bf16 %v3521, %v3520
      %v3576 = vpack.c.bf16 %v3523, %v3522
      %v3577 = vpack.c.bf16 %v3525, %v3524
      %v3578 = vpack.c.bf16 %v3527, %v3526
      %v3579 = vpack.c.bf16 %v3529, %v3528
      %v3580 = vpack.c.bf16 %v3531, %v3530
      %v3581 = vpack.c.bf16 %v3533, %v3532
      %v3582 = vpack.c.bf16 %v3535, %v3534
      %v3583 = vpack.c.bf16 %v3537, %v3536
      %v3584 = vpack.c.bf16 %v3539, %v3538
      %v3585 = vpack.c.bf16 %v3541, %v3540
      %v3586 = vpack.c.bf16 %v3543, %v3542
      %v3587 = vpack.c.bf16 %v3545, %v3544
      %v3588 = vpack.c.bf16 %v3547, %v3546
      %v3589 = vpack.c.bf16 %v3549, %v3548
      %v3590 = vpack.c.bf16 %v3551, %v3550
      %v3591 = vpack.c.bf16 %v3553, %v3552
      %v3592 = vpack.c.bf16 %v3555, %v3554
      %v3593 = vpack.c.bf16 %v3557, %v3556
      %v3594 = vpack.c.bf16 %v3559, %v3558
      %v3595 = vpack.c.bf16 %v3561, %v3560
      %v3596 = vpack.c.bf16 %v3563, %v3562
      %v3597 = vpack.c.bf16 %v3565, %v3564
      %v3598 = vld [vmem:[%s3] sm:$0xf]
      %v3599 = vld [vmem:[#allocation2 + $0x1] sm:$0xff]
      %v3600 = vld [vmem:[#allocation2 + $0x9] sm:$0xff]
      %v3601 = vld [vmem:[#allocation2 + $0x11] sm:$0xff]
      %v3602 = vld [vmem:[#allocation2 + $0x19] sm:$0xff]
      %v3603 = vld [vmem:[#allocation2 + $0x21] sm:$0xff]
      %v3604 = vld [vmem:[#allocation2 + $0x29] sm:$0xff]
      %v3605 = vld [vmem:[#allocation2 + $0x31] sm:$0xff]
      %v3606 = vld [vmem:[#allocation2 + $0x39] sm:$0xff]
      %v3607 = vld [vmem:[#allocation2 + $0x41] sm:$0xff]
      %v3608 = vld [vmem:[#allocation2 + $0x49] sm:$0xff]
      %v3609 = vld [vmem:[#allocation2 + $0x51] sm:$0xff]
      %v3610 = vld [vmem:[#allocation2 + $0x59] sm:$0xff]
      %v3611 = vld [vmem:[#allocation2 + $0x61] sm:$0xff]
      %v3612 = vld [vmem:[#allocation2 + $0x69] sm:$0xff]
      %v3613 = vld [vmem:[#allocation2 + $0x71] sm:$0xff]
      %v3614 = vld [vmem:[#allocation2 + $0x79] sm:$0xff]
      %v3615 = vld [vmem:[#allocation2 + $0x81] sm:$0xff]
      %v3616 = vld [vmem:[#allocation2 + $0x89] sm:$0xff]
      %v3617 = vld [vmem:[#allocation2 + $0x91] sm:$0xff]
      %v3618 = vld [vmem:[#allocation2 + $0x99] sm:$0xff]
      %v3619 = vld [vmem:[#allocation2 + $0xa1] sm:$0xff]
      %v3620 = vld [vmem:[#allocation2 + $0xa9] sm:$0xff]
      %v3621 = vld [vmem:[#allocation2 + $0xb1] sm:$0xff]
      %v3622 = vld [vmem:[#allocation2 + $0xb9] sm:$0xff]
      %v3623 = vld [vmem:[#allocation2 + $0xc1] sm:$0xff]
      %v3624 = vld [vmem:[#allocation2 + $0xc9] sm:$0xff]
      %v3625 = vld [vmem:[#allocation2 + $0xd1] sm:$0xff]
      %v3626 = vld [vmem:[#allocation2 + $0xd9] sm:$0xff]
      %v3627 = vld [vmem:[#allocation2 + $0xe1] sm:$0xff]
      %v3628 = vld [vmem:[#allocation2 + $0xe9] sm:$0xff]
      %v3629 = vld [vmem:[#allocation2 + $0xf1] sm:$0xff]
      %v3630 = vld [vmem:[#allocation2 + $0xf9] sm:$0xff]
      %v3631 = vld [vmem:[#allocation2 + $0x101] sm:$0xff]
      %v3632 = vld [vmem:[#allocation2 + $0x109] sm:$0xff]
      %v3633 = vld [vmem:[#allocation2 + $0x111] sm:$0xff]
      %v3634 = vld [vmem:[#allocation2 + $0x119] sm:$0xff]
      %v3635 = vld [vmem:[#allocation2 + $0x121] sm:$0xff]
      %v3636 = vld [vmem:[#allocation2 + $0x129] sm:$0xff]
      %v3637 = vld [vmem:[#allocation2 + $0x131] sm:$0xff]
      %v3638 = vld [vmem:[#allocation2 + $0x139] sm:$0xff]
      %v3639 = vld [vmem:[#allocation2 + $0x141] sm:$0xff]
      %v3640 = vld [vmem:[#allocation2 + $0x149] sm:$0xff]
      %v3641 = vld [vmem:[#allocation2 + $0x151] sm:$0xff]
      %v3642 = vld [vmem:[#allocation2 + $0x159] sm:$0xff]
      %v3643 = vld [vmem:[#allocation2 + $0x161] sm:$0xff]
      %v3644 = vld [vmem:[#allocation2 + $0x169] sm:$0xff]
      %v3645 = vld [vmem:[#allocation2 + $0x171] sm:$0xff]
      %v3646 = vld [vmem:[#allocation2 + $0x179] sm:$0xff]
      %v3647 = vld [vmem:[#allocation2 + $0x181] sm:$0xff]
      %v3648 = vld [vmem:[#allocation2 + $0x189] sm:$0xff]
      %v3649 = vld [vmem:[#allocation2 + $0x191] sm:$0xff]
      %v3650 = vld [vmem:[#allocation2 + $0x199] sm:$0xff]
      %v3651 = vld [vmem:[#allocation2 + $0x1a1] sm:$0xff]
      %v3652 = vld [vmem:[#allocation2 + $0x1a9] sm:$0xff]
      %v3653 = vld [vmem:[#allocation2 + $0x1b1] sm:$0xff]
      %v3654 = vld [vmem:[#allocation2 + $0x1b9] sm:$0xff]
      %v3655 = vld [vmem:[#allocation2 + $0x1c1] sm:$0xff]
      %v3656 = vld [vmem:[#allocation2 + $0x1c9] sm:$0xff]
      %v3657 = vld [vmem:[#allocation2 + $0x1d1] sm:$0xff]
      %v3658 = vld [vmem:[#allocation2 + $0x1d9] sm:$0xff]
      %v3659 = vld [vmem:[#allocation2 + $0x1e1] sm:$0xff]
      %v3660 = vld [vmem:[#allocation2 + $0x1e9] sm:$0xff]
      %v3661 = vld [vmem:[#allocation2 + $0x1f1] sm:$0xff]
      %v3662 = vld [vmem:[#allocation2 + $0x1f9] sm:$0xff]
      %v3663 = vpack.c.bf16 %v3600, %v3599
      %v3664 = vpack.c.bf16 %v3602, %v3601
      %v3665 = vpack.c.bf16 %v3604, %v3603
      %v3666 = vpack.c.bf16 %v3606, %v3605
      %v3667 = vpack.c.bf16 %v3608, %v3607
      %v3668 = vpack.c.bf16 %v3610, %v3609
      %v3669 = vpack.c.bf16 %v3612, %v3611
      %v3670 = vpack.c.bf16 %v3614, %v3613
      %v3671 = vpack.c.bf16 %v3616, %v3615
      %v3672 = vpack.c.bf16 %v3618, %v3617
      %v3673 = vpack.c.bf16 %v3620, %v3619
      %v3674 = vpack.c.bf16 %v3622, %v3621
      %v3675 = vpack.c.bf16 %v3624, %v3623
      %v3676 = vpack.c.bf16 %v3626, %v3625
      %v3677 = vpack.c.bf16 %v3628, %v3627
      %v3678 = vpack.c.bf16 %v3630, %v3629
      %v3679 = vpack.c.bf16 %v3632, %v3631
      %v3680 = vpack.c.bf16 %v3634, %v3633
      %v3681 = vpack.c.bf16 %v3636, %v3635
      %v3682 = vpack.c.bf16 %v3638, %v3637
      %v3683 = vpack.c.bf16 %v3640, %v3639
      %v3684 = vpack.c.bf16 %v3642, %v3641
      %v3685 = vpack.c.bf16 %v3644, %v3643
      %v3686 = vpack.c.bf16 %v3646, %v3645
      %v3687 = vpack.c.bf16 %v3648, %v3647
      %v3688 = vpack.c.bf16 %v3650, %v3649
      %v3689 = vpack.c.bf16 %v3652, %v3651
      %v3690 = vpack.c.bf16 %v3654, %v3653
      %v3691 = vpack.c.bf16 %v3656, %v3655
      %v3692 = vpack.c.bf16 %v3658, %v3657
      %v3693 = vpack.c.bf16 %v3660, %v3659
      %v3694 = vpack.c.bf16 %v3662, %v3661
      %s3695 = scalar_lea.vmem %s3, 4
      %v3696 = vld [vmem:[%s3695] sm:$0xf]
      %v3698 = vsel %vm3437, %v3663, 0
      %v3701 = vsel %vm3437, %v3664, 0
      %v3704 = vsel %vm3437, %v3665, 0
      %v3707 = vsel %vm3437, %v3666, 0
      %v3710 = vsel %vm3437, %v3667, 0
      %v3713 = vsel %vm3437, %v3668, 0
      %v3716 = vsel %vm3437, %v3669, 0
      %v3719 = vsel %vm3437, %v3670, 0
      %v3722 = vsel %vm3437, %v3671, 0
      %v3725 = vsel %vm3437, %v3672, 0
      %v3728 = vsel %vm3437, %v3673, 0
      %v3731 = vsel %vm3437, %v3674, 0
      %v3734 = vsel %vm3437, %v3675, 0
      %v3737 = vsel %vm3437, %v3676, 0
      %v3740 = vsel %vm3437, %v3677, 0
      %v3743 = vsel %vm3437, %v3678, 0
      %v3746 = vsel %vm3437, %v3679, 0
      %v3749 = vsel %vm3437, %v3680, 0
      %v3752 = vsel %vm3437, %v3681, 0
      %v3755 = vsel %vm3437, %v3682, 0
      %v3758 = vsel %vm3437, %v3683, 0
      %v3761 = vsel %vm3437, %v3684, 0
      %v3764 = vsel %vm3437, %v3685, 0
      %v3767 = vsel %vm3437, %v3686, 0
      %v3770 = vsel %vm3437, %v3687, 0
      %v3773 = vsel %vm3437, %v3688, 0
      %v3776 = vsel %vm3437, %v3689, 0
      %v3779 = vsel %vm3437, %v3690, 0
      %v3782 = vsel %vm3437, %v3691, 0
      %v3785 = vsel %vm3437, %v3692, 0
      %v3788 = vsel %vm3437, %v3693, 0
      %v3791 = vsel %vm3437, %v3694, 0
      %vm3793 = vcmask 1043456
      %v3795 = vsel %vm3793, %v3696, 0
      %3797 = vmatprep.subr.bf16.mxu0 0
      %3798 = vmatpush1.bf16.msra.mxu0 %v3795
      %3799 = vmatprep.subr.bf16.mxu0 0
      %3800 = vmatpush1.bf16.msra.mxu0 0
      %3801 = vmatprep.subr.bf16.mxu0 0
      %3802 = vmatpush1.bf16.msra.mxu0 0
      %3803 = vmatprep.subr.bf16.mxu0 0
      %3804 = vmatpush1.bf16.msra.mxu0 0
      %3805 = vmatprep.subr.bf16.mxu0 0
      %3806 = vmatpush1.bf16.msra.mxu0 0
      %3807 = vmatprep.subr.bf16.mxu0 0
      %3808 = vmatpush1.bf16.msra.mxu0 0
      %3809 = vmatprep.subr.bf16.mxu0 0
      %3810 = vmatpush1.bf16.msra.mxu0 0
      %3811 = vmatprep.subr.bf16.mxu0 0
      %3812 = vmatpush1.bf16.msra.mxu0 0
      %3813 = vmatprep.subr.bf16.mxu0 0
      %3814 = vmatpush1.bf16.msra.mxu0 0
      %3815 = vmatprep.subr.bf16.mxu0 0
      %3816 = vmatpush1.bf16.msra.mxu0 0
      %3817 = vmatprep.subr.bf16.mxu0 0
      %3818 = vmatpush1.bf16.msra.mxu0 0
      %3819 = vmatprep.subr.bf16.mxu0 0
      %3820 = vmatpush1.bf16.msra.mxu0 0
      %3821 = vmatprep.subr.bf16.mxu0 0
      %3822 = vmatpush1.bf16.msra.mxu0 0
      %3823 = vmatprep.subr.bf16.mxu0 0
      %3824 = vmatpush1.bf16.msra.mxu0 0
      %3825 = vmatprep.subr.bf16.mxu0 0
      %3826 = vmatpush1.bf16.msra.mxu0 0
      %3827 = vmatprep.subr.bf16.mxu0 0
      %3828 = vmatpush1.bf16.msra.mxu0 0
      %3829 = vmatprep.mubr.bf16.mxu0 0
      %3830 = vmatmul.mubr.bf16.gmra.mrb[0].mxu0 %v3698
      %v3831 = vpop.f32.mrb[0].mxu0
      %v3832 = vadd.f32 0.0, %v3831
      %v3833 = vpop.f32.mrb[0].mxu0
      %v3834 = vpop.f32.mrb[0].mxu0
      %v3835 = vadd.f32 0.0, %v3834
      %v3836 = vpop.f32.mrb[0].mxu0
      %3837 = vmatprep.mubr.bf16.mxu0 0
      %3838 = vmatmul.mubr.bf16.gmra.mrb[0].mxu0 %v3701
      %v3839 = vpop.f32.mrb[0].mxu0
      %v3840 = vadd.f32 0.0, %v3839
      %v3841 = vpop.f32.mrb[0].mxu0
      %v3842 = vpop.f32.mrb[0].mxu0
      %v3843 = vadd.f32 0.0, %v3842
      %v3844 = vpop.f32.mrb[0].mxu0
      %3845 = vmatprep.mubr.bf16.mxu0 0
      %3846 = vmatmul.mubr.bf16.gmra.mrb[0].mxu0 %v3704
      %v3847 = vpop.f32.mrb[0].mxu0
      %v3848 = vadd.f32 0.0, %v3847
      %v3849 = vpop.f32.mrb[0].mxu0
      %v3850 = vpop.f32.mrb[0].mxu0
      %v3851 = vadd.f32 0.0, %v3850
      %v3852 = vpop.f32.mrb[0].mxu0
      %3853 = vmatprep.mubr.bf16.mxu0 0
      %3854 = vmatmul.mubr.bf16.gmra.mrb[0].mxu0 %v3707
      %v3855 = vpop.f32.mrb[0].mxu0
      %v3856 = vadd.f32 0.0, %v3855
      %v3857 = vpop.f32.mrb[0].mxu0
      %v3858 = vpop.f32.mrb[0].mxu0
      %v3859 = vadd.f32 0.0, %v3858
      %v3860 = vpop.f32.mrb[0].mxu0
      %3861 = vmatprep.mubr.bf16.mxu0 0
      %3862 = vmatmul.mubr.bf16.gmra.mrb[0].mxu0 %v3710
      %v3863 = vpop.f32.mrb[0].mxu0
      %v3864 = vadd.f32 0.0, %v3863
      %v3865 = vpop.f32.mrb[0].mxu0
      %v3866 = vpop.f32.mrb[0].mxu0
      %v3867 = vadd.f32 0.0, %v3866
      %v3868 = vpop.f32.mrb[0].mxu0
      %3869 = vmatprep.mubr.bf16.mxu0 0
      %3870 = vmatmul.mubr.bf16.gmra.mrb[0].mxu0 %v3713
      %v3871 = vpop.f32.mrb[0].mxu0
      %v3872 = vadd.f32 0.0, %v3871
      %v3873 = vpop.f32.mrb[0].mxu0
      %v3874 = vpop.f32.mrb[0].mxu0
      %v3875 = vadd.f32 0.0, %v3874
      %v3876 = vpop.f32.mrb[0].mxu0
      %3877 = vmatprep.mubr.bf16.mxu0 0
      %3878 = vmatmul.mubr.bf16.gmra.mrb[0].mxu0 %v3716
      %v3879 = vpop.f32.mrb[0].mxu0
      %v3880 = vadd.f32 0.0, %v3879
      %v3881 = vpop.f32.mrb[0].mxu0
      %v3882 = vpop.f32.mrb[0].mxu0
      %v3883 = vadd.f32 0.0, %v3882
      %v3884 = vpop.f32.mrb[0].mxu0
      %3885 = vmatprep.mubr.bf16.mxu0 0
      %3886 = vmatmul.mubr.bf16.gmra.mrb[0].mxu0 %v3719
      %v3887 = vpop.f32.mrb[0].mxu0
      %v3888 = vadd.f32 0.0, %v3887
      %v3889 = vpop.f32.mrb[0].mxu0
      %v3890 = vpop.f32.mrb[0].mxu0
      %v3891 = vadd.f32 0.0, %v3890
      %v3892 = vpop.f32.mrb[0].mxu0
      %3893 = vmatprep.mubr.bf16.mxu0 0
      %3894 = vmatmul.mubr.bf16.gmra.mrb[0].mxu0 %v3722
      %v3895 = vpop.f32.mrb[0].mxu0
      %v3896 = vadd.f32 0.0, %v3895
      %v3897 = vpop.f32.mrb[0].mxu0
      %v3898 = vpop.f32.mrb[0].mxu0
      %v3899 = vadd.f32 0.0, %v3898
      %v3900 = vpop.f32.mrb[0].mxu0
      %3901 = vmatprep.mubr.bf16.mxu0 0
      %3902 = vmatmul.mubr.bf16.gmra.mrb[0].mxu0 %v3725
      %v3903 = vpop.f32.mrb[0].mxu0
      %v3904 = vadd.f32 0.0, %v3903
      %v3905 = vpop.f32.mrb[0].mxu0
      %v3906 = vpop.f32.mrb[0].mxu0
      %v3907 = vadd.f32 0.0, %v3906
      %v3908 = vpop.f32.mrb[0].mxu0
      %3909 = vmatprep.mubr.bf16.mxu0 0
      %3910 = vmatmul.mubr.bf16.gmra.mrb[0].mxu0 %v3728
      %v3911 = vpop.f32.mrb[0].mxu0
      %v3912 = vadd.f32 0.0, %v3911
      %v3913 = vpop.f32.mrb[0].mxu0
      %v3914 = vpop.f32.mrb[0].mxu0
      %v3915 = vadd.f32 0.0, %v3914
      %v3916 = vpop.f32.mrb[0].mxu0
      %3917 = vmatprep.mubr.bf16.mxu0 0
      %3918 = vmatmul.mubr.bf16.gmra.mrb[0].mxu0 %v3731
      %v3919 = vpop.f32.mrb[0].mxu0
      %v3920 = vadd.f32 0.0, %v3919
      %v3921 = vpop.f32.mrb[0].mxu0
      %v3922 = vpop.f32.mrb[0].mxu0
      %v3923 = vadd.f32 0.0, %v3922
      %v3924 = vpop.f32.mrb[0].mxu0
      %3925 = vmatprep.mubr.bf16.mxu0 0
      %3926 = vmatmul.mubr.bf16.gmra.mrb[0].mxu0 %v3734
      %v3927 = vpop.f32.mrb[0].mxu0
      %v3928 = vadd.f32 0.0, %v3927
      %v3929 = vpop.f32.mrb[0].mxu0
      %v3930 = vpop.f32.mrb[0].mxu0
      %v3931 = vadd.f32 0.0, %v3930
      %v3932 = vpop.f32.mrb[0].mxu0
      %3933 = vmatprep.mubr.bf16.mxu0 0
      %3934 = vmatmul.mubr.bf16.gmra.mrb[0].mxu0 %v3737
      %v3935 = vpop.f32.mrb[0].mxu0
      %v3936 = vadd.f32 0.0, %v3935
      %v3937 = vpop.f32.mrb[0].mxu0
      %v3938 = vpop.f32.mrb[0].mxu0
      %v3939 = vadd.f32 0.0, %v3938
      %v3940 = vpop.f32.mrb[0].mxu0
      %3941 = vmatprep.mubr.bf16.mxu0 0
      %3942 = vmatmul.mubr.bf16.gmra.mrb[0].mxu0 %v3740
      %v3943 = vpop.f32.mrb[0].mxu0
      %v3944 = vadd.f32 0.0, %v3943
      %v3945 = vpop.f32.mrb[0].mxu0
      %v3946 = vpop.f32.mrb[0].mxu0
      %v3947 = vadd.f32 0.0, %v3946
      %v3948 = vpop.f32.mrb[0].mxu0
      %3949 = vmatprep.mubr.bf16.mxu0 0
      %3950 = vmatmul.mubr.bf16.gmra.mrb[0].mxu0 %v3743
      %v3951 = vpop.f32.mrb[0].mxu0
      %v3952 = vadd.f32 0.0, %v3951
      %v3953 = vpop.f32.mrb[0].mxu0
      %v3954 = vpop.f32.mrb[0].mxu0
      %v3955 = vadd.f32 0.0, %v3954
      %v3956 = vpop.f32.mrb[0].mxu0
      %3957 = vmatprep.mubr.bf16.mxu0 0
      %3958 = vmatmul.mubr.bf16.gmra.mrb[0].mxu0 %v3746
      %v3959 = vpop.f32.mrb[0].mxu0
      %v3960 = vadd.f32 0.0, %v3959
      %v3961 = vpop.f32.mrb[0].mxu0
      %v3962 = vpop.f32.mrb[0].mxu0
      %v3963 = vadd.f32 0.0, %v3962
      %v3964 = vpop.f32.mrb[0].mxu0
      %3965 = vmatprep.mubr.bf16.mxu0 0
      %3966 = vmatmul.mubr.bf16.gmra.mrb[0].mxu0 %v3749
      %v3967 = vpop.f32.mrb[0].mxu0
      %v3968 = vadd.f32 0.0, %v3967
      %v3969 = vpop.f32.mrb[0].mxu0
      %v3970 = vpop.f32.mrb[0].mxu0
      %v3971 = vadd.f32 0.0, %v3970
      %v3972 = vpop.f32.mrb[0].mxu0
      %3973 = vmatprep.mubr.bf16.mxu0 0
      %3974 = vmatmul.mubr.bf16.gmra.mrb[0].mxu0 %v3752
      %v3975 = vpop.f32.mrb[0].mxu0
      %v3976 = vadd.f32 0.0, %v3975
      %v3977 = vpop.f32.mrb[0].mxu0
      %v3978 = vpop.f32.mrb[0].mxu0
      %v3979 = vadd.f32 0.0, %v3978
      %v3980 = vpop.f32.mrb[0].mxu0
      %3981 = vmatprep.mubr.bf16.mxu0 0
      %3982 = vmatmul.mubr.bf16.gmra.mrb[0].mxu0 %v3755
      %v3983 = vpop.f32.mrb[0].mxu0
      %v3984 = vadd.f32 0.0, %v3983
      %v3985 = vpop.f32.mrb[0].mxu0
      %v3986 = vpop.f32.mrb[0].mxu0
      %v3987 = vadd.f32 0.0, %v3986
      %v3988 = vpop.f32.mrb[0].mxu0
      %3989 = vmatprep.mubr.bf16.mxu0 0
      %3990 = vmatmul.mubr.bf16.gmra.mrb[0].mxu0 %v3758
      %v3991 = vpop.f32.mrb[0].mxu0
      %v3992 = vadd.f32 0.0, %v3991
      %v3993 = vpop.f32.mrb[0].mxu0
      %v3994 = vpop.f32.mrb[0].mxu0
      %v3995 = vadd.f32 0.0, %v3994
      %v3996 = vpop.f32.mrb[0].mxu0
      %3997 = vmatprep.mubr.bf16.mxu0 0
      %3998 = vmatmul.mubr.bf16.gmra.mrb[0].mxu0 %v3761
      %v3999 = vpop.f32.mrb[0].mxu0
      %v4000 = vadd.f32 0.0, %v3999
      %v4001 = vpop.f32.mrb[0].mxu0
      %v4002 = vpop.f32.mrb[0].mxu0
      %v4003 = vadd.f32 0.0, %v4002
      %v4004 = vpop.f32.mrb[0].mxu0
      %4005 = vmatprep.mubr.bf16.mxu0 0
      %4006 = vmatmul.mubr.bf16.gmra.mrb[0].mxu0 %v3764
      %v4007 = vpop.f32.mrb[0].mxu0
      %v4008 = vadd.f32 0.0, %v4007
      %v4009 = vpop.f32.mrb[0].mxu0
      %v4010 = vpop.f32.mrb[0].mxu0
      %v4011 = vadd.f32 0.0, %v4010
      %v4012 = vpop.f32.mrb[0].mxu0
      %4013 = vmatprep.mubr.bf16.mxu0 0
      %4014 = vmatmul.mubr.bf16.gmra.mrb[0].mxu0 %v3767
      %v4015 = vpop.f32.mrb[0].mxu0
      %v4016 = vadd.f32 0.0, %v4015
      %v4017 = vpop.f32.mrb[0].mxu0
      %v4018 = vpop.f32.mrb[0].mxu0
      %v4019 = vadd.f32 0.0, %v4018
      %v4020 = vpop.f32.mrb[0].mxu0
      %4021 = vmatprep.mubr.bf16.mxu0 0
      %4022 = vmatmul.mubr.bf16.gmra.mrb[0].mxu0 %v3770
      %v4023 = vpop.f32.mrb[0].mxu0
      %v4024 = vadd.f32 0.0, %v4023
      %v4025 = vpop.f32.mrb[0].mxu0
      %v4026 = vpop.f32.mrb[0].mxu0
      %v4027 = vadd.f32 0.0, %v4026
      %v4028 = vpop.f32.mrb[0].mxu0
      %4029 = vmatprep.mubr.bf16.mxu0 0
      %4030 = vmatmul.mubr.bf16.gmra.mrb[0].mxu0 %v3773
      %v4031 = vpop.f32.mrb[0].mxu0
      %v4032 = vadd.f32 0.0, %v4031
      %v4033 = vpop.f32.mrb[0].mxu0
      %v4034 = vpop.f32.mrb[0].mxu0
      %v4035 = vadd.f32 0.0, %v4034
      %v4036 = vpop.f32.mrb[0].mxu0
      %4037 = vmatprep.mubr.bf16.mxu0 0
      %4038 = vmatmul.mubr.bf16.gmra.mrb[0].mxu0 %v3776
      %v4039 = vpop.f32.mrb[0].mxu0
      %v4040 = vadd.f32 0.0, %v4039
      %v4041 = vpop.f32.mrb[0].mxu0
      %v4042 = vpop.f32.mrb[0].mxu0
      %v4043 = vadd.f32 0.0, %v4042
      %v4044 = vpop.f32.mrb[0].mxu0
      %4045 = vmatprep.mubr.bf16.mxu0 0
      %4046 = vmatmul.mubr.bf16.gmra.mrb[0].mxu0 %v3779
      %v4047 = vpop.f32.mrb[0].mxu0
      %v4048 = vadd.f32 0.0, %v4047
      %v4049 = vpop.f32.mrb[0].mxu0
      %v4050 = vpop.f32.mrb[0].mxu0
      %v4051 = vadd.f32 0.0, %v4050
      %v4052 = vpop.f32.mrb[0].mxu0
      %4053 = vmatprep.mubr.bf16.mxu0 0
      %4054 = vmatmul.mubr.bf16.gmra.mrb[0].mxu0 %v3782
      %v4055 = vpop.f32.mrb[0].mxu0
      %v4056 = vadd.f32 0.0, %v4055
      %v4057 = vpop.f32.mrb[0].mxu0
      %v4058 = vpop.f32.mrb[0].mxu0
      %v4059 = vadd.f32 0.0, %v4058
      %v4060 = vpop.f32.mrb[0].mxu0
      %4061 = vmatprep.mubr.bf16.mxu0 0
      %4062 = vmatmul.mubr.bf16.gmra.mrb[0].mxu0 %v3785
      %v4063 = vpop.f32.mrb[0].mxu0
      %v4064 = vadd.f32 0.0, %v4063
      %v4065 = vpop.f32.mrb[0].mxu0
      %v4066 = vpop.f32.mrb[0].mxu0
      %v4067 = vadd.f32 0.0, %v4066
      %v4068 = vpop.f32.mrb[0].mxu0
      %4069 = vmatprep.mubr.bf16.mxu0 0
      %4070 = vmatmul.mubr.bf16.gmra.mrb[0].mxu0 %v3788
      %v4071 = vpop.f32.mrb[0].mxu0
      %v4072 = vadd.f32 0.0, %v4071
      %v4073 = vpop.f32.mrb[0].mxu0
      %v4074 = vpop.f32.mrb[0].mxu0
      %v4075 = vadd.f32 0.0, %v4074
      %v4076 = vpop.f32.mrb[0].mxu0
      %4077 = vmatprep.mubr.bf16.mxu0 0
      %4078 = vmatmul.mubr.bf16.gmra.mrb[0].mxu0 %v3791
      %v4079 = vpop.f32.mrb[0].mxu0
      %v4080 = vadd.f32 0.0, %v4079
      %v4081 = vpop.f32.mrb[0].mxu0
      %v4082 = vpop.f32.mrb[0].mxu0
      %v4083 = vadd.f32 0.0, %v4082
      %v4084 = vpop.f32.mrb[0].mxu0
      %4085 = vdwg.mxu0
      %v4087 = vsel %vm3437, %v3566, 0
      %v4090 = vsel %vm3437, %v3567, 0
      %v4093 = vsel %vm3437, %v3568, 0
      %v4096 = vsel %vm3437, %v3569, 0
      %v4099 = vsel %vm3437, %v3570, 0
      %v4102 = vsel %vm3437, %v3571, 0
      %v4105 = vsel %vm3437, %v3572, 0
      %v4108 = vsel %vm3437, %v3573, 0
      %v4111 = vsel %vm3437, %v3574, 0
      %v4114 = vsel %vm3437, %v3575, 0
      %v4117 = vsel %vm3437, %v3576, 0
      %v4120 = vsel %vm3437, %v3577, 0
      %v4123 = vsel %vm3437, %v3578, 0
      %v4126 = vsel %vm3437, %v3579, 0
      %v4129 = vsel %vm3437, %v3580, 0
      %v4132 = vsel %vm3437, %v3581, 0
      %v4135 = vsel %vm3437, %v3582, 0
      %v4138 = vsel %vm3437, %v3583, 0
      %v4141 = vsel %vm3437, %v3584, 0
      %v4144 = vsel %vm3437, %v3585, 0
      %v4147 = vsel %vm3437, %v3586, 0
      %v4150 = vsel %vm3437, %v3587, 0
      %v4153 = vsel %vm3437, %v3588, 0
      %v4156 = vsel %vm3437, %v3589, 0
      %v4159 = vsel %vm3437, %v3590, 0
      %v4162 = vsel %vm3437, %v3591, 0
      %v4165 = vsel %vm3437, %v3592, 0
      %v4168 = vsel %vm3437, %v3593, 0
      %v4171 = vsel %vm3437, %v3594, 0
      %v4174 = vsel %vm3437, %v3595, 0
      %v4177 = vsel %vm3437, %v3596, 0
      %v4180 = vsel %vm3437, %v3597, 0
      %v4183 = vsel %vm3793, %v3598, 0
      %4185 = vmatprep.subr.bf16.mxu0 0
      %4186 = vmatpush1.bf16.msra.mxu0 %v4183
      %4187 = vmatprep.subr.bf16.mxu0 0
      %4188 = vmatpush1.bf16.msra.mxu0 0
      %4189 = vmatprep.subr.bf16.mxu0 0
      %4190 = vmatpush1.bf16.msra.mxu0 0
      %4191 = vmatprep.subr.bf16.mxu0 0
      %4192 = vmatpush1.bf16.msra.mxu0 0
      %4193 = vmatprep.subr.bf16.mxu0 0
      %4194 = vmatpush1.bf16.msra.mxu0 0
      %4195 = vmatprep.subr.bf16.mxu0 0
      %4196 = vmatpush1.bf16.msra.mxu0 0
      %4197 = vmatprep.subr.bf16.mxu0 0
      %4198 = vmatpush1.bf16.msra.mxu0 0
      %4199 = vmatprep.subr.bf16.mxu0 0
      %4200 = vmatpush1.bf16.msra.mxu0 0
      %4201 = vmatprep.subr.bf16.mxu0 0
      %4202 = vmatpush1.bf16.msra.mxu0 0
      %4203 = vmatprep.subr.bf16.mxu0 0
      %4204 = vmatpush1.bf16.msra.mxu0 0
      %4205 = vmatprep.subr.bf16.mxu0 0
      %4206 = vmatpush1.bf16.msra.mxu0 0
      %4207 = vmatprep.subr.bf16.mxu0 0
      %4208 = vmatpush1.bf16.msra.mxu0 0
      %4209 = vmatprep.subr.bf16.mxu0 0
      %4210 = vmatpush1.bf16.msra.mxu0 0
      %4211 = vmatprep.subr.bf16.mxu0 0
      %4212 = vmatpush1.bf16.msra.mxu0 0
      %4213 = vmatprep.subr.bf16.mxu0 0
      %4214 = vmatpush1.bf16.msra.mxu0 0
      %4215 = vmatprep.subr.bf16.mxu0 0
      %4216 = vmatpush1.bf16.msra.mxu0 0
      %4217 = vmatprep.mubr.bf16.mxu0 0
      %4218 = vmatmul.mubr.bf16.gmra.mrb[0].mxu0 %v4087
      %v4219 = vpop.f32.mrb[0].mxu0
      %v4220 = vadd.f32 %v3832, %v4219
      %v4221 = vpop.f32.mrb[0].mxu0
      %v4222 = vpop.f32.mrb[0].mxu0
      %v4223 = vadd.f32 %v3835, %v4222
      %v4224 = vpop.f32.mrb[0].mxu0
      %4225 = vmatprep.mubr.bf16.mxu0 0
      %4226 = vmatmul.mubr.bf16.gmra.mrb[0].mxu0 %v4090
      %v4227 = vpop.f32.mrb[0].mxu0
      %v4228 = vadd.f32 %v3840, %v4227
      %v4229 = vpop.f32.mrb[0].mxu0
      %v4230 = vpop.f32.mrb[0].mxu0
      %v4231 = vadd.f32 %v3843, %v4230
      %v4232 = vpop.f32.mrb[0].mxu0
      %4233 = vmatprep.mubr.bf16.mxu0 0
      %4234 = vmatmul.mubr.bf16.gmra.mrb[0].mxu0 %v4093
      %v4235 = vpop.f32.mrb[0].mxu0
      %v4236 = vadd.f32 %v3848, %v4235
      %v4237 = vpop.f32.mrb[0].mxu0
      %v4238 = vpop.f32.mrb[0].mxu0
      %v4239 = vadd.f32 %v3851, %v4238
      %v4240 = vpop.f32.mrb[0].mxu0
      %4241 = vmatprep.mubr.bf16.mxu0 0
      %4242 = vmatmul.mubr.bf16.gmra.mrb[0].mxu0 %v4096
      %v4243 = vpop.f32.mrb[0].mxu0
      %v4244 = vadd.f32 %v3856, %v4243
      %v4245 = vpop.f32.mrb[0].mxu0
      %v4246 = vpop.f32.mrb[0].mxu0
      %v4247 = vadd.f32 %v3859, %v4246
      %v4248 = vpop.f32.mrb[0].mxu0
      %4249 = vmatprep.mubr.bf16.mxu0 0
      %4250 = vmatmul.mubr.bf16.gmra.mrb[0].mxu0 %v4099
      %v4251 = vpop.f32.mrb[0].mxu0
      %v4252 = vadd.f32 %v3864, %v4251
      %v4253 = vpop.f32.mrb[0].mxu0
      %v4254 = vpop.f32.mrb[0].mxu0
      %v4255 = vadd.f32 %v3867, %v4254
      %v4256 = vpop.f32.mrb[0].mxu0
      %4257 = vmatprep.mubr.bf16.mxu0 0
      %4258 = vmatmul.mubr.bf16.gmra.mrb[0].mxu0 %v4102
      %v4259 = vpop.f32.mrb[0].mxu0
      %v4260 = vadd.f32 %v3872, %v4259
      %v4261 = vpop.f32.mrb[0].mxu0
      %v4262 = vpop.f32.mrb[0].mxu0
      %v4263 = vadd.f32 %v3875, %v4262
      %v4264 = vpop.f32.mrb[0].mxu0
      %4265 = vmatprep.mubr.bf16.mxu0 0
      %4266 = vmatmul.mubr.bf16.gmra.mrb[0].mxu0 %v4105
      %v4267 = vpop.f32.mrb[0].mxu0
      %v4268 = vadd.f32 %v3880, %v4267
      %v4269 = vpop.f32.mrb[0].mxu0
      %v4270 = vpop.f32.mrb[0].mxu0
      %v4271 = vadd.f32 %v3883, %v4270
      %v4272 = vpop.f32.mrb[0].mxu0
      %4273 = vmatprep.mubr.bf16.mxu0 0
      %4274 = vmatmul.mubr.bf16.gmra.mrb[0].mxu0 %v4108
      %v4275 = vpop.f32.mrb[0].mxu0
      %v4276 = vadd.f32 %v3888, %v4275
      %v4277 = vpop.f32.mrb[0].mxu0
      %v4278 = vpop.f32.mrb[0].mxu0
      %v4279 = vadd.f32 %v3891, %v4278
      %v4280 = vpop.f32.mrb[0].mxu0
      %4281 = vmatprep.mubr.bf16.mxu0 0
      %4282 = vmatmul.mubr.bf16.gmra.mrb[0].mxu0 %v4111
      %v4283 = vpop.f32.mrb[0].mxu0
      %v4284 = vadd.f32 %v3896, %v4283
      %v4285 = vpop.f32.mrb[0].mxu0
      %v4286 = vpop.f32.mrb[0].mxu0
      %v4287 = vadd.f32 %v3899, %v4286
      %v4288 = vpop.f32.mrb[0].mxu0
      %4289 = vmatprep.mubr.bf16.mxu0 0
      %4290 = vmatmul.mubr.bf16.gmra.mrb[0].mxu0 %v4114
      %v4291 = vpop.f32.mrb[0].mxu0
      %v4292 = vadd.f32 %v3904, %v4291
      %v4293 = vpop.f32.mrb[0].mxu0
      %v4294 = vpop.f32.mrb[0].mxu0
      %v4295 = vadd.f32 %v3907, %v4294
      %v4296 = vpop.f32.mrb[0].mxu0
      %4297 = vmatprep.mubr.bf16.mxu0 0
      %4298 = vmatmul.mubr.bf16.gmra.mrb[0].mxu0 %v4117
      %v4299 = vpop.f32.mrb[0].mxu0
      %v4300 = vadd.f32 %v3912, %v4299
      %v4301 = vpop.f32.mrb[0].mxu0
      %v4302 = vpop.f32.mrb[0].mxu0
      %v4303 = vadd.f32 %v3915, %v4302
      %v4304 = vpop.f32.mrb[0].mxu0
      %4305 = vmatprep.mubr.bf16.mxu0 0
      %4306 = vmatmul.mubr.bf16.gmra.mrb[0].mxu0 %v4120
      %v4307 = vpop.f32.mrb[0].mxu0
      %v4308 = vadd.f32 %v3920, %v4307
      %v4309 = vpop.f32.mrb[0].mxu0
      %v4310 = vpop.f32.mrb[0].mxu0
      %v4311 = vadd.f32 %v3923, %v4310
      %v4312 = vpop.f32.mrb[0].mxu0
      %4313 = vmatprep.mubr.bf16.mxu0 0
      %4314 = vmatmul.mubr.bf16.gmra.mrb[0].mxu0 %v4123
      %v4315 = vpop.f32.mrb[0].mxu0
      %v4316 = vadd.f32 %v3928, %v4315
      %v4317 = vpop.f32.mrb[0].mxu0
      %v4318 = vpop.f32.mrb[0].mxu0
      %v4319 = vadd.f32 %v3931, %v4318
      %v4320 = vpop.f32.mrb[0].mxu0
      %4321 = vmatprep.mubr.bf16.mxu0 0
      %4322 = vmatmul.mubr.bf16.gmra.mrb[0].mxu0 %v4126
      %v4323 = vpop.f32.mrb[0].mxu0
      %v4324 = vadd.f32 %v3936, %v4323
      %v4325 = vpop.f32.mrb[0].mxu0
      %v4326 = vpop.f32.mrb[0].mxu0
      %v4327 = vadd.f32 %v3939, %v4326
      %v4328 = vpop.f32.mrb[0].mxu0
      %4329 = vmatprep.mubr.bf16.mxu0 0
      %4330 = vmatmul.mubr.bf16.gmra.mrb[0].mxu0 %v4129
      %v4331 = vpop.f32.mrb[0].mxu0
      %v4332 = vadd.f32 %v3944, %v4331
      %v4333 = vpop.f32.mrb[0].mxu0
      %v4334 = vpop.f32.mrb[0].mxu0
      %v4335 = vadd.f32 %v3947, %v4334
      %v4336 = vpop.f32.mrb[0].mxu0
      %4337 = vmatprep.mubr.bf16.mxu0 0
      %4338 = vmatmul.mubr.bf16.gmra.mrb[0].mxu0 %v4132
      %v4339 = vpop.f32.mrb[0].mxu0
      %v4340 = vadd.f32 %v3952, %v4339
      %v4341 = vpop.f32.mrb[0].mxu0
      %v4342 = vpop.f32.mrb[0].mxu0
      %v4343 = vadd.f32 %v3955, %v4342
      %v4344 = vpop.f32.mrb[0].mxu0
      %4345 = vmatprep.mubr.bf16.mxu0 0
      %4346 = vmatmul.mubr.bf16.gmra.mrb[0].mxu0 %v4135
      %v4347 = vpop.f32.mrb[0].mxu0
      %v4348 = vadd.f32 %v3960, %v4347
      %v4349 = vpop.f32.mrb[0].mxu0
      %v4350 = vpop.f32.mrb[0].mxu0
      %v4351 = vadd.f32 %v3963, %v4350
      %v4352 = vpop.f32.mrb[0].mxu0
      %4353 = vmatprep.mubr.bf16.mxu0 0
      %4354 = vmatmul.mubr.bf16.gmra.mrb[0].mxu0 %v4138
      %v4355 = vpop.f32.mrb[0].mxu0
      %v4356 = vadd.f32 %v3968, %v4355
      %v4357 = vpop.f32.mrb[0].mxu0
      %v4358 = vpop.f32.mrb[0].mxu0
      %v4359 = vadd.f32 %v3971, %v4358
      %v4360 = vpop.f32.mrb[0].mxu0
      %4361 = vmatprep.mubr.bf16.mxu0 0
      %4362 = vmatmul.mubr.bf16.gmra.mrb[0].mxu0 %v4141
      %v4363 = vpop.f32.mrb[0].mxu0
      %v4364 = vadd.f32 %v3976, %v4363
      %v4365 = vpop.f32.mrb[0].mxu0
      %v4366 = vpop.f32.mrb[0].mxu0
      %v4367 = vadd.f32 %v3979, %v4366
      %v4368 = vpop.f32.mrb[0].mxu0
      %4369 = vmatprep.mubr.bf16.mxu0 0
      %4370 = vmatmul.mubr.bf16.gmra.mrb[0].mxu0 %v4144
      %v4371 = vpop.f32.mrb[0].mxu0
      %v4372 = vadd.f32 %v3984, %v4371
      %v4373 = vpop.f32.mrb[0].mxu0
      %v4374 = vpop.f32.mrb[0].mxu0
      %v4375 = vadd.f32 %v3987, %v4374
      %v4376 = vpop.f32.mrb[0].mxu0
      %4377 = vmatprep.mubr.bf16.mxu0 0
      %4378 = vmatmul.mubr.bf16.gmra.mrb[0].mxu0 %v4147
      %v4379 = vpop.f32.mrb[0].mxu0
      %v4380 = vadd.f32 %v3992, %v4379
      %v4381 = vpop.f32.mrb[0].mxu0
      %v4382 = vpop.f32.mrb[0].mxu0
      %v4383 = vadd.f32 %v3995, %v4382
      %v4384 = vpop.f32.mrb[0].mxu0
      %4385 = vmatprep.mubr.bf16.mxu0 0
      %4386 = vmatmul.mubr.bf16.gmra.mrb[0].mxu0 %v4150
      %v4387 = vpop.f32.mrb[0].mxu0
      %v4388 = vadd.f32 %v4000, %v4387
      %v4389 = vpop.f32.mrb[0].mxu0
      %v4390 = vpop.f32.mrb[0].mxu0
      %v4391 = vadd.f32 %v4003, %v4390
      %v4392 = vpop.f32.mrb[0].mxu0
      %4393 = vmatprep.mubr.bf16.mxu0 0
      %4394 = vmatmul.mubr.bf16.gmra.mrb[0].mxu0 %v4153
      %v4395 = vpop.f32.mrb[0].mxu0
      %v4396 = vadd.f32 %v4008, %v4395
      %v4397 = vpop.f32.mrb[0].mxu0
      %v4398 = vpop.f32.mrb[0].mxu0
      %v4399 = vadd.f32 %v4011, %v4398
      %v4400 = vpop.f32.mrb[0].mxu0
      %4401 = vmatprep.mubr.bf16.mxu0 0
      %4402 = vmatmul.mubr.bf16.gmra.mrb[0].mxu0 %v4156
      %v4403 = vpop.f32.mrb[0].mxu0
      %v4404 = vadd.f32 %v4016, %v4403
      %v4405 = vpop.f32.mrb[0].mxu0
      %v4406 = vpop.f32.mrb[0].mxu0
      %v4407 = vadd.f32 %v4019, %v4406
      %v4408 = vpop.f32.mrb[0].mxu0
      %4409 = vmatprep.mubr.bf16.mxu0 0
      %4410 = vmatmul.mubr.bf16.gmra.mrb[0].mxu0 %v4159
      %v4411 = vpop.f32.mrb[0].mxu0
      %v4412 = vadd.f32 %v4024, %v4411
      %v4413 = vpop.f32.mrb[0].mxu0
      %v4414 = vpop.f32.mrb[0].mxu0
      %v4415 = vadd.f32 %v4027, %v4414
      %v4416 = vpop.f32.mrb[0].mxu0
      %4417 = vmatprep.mubr.bf16.mxu0 0
      %4418 = vmatmul.mubr.bf16.gmra.mrb[0].mxu0 %v4162
      %v4419 = vpop.f32.mrb[0].mxu0
      %v4420 = vadd.f32 %v4032, %v4419
      %v4421 = vpop.f32.mrb[0].mxu0
      %v4422 = vpop.f32.mrb[0].mxu0
      %v4423 = vadd.f32 %v4035, %v4422
      %v4424 = vpop.f32.mrb[0].mxu0
      %4425 = vmatprep.mubr.bf16.mxu0 0
      %4426 = vmatmul.mubr.bf16.gmra.mrb[0].mxu0 %v4165
      %v4427 = vpop.f32.mrb[0].mxu0
      %v4428 = vadd.f32 %v4040, %v4427
      %v4429 = vpop.f32.mrb[0].mxu0
      %v4430 = vpop.f32.mrb[0].mxu0
      %v4431 = vadd.f32 %v4043, %v4430
      %v4432 = vpop.f32.mrb[0].mxu0
      %4433 = vmatprep.mubr.bf16.mxu0 0
      %4434 = vmatmul.mubr.bf16.gmra.mrb[0].mxu0 %v4168
      %v4435 = vpop.f32.mrb[0].mxu0
      %v4436 = vadd.f32 %v4048, %v4435
      %v4437 = vpop.f32.mrb[0].mxu0
      %v4438 = vpop.f32.mrb[0].mxu0
      %v4439 = vadd.f32 %v4051, %v4438
      %v4440 = vpop.f32.mrb[0].mxu0
      %4441 = vmatprep.mubr.bf16.mxu0 0
      %4442 = vmatmul.mubr.bf16.gmra.mrb[0].mxu0 %v4171
      %v4443 = vpop.f32.mrb[0].mxu0
      %v4444 = vadd.f32 %v4056, %v4443
      %v4445 = vpop.f32.mrb[0].mxu0
      %v4446 = vpop.f32.mrb[0].mxu0
      %v4447 = vadd.f32 %v4059, %v4446
      %v4448 = vpop.f32.mrb[0].mxu0
      %4449 = vmatprep.mubr.bf16.mxu0 0
      %4450 = vmatmul.mubr.bf16.gmra.mrb[0].mxu0 %v4174
      %v4451 = vpop.f32.mrb[0].mxu0
      %v4452 = vadd.f32 %v4064, %v4451
      %v4453 = vpop.f32.mrb[0].mxu0
      %v4454 = vpop.f32.mrb[0].mxu0
      %v4455 = vadd.f32 %v4067, %v4454
      %v4456 = vpop.f32.mrb[0].mxu0
      %4457 = vmatprep.mubr.bf16.mxu0 0
      %4458 = vmatmul.mubr.bf16.gmra.mrb[0].mxu0 %v4177
      %v4459 = vpop.f32.mrb[0].mxu0
      %v4460 = vadd.f32 %v4072, %v4459
      %v4461 = vpop.f32.mrb[0].mxu0
      %v4462 = vpop.f32.mrb[0].mxu0
      %v4463 = vadd.f32 %v4075, %v4462
      %v4464 = vpop.f32.mrb[0].mxu0
      %4465 = vmatprep.mubr.bf16.mxu0 0
      %4466 = vmatmul.mubr.bf16.gmra.mrb[0].mxu0 %v4180
      %v4467 = vpop.f32.mrb[0].mxu0
      %v4468 = vadd.f32 %v4080, %v4467
      %v4469 = vpop.f32.mrb[0].mxu0
      %v4470 = vpop.f32.mrb[0].mxu0
      %v4471 = vadd.f32 %v4083, %v4470
      %v4472 = vpop.f32.mrb[0].mxu0
      %4473 = vdwg.mxu0
      %v4474 = vld [vmem:[#allocation2 + $0x2] sm:$0xff]
      %v4475 = vld [vmem:[#allocation2 + $0xa] sm:$0xff]
      %v4476 = vld [vmem:[#allocation2 + $0x12] sm:$0xff]
      %v4477 = vld [vmem:[#allocation2 + $0x1a] sm:$0xff]
      %v4478 = vld [vmem:[#allocation2 + $0x22] sm:$0xff]
      %v4479 = vld [vmem:[#allocation2 + $0x2a] sm:$0xff]
      %v4480 = vld [vmem:[#allocation2 + $0x32] sm:$0xff]
      %v4481 = vld [vmem:[#allocation2 + $0x3a] sm:$0xff]
      %v4482 = vld [vmem:[#allocation2 + $0x42] sm:$0xff]
      %v4483 = vld [vmem:[#allocation2 + $0x4a] sm:$0xff]
      %v4484 = vld [vmem:[#allocation2 + $0x52] sm:$0xff]
      %v4485 = vld [vmem:[#allocation2 + $0x5a] sm:$0xff]
      %v4486 = vld [vmem:[#allocation2 + $0x62] sm:$0xff]
      %v4487 = vld [vmem:[#allocation2 + $0x6a] sm:$0xff]
      %v4488 = vld [vmem:[#allocation2 + $0x72] sm:$0xff]
      %v4489 = vld [vmem:[#allocation2 + $0x7a] sm:$0xff]
      %v4490 = vld [vmem:[#allocation2 + $0x82] sm:$0xff]
      %v4491 = vld [vmem:[#allocation2 + $0x8a] sm:$0xff]
      %v4492 = vld [vmem:[#allocation2 + $0x92] sm:$0xff]
      %v4493 = vld [vmem:[#allocation2 + $0x9a] sm:$0xff]
      %v4494 = vld [vmem:[#allocation2 + $0xa2] sm:$0xff]
      %v4495 = vld [vmem:[#allocation2 + $0xaa] sm:$0xff]
      %v4496 = vld [vmem:[#allocation2 + $0xb2] sm:$0xff]
      %v4497 = vld [vmem:[#allocation2 + $0xba] sm:$0xff]
      %v4498 = vld [vmem:[#allocation2 + $0xc2] sm:$0xff]
      %v4499 = vld [vmem:[#allocation2 + $0xca] sm:$0xff]
      %v4500 = vld [vmem:[#allocation2 + $0xd2] sm:$0xff]
      %v4501 = vld [vmem:[#allocation2 + $0xda] sm:$0xff]
      %v4502 = vld [vmem:[#allocation2 + $0xe2] sm:$0xff]
      %v4503 = vld [vmem:[#allocation2 + $0xea] sm:$0xff]
      %v4504 = vld [vmem:[#allocation2 + $0xf2] sm:$0xff]
      %v4505 = vld [vmem:[#allocation2 + $0xfa] sm:$0xff]
      %v4506 = vld [vmem:[#allocation2 + $0x102] sm:$0xff]
      %v4507 = vld [vmem:[#allocation2 + $0x10a] sm:$0xff]
      %v4508 = vld [vmem:[#allocation2 + $0x112] sm:$0xff]
      %v4509 = vld [vmem:[#allocation2 + $0x11a] sm:$0xff]
      %v4510 = vld [vmem:[#allocation2 + $0x122] sm:$0xff]
      %v4511 = vld [vmem:[#allocation2 + $0x12a] sm:$0xff]
      %v4512 = vld [vmem:[#allocation2 + $0x132] sm:$0xff]
      %v4513 = vld [vmem:[#allocation2 + $0x13a] sm:$0xff]
      %v4514 = vld [vmem:[#allocation2 + $0x142] sm:$0xff]
      %v4515 = vld [vmem:[#allocation2 + $0x14a] sm:$0xff]
      %v4516 = vld [vmem:[#allocation2 + $0x152] sm:$0xff]
      %v4517 = vld [vmem:[#allocation2 + $0x15a] sm:$0xff]
      %v4518 = vld [vmem:[#allocation2 + $0x162] sm:$0xff]
      %v4519 = vld [vmem:[#allocation2 + $0x16a] sm:$0xff]
      %v4520 = vld [vmem:[#allocation2 + $0x172] sm:$0xff]
      %v4521 = vld [vmem:[#allocation2 + $0x17a] sm:$0xff]
      %v4522 = vld [vmem:[#allocation2 + $0x182] sm:$0xff]
      %v4523 = vld [vmem:[#allocation2 + $0x18a] sm:$0xff]
      %v4524 = vld [vmem:[#allocation2 + $0x192] sm:$0xff]
      %v4525 = vld [vmem:[#allocation2 + $0x19a] sm:$0xff]
      %v4526 = vld [vmem:[#allocation2 + $0x1a2] sm:$0xff]
      %v4527 = vld [vmem:[#allocation2 + $0x1aa] sm:$0xff]
      %v4528 = vld [vmem:[#allocation2 + $0x1b2] sm:$0xff]
      %v4529 = vld [vmem:[#allocation2 + $0x1ba] sm:$0xff]
      %v4530 = vld [vmem:[#allocation2 + $0x1c2] sm:$0xff]
      %v4531 = vld [vmem:[#allocation2 + $0x1ca] sm:$0xff]
      %v4532 = vld [vmem:[#allocation2 + $0x1d2] sm:$0xff]
      %v4533 = vld [vmem:[#allocation2 + $0x1da] sm:$0xff]
      %v4534 = vld [vmem:[#allocation2 + $0x1e2] sm:$0xff]
      %v4535 = vld [vmem:[#allocation2 + $0x1ea] sm:$0xff]
      %v4536 = vld [vmem:[#allocation2 + $0x1f2] sm:$0xff]
      %v4537 = vld [vmem:[#allocation2 + $0x1fa] sm:$0xff]
      %v4538 = vpack.c.bf16 %v4475, %v4474
      %v4539 = vpack.c.bf16 %v4477, %v4476
      %v4540 = vpack.c.bf16 %v4479, %v4478
      %v4541 = vpack.c.bf16 %v4481, %v4480
      %v4542 = vpack.c.bf16 %v4483, %v4482
      %v4543 = vpack.c.bf16 %v4485, %v4484
      %v4544 = vpack.c.bf16 %v4487, %v4486
      %v4545 = vpack.c.bf16 %v4489, %v4488
      %v4546 = vpack.c.bf16 %v4491, %v4490
      %v4547 = vpack.c.bf16 %v4493, %v4492
      %v4548 = vpack.c.bf16 %v4495, %v4494
      %v4549 = vpack.c.bf16 %v4497, %v4496
      %v4550 = vpack.c.bf16 %v4499, %v4498
      %v4551 = vpack.c.bf16 %v4501, %v4500
      %v4552 = vpack.c.bf16 %v4503, %v4502
      %v4553 = vpack.c.bf16 %v4505, %v4504
      %v4554 = vpack.c.bf16 %v4507, %v4506
      %v4555 = vpack.c.bf16 %v4509, %v4508
      %v4556 = vpack.c.bf16 %v4511, %v4510
      %v4557 = vpack.c.bf16 %v4513, %v4512
      %v4558 = vpack.c.bf16 %v4515, %v4514
      %v4559 = vpack.c.bf16 %v4517, %v4516
      %v4560 = vpack.c.bf16 %v4519, %v4518
      %v4561 = vpack.c.bf16 %v4521, %v4520
      %v4562 = vpack.c.bf16 %v4523, %v4522
      %v4563 = vpack.c.bf16 %v4525, %v4524
      %v4564 = vpack.c.bf16 %v4527, %v4526
      %v4565 = vpack.c.bf16 %v4529, %v4528
      %v4566 = vpack.c.bf16 %v4531, %v4530
      %v4567 = vpack.c.bf16 %v4533, %v4532
      %v4568 = vpack.c.bf16 %v4535, %v4534
      %v4569 = vpack.c.bf16 %v4537, %v4536
      %s4570 = scalar_lea.vmem %s3, 8
      %v4571 = vld [vmem:[%s4570] sm:$0xf]
      %v4573 = vsel %vm3437, %v4538, 0
      %v4576 = vsel %vm3437, %v4539, 0
      %v4579 = vsel %vm3437, %v4540, 0
      %v4582 = vsel %vm3437, %v4541, 0
      %v4585 = vsel %vm3437, %v4542, 0
      %v4588 = vsel %vm3437, %v4543, 0
      %v4591 = vsel %vm3437, %v4544, 0
      %v4594 = vsel %vm3437, %v4545, 0
      %v4597 = vsel %vm3437, %v4546, 0
      %v4600 = vsel %vm3437, %v4547, 0
      %v4603 = vsel %vm3437, %v4548, 0
      %v4606 = vsel %vm3437, %v4549, 0
      %v4609 = vsel %vm3437, %v4550, 0
      %v4612 = vsel %vm3437, %v4551, 0
      %v4615 = vsel %vm3437, %v4552, 0
      %v4618 = vsel %vm3437, %v4553, 0
      %v4621 = vsel %vm3437, %v4554, 0
      %v4624 = vsel %vm3437, %v4555, 0
      %v4627 = vsel %vm3437, %v4556, 0
      %v4630 = vsel %vm3437, %v4557, 0
      %v4633 = vsel %vm3437, %v4558, 0
      %v4636 = vsel %vm3437, %v4559, 0
      %v4639 = vsel %vm3437, %v4560, 0
      %v4642 = vsel %vm3437, %v4561, 0
      %v4645 = vsel %vm3437, %v4562, 0
      %v4648 = vsel %vm3437, %v4563, 0
      %v4651 = vsel %vm3437, %v4564, 0
      %v4654 = vsel %vm3437, %v4565, 0
      %v4657 = vsel %vm3437, %v4566, 0
      %v4660 = vsel %vm3437, %v4567, 0
      %v4663 = vsel %vm3437, %v4568, 0
      %v4666 = vsel %vm3437, %v4569, 0
      %v4669 = vsel %vm3793, %v4571, 0
      %4671 = vmatprep.subr.bf16.mxu0 0
      %4672 = vmatpush1.bf16.msra.mxu0 %v4669
      %4673 = vmatprep.subr.bf16.mxu0 0
      %4674 = vmatpush1.bf16.msra.mxu0 0
      %4675 = vmatprep.subr.bf16.mxu0 0
      %4676 = vmatpush1.bf16.msra.mxu0 0
      %4677 = vmatprep.subr.bf16.mxu0 0
      %4678 = vmatpush1.bf16.msra.mxu0 0
      %4679 = vmatprep.subr.bf16.mxu0 0
      %4680 = vmatpush1.bf16.msra.mxu0 0
      %4681 = vmatprep.subr.bf16.mxu0 0
      %4682 = vmatpush1.bf16.msra.mxu0 0
      %4683 = vmatprep.subr.bf16.mxu0 0
      %4684 = vmatpush1.bf16.msra.mxu0 0
      %4685 = vmatprep.subr.bf16.mxu0 0
      %4686 = vmatpush1.bf16.msra.mxu0 0
      %4687 = vmatprep.subr.bf16.mxu0 0
      %4688 = vmatpush1.bf16.msra.mxu0 0
      %4689 = vmatprep.subr.bf16.mxu0 0
      %4690 = vmatpush1.bf16.msra.mxu0 0
      %4691 = vmatprep.subr.bf16.mxu0 0
      %4692 = vmatpush1.bf16.msra.mxu0 0
      %4693 = vmatprep.subr.bf16.mxu0 0
      %4694 = vmatpush1.bf16.msra.mxu0 0
      %4695 = vmatprep.subr.bf16.mxu0 0
      %4696 = vmatpush1.bf16.msra.mxu0 0
      %4697 = vmatprep.subr.bf16.mxu0 0
      %4698 = vmatpush1.bf16.msra.mxu0 0
      %4699 = vmatprep.subr.bf16.mxu0 0
      %4700 = vmatpush1.bf16.msra.mxu0 0
      %4701 = vmatprep.subr.bf16.mxu0 0
      %4702 = vmatpush1.bf16.msra.mxu0 0
      %4703 = vmatprep.mubr.bf16.mxu0 0
      %4704 = vmatmul.mubr.bf16.gmra.mrb[0].mxu0 %v4573
      %v4705 = vpop.f32.mrb[0].mxu0
      %v4706 = vadd.f32 0.0, %v4705
      %v4707 = vpop.f32.mrb[0].mxu0
      %v4708 = vpop.f32.mrb[0].mxu0
      %v4709 = vadd.f32 0.0, %v4708
      %v4710 = vpop.f32.mrb[0].mxu0
      %4711 = vmatprep.mubr.bf16.mxu0 0
      %4712 = vmatmul.mubr.bf16.gmra.mrb[0].mxu0 %v4576
      %v4713 = vpop.f32.mrb[0].mxu0
      %v4714 = vadd.f32 0.0, %v4713
      %v4715 = vpop.f32.mrb[0].mxu0
      %v4716 = vpop.f32.mrb[0].mxu0
      %v4717 = vadd.f32 0.0, %v4716
      %v4718 = vpop.f32.mrb[0].mxu0
      %4719 = vmatprep.mubr.bf16.mxu0 0
      %4720 = vmatmul.mubr.bf16.gmra.mrb[0].mxu0 %v4579
      %v4721 = vpop.f32.mrb[0].mxu0
      %v4722 = vadd.f32 0.0, %v4721
      %v4723 = vpop.f32.mrb[0].mxu0
      %v4724 = vpop.f32.mrb[0].mxu0
      %v4725 = vadd.f32 0.0, %v4724
      %v4726 = vpop.f32.mrb[0].mxu0
      %4727 = vmatprep.mubr.bf16.mxu0 0
      %4728 = vmatmul.mubr.bf16.gmra.mrb[0].mxu0 %v4582
      %v4729 = vpop.f32.mrb[0].mxu0
      %v4730 = vadd.f32 0.0, %v4729
      %v4731 = vpop.f32.mrb[0].mxu0
      %v4732 = vpop.f32.mrb[0].mxu0
      %v4733 = vadd.f32 0.0, %v4732
      %v4734 = vpop.f32.mrb[0].mxu0
      %4735 = vmatprep.mubr.bf16.mxu0 0
      %4736 = vmatmul.mubr.bf16.gmra.mrb[0].mxu0 %v4585
      %v4737 = vpop.f32.mrb[0].mxu0
      %v4738 = vadd.f32 0.0, %v4737
      %v4739 = vpop.f32.mrb[0].mxu0
      %v4740 = vpop.f32.mrb[0].mxu0
      %v4741 = vadd.f32 0.0, %v4740
      %v4742 = vpop.f32.mrb[0].mxu0
      %4743 = vmatprep.mubr.bf16.mxu0 0
      %4744 = vmatmul.mubr.bf16.gmra.mrb[0].mxu0 %v4588
      %v4745 = vpop.f32.mrb[0].mxu0
      %v4746 = vadd.f32 0.0, %v4745
      %v4747 = vpop.f32.mrb[0].mxu0
      %v4748 = vpop.f32.mrb[0].mxu0
      %v4749 = vadd.f32 0.0, %v4748
      %v4750 = vpop.f32.mrb[0].mxu0
      %4751 = vmatprep.mubr.bf16.mxu0 0
      %4752 = vmatmul.mubr.bf16.gmra.mrb[0].mxu0 %v4591
      %v4753 = vpop.f32.mrb[0].mxu0
      %v4754 = vadd.f32 0.0, %v4753
      %v4755 = vpop.f32.mrb[0].mxu0
      %v4756 = vpop.f32.mrb[0].mxu0
      %v4757 = vadd.f32 0.0, %v4756
      %v4758 = vpop.f32.mrb[0].mxu0
      %4759 = vmatprep.mubr.bf16.mxu0 0
      %4760 = vmatmul.mubr.bf16.gmra.mrb[0].mxu0 %v4594
      %v4761 = vpop.f32.mrb[0].mxu0
      %v4762 = vadd.f32 0.0, %v4761
      %v4763 = vpop.f32.mrb[0].mxu0
      %v4764 = vpop.f32.mrb[0].mxu0
      %v4765 = vadd.f32 0.0, %v4764
      %v4766 = vpop.f32.mrb[0].mxu0
      %4767 = vmatprep.mubr.bf16.mxu0 0
      %4768 = vmatmul.mubr.bf16.gmra.mrb[0].mxu0 %v4597
      %v4769 = vpop.f32.mrb[0].mxu0
      %v4770 = vadd.f32 0.0, %v4769
      %v4771 = vpop.f32.mrb[0].mxu0
      %v4772 = vpop.f32.mrb[0].mxu0
      %v4773 = vadd.f32 0.0, %v4772
      %v4774 = vpop.f32.mrb[0].mxu0
      %4775 = vmatprep.mubr.bf16.mxu0 0
      %4776 = vmatmul.mubr.bf16.gmra.mrb[0].mxu0 %v4600
      %v4777 = vpop.f32.mrb[0].mxu0
      %v4778 = vadd.f32 0.0, %v4777
      %v4779 = vpop.f32.mrb[0].mxu0
      %v4780 = vpop.f32.mrb[0].mxu0
      %v4781 = vadd.f32 0.0, %v4780
      %v4782 = vpop.f32.mrb[0].mxu0
      %4783 = vmatprep.mubr.bf16.mxu0 0
      %4784 = vmatmul.mubr.bf16.gmra.mrb[0].mxu0 %v4603
      %v4785 = vpop.f32.mrb[0].mxu0
      %v4786 = vadd.f32 0.0, %v4785
      %v4787 = vpop.f32.mrb[0].mxu0
      %v4788 = vpop.f32.mrb[0].mxu0
      %v4789 = vadd.f32 0.0, %v4788
      %v4790 = vpop.f32.mrb[0].mxu0
      %4791 = vmatprep.mubr.bf16.mxu0 0
      %4792 = vmatmul.mubr.bf16.gmra.mrb[0].mxu0 %v4606
      %v4793 = vpop.f32.mrb[0].mxu0
      %v4794 = vadd.f32 0.0, %v4793
      %v4795 = vpop.f32.mrb[0].mxu0
      %v4796 = vpop.f32.mrb[0].mxu0
      %v4797 = vadd.f32 0.0, %v4796
      %v4798 = vpop.f32.mrb[0].mxu0
      %4799 = vmatprep.mubr.bf16.mxu0 0
      %4800 = vmatmul.mubr.bf16.gmra.mrb[0].mxu0 %v4609
      %v4801 = vpop.f32.mrb[0].mxu0
      %v4802 = vadd.f32 0.0, %v4801
      %v4803 = vpop.f32.mrb[0].mxu0
      %v4804 = vpop.f32.mrb[0].mxu0
      %v4805 = vadd.f32 0.0, %v4804
      %v4806 = vpop.f32.mrb[0].mxu0
      %4807 = vmatprep.mubr.bf16.mxu0 0
      %4808 = vmatmul.mubr.bf16.gmra.mrb[0].mxu0 %v4612
      %v4809 = vpop.f32.mrb[0].mxu0
      %v4810 = vadd.f32 0.0, %v4809
      %v4811 = vpop.f32.mrb[0].mxu0
      %v4812 = vpop.f32.mrb[0].mxu0
      %v4813 = vadd.f32 0.0, %v4812
      %v4814 = vpop.f32.mrb[0].mxu0
      %4815 = vmatprep.mubr.bf16.mxu0 0
      %4816 = vmatmul.mubr.bf16.gmra.mrb[0].mxu0 %v4615
      %v4817 = vpop.f32.mrb[0].mxu0
      %v4818 = vadd.f32 0.0, %v4817
      %v4819 = vpop.f32.mrb[0].mxu0
      %v4820 = vpop.f32.mrb[0].mxu0
      %v4821 = vadd.f32 0.0, %v4820
      %v4822 = vpop.f32.mrb[0].mxu0
      %4823 = vmatprep.mubr.bf16.mxu0 0
      %4824 = vmatmul.mubr.bf16.gmra.mrb[0].mxu0 %v4618
      %v4825 = vpop.f32.mrb[0].mxu0
      %v4826 = vadd.f32 0.0, %v4825
      %v4827 = vpop.f32.mrb[0].mxu0
      %v4828 = vpop.f32.mrb[0].mxu0
      %v4829 = vadd.f32 0.0, %v4828
      %v4830 = vpop.f32.mrb[0].mxu0
      %4831 = vmatprep.mubr.bf16.mxu0 0
      %4832 = vmatmul.mubr.bf16.gmra.mrb[0].mxu0 %v4621
      %v4833 = vpop.f32.mrb[0].mxu0
      %v4834 = vadd.f32 0.0, %v4833
      %v4835 = vpop.f32.mrb[0].mxu0
      %v4836 = vpop.f32.mrb[0].mxu0
      %v4837 = vadd.f32 0.0, %v4836
      %v4838 = vpop.f32.mrb[0].mxu0
      %4839 = vmatprep.mubr.bf16.mxu0 0
      %4840 = vmatmul.mubr.bf16.gmra.mrb[0].mxu0 %v4624
      %v4841 = vpop.f32.mrb[0].mxu0
      %v4842 = vadd.f32 0.0, %v4841
      %v4843 = vpop.f32.mrb[0].mxu0
      %v4844 = vpop.f32.mrb[0].mxu0
      %v4845 = vadd.f32 0.0, %v4844
      %v4846 = vpop.f32.mrb[0].mxu0
      %4847 = vmatprep.mubr.bf16.mxu0 0
      %4848 = vmatmul.mubr.bf16.gmra.mrb[0].mxu0 %v4627
      %v4849 = vpop.f32.mrb[0].mxu0
      %v4850 = vadd.f32 0.0, %v4849
      %v4851 = vpop.f32.mrb[0].mxu0
      %v4852 = vpop.f32.mrb[0].mxu0
      %v4853 = vadd.f32 0.0, %v4852
      %v4854 = vpop.f32.mrb[0].mxu0
      %4855 = vmatprep.mubr.bf16.mxu0 0
      %4856 = vmatmul.mubr.bf16.gmra.mrb[0].mxu0 %v4630
      %v4857 = vpop.f32.mrb[0].mxu0
      %v4858 = vadd.f32 0.0, %v4857
      %v4859 = vpop.f32.mrb[0].mxu0
      %v4860 = vpop.f32.mrb[0].mxu0
      %v4861 = vadd.f32 0.0, %v4860
      %v4862 = vpop.f32.mrb[0].mxu0
      %4863 = vmatprep.mubr.bf16.mxu0 0
      %4864 = vmatmul.mubr.bf16.gmra.mrb[0].mxu0 %v4633
      %v4865 = vpop.f32.mrb[0].mxu0
      %v4866 = vadd.f32 0.0, %v4865
      %v4867 = vpop.f32.mrb[0].mxu0
      %v4868 = vpop.f32.mrb[0].mxu0
      %v4869 = vadd.f32 0.0, %v4868
      %v4870 = vpop.f32.mrb[0].mxu0
      %4871 = vmatprep.mubr.bf16.mxu0 0
      %4872 = vmatmul.mubr.bf16.gmra.mrb[0].mxu0 %v4636
      %v4873 = vpop.f32.mrb[0].mxu0
      %v4874 = vadd.f32 0.0, %v4873
      %v4875 = vpop.f32.mrb[0].mxu0
      %v4876 = vpop.f32.mrb[0].mxu0
      %v4877 = vadd.f32 0.0, %v4876
      %v4878 = vpop.f32.mrb[0].mxu0
      %4879 = vmatprep.mubr.bf16.mxu0 0
      %4880 = vmatmul.mubr.bf16.gmra.mrb[0].mxu0 %v4639
      %v4881 = vpop.f32.mrb[0].mxu0
      %v4882 = vadd.f32 0.0, %v4881
      %v4883 = vpop.f32.mrb[0].mxu0
      %v4884 = vpop.f32.mrb[0].mxu0
      %v4885 = vadd.f32 0.0, %v4884
      %v4886 = vpop.f32.mrb[0].mxu0
      %4887 = vmatprep.mubr.bf16.mxu0 0
      %4888 = vmatmul.mubr.bf16.gmra.mrb[0].mxu0 %v4642
      %v4889 = vpop.f32.mrb[0].mxu0
      %v4890 = vadd.f32 0.0, %v4889
      %v4891 = vpop.f32.mrb[0].mxu0
      %v4892 = vpop.f32.mrb[0].mxu0
      %v4893 = vadd.f32 0.0, %v4892
      %v4894 = vpop.f32.mrb[0].mxu0
      %4895 = vmatprep.mubr.bf16.mxu0 0
      %4896 = vmatmul.mubr.bf16.gmra.mrb[0].mxu0 %v4645
      %v4897 = vpop.f32.mrb[0].mxu0
      %v4898 = vadd.f32 0.0, %v4897
      %v4899 = vpop.f32.mrb[0].mxu0
      %v4900 = vpop.f32.mrb[0].mxu0
      %v4901 = vadd.f32 0.0, %v4900
      %v4902 = vpop.f32.mrb[0].mxu0
      %4903 = vmatprep.mubr.bf16.mxu0 0
      %4904 = vmatmul.mubr.bf16.gmra.mrb[0].mxu0 %v4648
      %v4905 = vpop.f32.mrb[0].mxu0
      %v4906 = vadd.f32 0.0, %v4905
      %v4907 = vpop.f32.mrb[0].mxu0
      %v4908 = vpop.f32.mrb[0].mxu0
      %v4909 = vadd.f32 0.0, %v4908
      %v4910 = vpop.f32.mrb[0].mxu0
      %4911 = vmatprep.mubr.bf16.mxu0 0
      %4912 = vmatmul.mubr.bf16.gmra.mrb[0].mxu0 %v4651
      %v4913 = vpop.f32.mrb[0].mxu0
      %v4914 = vadd.f32 0.0, %v4913
      %v4915 = vpop.f32.mrb[0].mxu0
      %v4916 = vpop.f32.mrb[0].mxu0
      %v4917 = vadd.f32 0.0, %v4916
      %v4918 = vpop.f32.mrb[0].mxu0
      %4919 = vmatprep.mubr.bf16.mxu0 0
      %4920 = vmatmul.mubr.bf16.gmra.mrb[0].mxu0 %v4654
      %v4921 = vpop.f32.mrb[0].mxu0
      %v4922 = vadd.f32 0.0, %v4921
      %v4923 = vpop.f32.mrb[0].mxu0
      %v4924 = vpop.f32.mrb[0].mxu0
      %v4925 = vadd.f32 0.0, %v4924
      %v4926 = vpop.f32.mrb[0].mxu0
      %4927 = vmatprep.mubr.bf16.mxu0 0
      %4928 = vmatmul.mubr.bf16.gmra.mrb[0].mxu0 %v4657
      %v4929 = vpop.f32.mrb[0].mxu0
      %v4930 = vadd.f32 0.0, %v4929
      %v4931 = vpop.f32.mrb[0].mxu0
      %v4932 = vpop.f32.mrb[0].mxu0
      %v4933 = vadd.f32 0.0, %v4932
      %v4934 = vpop.f32.mrb[0].mxu0
      %4935 = vmatprep.mubr.bf16.mxu0 0
      %4936 = vmatmul.mubr.bf16.gmra.mrb[0].mxu0 %v4660
      %v4937 = vpop.f32.mrb[0].mxu0
      %v4938 = vadd.f32 0.0, %v4937
      %v4939 = vpop.f32.mrb[0].mxu0
      %v4940 = vpop.f32.mrb[0].mxu0
      %v4941 = vadd.f32 0.0, %v4940
      %v4942 = vpop.f32.mrb[0].mxu0
      %4943 = vmatprep.mubr.bf16.mxu0 0
      %4944 = vmatmul.mubr.bf16.gmra.mrb[0].mxu0 %v4663
      %v4945 = vpop.f32.mrb[0].mxu0
      %v4946 = vadd.f32 0.0, %v4945
      %v4947 = vpop.f32.mrb[0].mxu0
      %v4948 = vpop.f32.mrb[0].mxu0
      %v4949 = vadd.f32 0.0, %v4948
      %v4950 = vpop.f32.mrb[0].mxu0
      %4951 = vmatprep.mubr.bf16.mxu0 0
      %4952 = vmatmul.mubr.bf16.gmra.mrb[0].mxu0 %v4666
      %v4953 = vpop.f32.mrb[0].mxu0
      %v4954 = vadd.f32 0.0, %v4953
      %v4955 = vpop.f32.mrb[0].mxu0
      %v4956 = vpop.f32.mrb[0].mxu0
      %v4957 = vadd.f32 0.0, %v4956
      %v4958 = vpop.f32.mrb[0].mxu0
      %4959 = vdwg.mxu0
      %v4960 = vadd.f32 %v4220, %v4706
      %v4961 = vadd.f32 %v4223, %v4709
      %v4962 = vadd.f32 %v4228, %v4714
      %v4963 = vadd.f32 %v4231, %v4717
      %v4964 = vadd.f32 %v4236, %v4722
      %v4965 = vadd.f32 %v4239, %v4725
      %v4966 = vadd.f32 %v4244, %v4730
      %v4967 = vadd.f32 %v4247, %v4733
      %v4968 = vadd.f32 %v4252, %v4738
      %v4969 = vadd.f32 %v4255, %v4741
      %v4970 = vadd.f32 %v4260, %v4746
      %v4971 = vadd.f32 %v4263, %v4749
      %v4972 = vadd.f32 %v4268, %v4754
      %v4973 = vadd.f32 %v4271, %v4757
      %v4974 = vadd.f32 %v4276, %v4762
      %v4975 = vadd.f32 %v4279, %v4765
      %v4976 = vadd.f32 %v4284, %v4770
      %v4977 = vadd.f32 %v4287, %v4773
      %v4978 = vadd.f32 %v4292, %v4778
      %v4979 = vadd.f32 %v4295, %v4781
      %v4980 = vadd.f32 %v4300, %v4786
      %v4981 = vadd.f32 %v4303, %v4789
      %v4982 = vadd.f32 %v4308, %v4794
      %v4983 = vadd.f32 %v4311, %v4797
      %v4984 = vadd.f32 %v4316, %v4802
      %v4985 = vadd.f32 %v4319, %v4805
      %v4986 = vadd.f32 %v4324, %v4810
      %v4987 = vadd.f32 %v4327, %v4813
      %v4988 = vadd.f32 %v4332, %v4818
      %v4989 = vadd.f32 %v4335, %v4821
      %v4990 = vadd.f32 %v4340, %v4826
      %v4991 = vadd.f32 %v4343, %v4829
      %v4992 = vadd.f32 %v4348, %v4834
      %v4993 = vadd.f32 %v4351, %v4837
      %v4994 = vadd.f32 %v4356, %v4842
      %v4995 = vadd.f32 %v4359, %v4845
      %v4996 = vadd.f32 %v4364, %v4850
      %v4997 = vadd.f32 %v4367, %v4853
      %v4998 = vadd.f32 %v4372, %v4858
      %v4999 = vadd.f32 %v4375, %v4861
      %v5000 = vadd.f32 %v4380, %v4866
      %v5001 = vadd.f32 %v4383, %v4869
      %v5002 = vadd.f32 %v4388, %v4874
      %v5003 = vadd.f32 %v4391, %v4877
      %v5004 = vadd.f32 %v4396, %v4882
      %v5005 = vadd.f32 %v4399, %v4885
      %v5006 = vadd.f32 %v4404, %v4890
      %v5007 = vadd.f32 %v4407, %v4893
      %v5008 = vadd.f32 %v4412, %v4898
      %v5009 = vadd.f32 %v4415, %v4901
      %v5010 = vadd.f32 %v4420, %v4906
      %v5011 = vadd.f32 %v4423, %v4909
      %v5012 = vadd.f32 %v4428, %v4914
      %v5013 = vadd.f32 %v4431, %v4917
      %v5014 = vadd.f32 %v4436, %v4922
      %v5015 = vadd.f32 %v4439, %v4925
      %v5016 = vadd.f32 %v4444, %v4930
      %v5017 = vadd.f32 %v4447, %v4933
      %v5018 = vadd.f32 %v4452, %v4938
      %v5019 = vadd.f32 %v4455, %v4941
      %v5020 = vadd.f32 %v4460, %v4946
      %v5021 = vadd.f32 %v4463, %v4949
      %v5022 = vadd.f32 %v4468, %v4954
      %v5023 = vadd.f32 %v4471, %v4957
      %v5024 = vld [vmem:[#allocation2 + $0x3] sm:$0xff]
      %v5025 = vld [vmem:[#allocation2 + $0xb] sm:$0xff]
      %v5026 = vld [vmem:[#allocation2 + $0x13] sm:$0xff]
      %v5027 = vld [vmem:[#allocation2 + $0x1b] sm:$0xff]
      %v5028 = vld [vmem:[#allocation2 + $0x23] sm:$0xff]
      %v5029 = vld [vmem:[#allocation2 + $0x2b] sm:$0xff]
      %v5030 = vld [vmem:[#allocation2 + $0x33] sm:$0xff]
      %v5031 = vld [vmem:[#allocation2 + $0x3b] sm:$0xff]
      %v5032 = vld [vmem:[#allocation2 + $0x43] sm:$0xff]
      %v5033 = vld [vmem:[#allocation2 + $0x4b] sm:$0xff]
      %v5034 = vld [vmem:[#allocation2 + $0x53] sm:$0xff]
      %v5035 = vld [vmem:[#allocation2 + $0x5b] sm:$0xff]
      %v5036 = vld [vmem:[#allocation2 + $0x63] sm:$0xff]
      %v5037 = vld [vmem:[#allocation2 + $0x6b] sm:$0xff]
      %v5038 = vld [vmem:[#allocation2 + $0x73] sm:$0xff]
      %v5039 = vld [vmem:[#allocation2 + $0x7b] sm:$0xff]
      %v5040 = vld [vmem:[#allocation2 + $0x83] sm:$0xff]
      %v5041 = vld [vmem:[#allocation2 + $0x8b] sm:$0xff]
      %v5042 = vld [vmem:[#allocation2 + $0x93] sm:$0xff]
      %v5043 = vld [vmem:[#allocation2 + $0x9b] sm:$0xff]
      %v5044 = vld [vmem:[#allocation2 + $0xa3] sm:$0xff]
      %v5045 = vld [vmem:[#allocation2 + $0xab] sm:$0xff]
      %v5046 = vld [vmem:[#allocation2 + $0xb3] sm:$0xff]
      %v5047 = vld [vmem:[#allocation2 + $0xbb] sm:$0xff]
      %v5048 = vld [vmem:[#allocation2 + $0xc3] sm:$0xff]
      %v5049 = vld [vmem:[#allocation2 + $0xcb] sm:$0xff]
      %v5050 = vld [vmem:[#allocation2 + $0xd3] sm:$0xff]
      %v5051 = vld [vmem:[#allocation2 + $0xdb] sm:$0xff]
      %v5052 = vld [vmem:[#allocation2 + $0xe3] sm:$0xff]
      %v5053 = vld [vmem:[#allocation2 + $0xeb] sm:$0xff]
      %v5054 = vld [vmem:[#allocation2 + $0xf3] sm:$0xff]
      %v5055 = vld [vmem:[#allocation2 + $0xfb] sm:$0xff]
      %v5056 = vld [vmem:[#allocation2 + $0x103] sm:$0xff]
      %v5057 = vld [vmem:[#allocation2 + $0x10b] sm:$0xff]
      %v5058 = vld [vmem:[#allocation2 + $0x113] sm:$0xff]
      %v5059 = vld [vmem:[#allocation2 + $0x11b] sm:$0xff]
      %v5060 = vld [vmem:[#allocation2 + $0x123] sm:$0xff]
      %v5061 = vld [vmem:[#allocation2 + $0x12b] sm:$0xff]
      %v5062 = vld [vmem:[#allocation2 + $0x133] sm:$0xff]
      %v5063 = vld [vmem:[#allocation2 + $0x13b] sm:$0xff]
      %v5064 = vld [vmem:[#allocation2 + $0x143] sm:$0xff]
      %v5065 = vld [vmem:[#allocation2 + $0x14b] sm:$0xff]
      %v5066 = vld [vmem:[#allocation2 + $0x153] sm:$0xff]
      %v5067 = vld [vmem:[#allocation2 + $0x15b] sm:$0xff]
      %v5068 = vld [vmem:[#allocation2 + $0x163] sm:$0xff]
      %v5069 = vld [vmem:[#allocation2 + $0x16b] sm:$0xff]
      %v5070 = vld [vmem:[#allocation2 + $0x173] sm:$0xff]
      %v5071 = vld [vmem:[#allocation2 + $0x17b] sm:$0xff]
      %v5072 = vld [vmem:[#allocation2 + $0x183] sm:$0xff]
      %v5073 = vld [vmem:[#allocation2 + $0x18b] sm:$0xff]
      %v5074 = vld [vmem:[#allocation2 + $0x193] sm:$0xff]
      %v5075 = vld [vmem:[#allocation2 + $0x19b] sm:$0xff]
      %v5076 = vld [vmem:[#allocation2 + $0x1a3] sm:$0xff]
      %v5077 = vld [vmem:[#allocation2 + $0x1ab] sm:$0xff]
      %v5078 = vld [vmem:[#allocation2 + $0x1b3] sm:$0xff]
      %v5079 = vld [vmem:[#allocation2 + $0x1bb] sm:$0xff]
      %v5080 = vld [vmem:[#allocation2 + $0x1c3] sm:$0xff]
      %v5081 = vld [vmem:[#allocation2 + $0x1cb] sm:$0xff]
      %v5082 = vld [vmem:[#allocation2 + $0x1d3] sm:$0xff]
      %v5083 = vld [vmem:[#allocation2 + $0x1db] sm:$0xff]
      %v5084 = vld [vmem:[#allocation2 + $0x1e3] sm:$0xff]
      %v5085 = vld [vmem:[#allocation2 + $0x1eb] sm:$0xff]
      %v5086 = vld [vmem:[#allocation2 + $0x1f3] sm:$0xff]
      %v5087 = vld [vmem:[#allocation2 + $0x1fb] sm:$0xff]
      %v5088 = vpack.c.bf16 %v5025, %v5024
      %v5089 = vpack.c.bf16 %v5027, %v5026
      %v5090 = vpack.c.bf16 %v5029, %v5028
      %v5091 = vpack.c.bf16 %v5031, %v5030
      %v5092 = vpack.c.bf16 %v5033, %v5032
      %v5093 = vpack.c.bf16 %v5035, %v5034
      %v5094 = vpack.c.bf16 %v5037, %v5036
      %v5095 = vpack.c.bf16 %v5039, %v5038
      %v5096 = vpack.c.bf16 %v5041, %v5040
      %v5097 = vpack.c.bf16 %v5043, %v5042
      %v5098 = vpack.c.bf16 %v5045, %v5044
      %v5099 = vpack.c.bf16 %v5047, %v5046
      %v5100 = vpack.c.bf16 %v5049, %v5048
      %v5101 = vpack.c.bf16 %v5051, %v5050
      %v5102 = vpack.c.bf16 %v5053, %v5052
      %v5103 = vpack.c.bf16 %v5055, %v5054
      %v5104 = vpack.c.bf16 %v5057, %v5056
      %v5105 = vpack.c.bf16 %v5059, %v5058
      %v5106 = vpack.c.bf16 %v5061, %v5060
      %v5107 = vpack.c.bf16 %v5063, %v5062
      %v5108 = vpack.c.bf16 %v5065, %v5064
      %v5109 = vpack.c.bf16 %v5067, %v5066
      %v5110 = vpack.c.bf16 %v5069, %v5068
      %v5111 = vpack.c.bf16 %v5071, %v5070
      %v5112 = vpack.c.bf16 %v5073, %v5072
      %v5113 = vpack.c.bf16 %v5075, %v5074
      %v5114 = vpack.c.bf16 %v5077, %v5076
      %v5115 = vpack.c.bf16 %v5079, %v5078
      %v5116 = vpack.c.bf16 %v5081, %v5080
      %v5117 = vpack.c.bf16 %v5083, %v5082
      %v5118 = vpack.c.bf16 %v5085, %v5084
      %v5119 = vpack.c.bf16 %v5087, %v5086
      %s5120 = scalar_lea.vmem %s3, 12
      %v5121 = vld [vmem:[%s5120] sm:$0xf]
      %v5123 = vsel %vm3437, %v5088, 0
      %v5126 = vsel %vm3437, %v5089, 0
      %v5129 = vsel %vm3437, %v5090, 0
      %v5132 = vsel %vm3437, %v5091, 0
      %v5135 = vsel %vm3437, %v5092, 0
      %v5138 = vsel %vm3437, %v5093, 0
      %v5141 = vsel %vm3437, %v5094, 0
      %v5144 = vsel %vm3437, %v5095, 0
      %v5147 = vsel %vm3437, %v5096, 0
      %v5150 = vsel %vm3437, %v5097, 0
      %v5153 = vsel %vm3437, %v5098, 0
      %v5156 = vsel %vm3437, %v5099, 0
      %v5159 = vsel %vm3437, %v5100, 0
      %v5162 = vsel %vm3437, %v5101, 0
      %v5165 = vsel %vm3437, %v5102, 0
      %v5168 = vsel %vm3437, %v5103, 0
      %v5171 = vsel %vm3437, %v5104, 0
      %v5174 = vsel %vm3437, %v5105, 0
      %v5177 = vsel %vm3437, %v5106, 0
      %v5180 = vsel %vm3437, %v5107, 0
      %v5183 = vsel %vm3437, %v5108, 0
      %v5186 = vsel %vm3437, %v5109, 0
      %v5189 = vsel %vm3437, %v5110, 0
      %v5192 = vsel %vm3437, %v5111, 0
      %v5195 = vsel %vm3437, %v5112, 0
      %v5198 = vsel %vm3437, %v5113, 0
      %v5201 = vsel %vm3437, %v5114, 0
      %v5204 = vsel %vm3437, %v5115, 0
      %v5207 = vsel %vm3437, %v5116, 0
      %v5210 = vsel %vm3437, %v5117, 0
      %v5213 = vsel %vm3437, %v5118, 0
      %v5216 = vsel %vm3437, %v5119, 0
      %v5219 = vsel %vm3793, %v5121, 0
      %5221 = vmatprep.subr.bf16.mxu0 0
      %5222 = vmatpush1.bf16.msra.mxu0 %v5219
      %5223 = vmatprep.subr.bf16.mxu0 0
      %5224 = vmatpush1.bf16.msra.mxu0 0
      %5225 = vmatprep.subr.bf16.mxu0 0
      %5226 = vmatpush1.bf16.msra.mxu0 0
      %5227 = vmatprep.subr.bf16.mxu0 0
      %5228 = vmatpush1.bf16.msra.mxu0 0
      %5229 = vmatprep.subr.bf16.mxu0 0
      %5230 = vmatpush1.bf16.msra.mxu0 0
      %5231 = vmatprep.subr.bf16.mxu0 0
      %5232 = vmatpush1.bf16.msra.mxu0 0
      %5233 = vmatprep.subr.bf16.mxu0 0
      %5234 = vmatpush1.bf16.msra.mxu0 0
      %5235 = vmatprep.subr.bf16.mxu0 0
      %5236 = vmatpush1.bf16.msra.mxu0 0
      %5237 = vmatprep.subr.bf16.mxu0 0
      %5238 = vmatpush1.bf16.msra.mxu0 0
      %5239 = vmatprep.subr.bf16.mxu0 0
      %5240 = vmatpush1.bf16.msra.mxu0 0
      %5241 = vmatprep.subr.bf16.mxu0 0
      %5242 = vmatpush1.bf16.msra.mxu0 0
      %5243 = vmatprep.subr.bf16.mxu0 0
      %5244 = vmatpush1.bf16.msra.mxu0 0
      %5245 = vmatprep.subr.bf16.mxu0 0
      %5246 = vmatpush1.bf16.msra.mxu0 0
      %5247 = vmatprep.subr.bf16.mxu0 0
      %5248 = vmatpush1.bf16.msra.mxu0 0
      %5249 = vmatprep.subr.bf16.mxu0 0
      %5250 = vmatpush1.bf16.msra.mxu0 0
      %5251 = vmatprep.subr.bf16.mxu0 0
      %5252 = vmatpush1.bf16.msra.mxu0 0
      %5253 = vmatprep.mubr.bf16.mxu0 0
      %5254 = vmatmul.mubr.bf16.gmra.mrb[0].mxu0 %v5123
      %v5255 = vpop.f32.mrb[0].mxu0
      %v5256 = vadd.f32 0.0, %v5255
      %v5257 = vpop.f32.mrb[0].mxu0
      %v5258 = vpop.f32.mrb[0].mxu0
      %v5259 = vadd.f32 0.0, %v5258
      %v5260 = vpop.f32.mrb[0].mxu0
      %5261 = vmatprep.mubr.bf16.mxu0 0
      %5262 = vmatmul.mubr.bf16.gmra.mrb[0].mxu0 %v5126
      %v5263 = vpop.f32.mrb[0].mxu0
      %v5264 = vadd.f32 0.0, %v5263
      %v5265 = vpop.f32.mrb[0].mxu0
      %v5266 = vpop.f32.mrb[0].mxu0
      %v5267 = vadd.f32 0.0, %v5266
      %v5268 = vpop.f32.mrb[0].mxu0
      %5269 = vmatprep.mubr.bf16.mxu0 0
      %5270 = vmatmul.mubr.bf16.gmra.mrb[0].mxu0 %v5129
      %v5271 = vpop.f32.mrb[0].mxu0
      %v5272 = vadd.f32 0.0, %v5271
      %v5273 = vpop.f32.mrb[0].mxu0
      %v5274 = vpop.f32.mrb[0].mxu0
      %v5275 = vadd.f32 0.0, %v5274
      %v5276 = vpop.f32.mrb[0].mxu0
      %5277 = vmatprep.mubr.bf16.mxu0 0
      %5278 = vmatmul.mubr.bf16.gmra.mrb[0].mxu0 %v5132
      %v5279 = vpop.f32.mrb[0].mxu0
      %v5280 = vadd.f32 0.0, %v5279
      %v5281 = vpop.f32.mrb[0].mxu0
      %v5282 = vpop.f32.mrb[0].mxu0
      %v5283 = vadd.f32 0.0, %v5282
      %v5284 = vpop.f32.mrb[0].mxu0
      %5285 = vmatprep.mubr.bf16.mxu0 0
      %5286 = vmatmul.mubr.bf16.gmra.mrb[0].mxu0 %v5135
      %v5287 = vpop.f32.mrb[0].mxu0
      %v5288 = vadd.f32 0.0, %v5287
      %v5289 = vpop.f32.mrb[0].mxu0
      %v5290 = vpop.f32.mrb[0].mxu0
      %v5291 = vadd.f32 0.0, %v5290
      %v5292 = vpop.f32.mrb[0].mxu0
      %5293 = vmatprep.mubr.bf16.mxu0 0
      %5294 = vmatmul.mubr.bf16.gmra.mrb[0].mxu0 %v5138
      %v5295 = vpop.f32.mrb[0].mxu0
      %v5296 = vadd.f32 0.0, %v5295
      %v5297 = vpop.f32.mrb[0].mxu0
      %v5298 = vpop.f32.mrb[0].mxu0
      %v5299 = vadd.f32 0.0, %v5298
      %v5300 = vpop.f32.mrb[0].mxu0
      %5301 = vmatprep.mubr.bf16.mxu0 0
      %5302 = vmatmul.mubr.bf16.gmra.mrb[0].mxu0 %v5141
      %v5303 = vpop.f32.mrb[0].mxu0
      %v5304 = vadd.f32 0.0, %v5303
      %v5305 = vpop.f32.mrb[0].mxu0
      %v5306 = vpop.f32.mrb[0].mxu0
      %v5307 = vadd.f32 0.0, %v5306
      %v5308 = vpop.f32.mrb[0].mxu0
      %5309 = vmatprep.mubr.bf16.mxu0 0
      %5310 = vmatmul.mubr.bf16.gmra.mrb[0].mxu0 %v5144
      %v5311 = vpop.f32.mrb[0].mxu0
      %v5312 = vadd.f32 0.0, %v5311
      %v5313 = vpop.f32.mrb[0].mxu0
      %v5314 = vpop.f32.mrb[0].mxu0
      %v5315 = vadd.f32 0.0, %v5314
      %v5316 = vpop.f32.mrb[0].mxu0
      %5317 = vmatprep.mubr.bf16.mxu0 0
      %5318 = vmatmul.mubr.bf16.gmra.mrb[0].mxu0 %v5147
      %v5319 = vpop.f32.mrb[0].mxu0
      %v5320 = vadd.f32 0.0, %v5319
      %v5321 = vpop.f32.mrb[0].mxu0
      %v5322 = vpop.f32.mrb[0].mxu0
      %v5323 = vadd.f32 0.0, %v5322
      %v5324 = vpop.f32.mrb[0].mxu0
      %5325 = vmatprep.mubr.bf16.mxu0 0
      %5326 = vmatmul.mubr.bf16.gmra.mrb[0].mxu0 %v5150
      %v5327 = vpop.f32.mrb[0].mxu0
      %v5328 = vadd.f32 0.0, %v5327
      %v5329 = vpop.f32.mrb[0].mxu0
      %v5330 = vpop.f32.mrb[0].mxu0
      %v5331 = vadd.f32 0.0, %v5330
      %v5332 = vpop.f32.mrb[0].mxu0
      %5333 = vmatprep.mubr.bf16.mxu0 0
      %5334 = vmatmul.mubr.bf16.gmra.mrb[0].mxu0 %v5153
      %v5335 = vpop.f32.mrb[0].mxu0
      %v5336 = vadd.f32 0.0, %v5335
      %v5337 = vpop.f32.mrb[0].mxu0
      %v5338 = vpop.f32.mrb[0].mxu0
      %v5339 = vadd.f32 0.0, %v5338
      %v5340 = vpop.f32.mrb[0].mxu0
      %5341 = vmatprep.mubr.bf16.mxu0 0
      %5342 = vmatmul.mubr.bf16.gmra.mrb[0].mxu0 %v5156
      %v5343 = vpop.f32.mrb[0].mxu0
      %v5344 = vadd.f32 0.0, %v5343
      %v5345 = vpop.f32.mrb[0].mxu0
      %v5346 = vpop.f32.mrb[0].mxu0
      %v5347 = vadd.f32 0.0, %v5346
      %v5348 = vpop.f32.mrb[0].mxu0
      %5349 = vmatprep.mubr.bf16.mxu0 0
      %5350 = vmatmul.mubr.bf16.gmra.mrb[0].mxu0 %v5159
      %v5351 = vpop.f32.mrb[0].mxu0
      %v5352 = vadd.f32 0.0, %v5351
      %v5353 = vpop.f32.mrb[0].mxu0
      %v5354 = vpop.f32.mrb[0].mxu0
      %v5355 = vadd.f32 0.0, %v5354
      %v5356 = vpop.f32.mrb[0].mxu0
      %5357 = vmatprep.mubr.bf16.mxu0 0
      %5358 = vmatmul.mubr.bf16.gmra.mrb[0].mxu0 %v5162
      %v5359 = vpop.f32.mrb[0].mxu0
      %v5360 = vadd.f32 0.0, %v5359
      %v5361 = vpop.f32.mrb[0].mxu0
      %v5362 = vpop.f32.mrb[0].mxu0
      %v5363 = vadd.f32 0.0, %v5362
      %v5364 = vpop.f32.mrb[0].mxu0
      %5365 = vmatprep.mubr.bf16.mxu0 0
      %5366 = vmatmul.mubr.bf16.gmra.mrb[0].mxu0 %v5165
      %v5367 = vpop.f32.mrb[0].mxu0
      %v5368 = vadd.f32 0.0, %v5367
      %v5369 = vpop.f32.mrb[0].mxu0
      %v5370 = vpop.f32.mrb[0].mxu0
      %v5371 = vadd.f32 0.0, %v5370
      %v5372 = vpop.f32.mrb[0].mxu0
      %5373 = vmatprep.mubr.bf16.mxu0 0
      %5374 = vmatmul.mubr.bf16.gmra.mrb[0].mxu0 %v5168
      %v5375 = vpop.f32.mrb[0].mxu0
      %v5376 = vadd.f32 0.0, %v5375
      %v5377 = vpop.f32.mrb[0].mxu0
      %v5378 = vpop.f32.mrb[0].mxu0
      %v5379 = vadd.f32 0.0, %v5378
      %v5380 = vpop.f32.mrb[0].mxu0
      %5381 = vmatprep.mubr.bf16.mxu0 0
      %5382 = vmatmul.mubr.bf16.gmra.mrb[0].mxu0 %v5171
      %v5383 = vpop.f32.mrb[0].mxu0
      %v5384 = vadd.f32 0.0, %v5383
      %v5385 = vpop.f32.mrb[0].mxu0
      %v5386 = vpop.f32.mrb[0].mxu0
      %v5387 = vadd.f32 0.0, %v5386
      %v5388 = vpop.f32.mrb[0].mxu0
      %5389 = vmatprep.mubr.bf16.mxu0 0
      %5390 = vmatmul.mubr.bf16.gmra.mrb[0].mxu0 %v5174
      %v5391 = vpop.f32.mrb[0].mxu0
      %v5392 = vadd.f32 0.0, %v5391
      %v5393 = vpop.f32.mrb[0].mxu0
      %v5394 = vpop.f32.mrb[0].mxu0
      %v5395 = vadd.f32 0.0, %v5394
      %v5396 = vpop.f32.mrb[0].mxu0
      %5397 = vmatprep.mubr.bf16.mxu0 0
      %5398 = vmatmul.mubr.bf16.gmra.mrb[0].mxu0 %v5177
      %v5399 = vpop.f32.mrb[0].mxu0
      %v5400 = vadd.f32 0.0, %v5399
      %v5401 = vpop.f32.mrb[0].mxu0
      %v5402 = vpop.f32.mrb[0].mxu0
      %v5403 = vadd.f32 0.0, %v5402
      %v5404 = vpop.f32.mrb[0].mxu0
      %5405 = vmatprep.mubr.bf16.mxu0 0
      %5406 = vmatmul.mubr.bf16.gmra.mrb[0].mxu0 %v5180
      %v5407 = vpop.f32.mrb[0].mxu0
      %v5408 = vadd.f32 0.0, %v5407
      %v5409 = vpop.f32.mrb[0].mxu0
      %v5410 = vpop.f32.mrb[0].mxu0
      %v5411 = vadd.f32 0.0, %v5410
      %v5412 = vpop.f32.mrb[0].mxu0
      %5413 = vmatprep.mubr.bf16.mxu0 0
      %5414 = vmatmul.mubr.bf16.gmra.mrb[0].mxu0 %v5183
      %v5415 = vpop.f32.mrb[0].mxu0
      %v5416 = vadd.f32 0.0, %v5415
      %v5417 = vpop.f32.mrb[0].mxu0
      %v5418 = vpop.f32.mrb[0].mxu0
      %v5419 = vadd.f32 0.0, %v5418
      %v5420 = vpop.f32.mrb[0].mxu0
      %5421 = vmatprep.mubr.bf16.mxu0 0
      %5422 = vmatmul.mubr.bf16.gmra.mrb[0].mxu0 %v5186
      %v5423 = vpop.f32.mrb[0].mxu0
      %v5424 = vadd.f32 0.0, %v5423
      %v5425 = vpop.f32.mrb[0].mxu0
      %v5426 = vpop.f32.mrb[0].mxu0
      %v5427 = vadd.f32 0.0, %v5426
      %v5428 = vpop.f32.mrb[0].mxu0
      %5429 = vmatprep.mubr.bf16.mxu0 0
      %5430 = vmatmul.mubr.bf16.gmra.mrb[0].mxu0 %v5189
      %v5431 = vpop.f32.mrb[0].mxu0
      %v5432 = vadd.f32 0.0, %v5431
      %v5433 = vpop.f32.mrb[0].mxu0
      %v5434 = vpop.f32.mrb[0].mxu0
      %v5435 = vadd.f32 0.0, %v5434
      %v5436 = vpop.f32.mrb[0].mxu0
      %5437 = vmatprep.mubr.bf16.mxu0 0
      %5438 = vmatmul.mubr.bf16.gmra.mrb[0].mxu0 %v5192
      %v5439 = vpop.f32.mrb[0].mxu0
      %v5440 = vadd.f32 0.0, %v5439
      %v5441 = vpop.f32.mrb[0].mxu0
      %v5442 = vpop.f32.mrb[0].mxu0
      %v5443 = vadd.f32 0.0, %v5442
      %v5444 = vpop.f32.mrb[0].mxu0
      %5445 = vmatprep.mubr.bf16.mxu0 0
      %5446 = vmatmul.mubr.bf16.gmra.mrb[0].mxu0 %v5195
      %v5447 = vpop.f32.mrb[0].mxu0
      %v5448 = vadd.f32 0.0, %v5447
      %v5449 = vpop.f32.mrb[0].mxu0
      %v5450 = vpop.f32.mrb[0].mxu0
      %v5451 = vadd.f32 0.0, %v5450
      %v5452 = vpop.f32.mrb[0].mxu0
      %5453 = vmatprep.mubr.bf16.mxu0 0
      %5454 = vmatmul.mubr.bf16.gmra.mrb[0].mxu0 %v5198
      %v5455 = vpop.f32.mrb[0].mxu0
      %v5456 = vadd.f32 0.0, %v5455
      %v5457 = vpop.f32.mrb[0].mxu0
      %v5458 = vpop.f32.mrb[0].mxu0
      %v5459 = vadd.f32 0.0, %v5458
      %v5460 = vpop.f32.mrb[0].mxu0
      %5461 = vmatprep.mubr.bf16.mxu0 0
      %5462 = vmatmul.mubr.bf16.gmra.mrb[0].mxu0 %v5201
      %v5463 = vpop.f32.mrb[0].mxu0
      %v5464 = vadd.f32 0.0, %v5463
      %v5465 = vpop.f32.mrb[0].mxu0
      %v5466 = vpop.f32.mrb[0].mxu0
      %v5467 = vadd.f32 0.0, %v5466
      %v5468 = vpop.f32.mrb[0].mxu0
      %5469 = vmatprep.mubr.bf16.mxu0 0
      %5470 = vmatmul.mubr.bf16.gmra.mrb[0].mxu0 %v5204
      %v5471 = vpop.f32.mrb[0].mxu0
      %v5472 = vadd.f32 0.0, %v5471
      %v5473 = vpop.f32.mrb[0].mxu0
      %v5474 = vpop.f32.mrb[0].mxu0
      %v5475 = vadd.f32 0.0, %v5474
      %v5476 = vpop.f32.mrb[0].mxu0
      %5477 = vmatprep.mubr.bf16.mxu0 0
      %5478 = vmatmul.mubr.bf16.gmra.mrb[0].mxu0 %v5207
      %v5479 = vpop.f32.mrb[0].mxu0
      %v5480 = vadd.f32 0.0, %v5479
      %v5481 = vpop.f32.mrb[0].mxu0
      %v5482 = vpop.f32.mrb[0].mxu0
      %v5483 = vadd.f32 0.0, %v5482
      %v5484 = vpop.f32.mrb[0].mxu0
      %5485 = vmatprep.mubr.bf16.mxu0 0
      %5486 = vmatmul.mubr.bf16.gmra.mrb[0].mxu0 %v5210
      %v5487 = vpop.f32.mrb[0].mxu0
      %v5488 = vadd.f32 0.0, %v5487
      %v5489 = vpop.f32.mrb[0].mxu0
      %v5490 = vpop.f32.mrb[0].mxu0
      %v5491 = vadd.f32 0.0, %v5490
      %v5492 = vpop.f32.mrb[0].mxu0
      %5493 = vmatprep.mubr.bf16.mxu0 0
      %5494 = vmatmul.mubr.bf16.gmra.mrb[0].mxu0 %v5213
      %v5495 = vpop.f32.mrb[0].mxu0
      %v5496 = vadd.f32 0.0, %v5495
      %v5497 = vpop.f32.mrb[0].mxu0
      %v5498 = vpop.f32.mrb[0].mxu0
      %v5499 = vadd.f32 0.0, %v5498
      %v5500 = vpop.f32.mrb[0].mxu0
      %5501 = vmatprep.mubr.bf16.mxu0 0
      %5502 = vmatmul.mubr.bf16.gmra.mrb[0].mxu0 %v5216
      %v5503 = vpop.f32.mrb[0].mxu0
      %v5504 = vadd.f32 0.0, %v5503
      %v5505 = vpop.f32.mrb[0].mxu0
      %v5506 = vpop.f32.mrb[0].mxu0
      %v5507 = vadd.f32 0.0, %v5506
      %v5508 = vpop.f32.mrb[0].mxu0
      %5509 = vdwg.mxu0
      %v5510 = vadd.f32 %v4960, %v5256
      %v5511 = vadd.f32 %v4961, %v5259
      %v5512 = vadd.f32 %v4962, %v5264
      %v5513 = vadd.f32 %v4963, %v5267
      %v5514 = vadd.f32 %v4964, %v5272
      %v5515 = vadd.f32 %v4965, %v5275
      %v5516 = vadd.f32 %v4966, %v5280
      %v5517 = vadd.f32 %v4967, %v5283
      %v5518 = vadd.f32 %v4968, %v5288
      %v5519 = vadd.f32 %v4969, %v5291
      %v5520 = vadd.f32 %v4970, %v5296
      %v5521 = vadd.f32 %v4971, %v5299
      %v5522 = vadd.f32 %v4972, %v5304
      %v5523 = vadd.f32 %v4973, %v5307
      %v5524 = vadd.f32 %v4974, %v5312
      %v5525 = vadd.f32 %v4975, %v5315
      %v5526 = vadd.f32 %v4976, %v5320
      %v5527 = vadd.f32 %v4977, %v5323
      %v5528 = vadd.f32 %v4978, %v5328
      %v5529 = vadd.f32 %v4979, %v5331
      %v5530 = vadd.f32 %v4980, %v5336
      %v5531 = vadd.f32 %v4981, %v5339
      %v5532 = vadd.f32 %v4982, %v5344
      %v5533 = vadd.f32 %v4983, %v5347
      %v5534 = vadd.f32 %v4984, %v5352
      %v5535 = vadd.f32 %v4985, %v5355
      %v5536 = vadd.f32 %v4986, %v5360
      %v5537 = vadd.f32 %v4987, %v5363
      %v5538 = vadd.f32 %v4988, %v5368
      %v5539 = vadd.f32 %v4989, %v5371
      %v5540 = vadd.f32 %v4990, %v5376
      %v5541 = vadd.f32 %v4991, %v5379
      %v5542 = vadd.f32 %v4992, %v5384
      %v5543 = vadd.f32 %v4993, %v5387
      %v5544 = vadd.f32 %v4994, %v5392
      %v5545 = vadd.f32 %v4995, %v5395
      %v5546 = vadd.f32 %v4996, %v5400
      %v5547 = vadd.f32 %v4997, %v5403
      %v5548 = vadd.f32 %v4998, %v5408
      %v5549 = vadd.f32 %v4999, %v5411
      %v5550 = vadd.f32 %v5000, %v5416
      %v5551 = vadd.f32 %v5001, %v5419
      %v5552 = vadd.f32 %v5002, %v5424
      %v5553 = vadd.f32 %v5003, %v5427
      %v5554 = vadd.f32 %v5004, %v5432
      %v5555 = vadd.f32 %v5005, %v5435
      %v5556 = vadd.f32 %v5006, %v5440
      %v5557 = vadd.f32 %v5007, %v5443
      %v5558 = vadd.f32 %v5008, %v5448
      %v5559 = vadd.f32 %v5009, %v5451
      %v5560 = vadd.f32 %v5010, %v5456
      %v5561 = vadd.f32 %v5011, %v5459
      %v5562 = vadd.f32 %v5012, %v5464
      %v5563 = vadd.f32 %v5013, %v5467
      %v5564 = vadd.f32 %v5014, %v5472
      %v5565 = vadd.f32 %v5015, %v5475
      %v5566 = vadd.f32 %v5016, %v5480
      %v5567 = vadd.f32 %v5017, %v5483
      %v5568 = vadd.f32 %v5018, %v5488
      %v5569 = vadd.f32 %v5019, %v5491
      %v5570 = vadd.f32 %v5020, %v5496
      %v5571 = vadd.f32 %v5021, %v5499
      %v5572 = vadd.f32 %v5022, %v5504
      %v5573 = vadd.f32 %v5023, %v5507
      %v5574 = vld [vmem:[#allocation2 + $0x4] sm:$0xff]
      %v5575 = vld [vmem:[#allocation2 + $0xc] sm:$0xff]
      %v5576 = vld [vmem:[#allocation2 + $0x14] sm:$0xff]
      %v5577 = vld [vmem:[#allocation2 + $0x1c] sm:$0xff]
      %v5578 = vld [vmem:[#allocation2 + $0x24] sm:$0xff]
      %v5579 = vld [vmem:[#allocation2 + $0x2c] sm:$0xff]
      %v5580 = vld [vmem:[#allocation2 + $0x34] sm:$0xff]
      %v5581 = vld [vmem:[#allocation2 + $0x3c] sm:$0xff]
      %v5582 = vld [vmem:[#allocation2 + $0x44] sm:$0xff]
      %v5583 = vld [vmem:[#allocation2 + $0x4c] sm:$0xff]
      %v5584 = vld [vmem:[#allocation2 + $0x54] sm:$0xff]
      %v5585 = vld [vmem:[#allocation2 + $0x5c] sm:$0xff]
      %v5586 = vld [vmem:[#allocation2 + $0x64] sm:$0xff]
      %v5587 = vld [vmem:[#allocation2 + $0x6c] sm:$0xff]
      %v5588 = vld [vmem:[#allocation2 + $0x74] sm:$0xff]
      %v5589 = vld [vmem:[#allocation2 + $0x7c] sm:$0xff]
      %v5590 = vld [vmem:[#allocation2 + $0x84] sm:$0xff]
      %v5591 = vld [vmem:[#allocation2 + $0x8c] sm:$0xff]
      %v5592 = vld [vmem:[#allocation2 + $0x94] sm:$0xff]
      %v5593 = vld [vmem:[#allocation2 + $0x9c] sm:$0xff]
      %v5594 = vld [vmem:[#allocation2 + $0xa4] sm:$0xff]
      %v5595 = vld [vmem:[#allocation2 + $0xac] sm:$0xff]
      %v5596 = vld [vmem:[#allocation2 + $0xb4] sm:$0xff]
      %v5597 = vld [vmem:[#allocation2 + $0xbc] sm:$0xff]
      %v5598 = vld [vmem:[#allocation2 + $0xc4] sm:$0xff]
      %v5599 = vld [vmem:[#allocation2 + $0xcc] sm:$0xff]
      %v5600 = vld [vmem:[#allocation2 + $0xd4] sm:$0xff]
      %v5601 = vld [vmem:[#allocation2 + $0xdc] sm:$0xff]
      %v5602 = vld [vmem:[#allocation2 + $0xe4] sm:$0xff]
      %v5603 = vld [vmem:[#allocation2 + $0xec] sm:$0xff]
      %v5604 = vld [vmem:[#allocation2 + $0xf4] sm:$0xff]
      %v5605 = vld [vmem:[#allocation2 + $0xfc] sm:$0xff]
      %v5606 = vld [vmem:[#allocation2 + $0x104] sm:$0xff]
      %v5607 = vld [vmem:[#allocation2 + $0x10c] sm:$0xff]
      %v5608 = vld [vmem:[#allocation2 + $0x114] sm:$0xff]
      %v5609 = vld [vmem:[#allocation2 + $0x11c] sm:$0xff]
      %v5610 = vld [vmem:[#allocation2 + $0x124] sm:$0xff]
      %v5611 = vld [vmem:[#allocation2 + $0x12c] sm:$0xff]
      %v5612 = vld [vmem:[#allocation2 + $0x134] sm:$0xff]
      %v5613 = vld [vmem:[#allocation2 + $0x13c] sm:$0xff]
      %v5614 = vld [vmem:[#allocation2 + $0x144] sm:$0xff]
      %v5615 = vld [vmem:[#allocation2 + $0x14c] sm:$0xff]
      %v5616 = vld [vmem:[#allocation2 + $0x154] sm:$0xff]
      %v5617 = vld [vmem:[#allocation2 + $0x15c] sm:$0xff]
      %v5618 = vld [vmem:[#allocation2 + $0x164] sm:$0xff]
      %v5619 = vld [vmem:[#allocation2 + $0x16c] sm:$0xff]
      %v5620 = vld [vmem:[#allocation2 + $0x174] sm:$0xff]
      %v5621 = vld [vmem:[#allocation2 + $0x17c] sm:$0xff]
      %v5622 = vld [vmem:[#allocation2 + $0x184] sm:$0xff]
      %v5623 = vld [vmem:[#allocation2 + $0x18c] sm:$0xff]
      %v5624 = vld [vmem:[#allocation2 + $0x194] sm:$0xff]
      %v5625 = vld [vmem:[#allocation2 + $0x19c] sm:$0xff]
      %v5626 = vld [vmem:[#allocation2 + $0x1a4] sm:$0xff]
      %v5627 = vld [vmem:[#allocation2 + $0x1ac] sm:$0xff]
      %v5628 = vld [vmem:[#allocation2 + $0x1b4] sm:$0xff]
      %v5629 = vld [vmem:[#allocation2 + $0x1bc] sm:$0xff]
      %v5630 = vld [vmem:[#allocation2 + $0x1c4] sm:$0xff]
      %v5631 = vld [vmem:[#allocation2 + $0x1cc] sm:$0xff]
      %v5632 = vld [vmem:[#allocation2 + $0x1d4] sm:$0xff]
      %v5633 = vld [vmem:[#allocation2 + $0x1dc] sm:$0xff]
      %v5634 = vld [vmem:[#allocation2 + $0x1e4] sm:$0xff]
      %v5635 = vld [vmem:[#allocation2 + $0x1ec] sm:$0xff]
      %v5636 = vld [vmem:[#allocation2 + $0x1f4] sm:$0xff]
      %v5637 = vld [vmem:[#allocation2 + $0x1fc] sm:$0xff]
      %v5638 = vpack.c.bf16 %v5575, %v5574
      %v5639 = vpack.c.bf16 %v5577, %v5576
      %v5640 = vpack.c.bf16 %v5579, %v5578
      %v5641 = vpack.c.bf16 %v5581, %v5580
      %v5642 = vpack.c.bf16 %v5583, %v5582
      %v5643 = vpack.c.bf16 %v5585, %v5584
      %v5644 = vpack.c.bf16 %v5587, %v5586
      %v5645 = vpack.c.bf16 %v5589, %v5588
      %v5646 = vpack.c.bf16 %v5591, %v5590
      %v5647 = vpack.c.bf16 %v5593, %v5592
      %v5648 = vpack.c.bf16 %v5595, %v5594
      %v5649 = vpack.c.bf16 %v5597, %v5596
      %v5650 = vpack.c.bf16 %v5599, %v5598
      %v5651 = vpack.c.bf16 %v5601, %v5600
      %v5652 = vpack.c.bf16 %v5603, %v5602
      %v5653 = vpack.c.bf16 %v5605, %v5604
      %v5654 = vpack.c.bf16 %v5607, %v5606
      %v5655 = vpack.c.bf16 %v5609, %v5608
      %v5656 = vpack.c.bf16 %v5611, %v5610
      %v5657 = vpack.c.bf16 %v5613, %v5612
      %v5658 = vpack.c.bf16 %v5615, %v5614
      %v5659 = vpack.c.bf16 %v5617, %v5616
      %v5660 = vpack.c.bf16 %v5619, %v5618
      %v5661 = vpack.c.bf16 %v5621, %v5620
      %v5662 = vpack.c.bf16 %v5623, %v5622
      %v5663 = vpack.c.bf16 %v5625, %v5624
      %v5664 = vpack.c.bf16 %v5627, %v5626
      %v5665 = vpack.c.bf16 %v5629, %v5628
      %v5666 = vpack.c.bf16 %v5631, %v5630
      %v5667 = vpack.c.bf16 %v5633, %v5632
      %v5668 = vpack.c.bf16 %v5635, %v5634
      %v5669 = vpack.c.bf16 %v5637, %v5636
      %s5670 = scalar_lea.vmem %s3, 16
      %v5671 = vld [vmem:[%s5670] sm:$0xf]
      %v5673 = vsel %vm3437, %v5638, 0
      %v5676 = vsel %vm3437, %v5639, 0
      %v5679 = vsel %vm3437, %v5640, 0
      %v5682 = vsel %vm3437, %v5641, 0
      %v5685 = vsel %vm3437, %v5642, 0
      %v5688 = vsel %vm3437, %v5643, 0
      %v5691 = vsel %vm3437, %v5644, 0
      %v5694 = vsel %vm3437, %v5645, 0
      %v5697 = vsel %vm3437, %v5646, 0
      %v5700 = vsel %vm3437, %v5647, 0
      %v5703 = vsel %vm3437, %v5648, 0
      %v5706 = vsel %vm3437, %v5649, 0
      %v5709 = vsel %vm3437, %v5650, 0
      %v5712 = vsel %vm3437, %v5651, 0
      %v5715 = vsel %vm3437, %v5652, 0
      %v5718 = vsel %vm3437, %v5653, 0
      %v5721 = vsel %vm3437, %v5654, 0
      %v5724 = vsel %vm3437, %v5655, 0
      %v5727 = vsel %vm3437, %v5656, 0
      %v5730 = vsel %vm3437, %v5657, 0
      %v5733 = vsel %vm3437, %v5658, 0
      %v5736 = vsel %vm3437, %v5659, 0
      %v5739 = vsel %vm3437, %v5660, 0
      %v5742 = vsel %vm3437, %v5661, 0
      %v5745 = vsel %vm3437, %v5662, 0
      %v5748 = vsel %vm3437, %v5663, 0
      %v5751 = vsel %vm3437, %v5664, 0
      %v5754 = vsel %vm3437, %v5665, 0
      %v5757 = vsel %vm3437, %v5666, 0
      %v5760 = vsel %vm3437, %v5667, 0
      %v5763 = vsel %vm3437, %v5668, 0
      %v5766 = vsel %vm3437, %v5669, 0
      %v5769 = vsel %vm3793, %v5671, 0
      %5771 = vmatprep.subr.bf16.mxu0 0
      %5772 = vmatpush1.bf16.msra.mxu0 %v5769
      %5773 = vmatprep.subr.bf16.mxu0 0
      %5774 = vmatpush1.bf16.msra.mxu0 0
      %5775 = vmatprep.subr.bf16.mxu0 0
      %5776 = vmatpush1.bf16.msra.mxu0 0
      %5777 = vmatprep.subr.bf16.mxu0 0
      %5778 = vmatpush1.bf16.msra.mxu0 0
      %5779 = vmatprep.subr.bf16.mxu0 0
      %5780 = vmatpush1.bf16.msra.mxu0 0
      %5781 = vmatprep.subr.bf16.mxu0 0
      %5782 = vmatpush1.bf16.msra.mxu0 0
      %5783 = vmatprep.subr.bf16.mxu0 0
      %5784 = vmatpush1.bf16.msra.mxu0 0
      %5785 = vmatprep.subr.bf16.mxu0 0
      %5786 = vmatpush1.bf16.msra.mxu0 0
      %5787 = vmatprep.subr.bf16.mxu0 0
      %5788 = vmatpush1.bf16.msra.mxu0 0
      %5789 = vmatprep.subr.bf16.mxu0 0
      %5790 = vmatpush1.bf16.msra.mxu0 0
      %5791 = vmatprep.subr.bf16.mxu0 0
      %5792 = vmatpush1.bf16.msra.mxu0 0
      %5793 = vmatprep.subr.bf16.mxu0 0
      %5794 = vmatpush1.bf16.msra.mxu0 0
      %5795 = vmatprep.subr.bf16.mxu0 0
      %5796 = vmatpush1.bf16.msra.mxu0 0
      %5797 = vmatprep.subr.bf16.mxu0 0
      %5798 = vmatpush1.bf16.msra.mxu0 0
      %5799 = vmatprep.subr.bf16.mxu0 0
      %5800 = vmatpush1.bf16.msra.mxu0 0
      %5801 = vmatprep.subr.bf16.mxu0 0
      %5802 = vmatpush1.bf16.msra.mxu0 0
      %5803 = vmatprep.mubr.bf16.mxu0 0
      %5804 = vmatmul.mubr.bf16.gmra.mrb[0].mxu0 %v5673
      %v5805 = vpop.f32.mrb[0].mxu0
      %v5806 = vadd.f32 0.0, %v5805
      %v5807 = vpop.f32.mrb[0].mxu0
      %v5808 = vpop.f32.mrb[0].mxu0
      %v5809 = vadd.f32 0.0, %v5808
      %v5810 = vpop.f32.mrb[0].mxu0
      %5811 = vmatprep.mubr.bf16.mxu0 0
      %5812 = vmatmul.mubr.bf16.gmra.mrb[0].mxu0 %v5676
      %v5813 = vpop.f32.mrb[0].mxu0
      %v5814 = vadd.f32 0.0, %v5813
      %v5815 = vpop.f32.mrb[0].mxu0
      %v5816 = vpop.f32.mrb[0].mxu0
      %v5817 = vadd.f32 0.0, %v5816
      %v5818 = vpop.f32.mrb[0].mxu0
      %5819 = vmatprep.mubr.bf16.mxu0 0
      %5820 = vmatmul.mubr.bf16.gmra.mrb[0].mxu0 %v5679
      %v5821 = vpop.f32.mrb[0].mxu0
      %v5822 = vadd.f32 0.0, %v5821
      %v5823 = vpop.f32.mrb[0].mxu0
      %v5824 = vpop.f32.mrb[0].mxu0
      %v5825 = vadd.f32 0.0, %v5824
      %v5826 = vpop.f32.mrb[0].mxu0
      %5827 = vmatprep.mubr.bf16.mxu0 0
      %5828 = vmatmul.mubr.bf16.gmra.mrb[0].mxu0 %v5682
      %v5829 = vpop.f32.mrb[0].mxu0
      %v5830 = vadd.f32 0.0, %v5829
      %v5831 = vpop.f32.mrb[0].mxu0
      %v5832 = vpop.f32.mrb[0].mxu0
      %v5833 = vadd.f32 0.0, %v5832
      %v5834 = vpop.f32.mrb[0].mxu0
      %5835 = vmatprep.mubr.bf16.mxu0 0
      %5836 = vmatmul.mubr.bf16.gmra.mrb[0].mxu0 %v5685
      %v5837 = vpop.f32.mrb[0].mxu0
      %v5838 = vadd.f32 0.0, %v5837
      %v5839 = vpop.f32.mrb[0].mxu0
      %v5840 = vpop.f32.mrb[0].mxu0
      %v5841 = vadd.f32 0.0, %v5840
      %v5842 = vpop.f32.mrb[0].mxu0
      %5843 = vmatprep.mubr.bf16.mxu0 0
      %5844 = vmatmul.mubr.bf16.gmra.mrb[0].mxu0 %v5688
      %v5845 = vpop.f32.mrb[0].mxu0
      %v5846 = vadd.f32 0.0, %v5845
      %v5847 = vpop.f32.mrb[0].mxu0
      %v5848 = vpop.f32.mrb[0].mxu0
      %v5849 = vadd.f32 0.0, %v5848
      %v5850 = vpop.f32.mrb[0].mxu0
      %5851 = vmatprep.mubr.bf16.mxu0 0
      %5852 = vmatmul.mubr.bf16.gmra.mrb[0].mxu0 %v5691
      %v5853 = vpop.f32.mrb[0].mxu0
      %v5854 = vadd.f32 0.0, %v5853
      %v5855 = vpop.f32.mrb[0].mxu0
      %v5856 = vpop.f32.mrb[0].mxu0
      %v5857 = vadd.f32 0.0, %v5856
      %v5858 = vpop.f32.mrb[0].mxu0
      %5859 = vmatprep.mubr.bf16.mxu0 0
      %5860 = vmatmul.mubr.bf16.gmra.mrb[0].mxu0 %v5694
      %v5861 = vpop.f32.mrb[0].mxu0
      %v5862 = vadd.f32 0.0, %v5861
      %v5863 = vpop.f32.mrb[0].mxu0
      %v5864 = vpop.f32.mrb[0].mxu0
      %v5865 = vadd.f32 0.0, %v5864
      %v5866 = vpop.f32.mrb[0].mxu0
      %5867 = vmatprep.mubr.bf16.mxu0 0
      %5868 = vmatmul.mubr.bf16.gmra.mrb[0].mxu0 %v5697
      %v5869 = vpop.f32.mrb[0].mxu0
      %v5870 = vadd.f32 0.0, %v5869
      %v5871 = vpop.f32.mrb[0].mxu0
      %v5872 = vpop.f32.mrb[0].mxu0
      %v5873 = vadd.f32 0.0, %v5872
      %v5874 = vpop.f32.mrb[0].mxu0
      %5875 = vmatprep.mubr.bf16.mxu0 0
      %5876 = vmatmul.mubr.bf16.gmra.mrb[0].mxu0 %v5700
      %v5877 = vpop.f32.mrb[0].mxu0
      %v5878 = vadd.f32 0.0, %v5877
      %v5879 = vpop.f32.mrb[0].mxu0
      %v5880 = vpop.f32.mrb[0].mxu0
      %v5881 = vadd.f32 0.0, %v5880
      %v5882 = vpop.f32.mrb[0].mxu0
      %5883 = vmatprep.mubr.bf16.mxu0 0
      %5884 = vmatmul.mubr.bf16.gmra.mrb[0].mxu0 %v5703
      %v5885 = vpop.f32.mrb[0].mxu0
      %v5886 = vadd.f32 0.0, %v5885
      %v5887 = vpop.f32.mrb[0].mxu0
      %v5888 = vpop.f32.mrb[0].mxu0
      %v5889 = vadd.f32 0.0, %v5888
      %v5890 = vpop.f32.mrb[0].mxu0
      %5891 = vmatprep.mubr.bf16.mxu0 0
      %5892 = vmatmul.mubr.bf16.gmra.mrb[0].mxu0 %v5706
      %v5893 = vpop.f32.mrb[0].mxu0
      %v5894 = vadd.f32 0.0, %v5893
      %v5895 = vpop.f32.mrb[0].mxu0
      %v5896 = vpop.f32.mrb[0].mxu0
      %v5897 = vadd.f32 0.0, %v5896
      %v5898 = vpop.f32.mrb[0].mxu0
      %5899 = vmatprep.mubr.bf16.mxu0 0
      %5900 = vmatmul.mubr.bf16.gmra.mrb[0].mxu0 %v5709
      %v5901 = vpop.f32.mrb[0].mxu0
      %v5902 = vadd.f32 0.0, %v5901
      %v5903 = vpop.f32.mrb[0].mxu0
      %v5904 = vpop.f32.mrb[0].mxu0
      %v5905 = vadd.f32 0.0, %v5904
      %v5906 = vpop.f32.mrb[0].mxu0
      %5907 = vmatprep.mubr.bf16.mxu0 0
      %5908 = vmatmul.mubr.bf16.gmra.mrb[0].mxu0 %v5712
      %v5909 = vpop.f32.mrb[0].mxu0
      %v5910 = vadd.f32 0.0, %v5909
      %v5911 = vpop.f32.mrb[0].mxu0
      %v5912 = vpop.f32.mrb[0].mxu0
      %v5913 = vadd.f32 0.0, %v5912
      %v5914 = vpop.f32.mrb[0].mxu0
      %5915 = vmatprep.mubr.bf16.mxu0 0
      %5916 = vmatmul.mubr.bf16.gmra.mrb[0].mxu0 %v5715
      %v5917 = vpop.f32.mrb[0].mxu0
      %v5918 = vadd.f32 0.0, %v5917
      %v5919 = vpop.f32.mrb[0].mxu0
      %v5920 = vpop.f32.mrb[0].mxu0
      %v5921 = vadd.f32 0.0, %v5920
      %v5922 = vpop.f32.mrb[0].mxu0
      %5923 = vmatprep.mubr.bf16.mxu0 0
      %5924 = vmatmul.mubr.bf16.gmra.mrb[0].mxu0 %v5718
      %v5925 = vpop.f32.mrb[0].mxu0
      %v5926 = vadd.f32 0.0, %v5925
      %v5927 = vpop.f32.mrb[0].mxu0
      %v5928 = vpop.f32.mrb[0].mxu0
      %v5929 = vadd.f32 0.0, %v5928
      %v5930 = vpop.f32.mrb[0].mxu0
      %5931 = vmatprep.mubr.bf16.mxu0 0
      %5932 = vmatmul.mubr.bf16.gmra.mrb[0].mxu0 %v5721
      %v5933 = vpop.f32.mrb[0].mxu0
      %v5934 = vadd.f32 0.0, %v5933
      %v5935 = vpop.f32.mrb[0].mxu0
      %v5936 = vpop.f32.mrb[0].mxu0
      %v5937 = vadd.f32 0.0, %v5936
      %v5938 = vpop.f32.mrb[0].mxu0
      %5939 = vmatprep.mubr.bf16.mxu0 0
      %5940 = vmatmul.mubr.bf16.gmra.mrb[0].mxu0 %v5724
      %v5941 = vpop.f32.mrb[0].mxu0
      %v5942 = vadd.f32 0.0, %v5941
      %v5943 = vpop.f32.mrb[0].mxu0
      %v5944 = vpop.f32.mrb[0].mxu0
      %v5945 = vadd.f32 0.0, %v5944
      %v5946 = vpop.f32.mrb[0].mxu0
      %5947 = vmatprep.mubr.bf16.mxu0 0
      %5948 = vmatmul.mubr.bf16.gmra.mrb[0].mxu0 %v5727
      %v5949 = vpop.f32.mrb[0].mxu0
      %v5950 = vadd.f32 0.0, %v5949
      %v5951 = vpop.f32.mrb[0].mxu0
      %v5952 = vpop.f32.mrb[0].mxu0
      %v5953 = vadd.f32 0.0, %v5952
      %v5954 = vpop.f32.mrb[0].mxu0
      %5955 = vmatprep.mubr.bf16.mxu0 0
      %5956 = vmatmul.mubr.bf16.gmra.mrb[0].mxu0 %v5730
      %v5957 = vpop.f32.mrb[0].mxu0
      %v5958 = vadd.f32 0.0, %v5957
      %v5959 = vpop.f32.mrb[0].mxu0
      %v5960 = vpop.f32.mrb[0].mxu0
      %v5961 = vadd.f32 0.0, %v5960
      %v5962 = vpop.f32.mrb[0].mxu0
      %5963 = vmatprep.mubr.bf16.mxu0 0
      %5964 = vmatmul.mubr.bf16.gmra.mrb[0].mxu0 %v5733
      %v5965 = vpop.f32.mrb[0].mxu0
      %v5966 = vadd.f32 0.0, %v5965
      %v5967 = vpop.f32.mrb[0].mxu0
      %v5968 = vpop.f32.mrb[0].mxu0
      %v5969 = vadd.f32 0.0, %v5968
      %v5970 = vpop.f32.mrb[0].mxu0
      %5971 = vmatprep.mubr.bf16.mxu0 0
      %5972 = vmatmul.mubr.bf16.gmra.mrb[0].mxu0 %v5736
      %v5973 = vpop.f32.mrb[0].mxu0
      %v5974 = vadd.f32 0.0, %v5973
      %v5975 = vpop.f32.mrb[0].mxu0
      %v5976 = vpop.f32.mrb[0].mxu0
      %v5977 = vadd.f32 0.0, %v5976
      %v5978 = vpop.f32.mrb[0].mxu0
      %5979 = vmatprep.mubr.bf16.mxu0 0
      %5980 = vmatmul.mubr.bf16.gmra.mrb[0].mxu0 %v5739
      %v5981 = vpop.f32.mrb[0].mxu0
      %v5982 = vadd.f32 0.0, %v5981
      %v5983 = vpop.f32.mrb[0].mxu0
      %v5984 = vpop.f32.mrb[0].mxu0
      %v5985 = vadd.f32 0.0, %v5984
      %v5986 = vpop.f32.mrb[0].mxu0
      %5987 = vmatprep.mubr.bf16.mxu0 0
      %5988 = vmatmul.mubr.bf16.gmra.mrb[0].mxu0 %v5742
      %v5989 = vpop.f32.mrb[0].mxu0
      %v5990 = vadd.f32 0.0, %v5989
      %v5991 = vpop.f32.mrb[0].mxu0
      %v5992 = vpop.f32.mrb[0].mxu0
      %v5993 = vadd.f32 0.0, %v5992
      %v5994 = vpop.f32.mrb[0].mxu0
      %5995 = vmatprep.mubr.bf16.mxu0 0
      %5996 = vmatmul.mubr.bf16.gmra.mrb[0].mxu0 %v5745
      %v5997 = vpop.f32.mrb[0].mxu0
      %v5998 = vadd.f32 0.0, %v5997
      %v5999 = vpop.f32.mrb[0].mxu0
      %v6000 = vpop.f32.mrb[0].mxu0
      %v6001 = vadd.f32 0.0, %v6000
      %v6002 = vpop.f32.mrb[0].mxu0
      %6003 = vmatprep.mubr.bf16.mxu0 0
      %6004 = vmatmul.mubr.bf16.gmra.mrb[0].mxu0 %v5748
      %v6005 = vpop.f32.mrb[0].mxu0
      %v6006 = vadd.f32 0.0, %v6005
      %v6007 = vpop.f32.mrb[0].mxu0
      %v6008 = vpop.f32.mrb[0].mxu0
      %v6009 = vadd.f32 0.0, %v6008
      %v6010 = vpop.f32.mrb[0].mxu0
      %6011 = vmatprep.mubr.bf16.mxu0 0
      %6012 = vmatmul.mubr.bf16.gmra.mrb[0].mxu0 %v5751
      %v6013 = vpop.f32.mrb[0].mxu0
      %v6014 = vadd.f32 0.0, %v6013
      %v6015 = vpop.f32.mrb[0].mxu0
      %v6016 = vpop.f32.mrb[0].mxu0
      %v6017 = vadd.f32 0.0, %v6016
      %v6018 = vpop.f32.mrb[0].mxu0
      %6019 = vmatprep.mubr.bf16.mxu0 0
      %6020 = vmatmul.mubr.bf16.gmra.mrb[0].mxu0 %v5754
      %v6021 = vpop.f32.mrb[0].mxu0
      %v6022 = vadd.f32 0.0, %v6021
      %v6023 = vpop.f32.mrb[0].mxu0
      %v6024 = vpop.f32.mrb[0].mxu0
      %v6025 = vadd.f32 0.0, %v6024
      %v6026 = vpop.f32.mrb[0].mxu0
      %6027 = vmatprep.mubr.bf16.mxu0 0
      %6028 = vmatmul.mubr.bf16.gmra.mrb[0].mxu0 %v5757
      %v6029 = vpop.f32.mrb[0].mxu0
      %v6030 = vadd.f32 0.0, %v6029
      %v6031 = vpop.f32.mrb[0].mxu0
      %v6032 = vpop.f32.mrb[0].mxu0
      %v6033 = vadd.f32 0.0, %v6032
      %v6034 = vpop.f32.mrb[0].mxu0
      %6035 = vmatprep.mubr.bf16.mxu0 0
      %6036 = vmatmul.mubr.bf16.gmra.mrb[0].mxu0 %v5760
      %v6037 = vpop.f32.mrb[0].mxu0
      %v6038 = vadd.f32 0.0, %v6037
      %v6039 = vpop.f32.mrb[0].mxu0
      %v6040 = vpop.f32.mrb[0].mxu0
      %v6041 = vadd.f32 0.0, %v6040
      %v6042 = vpop.f32.mrb[0].mxu0
      %6043 = vmatprep.mubr.bf16.mxu0 0
      %6044 = vmatmul.mubr.bf16.gmra.mrb[0].mxu0 %v5763
      %v6045 = vpop.f32.mrb[0].mxu0
      %v6046 = vadd.f32 0.0, %v6045
      %v6047 = vpop.f32.mrb[0].mxu0
      %v6048 = vpop.f32.mrb[0].mxu0
      %v6049 = vadd.f32 0.0, %v6048
      %v6050 = vpop.f32.mrb[0].mxu0
      %6051 = vmatprep.mubr.bf16.mxu0 0
      %6052 = vmatmul.mubr.bf16.gmra.mrb[0].mxu0 %v5766
      %v6053 = vpop.f32.mrb[0].mxu0
      %v6054 = vadd.f32 0.0, %v6053
      %v6055 = vpop.f32.mrb[0].mxu0
      %v6056 = vpop.f32.mrb[0].mxu0
      %v6057 = vadd.f32 0.0, %v6056
      %v6058 = vpop.f32.mrb[0].mxu0
      %6059 = vdwg.mxu0
      %v6060 = vadd.f32 %v5510, %v5806
      %v6061 = vadd.f32 %v5511, %v5809
      %v6062 = vadd.f32 %v5512, %v5814
      %v6063 = vadd.f32 %v5513, %v5817
      %v6064 = vadd.f32 %v5514, %v5822
      %v6065 = vadd.f32 %v5515, %v5825
      %v6066 = vadd.f32 %v5516, %v5830
      %v6067 = vadd.f32 %v5517, %v5833
      %v6068 = vadd.f32 %v5518, %v5838
      %v6069 = vadd.f32 %v5519, %v5841
      %v6070 = vadd.f32 %v5520, %v5846
      %v6071 = vadd.f32 %v5521, %v5849
      %v6072 = vadd.f32 %v5522, %v5854
      %v6073 = vadd.f32 %v5523, %v5857
      %v6074 = vadd.f32 %v5524, %v5862
      %v6075 = vadd.f32 %v5525, %v5865
      %v6076 = vadd.f32 %v5526, %v5870
      %v6077 = vadd.f32 %v5527, %v5873
      %v6078 = vadd.f32 %v5528, %v5878
      %v6079 = vadd.f32 %v5529, %v5881
      %v6080 = vadd.f32 %v5530, %v5886
      %v6081 = vadd.f32 %v5531, %v5889
      %v6082 = vadd.f32 %v5532, %v5894
      %v6083 = vadd.f32 %v5533, %v5897
      %v6084 = vadd.f32 %v5534, %v5902
      %v6085 = vadd.f32 %v5535, %v5905
      %v6086 = vadd.f32 %v5536, %v5910
      %v6087 = vadd.f32 %v5537, %v5913
      %v6088 = vadd.f32 %v5538, %v5918
      %v6089 = vadd.f32 %v5539, %v5921
      %v6090 = vadd.f32 %v5540, %v5926
      %v6091 = vadd.f32 %v5541, %v5929
      %v6092 = vadd.f32 %v5542, %v5934
      %v6093 = vadd.f32 %v5543, %v5937
      %v6094 = vadd.f32 %v5544, %v5942
      %v6095 = vadd.f32 %v5545, %v5945
      %v6096 = vadd.f32 %v5546, %v5950
      %v6097 = vadd.f32 %v5547, %v5953
      %v6098 = vadd.f32 %v5548, %v5958
      %v6099 = vadd.f32 %v5549, %v5961
      %v6100 = vadd.f32 %v5550, %v5966
      %v6101 = vadd.f32 %v5551, %v5969
      %v6102 = vadd.f32 %v5552, %v5974
      %v6103 = vadd.f32 %v5553, %v5977
      %v6104 = vadd.f32 %v5554, %v5982
      %v6105 = vadd.f32 %v5555, %v5985
      %v6106 = vadd.f32 %v5556, %v5990
      %v6107 = vadd.f32 %v5557, %v5993
      %v6108 = vadd.f32 %v5558, %v5998
      %v6109 = vadd.f32 %v5559, %v6001
      %v6110 = vadd.f32 %v5560, %v6006
      %v6111 = vadd.f32 %v5561, %v6009
      %v6112 = vadd.f32 %v5562, %v6014
      %v6113 = vadd.f32 %v5563, %v6017
      %v6114 = vadd.f32 %v5564, %v6022
      %v6115 = vadd.f32 %v5565, %v6025
      %v6116 = vadd.f32 %v5566, %v6030
      %v6117 = vadd.f32 %v5567, %v6033
      %v6118 = vadd.f32 %v5568, %v6038
      %v6119 = vadd.f32 %v5569, %v6041
      %v6120 = vadd.f32 %v5570, %v6046
      %v6121 = vadd.f32 %v5571, %v6049
      %v6122 = vadd.f32 %v5572, %v6054
      %v6123 = vadd.f32 %v5573, %v6057
      %v6124 = vld [vmem:[%s4] sm:$0x1]
      %v6126 = vlaneseq
      %v6127 = vshrl.u32 %v6126, 7
      %v6128 = vsub.s32 0, %v6127
      %v6129 = vrot.slane %v6124, %v6128
      %v6131 = vadd.f32 %v6060, %v6129
      %v6132 = vadd.f32 %v6061, %v6129
      %v6133 = vadd.f32 %v6062, %v6129
      %v6134 = vadd.f32 %v6063, %v6129
      %v6135 = vadd.f32 %v6064, %v6129
      %v6136 = vadd.f32 %v6065, %v6129
      %v6137 = vadd.f32 %v6066, %v6129
      %v6138 = vadd.f32 %v6067, %v6129
      %v6139 = vadd.f32 %v6068, %v6129
      %v6140 = vadd.f32 %v6069, %v6129
      %v6141 = vadd.f32 %v6070, %v6129
      %v6142 = vadd.f32 %v6071, %v6129
      %v6143 = vadd.f32 %v6072, %v6129
      %v6144 = vadd.f32 %v6073, %v6129
      %v6145 = vadd.f32 %v6074, %v6129
      %v6146 = vadd.f32 %v6075, %v6129
      %v6147 = vadd.f32 %v6076, %v6129
      %v6148 = vadd.f32 %v6077, %v6129
      %v6149 = vadd.f32 %v6078, %v6129
      %v6150 = vadd.f32 %v6079, %v6129
      %v6151 = vadd.f32 %v6080, %v6129
      %v6152 = vadd.f32 %v6081, %v6129
      %v6153 = vadd.f32 %v6082, %v6129
      %v6154 = vadd.f32 %v6083, %v6129
      %v6155 = vadd.f32 %v6084, %v6129
      %v6156 = vadd.f32 %v6085, %v6129
      %v6157 = vadd.f32 %v6086, %v6129
      %v6158 = vadd.f32 %v6087, %v6129
      %v6159 = vadd.f32 %v6088, %v6129
      %v6160 = vadd.f32 %v6089, %v6129
      %v6161 = vadd.f32 %v6090, %v6129
      %v6162 = vadd.f32 %v6091, %v6129
      %v6163 = vadd.f32 %v6092, %v6129
      %v6164 = vadd.f32 %v6093, %v6129
      %v6165 = vadd.f32 %v6094, %v6129
      %v6166 = vadd.f32 %v6095, %v6129
      %v6167 = vadd.f32 %v6096, %v6129
      %v6168 = vadd.f32 %v6097, %v6129
      %v6169 = vadd.f32 %v6098, %v6129
      %v6170 = vadd.f32 %v6099, %v6129
      %v6171 = vadd.f32 %v6100, %v6129
      %v6172 = vadd.f32 %v6101, %v6129
      %v6173 = vadd.f32 %v6102, %v6129
      %v6174 = vadd.f32 %v6103, %v6129
      %v6175 = vadd.f32 %v6104, %v6129
      %v6176 = vadd.f32 %v6105, %v6129
      %v6177 = vadd.f32 %v6106, %v6129
      %v6178 = vadd.f32 %v6107, %v6129
      %v6179 = vadd.f32 %v6108, %v6129
      %v6180 = vadd.f32 %v6109, %v6129
      %v6181 = vadd.f32 %v6110, %v6129
      %v6182 = vadd.f32 %v6111, %v6129
      %v6183 = vadd.f32 %v6112, %v6129
      %v6184 = vadd.f32 %v6113, %v6129
      %v6185 = vadd.f32 %v6114, %v6129
      %v6186 = vadd.f32 %v6115, %v6129
      %v6187 = vadd.f32 %v6116, %v6129
      %v6188 = vadd.f32 %v6117, %v6129
      %v6189 = vadd.f32 %v6118, %v6129
      %v6190 = vadd.f32 %v6119, %v6129
      %v6191 = vadd.f32 %v6120, %v6129
      %v6192 = vadd.f32 %v6121, %v6129
      %v6193 = vadd.f32 %v6122, %v6129
      %v6194 = vadd.f32 %v6123, %v6129
      %v6195 = vmax.f32 %v6131, 0.0
      %v6196 = vmax.f32 %v6132, 0.0
      %v6197 = vmax.f32 %v6133, 0.0
      %v6198 = vmax.f32 %v6134, 0.0
      %v6199 = vmax.f32 %v6135, 0.0
      %v6200 = vmax.f32 %v6136, 0.0
      %v6201 = vmax.f32 %v6137, 0.0
      %v6202 = vmax.f32 %v6138, 0.0
      %v6203 = vmax.f32 %v6139, 0.0
      %v6204 = vmax.f32 %v6140, 0.0
      %v6205 = vmax.f32 %v6141, 0.0
      %v6206 = vmax.f32 %v6142, 0.0
      %v6207 = vmax.f32 %v6143, 0.0
      %v6208 = vmax.f32 %v6144, 0.0
      %v6209 = vmax.f32 %v6145, 0.0
      %v6210 = vmax.f32 %v6146, 0.0
      %v6211 = vmax.f32 %v6147, 0.0
      %v6212 = vmax.f32 %v6148, 0.0
      %v6213 = vmax.f32 %v6149, 0.0
      %v6214 = vmax.f32 %v6150, 0.0
      %v6215 = vmax.f32 %v6151, 0.0
      %v6216 = vmax.f32 %v6152, 0.0
      %v6217 = vmax.f32 %v6153, 0.0
      %v6218 = vmax.f32 %v6154, 0.0
      %v6219 = vmax.f32 %v6155, 0.0
      %v6220 = vmax.f32 %v6156, 0.0
      %v6221 = vmax.f32 %v6157, 0.0
      %v6222 = vmax.f32 %v6158, 0.0
      %v6223 = vmax.f32 %v6159, 0.0
      %v6224 = vmax.f32 %v6160, 0.0
      %v6225 = vmax.f32 %v6161, 0.0
      %v6226 = vmax.f32 %v6162, 0.0
      %v6227 = vmax.f32 %v6163, 0.0
      %v6228 = vmax.f32 %v6164, 0.0
      %v6229 = vmax.f32 %v6165, 0.0
      %v6230 = vmax.f32 %v6166, 0.0
      %v6231 = vmax.f32 %v6167, 0.0
      %v6232 = vmax.f32 %v6168, 0.0
      %v6233 = vmax.f32 %v6169, 0.0
      %v6234 = vmax.f32 %v6170, 0.0
      %v6235 = vmax.f32 %v6171, 0.0
      %v6236 = vmax.f32 %v6172, 0.0
      %v6237 = vmax.f32 %v6173, 0.0
      %v6238 = vmax.f32 %v6174, 0.0
      %v6239 = vmax.f32 %v6175, 0.0
      %v6240 = vmax.f32 %v6176, 0.0
      %v6241 = vmax.f32 %v6177, 0.0
      %v6242 = vmax.f32 %v6178, 0.0
      %v6243 = vmax.f32 %v6179, 0.0
      %v6244 = vmax.f32 %v6180, 0.0
      %v6245 = vmax.f32 %v6181, 0.0
      %v6246 = vmax.f32 %v6182, 0.0
      %v6247 = vmax.f32 %v6183, 0.0
      %v6248 = vmax.f32 %v6184, 0.0
      %v6249 = vmax.f32 %v6185, 0.0
      %v6250 = vmax.f32 %v6186, 0.0
      %v6251 = vmax.f32 %v6187, 0.0
      %v6252 = vmax.f32 %v6188, 0.0
      %v6253 = vmax.f32 %v6189, 0.0
      %v6254 = vmax.f32 %v6190, 0.0
      %v6255 = vmax.f32 %v6191, 0.0
      %v6256 = vmax.f32 %v6192, 0.0
      %v6257 = vmax.f32 %v6193, 0.0
      %v6258 = vmax.f32 %v6194, 0.0
      %vm6259 = vcmask 130048
      %6260 = vst.msk [vmem:[#allocation3] sm:$0xff] %vm6259, %v6195
      %6261 = vst.msk [vmem:[#allocation3 + $0x8] sm:$0xff] %vm6259, %v6196
      %6262 = vst.msk [vmem:[#allocation3 + $0x10] sm:$0xff] %vm6259, %v6197
      %6263 = vst.msk [vmem:[#allocation3 + $0x18] sm:$0xff] %vm6259, %v6198
      %6264 = vst.msk [vmem:[#allocation3 + $0x20] sm:$0xff] %vm6259, %v6199
      %6265 = vst.msk [vmem:[#allocation3 + $0x28] sm:$0xff] %vm6259, %v6200
      %6266 = vst.msk [vmem:[#allocation3 + $0x30] sm:$0xff] %vm6259, %v6201
      %6267 = vst.msk [vmem:[#allocation3 + $0x38] sm:$0xff] %vm6259, %v6202
      %6268 = vst.msk [vmem:[#allocation3 + $0x40] sm:$0xff] %vm6259, %v6203
      %6269 = vst.msk [vmem:[#allocation3 + $0x48] sm:$0xff] %vm6259, %v6204
      %6270 = vst.msk [vmem:[#allocation3 + $0x50] sm:$0xff] %vm6259, %v6205
      %6271 = vst.msk [vmem:[#allocation3 + $0x58] sm:$0xff] %vm6259, %v6206
      %6272 = vst.msk [vmem:[#allocation3 + $0x60] sm:$0xff] %vm6259, %v6207
      %6273 = vst.msk [vmem:[#allocation3 + $0x68] sm:$0xff] %vm6259, %v6208
      %6274 = vst.msk [vmem:[#allocation3 + $0x70] sm:$0xff] %vm6259, %v6209
      %6275 = vst.msk [vmem:[#allocation3 + $0x78] sm:$0xff] %vm6259, %v6210
      %6276 = vst.msk [vmem:[#allocation3 + $0x80] sm:$0xff] %vm6259, %v6211
      %6277 = vst.msk [vmem:[#allocation3 + $0x88] sm:$0xff] %vm6259, %v6212
      %6278 = vst.msk [vmem:[#allocation3 + $0x90] sm:$0xff] %vm6259, %v6213
      %6279 = vst.msk [vmem:[#allocation3 + $0x98] sm:$0xff] %vm6259, %v6214
      %6280 = vst.msk [vmem:[#allocation3 + $0xa0] sm:$0xff] %vm6259, %v6215
      %6281 = vst.msk [vmem:[#allocation3 + $0xa8] sm:$0xff] %vm6259, %v6216
      %6282 = vst.msk [vmem:[#allocation3 + $0xb0] sm:$0xff] %vm6259, %v6217
      %6283 = vst.msk [vmem:[#allocation3 + $0xb8] sm:$0xff] %vm6259, %v6218
      %6284 = vst.msk [vmem:[#allocation3 + $0xc0] sm:$0xff] %vm6259, %v6219
      %6285 = vst.msk [vmem:[#allocation3 + $0xc8] sm:$0xff] %vm6259, %v6220
      %6286 = vst.msk [vmem:[#allocation3 + $0xd0] sm:$0xff] %vm6259, %v6221
      %6287 = vst.msk [vmem:[#allocation3 + $0xd8] sm:$0xff] %vm6259, %v6222
      %6288 = vst.msk [vmem:[#allocation3 + $0xe0] sm:$0xff] %vm6259, %v6223
      %6289 = vst.msk [vmem:[#allocation3 + $0xe8] sm:$0xff] %vm6259, %v6224
      %6290 = vst.msk [vmem:[#allocation3 + $0xf0] sm:$0xff] %vm6259, %v6225
      %6291 = vst.msk [vmem:[#allocation3 + $0xf8] sm:$0xff] %vm6259, %v6226
      %6292 = vst.msk [vmem:[#allocation3 + $0x100] sm:$0xff] %vm6259, %v6227
      %6293 = vst.msk [vmem:[#allocation3 + $0x108] sm:$0xff] %vm6259, %v6228
      %6294 = vst.msk [vmem:[#allocation3 + $0x110] sm:$0xff] %vm6259, %v6229
      %6295 = vst.msk [vmem:[#allocation3 + $0x118] sm:$0xff] %vm6259, %v6230
      %6296 = vst.msk [vmem:[#allocation3 + $0x120] sm:$0xff] %vm6259, %v6231
      %6297 = vst.msk [vmem:[#allocation3 + $0x128] sm:$0xff] %vm6259, %v6232
      %6298 = vst.msk [vmem:[#allocation3 + $0x130] sm:$0xff] %vm6259, %v6233
      %6299 = vst.msk [vmem:[#allocation3 + $0x138] sm:$0xff] %vm6259, %v6234
      %6300 = vst.msk [vmem:[#allocation3 + $0x140] sm:$0xff] %vm6259, %v6235
      %6301 = vst.msk [vmem:[#allocation3 + $0x148] sm:$0xff] %vm6259, %v6236
      %6302 = vst.msk [vmem:[#allocation3 + $0x150] sm:$0xff] %vm6259, %v6237
      %6303 = vst.msk [vmem:[#allocation3 + $0x158] sm:$0xff] %vm6259, %v6238
      %6304 = vst.msk [vmem:[#allocation3 + $0x160] sm:$0xff] %vm6259, %v6239
      %6305 = vst.msk [vmem:[#allocation3 + $0x168] sm:$0xff] %vm6259, %v6240
      %6306 = vst.msk [vmem:[#allocation3 + $0x170] sm:$0xff] %vm6259, %v6241
      %6307 = vst.msk [vmem:[#allocation3 + $0x178] sm:$0xff] %vm6259, %v6242
      %6308 = vst.msk [vmem:[#allocation3 + $0x180] sm:$0xff] %vm6259, %v6243
      %6309 = vst.msk [vmem:[#allocation3 + $0x188] sm:$0xff] %vm6259, %v6244
      %6310 = vst.msk [vmem:[#allocation3 + $0x190] sm:$0xff] %vm6259, %v6245
      %6311 = vst.msk [vmem:[#allocation3 + $0x198] sm:$0xff] %vm6259, %v6246
      %6312 = vst.msk [vmem:[#allocation3 + $0x1a0] sm:$0xff] %vm6259, %v6247
      %6313 = vst.msk [vmem:[#allocation3 + $0x1a8] sm:$0xff] %vm6259, %v6248
      %6314 = vst.msk [vmem:[#allocation3 + $0x1b0] sm:$0xff] %vm6259, %v6249
      %6315 = vst.msk [vmem:[#allocation3 + $0x1b8] sm:$0xff] %vm6259, %v6250
      %6316 = vst.msk [vmem:[#allocation3 + $0x1c0] sm:$0xff] %vm6259, %v6251
      %6317 = vst.msk [vmem:[#allocation3 + $0x1c8] sm:$0xff] %vm6259, %v6252
      %6318 = vst.msk [vmem:[#allocation3 + $0x1d0] sm:$0xff] %vm6259, %v6253
      %6319 = vst.msk [vmem:[#allocation3 + $0x1d8] sm:$0xff] %vm6259, %v6254
      %6320 = vst.msk [vmem:[#allocation3 + $0x1e0] sm:$0xff] %vm6259, %v6255
      %6321 = vst.msk [vmem:[#allocation3 + $0x1e8] sm:$0xff] %vm6259, %v6256
      %6322 = vst.msk [vmem:[#allocation3 + $0x1f0] sm:$0xff] %vm6259, %v6257
      %6323 = vst.msk [vmem:[#allocation3 + $0x1f8] sm:$0xff] %vm6259, %v6258
      %v6324 = vld [vmem:[#allocation3] ss:$2 sm:$0xff]
      %s6325 = scalar_lea.vmem [#allocation3], 16
      %v6326 = vld [vmem:[%s6325] ss:$2 sm:$0xff]
      %s6327 = scalar_lea.vmem [#allocation3], 32
      %v6328 = vld [vmem:[%s6327] ss:$2 sm:$0xff]
      %s6329 = scalar_lea.vmem [#allocation3], 48
      %v6330 = vld [vmem:[%s6329] ss:$2 sm:$0xff]
      %s6331 = scalar_lea.vmem [#allocation3], 64
      %v6332 = vld [vmem:[%s6331] ss:$2 sm:$0xff]
      %s6333 = scalar_lea.vmem [#allocation3], 80
      %v6334 = vld [vmem:[%s6333] ss:$2 sm:$0xff]
      %s6335 = scalar_lea.vmem [#allocation3], 96
      %v6336 = vld [vmem:[%s6335] ss:$2 sm:$0xff]
      %s6337 = scalar_lea.vmem [#allocation3], 112
      %v6338 = vld [vmem:[%s6337] ss:$2 sm:$0xff]
      %s6339 = scalar_lea.vmem [#allocation3], 128
      %v6340 = vld [vmem:[%s6339] ss:$2 sm:$0xff]
      %s6341 = scalar_lea.vmem [#allocation3], 144
      %v6342 = vld [vmem:[%s6341] ss:$2 sm:$0xff]
      %s6343 = scalar_lea.vmem [#allocation3], 160
      %v6344 = vld [vmem:[%s6343] ss:$2 sm:$0xff]
      %s6345 = scalar_lea.vmem [#allocation3], 176
      %v6346 = vld [vmem:[%s6345] ss:$2 sm:$0xff]
      %s6347 = scalar_lea.vmem [#allocation3], 192
      %v6348 = vld [vmem:[%s6347] ss:$2 sm:$0xff]
      %s6349 = scalar_lea.vmem [#allocation3], 208
      %v6350 = vld [vmem:[%s6349] ss:$2 sm:$0xff]
      %s6351 = scalar_lea.vmem [#allocation3], 224
      %v6352 = vld [vmem:[%s6351] ss:$2 sm:$0xff]
      %s6353 = scalar_lea.vmem [#allocation3], 240
      %v6354 = vld [vmem:[%s6353] ss:$2 sm:$0xff]
      %s6355 = scalar_lea.vmem [#allocation3], 256
      %v6356 = vld [vmem:[%s6355] ss:$2 sm:$0xff]
      %s6357 = scalar_lea.vmem [#allocation3], 272
      %v6358 = vld [vmem:[%s6357] ss:$2 sm:$0xff]
      %s6359 = scalar_lea.vmem [#allocation3], 288
      %v6360 = vld [vmem:[%s6359] ss:$2 sm:$0xff]
      %s6361 = scalar_lea.vmem [#allocation3], 304
      %v6362 = vld [vmem:[%s6361] ss:$2 sm:$0xff]
      %s6363 = scalar_lea.vmem [#allocation3], 320
      %v6364 = vld [vmem:[%s6363] ss:$2 sm:$0xff]
      %s6365 = scalar_lea.vmem [#allocation3], 336
      %v6366 = vld [vmem:[%s6365] ss:$2 sm:$0xff]
      %s6367 = scalar_lea.vmem [#allocation3], 352
      %v6368 = vld [vmem:[%s6367] ss:$2 sm:$0xff]
      %s6369 = scalar_lea.vmem [#allocation3], 368
      %v6370 = vld [vmem:[%s6369] ss:$2 sm:$0xff]
      %s6371 = scalar_lea.vmem [#allocation3], 384
      %v6372 = vld [vmem:[%s6371] ss:$2 sm:$0xff]
      %s6373 = scalar_lea.vmem [#allocation3], 400
      %v6374 = vld [vmem:[%s6373] ss:$2 sm:$0xff]
      %s6375 = scalar_lea.vmem [#allocation3], 416
      %v6376 = vld [vmem:[%s6375] ss:$2 sm:$0xff]
      %s6377 = scalar_lea.vmem [#allocation3], 432
      %v6378 = vld [vmem:[%s6377] ss:$2 sm:$0xff]
      %s6379 = scalar_lea.vmem [#allocation3], 448
      %v6380 = vld [vmem:[%s6379] ss:$2 sm:$0xff]
      %s6381 = scalar_lea.vmem [#allocation3], 464
      %v6382 = vld [vmem:[%s6381] ss:$2 sm:$0xff]
      %s6383 = scalar_lea.vmem [#allocation3], 480
      %v6384 = vld [vmem:[%s6383] ss:$2 sm:$0xff]
      %s6385 = scalar_lea.vmem [#allocation3], 496
      %v6386 = vld [vmem:[%s6385] ss:$2 sm:$0xff]
      %s6387 = scalar_lea.vmem [#allocation3], 1
      %v6388 = vld [vmem:[%s6387] ss:$2 sm:$0xff]
      %s6389 = scalar_lea.vmem [#allocation3], 17
      %v6390 = vld [vmem:[%s6389] ss:$2 sm:$0xff]
      %s6391 = scalar_lea.vmem [#allocation3], 33
      %v6392 = vld [vmem:[%s6391] ss:$2 sm:$0xff]
      %s6393 = scalar_lea.vmem [#allocation3], 49
      %v6394 = vld [vmem:[%s6393] ss:$2 sm:$0xff]
      %s6395 = scalar_lea.vmem [#allocation3], 65
      %v6396 = vld [vmem:[%s6395] ss:$2 sm:$0xff]
      %s6397 = scalar_lea.vmem [#allocation3], 81
      %v6398 = vld [vmem:[%s6397] ss:$2 sm:$0xff]
      %s6399 = scalar_lea.vmem [#allocation3], 97
      %v6400 = vld [vmem:[%s6399] ss:$2 sm:$0xff]
      %s6401 = scalar_lea.vmem [#allocation3], 113
      %v6402 = vld [vmem:[%s6401] ss:$2 sm:$0xff]
      %s6403 = scalar_lea.vmem [#allocation3], 129
      %v6404 = vld [vmem:[%s6403] ss:$2 sm:$0xff]
      %s6405 = scalar_lea.vmem [#allocation3], 145
      %v6406 = vld [vmem:[%s6405] ss:$2 sm:$0xff]
      %s6407 = scalar_lea.vmem [#allocation3], 161
      %v6408 = vld [vmem:[%s6407] ss:$2 sm:$0xff]
      %s6409 = scalar_lea.vmem [#allocation3], 177
      %v6410 = vld [vmem:[%s6409] ss:$2 sm:$0xff]
      %s6411 = scalar_lea.vmem [#allocation3], 193
      %v6412 = vld [vmem:[%s6411] ss:$2 sm:$0xff]
      %s6413 = scalar_lea.vmem [#allocation3], 209
      %v6414 = vld [vmem:[%s6413] ss:$2 sm:$0xff]
      %s6415 = scalar_lea.vmem [#allocation3], 225
      %v6416 = vld [vmem:[%s6415] ss:$2 sm:$0xff]
      %s6417 = scalar_lea.vmem [#allocation3], 241
      %v6418 = vld [vmem:[%s6417] ss:$2 sm:$0xff]
      %s6419 = scalar_lea.vmem [#allocation3], 257
      %v6420 = vld [vmem:[%s6419] ss:$2 sm:$0xff]
      %s6421 = scalar_lea.vmem [#allocation3], 273
      %v6422 = vld [vmem:[%s6421] ss:$2 sm:$0xff]
      %s6423 = scalar_lea.vmem [#allocation3], 289
      %v6424 = vld [vmem:[%s6423] ss:$2 sm:$0xff]
      %s6425 = scalar_lea.vmem [#allocation3], 305
      %v6426 = vld [vmem:[%s6425] ss:$2 sm:$0xff]
      %s6427 = scalar_lea.vmem [#allocation3], 321
      %v6428 = vld [vmem:[%s6427] ss:$2 sm:$0xff]
      %s6429 = scalar_lea.vmem [#allocation3], 337
      %v6430 = vld [vmem:[%s6429] ss:$2 sm:$0xff]
      %s6431 = scalar_lea.vmem [#allocation3], 353
      %v6432 = vld [vmem:[%s6431] ss:$2 sm:$0xff]
      %s6433 = scalar_lea.vmem [#allocation3], 369
      %v6434 = vld [vmem:[%s6433] ss:$2 sm:$0xff]
      %s6435 = scalar_lea.vmem [#allocation3], 385
      %v6436 = vld [vmem:[%s6435] ss:$2 sm:$0xff]
      %s6437 = scalar_lea.vmem [#allocation3], 401
      %v6438 = vld [vmem:[%s6437] ss:$2 sm:$0xff]
      %s6439 = scalar_lea.vmem [#allocation3], 417
      %v6440 = vld [vmem:[%s6439] ss:$2 sm:$0xff]
      %s6441 = scalar_lea.vmem [#allocation3], 433
      %v6442 = vld [vmem:[%s6441] ss:$2 sm:$0xff]
      %s6443 = scalar_lea.vmem [#allocation3], 449
      %v6444 = vld [vmem:[%s6443] ss:$2 sm:$0xff]
      %s6445 = scalar_lea.vmem [#allocation3], 465
      %v6446 = vld [vmem:[%s6445] ss:$2 sm:$0xff]
      %s6447 = scalar_lea.vmem [#allocation3], 481
      %v6448 = vld [vmem:[%s6447] ss:$2 sm:$0xff]
      %s6449 = scalar_lea.vmem [#allocation3], 497
      %v6450 = vld [vmem:[%s6449] ss:$2 sm:$0xff]
      %v6451 = vmax.f32 %v6324, %v6388
      %v6452 = vmax.f32 %v6326, %v6390
      %v6453 = vmax.f32 %v6328, %v6392
      %v6454 = vmax.f32 %v6330, %v6394
      %v6455 = vmax.f32 %v6332, %v6396
      %v6456 = vmax.f32 %v6334, %v6398
      %v6457 = vmax.f32 %v6336, %v6400
      %v6458 = vmax.f32 %v6338, %v6402
      %v6459 = vmax.f32 %v6340, %v6404
      %v6460 = vmax.f32 %v6342, %v6406
      %v6461 = vmax.f32 %v6344, %v6408
      %v6462 = vmax.f32 %v6346, %v6410
      %v6463 = vmax.f32 %v6348, %v6412
      %v6464 = vmax.f32 %v6350, %v6414
      %v6465 = vmax.f32 %v6352, %v6416
      %v6466 = vmax.f32 %v6354, %v6418
      %v6467 = vmax.f32 %v6356, %v6420
      %v6468 = vmax.f32 %v6358, %v6422
      %v6469 = vmax.f32 %v6360, %v6424
      %v6470 = vmax.f32 %v6362, %v6426
      %v6471 = vmax.f32 %v6364, %v6428
      %v6472 = vmax.f32 %v6366, %v6430
      %v6473 = vmax.f32 %v6368, %v6432
      %v6474 = vmax.f32 %v6370, %v6434
      %v6475 = vmax.f32 %v6372, %v6436
      %v6476 = vmax.f32 %v6374, %v6438
      %v6477 = vmax.f32 %v6376, %v6440
      %v6478 = vmax.f32 %v6378, %v6442
      %v6479 = vmax.f32 %v6380, %v6444
      %v6480 = vmax.f32 %v6382, %v6446
      %v6481 = vmax.f32 %v6384, %v6448
      %v6482 = vmax.f32 %v6386, %v6450
      %6483 = vst.msk [vmem:[#allocation2] sm:$0xff] %vm6259, %v6451
      %6484 = vst.msk [vmem:[#allocation2 + $0x8] sm:$0xff] %vm6259, %v6452
      %6485 = vst.msk [vmem:[#allocation2 + $0x10] sm:$0xff] %vm6259, %v6453
      %6486 = vst.msk [vmem:[#allocation2 + $0x18] sm:$0xff] %vm6259, %v6454
      %6487 = vst.msk [vmem:[#allocation2 + $0x20] sm:$0xff] %vm6259, %v6455
      %6488 = vst.msk [vmem:[#allocation2 + $0x28] sm:$0xff] %vm6259, %v6456
      %6489 = vst.msk [vmem:[#allocation2 + $0x30] sm:$0xff] %vm6259, %v6457
      %6490 = vst.msk [vmem:[#allocation2 + $0x38] sm:$0xff] %vm6259, %v6458
      %6491 = vst.msk [vmem:[#allocation2 + $0x40] sm:$0xff] %vm6259, %v6459
      %6492 = vst.msk [vmem:[#allocation2 + $0x48] sm:$0xff] %vm6259, %v6460
      %6493 = vst.msk [vmem:[#allocation2 + $0x50] sm:$0xff] %vm6259, %v6461
      %6494 = vst.msk [vmem:[#allocation2 + $0x58] sm:$0xff] %vm6259, %v6462
      %6495 = vst.msk [vmem:[#allocation2 + $0x60] sm:$0xff] %vm6259, %v6463
      %6496 = vst.msk [vmem:[#allocation2 + $0x68] sm:$0xff] %vm6259, %v6464
      %6497 = vst.msk [vmem:[#allocation2 + $0x70] sm:$0xff] %vm6259, %v6465
      %6498 = vst.msk [vmem:[#allocation2 + $0x78] sm:$0xff] %vm6259, %v6466
      %6499 = vst.msk [vmem:[#allocation2 + $0x80] sm:$0xff] %vm6259, %v6467
      %6500 = vst.msk [vmem:[#allocation2 + $0x88] sm:$0xff] %vm6259, %v6468
      %6501 = vst.msk [vmem:[#allocation2 + $0x90] sm:$0xff] %vm6259, %v6469
      %6502 = vst.msk [vmem:[#allocation2 + $0x98] sm:$0xff] %vm6259, %v6470
      %6503 = vst.msk [vmem:[#allocation2 + $0xa0] sm:$0xff] %vm6259, %v6471
      %6504 = vst.msk [vmem:[#allocation2 + $0xa8] sm:$0xff] %vm6259, %v6472
      %6505 = vst.msk [vmem:[#allocation2 + $0xb0] sm:$0xff] %vm6259, %v6473
      %6506 = vst.msk [vmem:[#allocation2 + $0xb8] sm:$0xff] %vm6259, %v6474
      %6507 = vst.msk [vmem:[#allocation2 + $0xc0] sm:$0xff] %vm6259, %v6475
      %6508 = vst.msk [vmem:[#allocation2 + $0xc8] sm:$0xff] %vm6259, %v6476
      %6509 = vst.msk [vmem:[#allocation2 + $0xd0] sm:$0xff] %vm6259, %v6477
      %6510 = vst.msk [vmem:[#allocation2 + $0xd8] sm:$0xff] %vm6259, %v6478
      %6511 = vst.msk [vmem:[#allocation2 + $0xe0] sm:$0xff] %vm6259, %v6479
      %6512 = vst.msk [vmem:[#allocation2 + $0xe8] sm:$0xff] %vm6259, %v6480
      %6513 = vst.msk [vmem:[#allocation2 + $0xf0] sm:$0xff] %vm6259, %v6481
      %6514 = vst.msk [vmem:[#allocation2 + $0xf8] sm:$0xff] %vm6259, %v6482
      %v6515 = vld [vmem:[#allocation2] sm:$0xff]
      %v6516 = vld [vmem:[#allocation2 + $0x8] sm:$0xff]
      %v6517 = vld [vmem:[#allocation2 + $0x10] sm:$0xff]
      %v6518 = vld [vmem:[#allocation2 + $0x18] sm:$0xff]
      %v6519 = vld [vmem:[#allocation2 + $0x20] sm:$0xff]
      %v6520 = vld [vmem:[#allocation2 + $0x28] sm:$0xff]
      %v6521 = vld [vmem:[#allocation2 + $0x30] sm:$0xff]
      %v6522 = vld [vmem:[#allocation2 + $0x38] sm:$0xff]
      %v6523 = vld [vmem:[#allocation2 + $0x40] sm:$0xff]
      %v6524 = vld [vmem:[#allocation2 + $0x48] sm:$0xff]
      %v6525 = vld [vmem:[#allocation2 + $0x50] sm:$0xff]
      %v6526 = vld [vmem:[#allocation2 + $0x58] sm:$0xff]
      %v6527 = vld [vmem:[#allocation2 + $0x60] sm:$0xff]
      %v6528 = vld [vmem:[#allocation2 + $0x68] sm:$0xff]
      %v6529 = vld [vmem:[#allocation2 + $0x70] sm:$0xff]
      %v6530 = vld [vmem:[#allocation2 + $0x78] sm:$0xff]
      %v6531 = vld [vmem:[#allocation2 + $0x80] sm:$0xff]
      %v6532 = vld [vmem:[#allocation2 + $0x88] sm:$0xff]
      %v6533 = vld [vmem:[#allocation2 + $0x90] sm:$0xff]
      %v6534 = vld [vmem:[#allocation2 + $0x98] sm:$0xff]
      %v6535 = vld [vmem:[#allocation2 + $0xa0] sm:$0xff]
      %v6536 = vld [vmem:[#allocation2 + $0xa8] sm:$0xff]
      %v6537 = vld [vmem:[#allocation2 + $0xb0] sm:$0xff]
      %v6538 = vld [vmem:[#allocation2 + $0xb8] sm:$0xff]
      %v6539 = vld [vmem:[#allocation2 + $0xc0] sm:$0xff]
      %v6540 = vld [vmem:[#allocation2 + $0xc8] sm:$0xff]
      %v6541 = vld [vmem:[#allocation2 + $0xd0] sm:$0xff]
      %v6542 = vld [vmem:[#allocation2 + $0xd8] sm:$0xff]
      %v6543 = vld [vmem:[#allocation2 + $0xe0] sm:$0xff]
      %v6544 = vld [vmem:[#allocation2 + $0xe8] sm:$0xff]
      %v6545 = vld [vmem:[#allocation2 + $0xf0] sm:$0xff]
      %v6546 = vld [vmem:[#allocation2 + $0xf8] sm:$0xff]
      %v6547 = vpack.c.bf16 %v6516, %v6515
      %v6548 = vpack.c.bf16 %v6518, %v6517
      %v6549 = vpack.c.bf16 %v6520, %v6519
      %v6550 = vpack.c.bf16 %v6522, %v6521
      %v6551 = vpack.c.bf16 %v6524, %v6523
      %v6552 = vpack.c.bf16 %v6526, %v6525
      %v6553 = vpack.c.bf16 %v6528, %v6527
      %v6554 = vpack.c.bf16 %v6530, %v6529
      %v6555 = vpack.c.bf16 %v6532, %v6531
      %v6556 = vpack.c.bf16 %v6534, %v6533
      %v6557 = vpack.c.bf16 %v6536, %v6535
      %v6558 = vpack.c.bf16 %v6538, %v6537
      %v6559 = vpack.c.bf16 %v6540, %v6539
      %v6560 = vpack.c.bf16 %v6542, %v6541
      %v6561 = vpack.c.bf16 %v6544, %v6543
      %v6562 = vpack.c.bf16 %v6546, %v6545
      %v6563 = vld [vmem:[%s5] sm:$0xf]
      %v6564 = vld [vmem:[%s5 + $0x4] sm:$0xf]
      %v6565 = vld [vmem:[#allocation2 + $0x1] sm:$0xff]
      %v6566 = vld [vmem:[#allocation2 + $0x9] sm:$0xff]
      %v6567 = vld [vmem:[#allocation2 + $0x11] sm:$0xff]
      %v6568 = vld [vmem:[#allocation2 + $0x19] sm:$0xff]
      %v6569 = vld [vmem:[#allocation2 + $0x21] sm:$0xff]
      %v6570 = vld [vmem:[#allocation2 + $0x29] sm:$0xff]
      %v6571 = vld [vmem:[#allocation2 + $0x31] sm:$0xff]
      %v6572 = vld [vmem:[#allocation2 + $0x39] sm:$0xff]
      %v6573 = vld [vmem:[#allocation2 + $0x41] sm:$0xff]
      %v6574 = vld [vmem:[#allocation2 + $0x49] sm:$0xff]
      %v6575 = vld [vmem:[#allocation2 + $0x51] sm:$0xff]
      %v6576 = vld [vmem:[#allocation2 + $0x59] sm:$0xff]
      %v6577 = vld [vmem:[#allocation2 + $0x61] sm:$0xff]
      %v6578 = vld [vmem:[#allocation2 + $0x69] sm:$0xff]
      %v6579 = vld [vmem:[#allocation2 + $0x71] sm:$0xff]
      %v6580 = vld [vmem:[#allocation2 + $0x79] sm:$0xff]
      %v6581 = vld [vmem:[#allocation2 + $0x81] sm:$0xff]
      %v6582 = vld [vmem:[#allocation2 + $0x89] sm:$0xff]
      %v6583 = vld [vmem:[#allocation2 + $0x91] sm:$0xff]
      %v6584 = vld [vmem:[#allocation2 + $0x99] sm:$0xff]
      %v6585 = vld [vmem:[#allocation2 + $0xa1] sm:$0xff]
      %v6586 = vld [vmem:[#allocation2 + $0xa9] sm:$0xff]
      %v6587 = vld [vmem:[#allocation2 + $0xb1] sm:$0xff]
      %v6588 = vld [vmem:[#allocation2 + $0xb9] sm:$0xff]
      %v6589 = vld [vmem:[#allocation2 + $0xc1] sm:$0xff]
      %v6590 = vld [vmem:[#allocation2 + $0xc9] sm:$0xff]
      %v6591 = vld [vmem:[#allocation2 + $0xd1] sm:$0xff]
      %v6592 = vld [vmem:[#allocation2 + $0xd9] sm:$0xff]
      %v6593 = vld [vmem:[#allocation2 + $0xe1] sm:$0xff]
      %v6594 = vld [vmem:[#allocation2 + $0xe9] sm:$0xff]
      %v6595 = vld [vmem:[#allocation2 + $0xf1] sm:$0xff]
      %v6596 = vld [vmem:[#allocation2 + $0xf9] sm:$0xff]
      %v6597 = vpack.c.bf16 %v6566, %v6565
      %v6598 = vpack.c.bf16 %v6568, %v6567
      %v6599 = vpack.c.bf16 %v6570, %v6569
      %v6600 = vpack.c.bf16 %v6572, %v6571
      %v6601 = vpack.c.bf16 %v6574, %v6573
      %v6602 = vpack.c.bf16 %v6576, %v6575
      %v6603 = vpack.c.bf16 %v6578, %v6577
      %v6604 = vpack.c.bf16 %v6580, %v6579
      %v6605 = vpack.c.bf16 %v6582, %v6581
      %v6606 = vpack.c.bf16 %v6584, %v6583
      %v6607 = vpack.c.bf16 %v6586, %v6585
      %v6608 = vpack.c.bf16 %v6588, %v6587
      %v6609 = vpack.c.bf16 %v6590, %v6589
      %v6610 = vpack.c.bf16 %v6592, %v6591
      %v6611 = vpack.c.bf16 %v6594, %v6593
      %v6612 = vpack.c.bf16 %v6596, %v6595
      %s6613 = scalar_lea.vmem %s5, 8
      %v6614 = vld [vmem:[%s6613] sm:$0xf]
      %v6615 = vld [vmem:[%s6613 + $0x4] sm:$0xf]
      %v6618 = vunpack.c.l.b16 %v6614
      %v6619 = vunpack.c.l.b16 %v6615
      %v6620 = vpack.c.b16 %v6619, %v6618
      %v6623 = vsel %vm6259, %v6597, 0
      %v6626 = vsel %vm6259, %v6598, 0
      %v6629 = vsel %vm6259, %v6599, 0
      %v6632 = vsel %vm6259, %v6600, 0
      %v6635 = vsel %vm6259, %v6601, 0
      %v6638 = vsel %vm6259, %v6602, 0
      %v6641 = vsel %vm6259, %v6603, 0
      %v6644 = vsel %vm6259, %v6604, 0
      %v6647 = vsel %vm6259, %v6605, 0
      %v6650 = vsel %vm6259, %v6606, 0
      %v6653 = vsel %vm6259, %v6607, 0
      %v6656 = vsel %vm6259, %v6608, 0
      %v6659 = vsel %vm6259, %v6609, 0
      %v6662 = vsel %vm6259, %v6610, 0
      %v6665 = vsel %vm6259, %v6611, 0
      %v6668 = vsel %vm6259, %v6612, 0
      %6670 = vmatprep.subr.bf16.mxu0 0
      %6671 = vmatpush1.bf16.msra.mxu0 %v6620
      %6672 = vmatprep.subr.bf16.mxu0 0
      %6673 = vmatpush1.bf16.msra.mxu0 0
      %6674 = vmatprep.subr.bf16.mxu0 0
      %6675 = vmatpush1.bf16.msra.mxu0 0
      %6676 = vmatprep.subr.bf16.mxu0 0
      %6677 = vmatpush1.bf16.msra.mxu0 0
      %6678 = vmatprep.subr.bf16.mxu0 0
      %6679 = vmatpush1.bf16.msra.mxu0 0
      %6680 = vmatprep.subr.bf16.mxu0 0
      %6681 = vmatpush1.bf16.msra.mxu0 0
      %6682 = vmatprep.subr.bf16.mxu0 0
      %6683 = vmatpush1.bf16.msra.mxu0 0
      %6684 = vmatprep.subr.bf16.mxu0 0
      %6685 = vmatpush1.bf16.msra.mxu0 0
      %6686 = vmatprep.subr.bf16.mxu0 0
      %6687 = vmatpush1.bf16.msra.mxu0 0
      %6688 = vmatprep.subr.bf16.mxu0 0
      %6689 = vmatpush1.bf16.msra.mxu0 0
      %6690 = vmatprep.subr.bf16.mxu0 0
      %6691 = vmatpush1.bf16.msra.mxu0 0
      %6692 = vmatprep.subr.bf16.mxu0 0
      %6693 = vmatpush1.bf16.msra.mxu0 0
      %6694 = vmatprep.subr.bf16.mxu0 0
      %6695 = vmatpush1.bf16.msra.mxu0 0
      %6696 = vmatprep.subr.bf16.mxu0 0
      %6697 = vmatpush1.bf16.msra.mxu0 0
      %6698 = vmatprep.subr.bf16.mxu0 0
      %6699 = vmatpush1.bf16.msra.mxu0 0
      %6700 = vmatprep.subr.bf16.mxu0 0
      %6701 = vmatpush1.bf16.msra.mxu0 0
      %6702 = vmatprep.mubr.bf16.mxu0 0
      %6703 = vmatmul.mubr.bf16.gmra.mrb[0].mxu0 %v6623
      %v6704 = vpop.f32.mrb[0].mxu0
      %v6705 = vadd.f32 0.0, %v6704
      %v6706 = vpop.f32.mrb[0].mxu0
      %v6707 = vpop.f32.mrb[0].mxu0
      %v6708 = vadd.f32 0.0, %v6707
      %v6709 = vpop.f32.mrb[0].mxu0
      %6710 = vmatprep.mubr.bf16.mxu0 0
      %6711 = vmatmul.mubr.bf16.gmra.mrb[0].mxu0 %v6626
      %v6712 = vpop.f32.mrb[0].mxu0
      %v6713 = vadd.f32 0.0, %v6712
      %v6714 = vpop.f32.mrb[0].mxu0
      %v6715 = vpop.f32.mrb[0].mxu0
      %v6716 = vadd.f32 0.0, %v6715
      %v6717 = vpop.f32.mrb[0].mxu0
      %6718 = vmatprep.mubr.bf16.mxu0 0
      %6719 = vmatmul.mubr.bf16.gmra.mrb[0].mxu0 %v6629
      %v6720 = vpop.f32.mrb[0].mxu0
      %v6721 = vadd.f32 0.0, %v6720
      %v6722 = vpop.f32.mrb[0].mxu0
      %v6723 = vpop.f32.mrb[0].mxu0
      %v6724 = vadd.f32 0.0, %v6723
      %v6725 = vpop.f32.mrb[0].mxu0
      %6726 = vmatprep.mubr.bf16.mxu0 0
      %6727 = vmatmul.mubr.bf16.gmra.mrb[0].mxu0 %v6632
      %v6728 = vpop.f32.mrb[0].mxu0
      %v6729 = vadd.f32 0.0, %v6728
      %v6730 = vpop.f32.mrb[0].mxu0
      %v6731 = vpop.f32.mrb[0].mxu0
      %v6732 = vadd.f32 0.0, %v6731
      %v6733 = vpop.f32.mrb[0].mxu0
      %6734 = vmatprep.mubr.bf16.mxu0 0
      %6735 = vmatmul.mubr.bf16.gmra.mrb[0].mxu0 %v6635
      %v6736 = vpop.f32.mrb[0].mxu0
      %v6737 = vadd.f32 0.0, %v6736
      %v6738 = vpop.f32.mrb[0].mxu0
      %v6739 = vpop.f32.mrb[0].mxu0
      %v6740 = vadd.f32 0.0, %v6739
      %v6741 = vpop.f32.mrb[0].mxu0
      %6742 = vmatprep.mubr.bf16.mxu0 0
      %6743 = vmatmul.mubr.bf16.gmra.mrb[0].mxu0 %v6638
      %v6744 = vpop.f32.mrb[0].mxu0
      %v6745 = vadd.f32 0.0, %v6744
      %v6746 = vpop.f32.mrb[0].mxu0
      %v6747 = vpop.f32.mrb[0].mxu0
      %v6748 = vadd.f32 0.0, %v6747
      %v6749 = vpop.f32.mrb[0].mxu0
      %6750 = vmatprep.mubr.bf16.mxu0 0
      %6751 = vmatmul.mubr.bf16.gmra.mrb[0].mxu0 %v6641
      %v6752 = vpop.f32.mrb[0].mxu0
      %v6753 = vadd.f32 0.0, %v6752
      %v6754 = vpop.f32.mrb[0].mxu0
      %v6755 = vpop.f32.mrb[0].mxu0
      %v6756 = vadd.f32 0.0, %v6755
      %v6757 = vpop.f32.mrb[0].mxu0
      %6758 = vmatprep.mubr.bf16.mxu0 0
      %6759 = vmatmul.mubr.bf16.gmra.mrb[0].mxu0 %v6644
      %v6760 = vpop.f32.mrb[0].mxu0
      %v6761 = vadd.f32 0.0, %v6760
      %v6762 = vpop.f32.mrb[0].mxu0
      %v6763 = vpop.f32.mrb[0].mxu0
      %v6764 = vadd.f32 0.0, %v6763
      %v6765 = vpop.f32.mrb[0].mxu0
      %6766 = vmatprep.mubr.bf16.mxu0 0
      %6767 = vmatmul.mubr.bf16.gmra.mrb[0].mxu0 %v6647
      %v6768 = vpop.f32.mrb[0].mxu0
      %v6769 = vadd.f32 0.0, %v6768
      %v6770 = vpop.f32.mrb[0].mxu0
      %v6771 = vpop.f32.mrb[0].mxu0
      %v6772 = vadd.f32 0.0, %v6771
      %v6773 = vpop.f32.mrb[0].mxu0
      %6774 = vmatprep.mubr.bf16.mxu0 0
      %6775 = vmatmul.mubr.bf16.gmra.mrb[0].mxu0 %v6650
      %v6776 = vpop.f32.mrb[0].mxu0
      %v6777 = vadd.f32 0.0, %v6776
      %v6778 = vpop.f32.mrb[0].mxu0
      %v6779 = vpop.f32.mrb[0].mxu0
      %v6780 = vadd.f32 0.0, %v6779
      %v6781 = vpop.f32.mrb[0].mxu0
      %6782 = vmatprep.mubr.bf16.mxu0 0
      %6783 = vmatmul.mubr.bf16.gmra.mrb[0].mxu0 %v6653
      %v6784 = vpop.f32.mrb[0].mxu0
      %v6785 = vadd.f32 0.0, %v6784
      %v6786 = vpop.f32.mrb[0].mxu0
      %v6787 = vpop.f32.mrb[0].mxu0
      %v6788 = vadd.f32 0.0, %v6787
      %v6789 = vpop.f32.mrb[0].mxu0
      %6790 = vmatprep.mubr.bf16.mxu0 0
      %6791 = vmatmul.mubr.bf16.gmra.mrb[0].mxu0 %v6656
      %v6792 = vpop.f32.mrb[0].mxu0
      %v6793 = vadd.f32 0.0, %v6792
      %v6794 = vpop.f32.mrb[0].mxu0
      %v6795 = vpop.f32.mrb[0].mxu0
      %v6796 = vadd.f32 0.0, %v6795
      %v6797 = vpop.f32.mrb[0].mxu0
      %6798 = vmatprep.mubr.bf16.mxu0 0
      %6799 = vmatmul.mubr.bf16.gmra.mrb[0].mxu0 %v6659
      %v6800 = vpop.f32.mrb[0].mxu0
      %v6801 = vadd.f32 0.0, %v6800
      %v6802 = vpop.f32.mrb[0].mxu0
      %v6803 = vpop.f32.mrb[0].mxu0
      %v6804 = vadd.f32 0.0, %v6803
      %v6805 = vpop.f32.mrb[0].mxu0
      %6806 = vmatprep.mubr.bf16.mxu0 0
      %6807 = vmatmul.mubr.bf16.gmra.mrb[0].mxu0 %v6662
      %v6808 = vpop.f32.mrb[0].mxu0
      %v6809 = vadd.f32 0.0, %v6808
      %v6810 = vpop.f32.mrb[0].mxu0
      %v6811 = vpop.f32.mrb[0].mxu0
      %v6812 = vadd.f32 0.0, %v6811
      %v6813 = vpop.f32.mrb[0].mxu0
      %6814 = vmatprep.mubr.bf16.mxu0 0
      %6815 = vmatmul.mubr.bf16.gmra.mrb[0].mxu0 %v6665
      %v6816 = vpop.f32.mrb[0].mxu0
      %v6817 = vadd.f32 0.0, %v6816
      %v6818 = vpop.f32.mrb[0].mxu0
      %v6819 = vpop.f32.mrb[0].mxu0
      %v6820 = vadd.f32 0.0, %v6819
      %v6821 = vpop.f32.mrb[0].mxu0
      %6822 = vmatprep.mubr.bf16.mxu0 0
      %6823 = vmatmul.mubr.bf16.gmra.mrb[0].mxu0 %v6668
      %v6824 = vpop.f32.mrb[0].mxu0
      %v6825 = vadd.f32 0.0, %v6824
      %v6826 = vpop.f32.mrb[0].mxu0
      %v6827 = vpop.f32.mrb[0].mxu0
      %v6828 = vadd.f32 0.0, %v6827
      %v6829 = vpop.f32.mrb[0].mxu0
      %6830 = vdwg.mxu0
      %v6833 = vunpack.c.l.b16 %v6563
      %v6834 = vunpack.c.l.b16 %v6564
      %v6835 = vpack.c.b16 %v6834, %v6833
      %v6838 = vsel %vm6259, %v6547, 0
      %v6841 = vsel %vm6259, %v6548, 0
      %v6844 = vsel %vm6259, %v6549, 0
      %v6847 = vsel %vm6259, %v6550, 0
      %v6850 = vsel %vm6259, %v6551, 0
      %v6853 = vsel %vm6259, %v6552, 0
      %v6856 = vsel %vm6259, %v6553, 0
      %v6859 = vsel %vm6259, %v6554, 0
      %v6862 = vsel %vm6259, %v6555, 0
      %v6865 = vsel %vm6259, %v6556, 0
      %v6868 = vsel %vm6259, %v6557, 0
      %v6871 = vsel %vm6259, %v6558, 0
      %v6874 = vsel %vm6259, %v6559, 0
      %v6877 = vsel %vm6259, %v6560, 0
      %v6880 = vsel %vm6259, %v6561, 0
      %v6883 = vsel %vm6259, %v6562, 0
      %6885 = vmatprep.subr.bf16.mxu0 0
      %6886 = vmatpush1.bf16.msra.mxu0 %v6835
      %6887 = vmatprep.subr.bf16.mxu0 0
      %6888 = vmatpush1.bf16.msra.mxu0 0
      %6889 = vmatprep.subr.bf16.mxu0 0
      %6890 = vmatpush1.bf16.msra.mxu0 0
      %6891 = vmatprep.subr.bf16.mxu0 0
      %6892 = vmatpush1.bf16.msra.mxu0 0
      %6893 = vmatprep.subr.bf16.mxu0 0
      %6894 = vmatpush1.bf16.msra.mxu0 0
      %6895 = vmatprep.subr.bf16.mxu0 0
      %6896 = vmatpush1.bf16.msra.mxu0 0
      %6897 = vmatprep.subr.bf16.mxu0 0
      %6898 = vmatpush1.bf16.msra.mxu0 0
      %6899 = vmatprep.subr.bf16.mxu0 0
      %6900 = vmatpush1.bf16.msra.mxu0 0
      %6901 = vmatprep.subr.bf16.mxu0 0
      %6902 = vmatpush1.bf16.msra.mxu0 0
      %6903 = vmatprep.subr.bf16.mxu0 0
      %6904 = vmatpush1.bf16.msra.mxu0 0
      %6905 = vmatprep.subr.bf16.mxu0 0
      %6906 = vmatpush1.bf16.msra.mxu0 0
      %6907 = vmatprep.subr.bf16.mxu0 0
      %6908 = vmatpush1.bf16.msra.mxu0 0
      %6909 = vmatprep.subr.bf16.mxu0 0
      %6910 = vmatpush1.bf16.msra.mxu0 0
      %6911 = vmatprep.subr.bf16.mxu0 0
      %6912 = vmatpush1.bf16.msra.mxu0 0
      %6913 = vmatprep.subr.bf16.mxu0 0
      %6914 = vmatpush1.bf16.msra.mxu0 0
      %6915 = vmatprep.subr.bf16.mxu0 0
      %6916 = vmatpush1.bf16.msra.mxu0 0
      %6917 = vmatprep.mubr.bf16.mxu0 0
      %6918 = vmatmul.mubr.bf16.gmra.mrb[0].mxu0 %v6838
      %v6919 = vpop.f32.mrb[0].mxu0
      %v6920 = vadd.f32 %v6705, %v6919
      %v6921 = vpop.f32.mrb[0].mxu0
      %v6922 = vpop.f32.mrb[0].mxu0
      %v6923 = vadd.f32 %v6708, %v6922
      %v6924 = vpop.f32.mrb[0].mxu0
      %6925 = vmatprep.mubr.bf16.mxu0 0
      %6926 = vmatmul.mubr.bf16.gmra.mrb[0].mxu0 %v6841
      %v6927 = vpop.f32.mrb[0].mxu0
      %v6928 = vadd.f32 %v6713, %v6927
      %v6929 = vpop.f32.mrb[0].mxu0
      %v6930 = vpop.f32.mrb[0].mxu0
      %v6931 = vadd.f32 %v6716, %v6930
      %v6932 = vpop.f32.mrb[0].mxu0
      %6933 = vmatprep.mubr.bf16.mxu0 0
      %6934 = vmatmul.mubr.bf16.gmra.mrb[0].mxu0 %v6844
      %v6935 = vpop.f32.mrb[0].mxu0
      %v6936 = vadd.f32 %v6721, %v6935
      %v6937 = vpop.f32.mrb[0].mxu0
      %v6938 = vpop.f32.mrb[0].mxu0
      %v6939 = vadd.f32 %v6724, %v6938
      %v6940 = vpop.f32.mrb[0].mxu0
      %6941 = vmatprep.mubr.bf16.mxu0 0
      %6942 = vmatmul.mubr.bf16.gmra.mrb[0].mxu0 %v6847
      %v6943 = vpop.f32.mrb[0].mxu0
      %v6944 = vadd.f32 %v6729, %v6943
      %v6945 = vpop.f32.mrb[0].mxu0
      %v6946 = vpop.f32.mrb[0].mxu0
      %v6947 = vadd.f32 %v6732, %v6946
      %v6948 = vpop.f32.mrb[0].mxu0
      %6949 = vmatprep.mubr.bf16.mxu0 0
      %6950 = vmatmul.mubr.bf16.gmra.mrb[0].mxu0 %v6850
      %v6951 = vpop.f32.mrb[0].mxu0
      %v6952 = vadd.f32 %v6737, %v6951
      %v6953 = vpop.f32.mrb[0].mxu0
      %v6954 = vpop.f32.mrb[0].mxu0
      %v6955 = vadd.f32 %v6740, %v6954
      %v6956 = vpop.f32.mrb[0].mxu0
      %6957 = vmatprep.mubr.bf16.mxu0 0
      %6958 = vmatmul.mubr.bf16.gmra.mrb[0].mxu0 %v6853
      %v6959 = vpop.f32.mrb[0].mxu0
      %v6960 = vadd.f32 %v6745, %v6959
      %v6961 = vpop.f32.mrb[0].mxu0
      %v6962 = vpop.f32.mrb[0].mxu0
      %v6963 = vadd.f32 %v6748, %v6962
      %v6964 = vpop.f32.mrb[0].mxu0
      %6965 = vmatprep.mubr.bf16.mxu0 0
      %6966 = vmatmul.mubr.bf16.gmra.mrb[0].mxu0 %v6856
      %v6967 = vpop.f32.mrb[0].mxu0
      %v6968 = vadd.f32 %v6753, %v6967
      %v6969 = vpop.f32.mrb[0].mxu0
      %v6970 = vpop.f32.mrb[0].mxu0
      %v6971 = vadd.f32 %v6756, %v6970
      %v6972 = vpop.f32.mrb[0].mxu0
      %6973 = vmatprep.mubr.bf16.mxu0 0
      %6974 = vmatmul.mubr.bf16.gmra.mrb[0].mxu0 %v6859
      %v6975 = vpop.f32.mrb[0].mxu0
      %v6976 = vadd.f32 %v6761, %v6975
      %v6977 = vpop.f32.mrb[0].mxu0
      %v6978 = vpop.f32.mrb[0].mxu0
      %v6979 = vadd.f32 %v6764, %v6978
      %v6980 = vpop.f32.mrb[0].mxu0
      %6981 = vmatprep.mubr.bf16.mxu0 0
      %6982 = vmatmul.mubr.bf16.gmra.mrb[0].mxu0 %v6862
      %v6983 = vpop.f32.mrb[0].mxu0
      %v6984 = vadd.f32 %v6769, %v6983
      %v6985 = vpop.f32.mrb[0].mxu0
      %v6986 = vpop.f32.mrb[0].mxu0
      %v6987 = vadd.f32 %v6772, %v6986
      %v6988 = vpop.f32.mrb[0].mxu0
      %6989 = vmatprep.mubr.bf16.mxu0 0
      %6990 = vmatmul.mubr.bf16.gmra.mrb[0].mxu0 %v6865
      %v6991 = vpop.f32.mrb[0].mxu0
      %v6992 = vadd.f32 %v6777, %v6991
      %v6993 = vpop.f32.mrb[0].mxu0
      %v6994 = vpop.f32.mrb[0].mxu0
      %v6995 = vadd.f32 %v6780, %v6994
      %v6996 = vpop.f32.mrb[0].mxu0
      %6997 = vmatprep.mubr.bf16.mxu0 0
      %6998 = vmatmul.mubr.bf16.gmra.mrb[0].mxu0 %v6868
      %v6999 = vpop.f32.mrb[0].mxu0
      %v7000 = vadd.f32 %v6785, %v6999
      %v7001 = vpop.f32.mrb[0].mxu0
      %v7002 = vpop.f32.mrb[0].mxu0
      %v7003 = vadd.f32 %v6788, %v7002
      %v7004 = vpop.f32.mrb[0].mxu0
      %7005 = vmatprep.mubr.bf16.mxu0 0
      %7006 = vmatmul.mubr.bf16.gmra.mrb[0].mxu0 %v6871
      %v7007 = vpop.f32.mrb[0].mxu0
      %v7008 = vadd.f32 %v6793, %v7007
      %v7009 = vpop.f32.mrb[0].mxu0
      %v7010 = vpop.f32.mrb[0].mxu0
      %v7011 = vadd.f32 %v6796, %v7010
      %v7012 = vpop.f32.mrb[0].mxu0
      %7013 = vmatprep.mubr.bf16.mxu0 0
      %7014 = vmatmul.mubr.bf16.gmra.mrb[0].mxu0 %v6874
      %v7015 = vpop.f32.mrb[0].mxu0
      %v7016 = vadd.f32 %v6801, %v7015
      %v7017 = vpop.f32.mrb[0].mxu0
      %v7018 = vpop.f32.mrb[0].mxu0
      %v7019 = vadd.f32 %v6804, %v7018
      %v7020 = vpop.f32.mrb[0].mxu0
      %7021 = vmatprep.mubr.bf16.mxu0 0
      %7022 = vmatmul.mubr.bf16.gmra.mrb[0].mxu0 %v6877
      %v7023 = vpop.f32.mrb[0].mxu0
      %v7024 = vadd.f32 %v6809, %v7023
      %v7025 = vpop.f32.mrb[0].mxu0
      %v7026 = vpop.f32.mrb[0].mxu0
      %v7027 = vadd.f32 %v6812, %v7026
      %v7028 = vpop.f32.mrb[0].mxu0
      %7029 = vmatprep.mubr.bf16.mxu0 0
      %7030 = vmatmul.mubr.bf16.gmra.mrb[0].mxu0 %v6880
      %v7031 = vpop.f32.mrb[0].mxu0
      %v7032 = vadd.f32 %v6817, %v7031
      %v7033 = vpop.f32.mrb[0].mxu0
      %v7034 = vpop.f32.mrb[0].mxu0
      %v7035 = vadd.f32 %v6820, %v7034
      %v7036 = vpop.f32.mrb[0].mxu0
      %7037 = vmatprep.mubr.bf16.mxu0 0
      %7038 = vmatmul.mubr.bf16.gmra.mrb[0].mxu0 %v6883
      %v7039 = vpop.f32.mrb[0].mxu0
      %v7040 = vadd.f32 %v6825, %v7039
      %v7041 = vpop.f32.mrb[0].mxu0
      %v7042 = vpop.f32.mrb[0].mxu0
      %v7043 = vadd.f32 %v6828, %v7042
      %v7044 = vpop.f32.mrb[0].mxu0
      %7045 = vdwg.mxu0
      %v7046 = vld [vmem:[#allocation2 + $0x2] sm:$0xff]
      %v7047 = vld [vmem:[#allocation2 + $0xa] sm:$0xff]
      %v7048 = vld [vmem:[#allocation2 + $0x12] sm:$0xff]
      %v7049 = vld [vmem:[#allocation2 + $0x1a] sm:$0xff]
      %v7050 = vld [vmem:[#allocation2 + $0x22] sm:$0xff]
      %v7051 = vld [vmem:[#allocation2 + $0x2a] sm:$0xff]
      %v7052 = vld [vmem:[#allocation2 + $0x32] sm:$0xff]
      %v7053 = vld [vmem:[#allocation2 + $0x3a] sm:$0xff]
      %v7054 = vld [vmem:[#allocation2 + $0x42] sm:$0xff]
      %v7055 = vld [vmem:[#allocation2 + $0x4a] sm:$0xff]
      %v7056 = vld [vmem:[#allocation2 + $0x52] sm:$0xff]
      %v7057 = vld [vmem:[#allocation2 + $0x5a] sm:$0xff]
      %v7058 = vld [vmem:[#allocation2 + $0x62] sm:$0xff]
      %v7059 = vld [vmem:[#allocation2 + $0x6a] sm:$0xff]
      %v7060 = vld [vmem:[#allocation2 + $0x72] sm:$0xff]
      %v7061 = vld [vmem:[#allocation2 + $0x7a] sm:$0xff]
      %v7062 = vld [vmem:[#allocation2 + $0x82] sm:$0xff]
      %v7063 = vld [vmem:[#allocation2 + $0x8a] sm:$0xff]
      %v7064 = vld [vmem:[#allocation2 + $0x92] sm:$0xff]
      %v7065 = vld [vmem:[#allocation2 + $0x9a] sm:$0xff]
      %v7066 = vld [vmem:[#allocation2 + $0xa2] sm:$0xff]
      %v7067 = vld [vmem:[#allocation2 + $0xaa] sm:$0xff]
      %v7068 = vld [vmem:[#allocation2 + $0xb2] sm:$0xff]
      %v7069 = vld [vmem:[#allocation2 + $0xba] sm:$0xff]
      %v7070 = vld [vmem:[#allocation2 + $0xc2] sm:$0xff]
      %v7071 = vld [vmem:[#allocation2 + $0xca] sm:$0xff]
      %v7072 = vld [vmem:[#allocation2 + $0xd2] sm:$0xff]
      %v7073 = vld [vmem:[#allocation2 + $0xda] sm:$0xff]
      %v7074 = vld [vmem:[#allocation2 + $0xe2] sm:$0xff]
      %v7075 = vld [vmem:[#allocation2 + $0xea] sm:$0xff]
      %v7076 = vld [vmem:[#allocation2 + $0xf2] sm:$0xff]
      %v7077 = vld [vmem:[#allocation2 + $0xfa] sm:$0xff]
      %v7078 = vpack.c.bf16 %v7047, %v7046
      %v7079 = vpack.c.bf16 %v7049, %v7048
      %v7080 = vpack.c.bf16 %v7051, %v7050
      %v7081 = vpack.c.bf16 %v7053, %v7052
      %v7082 = vpack.c.bf16 %v7055, %v7054
      %v7083 = vpack.c.bf16 %v7057, %v7056
      %v7084 = vpack.c.bf16 %v7059, %v7058
      %v7085 = vpack.c.bf16 %v7061, %v7060
      %v7086 = vpack.c.bf16 %v7063, %v7062
      %v7087 = vpack.c.bf16 %v7065, %v7064
      %v7088 = vpack.c.bf16 %v7067, %v7066
      %v7089 = vpack.c.bf16 %v7069, %v7068
      %v7090 = vpack.c.bf16 %v7071, %v7070
      %v7091 = vpack.c.bf16 %v7073, %v7072
      %v7092 = vpack.c.bf16 %v7075, %v7074
      %v7093 = vpack.c.bf16 %v7077, %v7076
      %s7094 = scalar_lea.vmem %s5, 16
      %v7095 = vld [vmem:[%s7094] sm:$0xf]
      %v7096 = vld [vmem:[%s7094 + $0x4] sm:$0xf]
      %v7099 = vunpack.c.l.b16 %v7095
      %v7100 = vunpack.c.l.b16 %v7096
      %v7101 = vpack.c.b16 %v7100, %v7099
      %v7104 = vsel %vm6259, %v7078, 0
      %v7107 = vsel %vm6259, %v7079, 0
      %v7110 = vsel %vm6259, %v7080, 0
      %v7113 = vsel %vm6259, %v7081, 0
      %v7116 = vsel %vm6259, %v7082, 0
      %v7119 = vsel %vm6259, %v7083, 0
      %v7122 = vsel %vm6259, %v7084, 0
      %v7125 = vsel %vm6259, %v7085, 0
      %v7128 = vsel %vm6259, %v7086, 0
      %v7131 = vsel %vm6259, %v7087, 0
      %v7134 = vsel %vm6259, %v7088, 0
      %v7137 = vsel %vm6259, %v7089, 0
      %v7140 = vsel %vm6259, %v7090, 0
      %v7143 = vsel %vm6259, %v7091, 0
      %v7146 = vsel %vm6259, %v7092, 0
      %v7149 = vsel %vm6259, %v7093, 0
      %7151 = vmatprep.subr.bf16.mxu0 0
      %7152 = vmatpush1.bf16.msra.mxu0 %v7101
      %7153 = vmatprep.subr.bf16.mxu0 0
      %7154 = vmatpush1.bf16.msra.mxu0 0
      %7155 = vmatprep.subr.bf16.mxu0 0
      %7156 = vmatpush1.bf16.msra.mxu0 0
      %7157 = vmatprep.subr.bf16.mxu0 0
      %7158 = vmatpush1.bf16.msra.mxu0 0
      %7159 = vmatprep.subr.bf16.mxu0 0
      %7160 = vmatpush1.bf16.msra.mxu0 0
      %7161 = vmatprep.subr.bf16.mxu0 0
      %7162 = vmatpush1.bf16.msra.mxu0 0
      %7163 = vmatprep.subr.bf16.mxu0 0
      %7164 = vmatpush1.bf16.msra.mxu0 0
      %7165 = vmatprep.subr.bf16.mxu0 0
      %7166 = vmatpush1.bf16.msra.mxu0 0
      %7167 = vmatprep.subr.bf16.mxu0 0
      %7168 = vmatpush1.bf16.msra.mxu0 0
      %7169 = vmatprep.subr.bf16.mxu0 0
      %7170 = vmatpush1.bf16.msra.mxu0 0
      %7171 = vmatprep.subr.bf16.mxu0 0
      %7172 = vmatpush1.bf16.msra.mxu0 0
      %7173 = vmatprep.subr.bf16.mxu0 0
      %7174 = vmatpush1.bf16.msra.mxu0 0
      %7175 = vmatprep.subr.bf16.mxu0 0
      %7176 = vmatpush1.bf16.msra.mxu0 0
      %7177 = vmatprep.subr.bf16.mxu0 0
      %7178 = vmatpush1.bf16.msra.mxu0 0
      %7179 = vmatprep.subr.bf16.mxu0 0
      %7180 = vmatpush1.bf16.msra.mxu0 0
      %7181 = vmatprep.subr.bf16.mxu0 0
      %7182 = vmatpush1.bf16.msra.mxu0 0
      %7183 = vmatprep.mubr.bf16.mxu0 0
      %7184 = vmatmul.mubr.bf16.gmra.mrb[0].mxu0 %v7104
      %v7185 = vpop.f32.mrb[0].mxu0
      %v7186 = vadd.f32 0.0, %v7185
      %v7187 = vpop.f32.mrb[0].mxu0
      %v7188 = vpop.f32.mrb[0].mxu0
      %v7189 = vadd.f32 0.0, %v7188
      %v7190 = vpop.f32.mrb[0].mxu0
      %7191 = vmatprep.mubr.bf16.mxu0 0
      %7192 = vmatmul.mubr.bf16.gmra.mrb[0].mxu0 %v7107
      %v7193 = vpop.f32.mrb[0].mxu0
      %v7194 = vadd.f32 0.0, %v7193
      %v7195 = vpop.f32.mrb[0].mxu0
      %v7196 = vpop.f32.mrb[0].mxu0
      %v7197 = vadd.f32 0.0, %v7196
      %v7198 = vpop.f32.mrb[0].mxu0
      %7199 = vmatprep.mubr.bf16.mxu0 0
      %7200 = vmatmul.mubr.bf16.gmra.mrb[0].mxu0 %v7110
      %v7201 = vpop.f32.mrb[0].mxu0
      %v7202 = vadd.f32 0.0, %v7201
      %v7203 = vpop.f32.mrb[0].mxu0
      %v7204 = vpop.f32.mrb[0].mxu0
      %v7205 = vadd.f32 0.0, %v7204
      %v7206 = vpop.f32.mrb[0].mxu0
      %7207 = vmatprep.mubr.bf16.mxu0 0
      %7208 = vmatmul.mubr.bf16.gmra.mrb[0].mxu0 %v7113
      %v7209 = vpop.f32.mrb[0].mxu0
      %v7210 = vadd.f32 0.0, %v7209
      %v7211 = vpop.f32.mrb[0].mxu0
      %v7212 = vpop.f32.mrb[0].mxu0
      %v7213 = vadd.f32 0.0, %v7212
      %v7214 = vpop.f32.mrb[0].mxu0
      %7215 = vmatprep.mubr.bf16.mxu0 0
      %7216 = vmatmul.mubr.bf16.gmra.mrb[0].mxu0 %v7116
      %v7217 = vpop.f32.mrb[0].mxu0
      %v7218 = vadd.f32 0.0, %v7217
      %v7219 = vpop.f32.mrb[0].mxu0
      %v7220 = vpop.f32.mrb[0].mxu0
      %v7221 = vadd.f32 0.0, %v7220
      %v7222 = vpop.f32.mrb[0].mxu0
      %7223 = vmatprep.mubr.bf16.mxu0 0
      %7224 = vmatmul.mubr.bf16.gmra.mrb[0].mxu0 %v7119
      %v7225 = vpop.f32.mrb[0].mxu0
      %v7226 = vadd.f32 0.0, %v7225
      %v7227 = vpop.f32.mrb[0].mxu0
      %v7228 = vpop.f32.mrb[0].mxu0
      %v7229 = vadd.f32 0.0, %v7228
      %v7230 = vpop.f32.mrb[0].mxu0
      %7231 = vmatprep.mubr.bf16.mxu0 0
      %7232 = vmatmul.mubr.bf16.gmra.mrb[0].mxu0 %v7122
      %v7233 = vpop.f32.mrb[0].mxu0
      %v7234 = vadd.f32 0.0, %v7233
      %v7235 = vpop.f32.mrb[0].mxu0
      %v7236 = vpop.f32.mrb[0].mxu0
      %v7237 = vadd.f32 0.0, %v7236
      %v7238 = vpop.f32.mrb[0].mxu0
      %7239 = vmatprep.mubr.bf16.mxu0 0
      %7240 = vmatmul.mubr.bf16.gmra.mrb[0].mxu0 %v7125
      %v7241 = vpop.f32.mrb[0].mxu0
      %v7242 = vadd.f32 0.0, %v7241
      %v7243 = vpop.f32.mrb[0].mxu0
      %v7244 = vpop.f32.mrb[0].mxu0
      %v7245 = vadd.f32 0.0, %v7244
      %v7246 = vpop.f32.mrb[0].mxu0
      %7247 = vmatprep.mubr.bf16.mxu0 0
      %7248 = vmatmul.mubr.bf16.gmra.mrb[0].mxu0 %v7128
      %v7249 = vpop.f32.mrb[0].mxu0
      %v7250 = vadd.f32 0.0, %v7249
      %v7251 = vpop.f32.mrb[0].mxu0
      %v7252 = vpop.f32.mrb[0].mxu0
      %v7253 = vadd.f32 0.0, %v7252
      %v7254 = vpop.f32.mrb[0].mxu0
      %7255 = vmatprep.mubr.bf16.mxu0 0
      %7256 = vmatmul.mubr.bf16.gmra.mrb[0].mxu0 %v7131
      %v7257 = vpop.f32.mrb[0].mxu0
      %v7258 = vadd.f32 0.0, %v7257
      %v7259 = vpop.f32.mrb[0].mxu0
      %v7260 = vpop.f32.mrb[0].mxu0
      %v7261 = vadd.f32 0.0, %v7260
      %v7262 = vpop.f32.mrb[0].mxu0
      %7263 = vmatprep.mubr.bf16.mxu0 0
      %7264 = vmatmul.mubr.bf16.gmra.mrb[0].mxu0 %v7134
      %v7265 = vpop.f32.mrb[0].mxu0
      %v7266 = vadd.f32 0.0, %v7265
      %v7267 = vpop.f32.mrb[0].mxu0
      %v7268 = vpop.f32.mrb[0].mxu0
      %v7269 = vadd.f32 0.0, %v7268
      %v7270 = vpop.f32.mrb[0].mxu0
      %7271 = vmatprep.mubr.bf16.mxu0 0
      %7272 = vmatmul.mubr.bf16.gmra.mrb[0].mxu0 %v7137
      %v7273 = vpop.f32.mrb[0].mxu0
      %v7274 = vadd.f32 0.0, %v7273
      %v7275 = vpop.f32.mrb[0].mxu0
      %v7276 = vpop.f32.mrb[0].mxu0
      %v7277 = vadd.f32 0.0, %v7276
      %v7278 = vpop.f32.mrb[0].mxu0
      %7279 = vmatprep.mubr.bf16.mxu0 0
      %7280 = vmatmul.mubr.bf16.gmra.mrb[0].mxu0 %v7140
      %v7281 = vpop.f32.mrb[0].mxu0
      %v7282 = vadd.f32 0.0, %v7281
      %v7283 = vpop.f32.mrb[0].mxu0
      %v7284 = vpop.f32.mrb[0].mxu0
      %v7285 = vadd.f32 0.0, %v7284
      %v7286 = vpop.f32.mrb[0].mxu0
      %7287 = vmatprep.mubr.bf16.mxu0 0
      %7288 = vmatmul.mubr.bf16.gmra.mrb[0].mxu0 %v7143
      %v7289 = vpop.f32.mrb[0].mxu0
      %v7290 = vadd.f32 0.0, %v7289
      %v7291 = vpop.f32.mrb[0].mxu0
      %v7292 = vpop.f32.mrb[0].mxu0
      %v7293 = vadd.f32 0.0, %v7292
      %v7294 = vpop.f32.mrb[0].mxu0
      %7295 = vmatprep.mubr.bf16.mxu0 0
      %7296 = vmatmul.mubr.bf16.gmra.mrb[0].mxu0 %v7146
      %v7297 = vpop.f32.mrb[0].mxu0
      %v7298 = vadd.f32 0.0, %v7297
      %v7299 = vpop.f32.mrb[0].mxu0
      %v7300 = vpop.f32.mrb[0].mxu0
      %v7301 = vadd.f32 0.0, %v7300
      %v7302 = vpop.f32.mrb[0].mxu0
      %7303 = vmatprep.mubr.bf16.mxu0 0
      %7304 = vmatmul.mubr.bf16.gmra.mrb[0].mxu0 %v7149
      %v7305 = vpop.f32.mrb[0].mxu0
      %v7306 = vadd.f32 0.0, %v7305
      %v7307 = vpop.f32.mrb[0].mxu0
      %v7308 = vpop.f32.mrb[0].mxu0
      %v7309 = vadd.f32 0.0, %v7308
      %v7310 = vpop.f32.mrb[0].mxu0
      %7311 = vdwg.mxu0
      %v7312 = vadd.f32 %v6920, %v7186
      %v7313 = vadd.f32 %v6923, %v7189
      %v7314 = vadd.f32 %v6928, %v7194
      %v7315 = vadd.f32 %v6931, %v7197
      %v7316 = vadd.f32 %v6936, %v7202
      %v7317 = vadd.f32 %v6939, %v7205
      %v7318 = vadd.f32 %v6944, %v7210
      %v7319 = vadd.f32 %v6947, %v7213
      %v7320 = vadd.f32 %v6952, %v7218
      %v7321 = vadd.f32 %v6955, %v7221
      %v7322 = vadd.f32 %v6960, %v7226
      %v7323 = vadd.f32 %v6963, %v7229
      %v7324 = vadd.f32 %v6968, %v7234
      %v7325 = vadd.f32 %v6971, %v7237
      %v7326 = vadd.f32 %v6976, %v7242
      %v7327 = vadd.f32 %v6979, %v7245
      %v7328 = vadd.f32 %v6984, %v7250
      %v7329 = vadd.f32 %v6987, %v7253
      %v7330 = vadd.f32 %v6992, %v7258
      %v7331 = vadd.f32 %v6995, %v7261
      %v7332 = vadd.f32 %v7000, %v7266
      %v7333 = vadd.f32 %v7003, %v7269
      %v7334 = vadd.f32 %v7008, %v7274
      %v7335 = vadd.f32 %v7011, %v7277
      %v7336 = vadd.f32 %v7016, %v7282
      %v7337 = vadd.f32 %v7019, %v7285
      %v7338 = vadd.f32 %v7024, %v7290
      %v7339 = vadd.f32 %v7027, %v7293
      %v7340 = vadd.f32 %v7032, %v7298
      %v7341 = vadd.f32 %v7035, %v7301
      %v7342 = vadd.f32 %v7040, %v7306
      %v7343 = vadd.f32 %v7043, %v7309
      %v7344 = vld [vmem:[%s6] sm:$0x1]
      %v7346 = vlaneseq
      %v7347 = vshrl.u32 %v7346, 7
      %v7348 = vsub.s32 0, %v7347
      %v7349 = vrot.slane %v7344, %v7348
      %v7351 = vadd.f32 %v7312, %v7349
      %v7352 = vadd.f32 %v7313, %v7349
      %v7353 = vadd.f32 %v7314, %v7349
      %v7354 = vadd.f32 %v7315, %v7349
      %v7355 = vadd.f32 %v7316, %v7349
      %v7356 = vadd.f32 %v7317, %v7349
      %v7357 = vadd.f32 %v7318, %v7349
      %v7358 = vadd.f32 %v7319, %v7349
      %v7359 = vadd.f32 %v7320, %v7349
      %v7360 = vadd.f32 %v7321, %v7349
      %v7361 = vadd.f32 %v7322, %v7349
      %v7362 = vadd.f32 %v7323, %v7349
      %v7363 = vadd.f32 %v7324, %v7349
      %v7364 = vadd.f32 %v7325, %v7349
      %v7365 = vadd.f32 %v7326, %v7349
      %v7366 = vadd.f32 %v7327, %v7349
      %v7367 = vadd.f32 %v7328, %v7349
      %v7368 = vadd.f32 %v7329, %v7349
      %v7369 = vadd.f32 %v7330, %v7349
      %v7370 = vadd.f32 %v7331, %v7349
      %v7371 = vadd.f32 %v7332, %v7349
      %v7372 = vadd.f32 %v7333, %v7349
      %v7373 = vadd.f32 %v7334, %v7349
      %v7374 = vadd.f32 %v7335, %v7349
      %v7375 = vadd.f32 %v7336, %v7349
      %v7376 = vadd.f32 %v7337, %v7349
      %v7377 = vadd.f32 %v7338, %v7349
      %v7378 = vadd.f32 %v7339, %v7349
      %v7379 = vadd.f32 %v7340, %v7349
      %v7380 = vadd.f32 %v7341, %v7349
      %v7381 = vadd.f32 %v7342, %v7349
      %v7382 = vadd.f32 %v7343, %v7349
      %v7383 = vmax.f32 %v7351, 0.0
      %v7384 = vmax.f32 %v7352, 0.0
      %v7385 = vmax.f32 %v7353, 0.0
      %v7386 = vmax.f32 %v7354, 0.0
      %v7387 = vmax.f32 %v7355, 0.0
      %v7388 = vmax.f32 %v7356, 0.0
      %v7389 = vmax.f32 %v7357, 0.0
      %v7390 = vmax.f32 %v7358, 0.0
      %v7391 = vmax.f32 %v7359, 0.0
      %v7392 = vmax.f32 %v7360, 0.0
      %v7393 = vmax.f32 %v7361, 0.0
      %v7394 = vmax.f32 %v7362, 0.0
      %v7395 = vmax.f32 %v7363, 0.0
      %v7396 = vmax.f32 %v7364, 0.0
      %v7397 = vmax.f32 %v7365, 0.0
      %v7398 = vmax.f32 %v7366, 0.0
      %v7399 = vmax.f32 %v7367, 0.0
      %v7400 = vmax.f32 %v7368, 0.0
      %v7401 = vmax.f32 %v7369, 0.0
      %v7402 = vmax.f32 %v7370, 0.0
      %v7403 = vmax.f32 %v7371, 0.0
      %v7404 = vmax.f32 %v7372, 0.0
      %v7405 = vmax.f32 %v7373, 0.0
      %v7406 = vmax.f32 %v7374, 0.0
      %v7407 = vmax.f32 %v7375, 0.0
      %v7408 = vmax.f32 %v7376, 0.0
      %v7409 = vmax.f32 %v7377, 0.0
      %v7410 = vmax.f32 %v7378, 0.0
      %v7411 = vmax.f32 %v7379, 0.0
      %v7412 = vmax.f32 %v7380, 0.0
      %v7413 = vmax.f32 %v7381, 0.0
      %v7414 = vmax.f32 %v7382, 0.0
      %7415 = vst.msk [vmem:[#allocation3] sm:$0xff] %vm6259, %v7383
      %7416 = vst.msk [vmem:[#allocation3 + $0x8] sm:$0xff] %vm6259, %v7384
      %7417 = vst.msk [vmem:[#allocation3 + $0x10] sm:$0xff] %vm6259, %v7385
      %7418 = vst.msk [vmem:[#allocation3 + $0x18] sm:$0xff] %vm6259, %v7386
      %7419 = vst.msk [vmem:[#allocation3 + $0x20] sm:$0xff] %vm6259, %v7387
      %7420 = vst.msk [vmem:[#allocation3 + $0x28] sm:$0xff] %vm6259, %v7388
      %7421 = vst.msk [vmem:[#allocation3 + $0x30] sm:$0xff] %vm6259, %v7389
      %7422 = vst.msk [vmem:[#allocation3 + $0x38] sm:$0xff] %vm6259, %v7390
      %7423 = vst.msk [vmem:[#allocation3 + $0x40] sm:$0xff] %vm6259, %v7391
      %7424 = vst.msk [vmem:[#allocation3 + $0x48] sm:$0xff] %vm6259, %v7392
      %7425 = vst.msk [vmem:[#allocation3 + $0x50] sm:$0xff] %vm6259, %v7393
      %7426 = vst.msk [vmem:[#allocation3 + $0x58] sm:$0xff] %vm6259, %v7394
      %7427 = vst.msk [vmem:[#allocation3 + $0x60] sm:$0xff] %vm6259, %v7395
      %7428 = vst.msk [vmem:[#allocation3 + $0x68] sm:$0xff] %vm6259, %v7396
      %7429 = vst.msk [vmem:[#allocation3 + $0x70] sm:$0xff] %vm6259, %v7397
      %7430 = vst.msk [vmem:[#allocation3 + $0x78] sm:$0xff] %vm6259, %v7398
      %7431 = vst.msk [vmem:[#allocation3 + $0x80] sm:$0xff] %vm6259, %v7399
      %7432 = vst.msk [vmem:[#allocation3 + $0x88] sm:$0xff] %vm6259, %v7400
      %7433 = vst.msk [vmem:[#allocation3 + $0x90] sm:$0xff] %vm6259, %v7401
      %7434 = vst.msk [vmem:[#allocation3 + $0x98] sm:$0xff] %vm6259, %v7402
      %7435 = vst.msk [vmem:[#allocation3 + $0xa0] sm:$0xff] %vm6259, %v7403
      %7436 = vst.msk [vmem:[#allocation3 + $0xa8] sm:$0xff] %vm6259, %v7404
      %7437 = vst.msk [vmem:[#allocation3 + $0xb0] sm:$0xff] %vm6259, %v7405
      %7438 = vst.msk [vmem:[#allocation3 + $0xb8] sm:$0xff] %vm6259, %v7406
      %7439 = vst.msk [vmem:[#allocation3 + $0xc0] sm:$0xff] %vm6259, %v7407
      %7440 = vst.msk [vmem:[#allocation3 + $0xc8] sm:$0xff] %vm6259, %v7408
      %7441 = vst.msk [vmem:[#allocation3 + $0xd0] sm:$0xff] %vm6259, %v7409
      %7442 = vst.msk [vmem:[#allocation3 + $0xd8] sm:$0xff] %vm6259, %v7410
      %7443 = vst.msk [vmem:[#allocation3 + $0xe0] sm:$0xff] %vm6259, %v7411
      %7444 = vst.msk [vmem:[#allocation3 + $0xe8] sm:$0xff] %vm6259, %v7412
      %7445 = vst.msk [vmem:[#allocation3 + $0xf0] sm:$0xff] %vm6259, %v7413
      %7446 = vst.msk [vmem:[#allocation3 + $0xf8] sm:$0xff] %vm6259, %v7414
      %v7447 = vld [vmem:[#allocation3] sm:$0xff]
      %v7448 = vld [vmem:[#allocation3 + $0x8] sm:$0xff]
      %v7449 = vld [vmem:[#allocation3 + $0x10] sm:$0xff]
      %v7450 = vld [vmem:[#allocation3 + $0x18] sm:$0xff]
      %v7451 = vld [vmem:[#allocation3 + $0x20] sm:$0xff]
      %v7452 = vld [vmem:[#allocation3 + $0x28] sm:$0xff]
      %v7453 = vld [vmem:[#allocation3 + $0x30] sm:$0xff]
      %v7454 = vld [vmem:[#allocation3 + $0x38] sm:$0xff]
      %v7455 = vld [vmem:[#allocation3 + $0x40] sm:$0xff]
      %v7456 = vld [vmem:[#allocation3 + $0x48] sm:$0xff]
      %v7457 = vld [vmem:[#allocation3 + $0x50] sm:$0xff]
      %v7458 = vld [vmem:[#allocation3 + $0x58] sm:$0xff]
      %v7459 = vld [vmem:[#allocation3 + $0x60] sm:$0xff]
      %v7460 = vld [vmem:[#allocation3 + $0x68] sm:$0xff]
      %v7461 = vld [vmem:[#allocation3 + $0x70] sm:$0xff]
      %v7462 = vld [vmem:[#allocation3 + $0x78] sm:$0xff]
      %v7463 = vld [vmem:[#allocation3 + $0x80] sm:$0xff]
      %v7464 = vld [vmem:[#allocation3 + $0x88] sm:$0xff]
      %v7465 = vld [vmem:[#allocation3 + $0x90] sm:$0xff]
      %v7466 = vld [vmem:[#allocation3 + $0x98] sm:$0xff]
      %v7467 = vld [vmem:[#allocation3 + $0xa0] sm:$0xff]
      %v7468 = vld [vmem:[#allocation3 + $0xa8] sm:$0xff]
      %v7469 = vld [vmem:[#allocation3 + $0xb0] sm:$0xff]
      %v7470 = vld [vmem:[#allocation3 + $0xb8] sm:$0xff]
      %v7471 = vld [vmem:[#allocation3 + $0xc0] sm:$0xff]
      %v7472 = vld [vmem:[#allocation3 + $0xc8] sm:$0xff]
      %v7473 = vld [vmem:[#allocation3 + $0xd0] sm:$0xff]
      %v7474 = vld [vmem:[#allocation3 + $0xd8] sm:$0xff]
      %v7475 = vld [vmem:[#allocation3 + $0xe0] sm:$0xff]
      %v7476 = vld [vmem:[#allocation3 + $0xe8] sm:$0xff]
      %v7477 = vld [vmem:[#allocation3 + $0xf0] sm:$0xff]
      %v7478 = vld [vmem:[#allocation3 + $0xf8] sm:$0xff]
      %v7479 = vpack.c.bf16 %v7448, %v7447
      %v7480 = vpack.c.bf16 %v7450, %v7449
      %v7481 = vpack.c.bf16 %v7452, %v7451
      %v7482 = vpack.c.bf16 %v7454, %v7453
      %v7483 = vpack.c.bf16 %v7456, %v7455
      %v7484 = vpack.c.bf16 %v7458, %v7457
      %v7485 = vpack.c.bf16 %v7460, %v7459
      %v7486 = vpack.c.bf16 %v7462, %v7461
      %v7487 = vpack.c.bf16 %v7464, %v7463
      %v7488 = vpack.c.bf16 %v7466, %v7465
      %v7489 = vpack.c.bf16 %v7468, %v7467
      %v7490 = vpack.c.bf16 %v7470, %v7469
      %v7491 = vpack.c.bf16 %v7472, %v7471
      %v7492 = vpack.c.bf16 %v7474, %v7473
      %v7493 = vpack.c.bf16 %v7476, %v7475
      %v7494 = vpack.c.bf16 %v7478, %v7477
      %v7495 = vld [vmem:[%s5] sm:$0xf]
      %v7496 = vld [vmem:[%s5 + $0x4] sm:$0xf]
      %v7497 = vld [vmem:[#allocation3 + $0x1] sm:$0xff]
      %v7498 = vld [vmem:[#allocation3 + $0x9] sm:$0xff]
      %v7499 = vld [vmem:[#allocation3 + $0x11] sm:$0xff]
      %v7500 = vld [vmem:[#allocation3 + $0x19] sm:$0xff]
      %v7501 = vld [vmem:[#allocation3 + $0x21] sm:$0xff]
      %v7502 = vld [vmem:[#allocation3 + $0x29] sm:$0xff]
      %v7503 = vld [vmem:[#allocation3 + $0x31] sm:$0xff]
      %v7504 = vld [vmem:[#allocation3 + $0x39] sm:$0xff]
      %v7505 = vld [vmem:[#allocation3 + $0x41] sm:$0xff]
      %v7506 = vld [vmem:[#allocation3 + $0x49] sm:$0xff]
      %v7507 = vld [vmem:[#allocation3 + $0x51] sm:$0xff]
      %v7508 = vld [vmem:[#allocation3 + $0x59] sm:$0xff]
      %v7509 = vld [vmem:[#allocation3 + $0x61] sm:$0xff]
      %v7510 = vld [vmem:[#allocation3 + $0x69] sm:$0xff]
      %v7511 = vld [vmem:[#allocation3 + $0x71] sm:$0xff]
      %v7512 = vld [vmem:[#allocation3 + $0x79] sm:$0xff]
      %v7513 = vld [vmem:[#allocation3 + $0x81] sm:$0xff]
      %v7514 = vld [vmem:[#allocation3 + $0x89] sm:$0xff]
      %v7515 = vld [vmem:[#allocation3 + $0x91] sm:$0xff]
      %v7516 = vld [vmem:[#allocation3 + $0x99] sm:$0xff]
      %v7517 = vld [vmem:[#allocation3 + $0xa1] sm:$0xff]
      %v7518 = vld [vmem:[#allocation3 + $0xa9] sm:$0xff]
      %v7519 = vld [vmem:[#allocation3 + $0xb1] sm:$0xff]
      %v7520 = vld [vmem:[#allocation3 + $0xb9] sm:$0xff]
      %v7521 = vld [vmem:[#allocation3 + $0xc1] sm:$0xff]
      %v7522 = vld [vmem:[#allocation3 + $0xc9] sm:$0xff]
      %v7523 = vld [vmem:[#allocation3 + $0xd1] sm:$0xff]
      %v7524 = vld [vmem:[#allocation3 + $0xd9] sm:$0xff]
      %v7525 = vld [vmem:[#allocation3 + $0xe1] sm:$0xff]
      %v7526 = vld [vmem:[#allocation3 + $0xe9] sm:$0xff]
      %v7527 = vld [vmem:[#allocation3 + $0xf1] sm:$0xff]
      %v7528 = vld [vmem:[#allocation3 + $0xf9] sm:$0xff]
      %v7529 = vpack.c.bf16 %v7498, %v7497
      %v7530 = vpack.c.bf16 %v7500, %v7499
      %v7531 = vpack.c.bf16 %v7502, %v7501
      %v7532 = vpack.c.bf16 %v7504, %v7503
      %v7533 = vpack.c.bf16 %v7506, %v7505
      %v7534 = vpack.c.bf16 %v7508, %v7507
      %v7535 = vpack.c.bf16 %v7510, %v7509
      %v7536 = vpack.c.bf16 %v7512, %v7511
      %v7537 = vpack.c.bf16 %v7514, %v7513
      %v7538 = vpack.c.bf16 %v7516, %v7515
      %v7539 = vpack.c.bf16 %v7518, %v7517
      %v7540 = vpack.c.bf16 %v7520, %v7519
      %v7541 = vpack.c.bf16 %v7522, %v7521
      %v7542 = vpack.c.bf16 %v7524, %v7523
      %v7543 = vpack.c.bf16 %v7526, %v7525
      %v7544 = vpack.c.bf16 %v7528, %v7527
      %v7545 = vld [vmem:[%s6613] sm:$0xf]
      %v7546 = vld [vmem:[%s6613 + $0x4] sm:$0xf]
      %v7549 = vunpack.c.l.b16 %v7545
      %v7550 = vunpack.c.l.b16 %v7546
      %v7551 = vpack.c.b16 %v7550, %v7549
      %v7554 = vsel %vm6259, %v7529, 0
      %v7557 = vsel %vm6259, %v7530, 0
      %v7560 = vsel %vm6259, %v7531, 0
      %v7563 = vsel %vm6259, %v7532, 0
      %v7566 = vsel %vm6259, %v7533, 0
      %v7569 = vsel %vm6259, %v7534, 0
      %v7572 = vsel %vm6259, %v7535, 0
      %v7575 = vsel %vm6259, %v7536, 0
      %v7578 = vsel %vm6259, %v7537, 0
      %v7581 = vsel %vm6259, %v7538, 0
      %v7584 = vsel %vm6259, %v7539, 0
      %v7587 = vsel %vm6259, %v7540, 0
      %v7590 = vsel %vm6259, %v7541, 0
      %v7593 = vsel %vm6259, %v7542, 0
      %v7596 = vsel %vm6259, %v7543, 0
      %v7599 = vsel %vm6259, %v7544, 0
      %7601 = vmatprep.subr.bf16.mxu0 0
      %7602 = vmatpush1.bf16.msra.mxu0 %v7551
      %7603 = vmatprep.subr.bf16.mxu0 0
      %7604 = vmatpush1.bf16.msra.mxu0 0
      %7605 = vmatprep.subr.bf16.mxu0 0
      %7606 = vmatpush1.bf16.msra.mxu0 0
      %7607 = vmatprep.subr.bf16.mxu0 0
      %7608 = vmatpush1.bf16.msra.mxu0 0
      %7609 = vmatprep.subr.bf16.mxu0 0
      %7610 = vmatpush1.bf16.msra.mxu0 0
      %7611 = vmatprep.subr.bf16.mxu0 0
      %7612 = vmatpush1.bf16.msra.mxu0 0
      %7613 = vmatprep.subr.bf16.mxu0 0
      %7614 = vmatpush1.bf16.msra.mxu0 0
      %7615 = vmatprep.subr.bf16.mxu0 0
      %7616 = vmatpush1.bf16.msra.mxu0 0
      %7617 = vmatprep.subr.bf16.mxu0 0
      %7618 = vmatpush1.bf16.msra.mxu0 0
      %7619 = vmatprep.subr.bf16.mxu0 0
      %7620 = vmatpush1.bf16.msra.mxu0 0
      %7621 = vmatprep.subr.bf16.mxu0 0
      %7622 = vmatpush1.bf16.msra.mxu0 0
      %7623 = vmatprep.subr.bf16.mxu0 0
      %7624 = vmatpush1.bf16.msra.mxu0 0
      %7625 = vmatprep.subr.bf16.mxu0 0
      %7626 = vmatpush1.bf16.msra.mxu0 0
      %7627 = vmatprep.subr.bf16.mxu0 0
      %7628 = vmatpush1.bf16.msra.mxu0 0
      %7629 = vmatprep.subr.bf16.mxu0 0
      %7630 = vmatpush1.bf16.msra.mxu0 0
      %7631 = vmatprep.subr.bf16.mxu0 0
      %7632 = vmatpush1.bf16.msra.mxu0 0
      %7633 = vmatprep.mubr.bf16.mxu0 0
      %7634 = vmatmul.mubr.bf16.gmra.mrb[0].mxu0 %v7554
      %v7635 = vpop.f32.mrb[0].mxu0
      %v7636 = vadd.f32 0.0, %v7635
      %v7637 = vpop.f32.mrb[0].mxu0
      %v7638 = vpop.f32.mrb[0].mxu0
      %v7639 = vadd.f32 0.0, %v7638
      %v7640 = vpop.f32.mrb[0].mxu0
      %7641 = vmatprep.mubr.bf16.mxu0 0
      %7642 = vmatmul.mubr.bf16.gmra.mrb[0].mxu0 %v7557
      %v7643 = vpop.f32.mrb[0].mxu0
      %v7644 = vadd.f32 0.0, %v7643
      %v7645 = vpop.f32.mrb[0].mxu0
      %v7646 = vpop.f32.mrb[0].mxu0
      %v7647 = vadd.f32 0.0, %v7646
      %v7648 = vpop.f32.mrb[0].mxu0
      %7649 = vmatprep.mubr.bf16.mxu0 0
      %7650 = vmatmul.mubr.bf16.gmra.mrb[0].mxu0 %v7560
      %v7651 = vpop.f32.mrb[0].mxu0
      %v7652 = vadd.f32 0.0, %v7651
      %v7653 = vpop.f32.mrb[0].mxu0
      %v7654 = vpop.f32.mrb[0].mxu0
      %v7655 = vadd.f32 0.0, %v7654
      %v7656 = vpop.f32.mrb[0].mxu0
      %7657 = vmatprep.mubr.bf16.mxu0 0
      %7658 = vmatmul.mubr.bf16.gmra.mrb[0].mxu0 %v7563
      %v7659 = vpop.f32.mrb[0].mxu0
      %v7660 = vadd.f32 0.0, %v7659
      %v7661 = vpop.f32.mrb[0].mxu0
      %v7662 = vpop.f32.mrb[0].mxu0
      %v7663 = vadd.f32 0.0, %v7662
      %v7664 = vpop.f32.mrb[0].mxu0
      %7665 = vmatprep.mubr.bf16.mxu0 0
      %7666 = vmatmul.mubr.bf16.gmra.mrb[0].mxu0 %v7566
      %v7667 = vpop.f32.mrb[0].mxu0
      %v7668 = vadd.f32 0.0, %v7667
      %v7669 = vpop.f32.mrb[0].mxu0
      %v7670 = vpop.f32.mrb[0].mxu0
      %v7671 = vadd.f32 0.0, %v7670
      %v7672 = vpop.f32.mrb[0].mxu0
      %7673 = vmatprep.mubr.bf16.mxu0 0
      %7674 = vmatmul.mubr.bf16.gmra.mrb[0].mxu0 %v7569
      %v7675 = vpop.f32.mrb[0].mxu0
      %v7676 = vadd.f32 0.0, %v7675
      %v7677 = vpop.f32.mrb[0].mxu0
      %v7678 = vpop.f32.mrb[0].mxu0
      %v7679 = vadd.f32 0.0, %v7678
      %v7680 = vpop.f32.mrb[0].mxu0
      %7681 = vmatprep.mubr.bf16.mxu0 0
      %7682 = vmatmul.mubr.bf16.gmra.mrb[0].mxu0 %v7572
      %v7683 = vpop.f32.mrb[0].mxu0
      %v7684 = vadd.f32 0.0, %v7683
      %v7685 = vpop.f32.mrb[0].mxu0
      %v7686 = vpop.f32.mrb[0].mxu0
      %v7687 = vadd.f32 0.0, %v7686
      %v7688 = vpop.f32.mrb[0].mxu0
      %7689 = vmatprep.mubr.bf16.mxu0 0
      %7690 = vmatmul.mubr.bf16.gmra.mrb[0].mxu0 %v7575
      %v7691 = vpop.f32.mrb[0].mxu0
      %v7692 = vadd.f32 0.0, %v7691
      %v7693 = vpop.f32.mrb[0].mxu0
      %v7694 = vpop.f32.mrb[0].mxu0
      %v7695 = vadd.f32 0.0, %v7694
      %v7696 = vpop.f32.mrb[0].mxu0
      %7697 = vmatprep.mubr.bf16.mxu0 0
      %7698 = vmatmul.mubr.bf16.gmra.mrb[0].mxu0 %v7578
      %v7699 = vpop.f32.mrb[0].mxu0
      %v7700 = vadd.f32 0.0, %v7699
      %v7701 = vpop.f32.mrb[0].mxu0
      %v7702 = vpop.f32.mrb[0].mxu0
      %v7703 = vadd.f32 0.0, %v7702
      %v7704 = vpop.f32.mrb[0].mxu0
      %7705 = vmatprep.mubr.bf16.mxu0 0
      %7706 = vmatmul.mubr.bf16.gmra.mrb[0].mxu0 %v7581
      %v7707 = vpop.f32.mrb[0].mxu0
      %v7708 = vadd.f32 0.0, %v7707
      %v7709 = vpop.f32.mrb[0].mxu0
      %v7710 = vpop.f32.mrb[0].mxu0
      %v7711 = vadd.f32 0.0, %v7710
      %v7712 = vpop.f32.mrb[0].mxu0
      %7713 = vmatprep.mubr.bf16.mxu0 0
      %7714 = vmatmul.mubr.bf16.gmra.mrb[0].mxu0 %v7584
      %v7715 = vpop.f32.mrb[0].mxu0
      %v7716 = vadd.f32 0.0, %v7715
      %v7717 = vpop.f32.mrb[0].mxu0
      %v7718 = vpop.f32.mrb[0].mxu0
      %v7719 = vadd.f32 0.0, %v7718
      %v7720 = vpop.f32.mrb[0].mxu0
      %7721 = vmatprep.mubr.bf16.mxu0 0
      %7722 = vmatmul.mubr.bf16.gmra.mrb[0].mxu0 %v7587
      %v7723 = vpop.f32.mrb[0].mxu0
      %v7724 = vadd.f32 0.0, %v7723
      %v7725 = vpop.f32.mrb[0].mxu0
      %v7726 = vpop.f32.mrb[0].mxu0
      %v7727 = vadd.f32 0.0, %v7726
      %v7728 = vpop.f32.mrb[0].mxu0
      %7729 = vmatprep.mubr.bf16.mxu0 0
      %7730 = vmatmul.mubr.bf16.gmra.mrb[0].mxu0 %v7590
      %v7731 = vpop.f32.mrb[0].mxu0
      %v7732 = vadd.f32 0.0, %v7731
      %v7733 = vpop.f32.mrb[0].mxu0
      %v7734 = vpop.f32.mrb[0].mxu0
      %v7735 = vadd.f32 0.0, %v7734
      %v7736 = vpop.f32.mrb[0].mxu0
      %7737 = vmatprep.mubr.bf16.mxu0 0
      %7738 = vmatmul.mubr.bf16.gmra.mrb[0].mxu0 %v7593
      %v7739 = vpop.f32.mrb[0].mxu0
      %v7740 = vadd.f32 0.0, %v7739
      %v7741 = vpop.f32.mrb[0].mxu0
      %v7742 = vpop.f32.mrb[0].mxu0
      %v7743 = vadd.f32 0.0, %v7742
      %v7744 = vpop.f32.mrb[0].mxu0
      %7745 = vmatprep.mubr.bf16.mxu0 0
      %7746 = vmatmul.mubr.bf16.gmra.mrb[0].mxu0 %v7596
      %v7747 = vpop.f32.mrb[0].mxu0
      %v7748 = vadd.f32 0.0, %v7747
      %v7749 = vpop.f32.mrb[0].mxu0
      %v7750 = vpop.f32.mrb[0].mxu0
      %v7751 = vadd.f32 0.0, %v7750
      %v7752 = vpop.f32.mrb[0].mxu0
      %7753 = vmatprep.mubr.bf16.mxu0 0
      %7754 = vmatmul.mubr.bf16.gmra.mrb[0].mxu0 %v7599
      %v7755 = vpop.f32.mrb[0].mxu0
      %v7756 = vadd.f32 0.0, %v7755
      %v7757 = vpop.f32.mrb[0].mxu0
      %v7758 = vpop.f32.mrb[0].mxu0
      %v7759 = vadd.f32 0.0, %v7758
      %v7760 = vpop.f32.mrb[0].mxu0
      %7761 = vdwg.mxu0
      %v7764 = vunpack.c.l.b16 %v7495
      %v7765 = vunpack.c.l.b16 %v7496
      %v7766 = vpack.c.b16 %v7765, %v7764
      %v7769 = vsel %vm6259, %v7479, 0
      %v7772 = vsel %vm6259, %v7480, 0
      %v7775 = vsel %vm6259, %v7481, 0
      %v7778 = vsel %vm6259, %v7482, 0
      %v7781 = vsel %vm6259, %v7483, 0
      %v7784 = vsel %vm6259, %v7484, 0
      %v7787 = vsel %vm6259, %v7485, 0
      %v7790 = vsel %vm6259, %v7486, 0
      %v7793 = vsel %vm6259, %v7487, 0
      %v7796 = vsel %vm6259, %v7488, 0
      %v7799 = vsel %vm6259, %v7489, 0
      %v7802 = vsel %vm6259, %v7490, 0
      %v7805 = vsel %vm6259, %v7491, 0
      %v7808 = vsel %vm6259, %v7492, 0
      %v7811 = vsel %vm6259, %v7493, 0
      %v7814 = vsel %vm6259, %v7494, 0
      %7816 = vmatprep.subr.bf16.mxu0 0
      %7817 = vmatpush1.bf16.msra.mxu0 %v7766
      %7818 = vmatprep.subr.bf16.mxu0 0
      %7819 = vmatpush1.bf16.msra.mxu0 0
      %7820 = vmatprep.subr.bf16.mxu0 0
      %7821 = vmatpush1.bf16.msra.mxu0 0
      %7822 = vmatprep.subr.bf16.mxu0 0
      %7823 = vmatpush1.bf16.msra.mxu0 0
      %7824 = vmatprep.subr.bf16.mxu0 0
      %7825 = vmatpush1.bf16.msra.mxu0 0
      %7826 = vmatprep.subr.bf16.mxu0 0
      %7827 = vmatpush1.bf16.msra.mxu0 0
      %7828 = vmatprep.subr.bf16.mxu0 0
      %7829 = vmatpush1.bf16.msra.mxu0 0
      %7830 = vmatprep.subr.bf16.mxu0 0
      %7831 = vmatpush1.bf16.msra.mxu0 0
      %7832 = vmatprep.subr.bf16.mxu0 0
      %7833 = vmatpush1.bf16.msra.mxu0 0
      %7834 = vmatprep.subr.bf16.mxu0 0
      %7835 = vmatpush1.bf16.msra.mxu0 0
      %7836 = vmatprep.subr.bf16.mxu0 0
      %7837 = vmatpush1.bf16.msra.mxu0 0
      %7838 = vmatprep.subr.bf16.mxu0 0
      %7839 = vmatpush1.bf16.msra.mxu0 0
      %7840 = vmatprep.subr.bf16.mxu0 0
      %7841 = vmatpush1.bf16.msra.mxu0 0
      %7842 = vmatprep.subr.bf16.mxu0 0
      %7843 = vmatpush1.bf16.msra.mxu0 0
      %7844 = vmatprep.subr.bf16.mxu0 0
      %7845 = vmatpush1.bf16.msra.mxu0 0
      %7846 = vmatprep.subr.bf16.mxu0 0
      %7847 = vmatpush1.bf16.msra.mxu0 0
      %7848 = vmatprep.mubr.bf16.mxu0 0
      %7849 = vmatmul.mubr.bf16.gmra.mrb[0].mxu0 %v7769
      %v7850 = vpop.f32.mrb[0].mxu0
      %v7851 = vadd.f32 %v7636, %v7850
      %v7852 = vpop.f32.mrb[0].mxu0
      %v7853 = vpop.f32.mrb[0].mxu0
      %v7854 = vadd.f32 %v7639, %v7853
      %v7855 = vpop.f32.mrb[0].mxu0
      %7856 = vmatprep.mubr.bf16.mxu0 0
      %7857 = vmatmul.mubr.bf16.gmra.mrb[0].mxu0 %v7772
      %v7858 = vpop.f32.mrb[0].mxu0
      %v7859 = vadd.f32 %v7644, %v7858
      %v7860 = vpop.f32.mrb[0].mxu0
      %v7861 = vpop.f32.mrb[0].mxu0
      %v7862 = vadd.f32 %v7647, %v7861
      %v7863 = vpop.f32.mrb[0].mxu0
      %7864 = vmatprep.mubr.bf16.mxu0 0
      %7865 = vmatmul.mubr.bf16.gmra.mrb[0].mxu0 %v7775
      %v7866 = vpop.f32.mrb[0].mxu0
      %v7867 = vadd.f32 %v7652, %v7866
      %v7868 = vpop.f32.mrb[0].mxu0
      %v7869 = vpop.f32.mrb[0].mxu0
      %v7870 = vadd.f32 %v7655, %v7869
      %v7871 = vpop.f32.mrb[0].mxu0
      %7872 = vmatprep.mubr.bf16.mxu0 0
      %7873 = vmatmul.mubr.bf16.gmra.mrb[0].mxu0 %v7778
      %v7874 = vpop.f32.mrb[0].mxu0
      %v7875 = vadd.f32 %v7660, %v7874
      %v7876 = vpop.f32.mrb[0].mxu0
      %v7877 = vpop.f32.mrb[0].mxu0
      %v7878 = vadd.f32 %v7663, %v7877
      %v7879 = vpop.f32.mrb[0].mxu0
      %7880 = vmatprep.mubr.bf16.mxu0 0
      %7881 = vmatmul.mubr.bf16.gmra.mrb[0].mxu0 %v7781
      %v7882 = vpop.f32.mrb[0].mxu0
      %v7883 = vadd.f32 %v7668, %v7882
      %v7884 = vpop.f32.mrb[0].mxu0
      %v7885 = vpop.f32.mrb[0].mxu0
      %v7886 = vadd.f32 %v7671, %v7885
      %v7887 = vpop.f32.mrb[0].mxu0
      %7888 = vmatprep.mubr.bf16.mxu0 0
      %7889 = vmatmul.mubr.bf16.gmra.mrb[0].mxu0 %v7784
      %v7890 = vpop.f32.mrb[0].mxu0
      %v7891 = vadd.f32 %v7676, %v7890
      %v7892 = vpop.f32.mrb[0].mxu0
      %v7893 = vpop.f32.mrb[0].mxu0
      %v7894 = vadd.f32 %v7679, %v7893
      %v7895 = vpop.f32.mrb[0].mxu0
      %7896 = vmatprep.mubr.bf16.mxu0 0
      %7897 = vmatmul.mubr.bf16.gmra.mrb[0].mxu0 %v7787
      %v7898 = vpop.f32.mrb[0].mxu0
      %v7899 = vadd.f32 %v7684, %v7898
      %v7900 = vpop.f32.mrb[0].mxu0
      %v7901 = vpop.f32.mrb[0].mxu0
      %v7902 = vadd.f32 %v7687, %v7901
      %v7903 = vpop.f32.mrb[0].mxu0
      %7904 = vmatprep.mubr.bf16.mxu0 0
      %7905 = vmatmul.mubr.bf16.gmra.mrb[0].mxu0 %v7790
      %v7906 = vpop.f32.mrb[0].mxu0
      %v7907 = vadd.f32 %v7692, %v7906
      %v7908 = vpop.f32.mrb[0].mxu0
      %v7909 = vpop.f32.mrb[0].mxu0
      %v7910 = vadd.f32 %v7695, %v7909
      %v7911 = vpop.f32.mrb[0].mxu0
      %7912 = vmatprep.mubr.bf16.mxu0 0
      %7913 = vmatmul.mubr.bf16.gmra.mrb[0].mxu0 %v7793
      %v7914 = vpop.f32.mrb[0].mxu0
      %v7915 = vadd.f32 %v7700, %v7914
      %v7916 = vpop.f32.mrb[0].mxu0
      %v7917 = vpop.f32.mrb[0].mxu0
      %v7918 = vadd.f32 %v7703, %v7917
      %v7919 = vpop.f32.mrb[0].mxu0
      %7920 = vmatprep.mubr.bf16.mxu0 0
      %7921 = vmatmul.mubr.bf16.gmra.mrb[0].mxu0 %v7796
      %v7922 = vpop.f32.mrb[0].mxu0
      %v7923 = vadd.f32 %v7708, %v7922
      %v7924 = vpop.f32.mrb[0].mxu0
      %v7925 = vpop.f32.mrb[0].mxu0
      %v7926 = vadd.f32 %v7711, %v7925
      %v7927 = vpop.f32.mrb[0].mxu0
      %7928 = vmatprep.mubr.bf16.mxu0 0
      %7929 = vmatmul.mubr.bf16.gmra.mrb[0].mxu0 %v7799
      %v7930 = vpop.f32.mrb[0].mxu0
      %v7931 = vadd.f32 %v7716, %v7930
      %v7932 = vpop.f32.mrb[0].mxu0
      %v7933 = vpop.f32.mrb[0].mxu0
      %v7934 = vadd.f32 %v7719, %v7933
      %v7935 = vpop.f32.mrb[0].mxu0
      %7936 = vmatprep.mubr.bf16.mxu0 0
      %7937 = vmatmul.mubr.bf16.gmra.mrb[0].mxu0 %v7802
      %v7938 = vpop.f32.mrb[0].mxu0
      %v7939 = vadd.f32 %v7724, %v7938
      %v7940 = vpop.f32.mrb[0].mxu0
      %v7941 = vpop.f32.mrb[0].mxu0
      %v7942 = vadd.f32 %v7727, %v7941
      %v7943 = vpop.f32.mrb[0].mxu0
      %7944 = vmatprep.mubr.bf16.mxu0 0
      %7945 = vmatmul.mubr.bf16.gmra.mrb[0].mxu0 %v7805
      %v7946 = vpop.f32.mrb[0].mxu0
      %v7947 = vadd.f32 %v7732, %v7946
      %v7948 = vpop.f32.mrb[0].mxu0
      %v7949 = vpop.f32.mrb[0].mxu0
      %v7950 = vadd.f32 %v7735, %v7949
      %v7951 = vpop.f32.mrb[0].mxu0
      %7952 = vmatprep.mubr.bf16.mxu0 0
      %7953 = vmatmul.mubr.bf16.gmra.mrb[0].mxu0 %v7808
      %v7954 = vpop.f32.mrb[0].mxu0
      %v7955 = vadd.f32 %v7740, %v7954
      %v7956 = vpop.f32.mrb[0].mxu0
      %v7957 = vpop.f32.mrb[0].mxu0
      %v7958 = vadd.f32 %v7743, %v7957
      %v7959 = vpop.f32.mrb[0].mxu0
      %7960 = vmatprep.mubr.bf16.mxu0 0
      %7961 = vmatmul.mubr.bf16.gmra.mrb[0].mxu0 %v7811
      %v7962 = vpop.f32.mrb[0].mxu0
      %v7963 = vadd.f32 %v7748, %v7962
      %v7964 = vpop.f32.mrb[0].mxu0
      %v7965 = vpop.f32.mrb[0].mxu0
      %v7966 = vadd.f32 %v7751, %v7965
      %v7967 = vpop.f32.mrb[0].mxu0
      %7968 = vmatprep.mubr.bf16.mxu0 0
      %7969 = vmatmul.mubr.bf16.gmra.mrb[0].mxu0 %v7814
      %v7970 = vpop.f32.mrb[0].mxu0
      %v7971 = vadd.f32 %v7756, %v7970
      %v7972 = vpop.f32.mrb[0].mxu0
      %v7973 = vpop.f32.mrb[0].mxu0
      %v7974 = vadd.f32 %v7759, %v7973
      %v7975 = vpop.f32.mrb[0].mxu0
      %7976 = vdwg.mxu0
      %v7977 = vld [vmem:[#allocation3 + $0x2] sm:$0xff]
      %v7978 = vld [vmem:[#allocation3 + $0xa] sm:$0xff]
      %v7979 = vld [vmem:[#allocation3 + $0x12] sm:$0xff]
      %v7980 = vld [vmem:[#allocation3 + $0x1a] sm:$0xff]
      %v7981 = vld [vmem:[#allocation3 + $0x22] sm:$0xff]
      %v7982 = vld [vmem:[#allocation3 + $0x2a] sm:$0xff]
      %v7983 = vld [vmem:[#allocation3 + $0x32] sm:$0xff]
      %v7984 = vld [vmem:[#allocation3 + $0x3a] sm:$0xff]
      %v7985 = vld [vmem:[#allocation3 + $0x42] sm:$0xff]
      %v7986 = vld [vmem:[#allocation3 + $0x4a] sm:$0xff]
      %v7987 = vld [vmem:[#allocation3 + $0x52] sm:$0xff]
      %v7988 = vld [vmem:[#allocation3 + $0x5a] sm:$0xff]
      %v7989 = vld [vmem:[#allocation3 + $0x62] sm:$0xff]
      %v7990 = vld [vmem:[#allocation3 + $0x6a] sm:$0xff]
      %v7991 = vld [vmem:[#allocation3 + $0x72] sm:$0xff]
      %v7992 = vld [vmem:[#allocation3 + $0x7a] sm:$0xff]
      %v7993 = vld [vmem:[#allocation3 + $0x82] sm:$0xff]
      %v7994 = vld [vmem:[#allocation3 + $0x8a] sm:$0xff]
      %v7995 = vld [vmem:[#allocation3 + $0x92] sm:$0xff]
      %v7996 = vld [vmem:[#allocation3 + $0x9a] sm:$0xff]
      %v7997 = vld [vmem:[#allocation3 + $0xa2] sm:$0xff]
      %v7998 = vld [vmem:[#allocation3 + $0xaa] sm:$0xff]
      %v7999 = vld [vmem:[#allocation3 + $0xb2] sm:$0xff]
      %v8000 = vld [vmem:[#allocation3 + $0xba] sm:$0xff]
      %v8001 = vld [vmem:[#allocation3 + $0xc2] sm:$0xff]
      %v8002 = vld [vmem:[#allocation3 + $0xca] sm:$0xff]
      %v8003 = vld [vmem:[#allocation3 + $0xd2] sm:$0xff]
      %v8004 = vld [vmem:[#allocation3 + $0xda] sm:$0xff]
      %v8005 = vld [vmem:[#allocation3 + $0xe2] sm:$0xff]
      %v8006 = vld [vmem:[#allocation3 + $0xea] sm:$0xff]
      %v8007 = vld [vmem:[#allocation3 + $0xf2] sm:$0xff]
      %v8008 = vld [vmem:[#allocation3 + $0xfa] sm:$0xff]
      %v8009 = vpack.c.bf16 %v7978, %v7977
      %v8010 = vpack.c.bf16 %v7980, %v7979
      %v8011 = vpack.c.bf16 %v7982, %v7981
      %v8012 = vpack.c.bf16 %v7984, %v7983
      %v8013 = vpack.c.bf16 %v7986, %v7985
      %v8014 = vpack.c.bf16 %v7988, %v7987
      %v8015 = vpack.c.bf16 %v7990, %v7989
      %v8016 = vpack.c.bf16 %v7992, %v7991
      %v8017 = vpack.c.bf16 %v7994, %v7993
      %v8018 = vpack.c.bf16 %v7996, %v7995
      %v8019 = vpack.c.bf16 %v7998, %v7997
      %v8020 = vpack.c.bf16 %v8000, %v7999
      %v8021 = vpack.c.bf16 %v8002, %v8001
      %v8022 = vpack.c.bf16 %v8004, %v8003
      %v8023 = vpack.c.bf16 %v8006, %v8005
      %v8024 = vpack.c.bf16 %v8008, %v8007
      %v8025 = vld [vmem:[%s7094] sm:$0xf]
      %v8026 = vld [vmem:[%s7094 + $0x4] sm:$0xf]
      %v8029 = vunpack.c.l.b16 %v8025
      %v8030 = vunpack.c.l.b16 %v8026
      %v8031 = vpack.c.b16 %v8030, %v8029
      %v8034 = vsel %vm6259, %v8009, 0
      %v8037 = vsel %vm6259, %v8010, 0
      %v8040 = vsel %vm6259, %v8011, 0
      %v8043 = vsel %vm6259, %v8012, 0
      %v8046 = vsel %vm6259, %v8013, 0
      %v8049 = vsel %vm6259, %v8014, 0
      %v8052 = vsel %vm6259, %v8015, 0
      %v8055 = vsel %vm6259, %v8016, 0
      %v8058 = vsel %vm6259, %v8017, 0
      %v8061 = vsel %vm6259, %v8018, 0
      %v8064 = vsel %vm6259, %v8019, 0
      %v8067 = vsel %vm6259, %v8020, 0
      %v8070 = vsel %vm6259, %v8021, 0
      %v8073 = vsel %vm6259, %v8022, 0
      %v8076 = vsel %vm6259, %v8023, 0
      %v8079 = vsel %vm6259, %v8024, 0
      %8081 = vmatprep.subr.bf16.mxu0 0
      %8082 = vmatpush1.bf16.msra.mxu0 %v8031
      %8083 = vmatprep.subr.bf16.mxu0 0
      %8084 = vmatpush1.bf16.msra.mxu0 0
      %8085 = vmatprep.subr.bf16.mxu0 0
      %8086 = vmatpush1.bf16.msra.mxu0 0
      %8087 = vmatprep.subr.bf16.mxu0 0
      %8088 = vmatpush1.bf16.msra.mxu0 0
      %8089 = vmatprep.subr.bf16.mxu0 0
      %8090 = vmatpush1.bf16.msra.mxu0 0
      %8091 = vmatprep.subr.bf16.mxu0 0
      %8092 = vmatpush1.bf16.msra.mxu0 0
      %8093 = vmatprep.subr.bf16.mxu0 0
      %8094 = vmatpush1.bf16.msra.mxu0 0
      %8095 = vmatprep.subr.bf16.mxu0 0
      %8096 = vmatpush1.bf16.msra.mxu0 0
      %8097 = vmatprep.subr.bf16.mxu0 0
      %8098 = vmatpush1.bf16.msra.mxu0 0
      %8099 = vmatprep.subr.bf16.mxu0 0
      %8100 = vmatpush1.bf16.msra.mxu0 0
      %8101 = vmatprep.subr.bf16.mxu0 0
      %8102 = vmatpush1.bf16.msra.mxu0 0
      %8103 = vmatprep.subr.bf16.mxu0 0
      %8104 = vmatpush1.bf16.msra.mxu0 0
      %8105 = vmatprep.subr.bf16.mxu0 0
      %8106 = vmatpush1.bf16.msra.mxu0 0
      %8107 = vmatprep.subr.bf16.mxu0 0
      %8108 = vmatpush1.bf16.msra.mxu0 0
      %8109 = vmatprep.subr.bf16.mxu0 0
      %8110 = vmatpush1.bf16.msra.mxu0 0
      %8111 = vmatprep.subr.bf16.mxu0 0
      %8112 = vmatpush1.bf16.msra.mxu0 0
      %8113 = vmatprep.mubr.bf16.mxu0 0
      %8114 = vmatmul.mubr.bf16.gmra.mrb[0].mxu0 %v8034
      %v8115 = vpop.f32.mrb[0].mxu0
      %v8116 = vadd.f32 0.0, %v8115
      %v8117 = vpop.f32.mrb[0].mxu0
      %v8118 = vpop.f32.mrb[0].mxu0
      %v8119 = vadd.f32 0.0, %v8118
      %v8120 = vpop.f32.mrb[0].mxu0
      %8121 = vmatprep.mubr.bf16.mxu0 0
      %8122 = vmatmul.mubr.bf16.gmra.mrb[0].mxu0 %v8037
      %v8123 = vpop.f32.mrb[0].mxu0
      %v8124 = vadd.f32 0.0, %v8123
      %v8125 = vpop.f32.mrb[0].mxu0
      %v8126 = vpop.f32.mrb[0].mxu0
      %v8127 = vadd.f32 0.0, %v8126
      %v8128 = vpop.f32.mrb[0].mxu0
      %8129 = vmatprep.mubr.bf16.mxu0 0
      %8130 = vmatmul.mubr.bf16.gmra.mrb[0].mxu0 %v8040
      %v8131 = vpop.f32.mrb[0].mxu0
      %v8132 = vadd.f32 0.0, %v8131
      %v8133 = vpop.f32.mrb[0].mxu0
      %v8134 = vpop.f32.mrb[0].mxu0
      %v8135 = vadd.f32 0.0, %v8134
      %v8136 = vpop.f32.mrb[0].mxu0
      %8137 = vmatprep.mubr.bf16.mxu0 0
      %8138 = vmatmul.mubr.bf16.gmra.mrb[0].mxu0 %v8043
      %v8139 = vpop.f32.mrb[0].mxu0
      %v8140 = vadd.f32 0.0, %v8139
      %v8141 = vpop.f32.mrb[0].mxu0
      %v8142 = vpop.f32.mrb[0].mxu0
      %v8143 = vadd.f32 0.0, %v8142
      %v8144 = vpop.f32.mrb[0].mxu0
      %8145 = vmatprep.mubr.bf16.mxu0 0
      %8146 = vmatmul.mubr.bf16.gmra.mrb[0].mxu0 %v8046
      %v8147 = vpop.f32.mrb[0].mxu0
      %v8148 = vadd.f32 0.0, %v8147
      %v8149 = vpop.f32.mrb[0].mxu0
      %v8150 = vpop.f32.mrb[0].mxu0
      %v8151 = vadd.f32 0.0, %v8150
      %v8152 = vpop.f32.mrb[0].mxu0
      %8153 = vmatprep.mubr.bf16.mxu0 0
      %8154 = vmatmul.mubr.bf16.gmra.mrb[0].mxu0 %v8049
      %v8155 = vpop.f32.mrb[0].mxu0
      %v8156 = vadd.f32 0.0, %v8155
      %v8157 = vpop.f32.mrb[0].mxu0
      %v8158 = vpop.f32.mrb[0].mxu0
      %v8159 = vadd.f32 0.0, %v8158
      %v8160 = vpop.f32.mrb[0].mxu0
      %8161 = vmatprep.mubr.bf16.mxu0 0
      %8162 = vmatmul.mubr.bf16.gmra.mrb[0].mxu0 %v8052
      %v8163 = vpop.f32.mrb[0].mxu0
      %v8164 = vadd.f32 0.0, %v8163
      %v8165 = vpop.f32.mrb[0].mxu0
      %v8166 = vpop.f32.mrb[0].mxu0
      %v8167 = vadd.f32 0.0, %v8166
      %v8168 = vpop.f32.mrb[0].mxu0
      %8169 = vmatprep.mubr.bf16.mxu0 0
      %8170 = vmatmul.mubr.bf16.gmra.mrb[0].mxu0 %v8055
      %v8171 = vpop.f32.mrb[0].mxu0
      %v8172 = vadd.f32 0.0, %v8171
      %v8173 = vpop.f32.mrb[0].mxu0
      %v8174 = vpop.f32.mrb[0].mxu0
      %v8175 = vadd.f32 0.0, %v8174
      %v8176 = vpop.f32.mrb[0].mxu0
      %8177 = vmatprep.mubr.bf16.mxu0 0
      %8178 = vmatmul.mubr.bf16.gmra.mrb[0].mxu0 %v8058
      %v8179 = vpop.f32.mrb[0].mxu0
      %v8180 = vadd.f32 0.0, %v8179
      %v8181 = vpop.f32.mrb[0].mxu0
      %v8182 = vpop.f32.mrb[0].mxu0
      %v8183 = vadd.f32 0.0, %v8182
      %v8184 = vpop.f32.mrb[0].mxu0
      %8185 = vmatprep.mubr.bf16.mxu0 0
      %8186 = vmatmul.mubr.bf16.gmra.mrb[0].mxu0 %v8061
      %v8187 = vpop.f32.mrb[0].mxu0
      %v8188 = vadd.f32 0.0, %v8187
      %v8189 = vpop.f32.mrb[0].mxu0
      %v8190 = vpop.f32.mrb[0].mxu0
      %v8191 = vadd.f32 0.0, %v8190
      %v8192 = vpop.f32.mrb[0].mxu0
      %8193 = vmatprep.mubr.bf16.mxu0 0
      %8194 = vmatmul.mubr.bf16.gmra.mrb[0].mxu0 %v8064
      %v8195 = vpop.f32.mrb[0].mxu0
      %v8196 = vadd.f32 0.0, %v8195
      %v8197 = vpop.f32.mrb[0].mxu0
      %v8198 = vpop.f32.mrb[0].mxu0
      %v8199 = vadd.f32 0.0, %v8198
      %v8200 = vpop.f32.mrb[0].mxu0
      %8201 = vmatprep.mubr.bf16.mxu0 0
      %8202 = vmatmul.mubr.bf16.gmra.mrb[0].mxu0 %v8067
      %v8203 = vpop.f32.mrb[0].mxu0
      %v8204 = vadd.f32 0.0, %v8203
      %v8205 = vpop.f32.mrb[0].mxu0
      %v8206 = vpop.f32.mrb[0].mxu0
      %v8207 = vadd.f32 0.0, %v8206
      %v8208 = vpop.f32.mrb[0].mxu0
      %8209 = vmatprep.mubr.bf16.mxu0 0
      %8210 = vmatmul.mubr.bf16.gmra.mrb[0].mxu0 %v8070
      %v8211 = vpop.f32.mrb[0].mxu0
      %v8212 = vadd.f32 0.0, %v8211
      %v8213 = vpop.f32.mrb[0].mxu0
      %v8214 = vpop.f32.mrb[0].mxu0
      %v8215 = vadd.f32 0.0, %v8214
      %v8216 = vpop.f32.mrb[0].mxu0
      %8217 = vmatprep.mubr.bf16.mxu0 0
      %8218 = vmatmul.mubr.bf16.gmra.mrb[0].mxu0 %v8073
      %v8219 = vpop.f32.mrb[0].mxu0
      %v8220 = vadd.f32 0.0, %v8219
      %v8221 = vpop.f32.mrb[0].mxu0
      %v8222 = vpop.f32.mrb[0].mxu0
      %v8223 = vadd.f32 0.0, %v8222
      %v8224 = vpop.f32.mrb[0].mxu0
      %8225 = vmatprep.mubr.bf16.mxu0 0
      %8226 = vmatmul.mubr.bf16.gmra.mrb[0].mxu0 %v8076
      %v8227 = vpop.f32.mrb[0].mxu0
      %v8228 = vadd.f32 0.0, %v8227
      %v8229 = vpop.f32.mrb[0].mxu0
      %v8230 = vpop.f32.mrb[0].mxu0
      %v8231 = vadd.f32 0.0, %v8230
      %v8232 = vpop.f32.mrb[0].mxu0
      %8233 = vmatprep.mubr.bf16.mxu0 0
      %8234 = vmatmul.mubr.bf16.gmra.mrb[0].mxu0 %v8079
      %v8235 = vpop.f32.mrb[0].mxu0
      %v8236 = vadd.f32 0.0, %v8235
      %v8237 = vpop.f32.mrb[0].mxu0
      %v8238 = vpop.f32.mrb[0].mxu0
      %v8239 = vadd.f32 0.0, %v8238
      %v8240 = vpop.f32.mrb[0].mxu0
      %8241 = vdwg.mxu0
      %v8242 = vadd.f32 %v7851, %v8116
      %v8243 = vadd.f32 %v7854, %v8119
      %v8244 = vadd.f32 %v7859, %v8124
      %v8245 = vadd.f32 %v7862, %v8127
      %v8246 = vadd.f32 %v7867, %v8132
      %v8247 = vadd.f32 %v7870, %v8135
      %v8248 = vadd.f32 %v7875, %v8140
      %v8249 = vadd.f32 %v7878, %v8143
      %v8250 = vadd.f32 %v7883, %v8148
      %v8251 = vadd.f32 %v7886, %v8151
      %v8252 = vadd.f32 %v7891, %v8156
      %v8253 = vadd.f32 %v7894, %v8159
      %v8254 = vadd.f32 %v7899, %v8164
      %v8255 = vadd.f32 %v7902, %v8167
      %v8256 = vadd.f32 %v7907, %v8172
      %v8257 = vadd.f32 %v7910, %v8175
      %v8258 = vadd.f32 %v7915, %v8180
      %v8259 = vadd.f32 %v7918, %v8183
      %v8260 = vadd.f32 %v7923, %v8188
      %v8261 = vadd.f32 %v7926, %v8191
      %v8262 = vadd.f32 %v7931, %v8196
      %v8263 = vadd.f32 %v7934, %v8199
      %v8264 = vadd.f32 %v7939, %v8204
      %v8265 = vadd.f32 %v7942, %v8207
      %v8266 = vadd.f32 %v7947, %v8212
      %v8267 = vadd.f32 %v7950, %v8215
      %v8268 = vadd.f32 %v7955, %v8220
      %v8269 = vadd.f32 %v7958, %v8223
      %v8270 = vadd.f32 %v7963, %v8228
      %v8271 = vadd.f32 %v7966, %v8231
      %v8272 = vadd.f32 %v7971, %v8236
      %v8273 = vadd.f32 %v7974, %v8239
      %v8274 = vld [vmem:[%s6] sm:$0x1]
      %v8276 = vlaneseq
      %v8277 = vshrl.u32 %v8276, 7
      %v8278 = vsub.s32 0, %v8277
      %v8279 = vrot.slane %v8274, %v8278
      %v8281 = vadd.f32 %v8242, %v8279
      %v8282 = vadd.f32 %v8243, %v8279
      %v8283 = vadd.f32 %v8244, %v8279
      %v8284 = vadd.f32 %v8245, %v8279
      %v8285 = vadd.f32 %v8246, %v8279
      %v8286 = vadd.f32 %v8247, %v8279
      %v8287 = vadd.f32 %v8248, %v8279
      %v8288 = vadd.f32 %v8249, %v8279
      %v8289 = vadd.f32 %v8250, %v8279
      %v8290 = vadd.f32 %v8251, %v8279
      %v8291 = vadd.f32 %v8252, %v8279
      %v8292 = vadd.f32 %v8253, %v8279
      %v8293 = vadd.f32 %v8254, %v8279
      %v8294 = vadd.f32 %v8255, %v8279
      %v8295 = vadd.f32 %v8256, %v8279
      %v8296 = vadd.f32 %v8257, %v8279
      %v8297 = vadd.f32 %v8258, %v8279
      %v8298 = vadd.f32 %v8259, %v8279
      %v8299 = vadd.f32 %v8260, %v8279
      %v8300 = vadd.f32 %v8261, %v8279
      %v8301 = vadd.f32 %v8262, %v8279
      %v8302 = vadd.f32 %v8263, %v8279
      %v8303 = vadd.f32 %v8264, %v8279
      %v8304 = vadd.f32 %v8265, %v8279
      %v8305 = vadd.f32 %v8266, %v8279
      %v8306 = vadd.f32 %v8267, %v8279
      %v8307 = vadd.f32 %v8268, %v8279
      %v8308 = vadd.f32 %v8269, %v8279
      %v8309 = vadd.f32 %v8270, %v8279
      %v8310 = vadd.f32 %v8271, %v8279
      %v8311 = vadd.f32 %v8272, %v8279
      %v8312 = vadd.f32 %v8273, %v8279
      %v8313 = vmax.f32 %v8281, 0.0
      %v8314 = vmax.f32 %v8282, 0.0
      %v8315 = vmax.f32 %v8283, 0.0
      %v8316 = vmax.f32 %v8284, 0.0
      %v8317 = vmax.f32 %v8285, 0.0
      %v8318 = vmax.f32 %v8286, 0.0
      %v8319 = vmax.f32 %v8287, 0.0
      %v8320 = vmax.f32 %v8288, 0.0
      %v8321 = vmax.f32 %v8289, 0.0
      %v8322 = vmax.f32 %v8290, 0.0
      %v8323 = vmax.f32 %v8291, 0.0
      %v8324 = vmax.f32 %v8292, 0.0
      %v8325 = vmax.f32 %v8293, 0.0
      %v8326 = vmax.f32 %v8294, 0.0
      %v8327 = vmax.f32 %v8295, 0.0
      %v8328 = vmax.f32 %v8296, 0.0
      %v8329 = vmax.f32 %v8297, 0.0
      %v8330 = vmax.f32 %v8298, 0.0
      %v8331 = vmax.f32 %v8299, 0.0
      %v8332 = vmax.f32 %v8300, 0.0
      %v8333 = vmax.f32 %v8301, 0.0
      %v8334 = vmax.f32 %v8302, 0.0
      %v8335 = vmax.f32 %v8303, 0.0
      %v8336 = vmax.f32 %v8304, 0.0
      %v8337 = vmax.f32 %v8305, 0.0
      %v8338 = vmax.f32 %v8306, 0.0
      %v8339 = vmax.f32 %v8307, 0.0
      %v8340 = vmax.f32 %v8308, 0.0
      %v8341 = vmax.f32 %v8309, 0.0
      %v8342 = vmax.f32 %v8310, 0.0
      %v8343 = vmax.f32 %v8311, 0.0
      %v8344 = vmax.f32 %v8312, 0.0
      %8345 = vst.msk [vmem:[#allocation2] sm:$0xff] %vm6259, %v8313
      %8346 = vst.msk [vmem:[#allocation2 + $0x8] sm:$0xff] %vm6259, %v8314
      %8347 = vst.msk [vmem:[#allocation2 + $0x10] sm:$0xff] %vm6259, %v8315
      %8348 = vst.msk [vmem:[#allocation2 + $0x18] sm:$0xff] %vm6259, %v8316
      %8349 = vst.msk [vmem:[#allocation2 + $0x20] sm:$0xff] %vm6259, %v8317
      %8350 = vst.msk [vmem:[#allocation2 + $0x28] sm:$0xff] %vm6259, %v8318
      %8351 = vst.msk [vmem:[#allocation2 + $0x30] sm:$0xff] %vm6259, %v8319
      %8352 = vst.msk [vmem:[#allocation2 + $0x38] sm:$0xff] %vm6259, %v8320
      %8353 = vst.msk [vmem:[#allocation2 + $0x40] sm:$0xff] %vm6259, %v8321
      %8354 = vst.msk [vmem:[#allocation2 + $0x48] sm:$0xff] %vm6259, %v8322
      %8355 = vst.msk [vmem:[#allocation2 + $0x50] sm:$0xff] %vm6259, %v8323
      %8356 = vst.msk [vmem:[#allocation2 + $0x58] sm:$0xff] %vm6259, %v8324
      %8357 = vst.msk [vmem:[#allocation2 + $0x60] sm:$0xff] %vm6259, %v8325
      %8358 = vst.msk [vmem:[#allocation2 + $0x68] sm:$0xff] %vm6259, %v8326
      %8359 = vst.msk [vmem:[#allocation2 + $0x70] sm:$0xff] %vm6259, %v8327
      %8360 = vst.msk [vmem:[#allocation2 + $0x78] sm:$0xff] %vm6259, %v8328
      %8361 = vst.msk [vmem:[#allocation2 + $0x80] sm:$0xff] %vm6259, %v8329
      %8362 = vst.msk [vmem:[#allocation2 + $0x88] sm:$0xff] %vm6259, %v8330
      %8363 = vst.msk [vmem:[#allocation2 + $0x90] sm:$0xff] %vm6259, %v8331
      %8364 = vst.msk [vmem:[#allocation2 + $0x98] sm:$0xff] %vm6259, %v8332
      %8365 = vst.msk [vmem:[#allocation2 + $0xa0] sm:$0xff] %vm6259, %v8333
      %8366 = vst.msk [vmem:[#allocation2 + $0xa8] sm:$0xff] %vm6259, %v8334
      %8367 = vst.msk [vmem:[#allocation2 + $0xb0] sm:$0xff] %vm6259, %v8335
      %8368 = vst.msk [vmem:[#allocation2 + $0xb8] sm:$0xff] %vm6259, %v8336
      %8369 = vst.msk [vmem:[#allocation2 + $0xc0] sm:$0xff] %vm6259, %v8337
      %8370 = vst.msk [vmem:[#allocation2 + $0xc8] sm:$0xff] %vm6259, %v8338
      %8371 = vst.msk [vmem:[#allocation2 + $0xd0] sm:$0xff] %vm6259, %v8339
      %8372 = vst.msk [vmem:[#allocation2 + $0xd8] sm:$0xff] %vm6259, %v8340
      %8373 = vst.msk [vmem:[#allocation2 + $0xe0] sm:$0xff] %vm6259, %v8341
      %8374 = vst.msk [vmem:[#allocation2 + $0xe8] sm:$0xff] %vm6259, %v8342
      %8375 = vst.msk [vmem:[#allocation2 + $0xf0] sm:$0xff] %vm6259, %v8343
      %8376 = vst.msk [vmem:[#allocation2 + $0xf8] sm:$0xff] %vm6259, %v8344
      %v8377 = vld [vmem:[#allocation2] ss:$2 sm:$0xff]
      %s8378 = scalar_lea.vmem [#allocation2], 16
      %v8379 = vld [vmem:[%s8378] ss:$2 sm:$0xff]
      %s8380 = scalar_lea.vmem [#allocation2], 32
      %v8381 = vld [vmem:[%s8380] ss:$2 sm:$0xff]
      %s8382 = scalar_lea.vmem [#allocation2], 48
      %v8383 = vld [vmem:[%s8382] ss:$2 sm:$0xff]
      %s8384 = scalar_lea.vmem [#allocation2], 64
      %v8385 = vld [vmem:[%s8384] ss:$2 sm:$0xff]
      %s8386 = scalar_lea.vmem [#allocation2], 80
      %v8387 = vld [vmem:[%s8386] ss:$2 sm:$0xff]
      %s8388 = scalar_lea.vmem [#allocation2], 96
      %v8389 = vld [vmem:[%s8388] ss:$2 sm:$0xff]
      %s8390 = scalar_lea.vmem [#allocation2], 112
      %v8391 = vld [vmem:[%s8390] ss:$2 sm:$0xff]
      %s8392 = scalar_lea.vmem [#allocation2], 128
      %v8393 = vld [vmem:[%s8392] ss:$2 sm:$0xff]
      %s8394 = scalar_lea.vmem [#allocation2], 144
      %v8395 = vld [vmem:[%s8394] ss:$2 sm:$0xff]
      %s8396 = scalar_lea.vmem [#allocation2], 160
      %v8397 = vld [vmem:[%s8396] ss:$2 sm:$0xff]
      %s8398 = scalar_lea.vmem [#allocation2], 176
      %v8399 = vld [vmem:[%s8398] ss:$2 sm:$0xff]
      %s8400 = scalar_lea.vmem [#allocation2], 192
      %v8401 = vld [vmem:[%s8400] ss:$2 sm:$0xff]
      %s8402 = scalar_lea.vmem [#allocation2], 208
      %v8403 = vld [vmem:[%s8402] ss:$2 sm:$0xff]
      %s8404 = scalar_lea.vmem [#allocation2], 224
      %v8405 = vld [vmem:[%s8404] ss:$2 sm:$0xff]
      %s8406 = scalar_lea.vmem [#allocation2], 240
      %v8407 = vld [vmem:[%s8406] ss:$2 sm:$0xff]
      %s8408 = scalar_lea.vmem [#allocation2], 1
      %v8409 = vld [vmem:[%s8408] ss:$2 sm:$0xff]
      %s8410 = scalar_lea.vmem [#allocation2], 17
      %v8411 = vld [vmem:[%s8410] ss:$2 sm:$0xff]
      %s8412 = scalar_lea.vmem [#allocation2], 33
      %v8413 = vld [vmem:[%s8412] ss:$2 sm:$0xff]
      %s8414 = scalar_lea.vmem [#allocation2], 49
      %v8415 = vld [vmem:[%s8414] ss:$2 sm:$0xff]
      %s8416 = scalar_lea.vmem [#allocation2], 65
      %v8417 = vld [vmem:[%s8416] ss:$2 sm:$0xff]
      %s8418 = scalar_lea.vmem [#allocation2], 81
      %v8419 = vld [vmem:[%s8418] ss:$2 sm:$0xff]
      %s8420 = scalar_lea.vmem [#allocation2], 97
      %v8421 = vld [vmem:[%s8420] ss:$2 sm:$0xff]
      %s8422 = scalar_lea.vmem [#allocation2], 113
      %v8423 = vld [vmem:[%s8422] ss:$2 sm:$0xff]
      %s8424 = scalar_lea.vmem [#allocation2], 129
      %v8425 = vld [vmem:[%s8424] ss:$2 sm:$0xff]
      %s8426 = scalar_lea.vmem [#allocation2], 145
      %v8427 = vld [vmem:[%s8426] ss:$2 sm:$0xff]
      %s8428 = scalar_lea.vmem [#allocation2], 161
      %v8429 = vld [vmem:[%s8428] ss:$2 sm:$0xff]
      %s8430 = scalar_lea.vmem [#allocation2], 177
      %v8431 = vld [vmem:[%s8430] ss:$2 sm:$0xff]
      %s8432 = scalar_lea.vmem [#allocation2], 193
      %v8433 = vld [vmem:[%s8432] ss:$2 sm:$0xff]
      %s8434 = scalar_lea.vmem [#allocation2], 209
      %v8435 = vld [vmem:[%s8434] ss:$2 sm:$0xff]
      %s8436 = scalar_lea.vmem [#allocation2], 225
      %v8437 = vld [vmem:[%s8436] ss:$2 sm:$0xff]
      %s8438 = scalar_lea.vmem [#allocation2], 241
      %v8439 = vld [vmem:[%s8438] ss:$2 sm:$0xff]
      %v8440 = vmax.f32 %v8377, %v8409
      %v8441 = vmax.f32 %v8379, %v8411
      %v8442 = vmax.f32 %v8381, %v8413
      %v8443 = vmax.f32 %v8383, %v8415
      %v8444 = vmax.f32 %v8385, %v8417
      %v8445 = vmax.f32 %v8387, %v8419
      %v8446 = vmax.f32 %v8389, %v8421
      %v8447 = vmax.f32 %v8391, %v8423
      %v8448 = vmax.f32 %v8393, %v8425
      %v8449 = vmax.f32 %v8395, %v8427
      %v8450 = vmax.f32 %v8397, %v8429
      %v8451 = vmax.f32 %v8399, %v8431
      %v8452 = vmax.f32 %v8401, %v8433
      %v8453 = vmax.f32 %v8403, %v8435
      %v8454 = vmax.f32 %v8405, %v8437
      %v8455 = vmax.f32 %v8407, %v8439
      %8456 = vst.msk [vmem:[#allocation3] sm:$0xff] %vm6259, %v8440
      %8457 = vst.msk [vmem:[#allocation3 + $0x8] sm:$0xff] %vm6259, %v8441
      %8458 = vst.msk [vmem:[#allocation3 + $0x10] sm:$0xff] %vm6259, %v8442
      %8459 = vst.msk [vmem:[#allocation3 + $0x18] sm:$0xff] %vm6259, %v8443
      %8460 = vst.msk [vmem:[#allocation3 + $0x20] sm:$0xff] %vm6259, %v8444
      %8461 = vst.msk [vmem:[#allocation3 + $0x28] sm:$0xff] %vm6259, %v8445
      %8462 = vst.msk [vmem:[#allocation3 + $0x30] sm:$0xff] %vm6259, %v8446
      %8463 = vst.msk [vmem:[#allocation3 + $0x38] sm:$0xff] %vm6259, %v8447
      %8464 = vst.msk [vmem:[#allocation3 + $0x40] sm:$0xff] %vm6259, %v8448
      %8465 = vst.msk [vmem:[#allocation3 + $0x48] sm:$0xff] %vm6259, %v8449
      %8466 = vst.msk [vmem:[#allocation3 + $0x50] sm:$0xff] %vm6259, %v8450
      %8467 = vst.msk [vmem:[#allocation3 + $0x58] sm:$0xff] %vm6259, %v8451
      %8468 = vst.msk [vmem:[#allocation3 + $0x60] sm:$0xff] %vm6259, %v8452
      %8469 = vst.msk [vmem:[#allocation3 + $0x68] sm:$0xff] %vm6259, %v8453
      %8470 = vst.msk [vmem:[#allocation3 + $0x70] sm:$0xff] %vm6259, %v8454
      %8471 = vst.msk [vmem:[#allocation3 + $0x78] sm:$0xff] %vm6259, %v8455
      %v8472 = vld [vmem:[#allocation3] sm:$0xff]
      %v8473 = vld [vmem:[#allocation3 + $0x8] sm:$0xff]
      %v8474 = vld [vmem:[#allocation3 + $0x10] sm:$0xff]
      %v8475 = vld [vmem:[#allocation3 + $0x18] sm:$0xff]
      %v8476 = vld [vmem:[#allocation3 + $0x20] sm:$0xff]
      %v8477 = vld [vmem:[#allocation3 + $0x28] sm:$0xff]
      %v8478 = vld [vmem:[#allocation3 + $0x30] sm:$0xff]
      %v8479 = vld [vmem:[#allocation3 + $0x38] sm:$0xff]
      %v8480 = vld [vmem:[#allocation3 + $0x40] sm:$0xff]
      %v8481 = vld [vmem:[#allocation3 + $0x48] sm:$0xff]
      %v8482 = vld [vmem:[#allocation3 + $0x50] sm:$0xff]
      %v8483 = vld [vmem:[#allocation3 + $0x58] sm:$0xff]
      %v8484 = vld [vmem:[#allocation3 + $0x60] sm:$0xff]
      %v8485 = vld [vmem:[#allocation3 + $0x68] sm:$0xff]
      %v8486 = vld [vmem:[#allocation3 + $0x70] sm:$0xff]
      %v8487 = vld [vmem:[#allocation3 + $0x78] sm:$0xff]
      %v8488 = vpack.c.bf16 %v8473, %v8472
      %v8489 = vpack.c.bf16 %v8475, %v8474
      %v8490 = vpack.c.bf16 %v8477, %v8476
      %v8491 = vpack.c.bf16 %v8479, %v8478
      %v8492 = vpack.c.bf16 %v8481, %v8480
      %v8493 = vpack.c.bf16 %v8483, %v8482
      %v8494 = vpack.c.bf16 %v8485, %v8484
      %v8495 = vpack.c.bf16 %v8487, %v8486
      %v8496 = vld [vmem:[%s7] sm:$0xf]
      %v8497 = vld [vmem:[%s7 + $0x4] sm:$0xf]
      %v8498 = vld [vmem:[#allocation3 + $0x1] sm:$0xff]
      %v8499 = vld [vmem:[#allocation3 + $0x9] sm:$0xff]
      %v8500 = vld [vmem:[#allocation3 + $0x11] sm:$0xff]
      %v8501 = vld [vmem:[#allocation3 + $0x19] sm:$0xff]
      %v8502 = vld [vmem:[#allocation3 + $0x21] sm:$0xff]
      %v8503 = vld [vmem:[#allocation3 + $0x29] sm:$0xff]
      %v8504 = vld [vmem:[#allocation3 + $0x31] sm:$0xff]
      %v8505 = vld [vmem:[#allocation3 + $0x39] sm:$0xff]
      %v8506 = vld [vmem:[#allocation3 + $0x41] sm:$0xff]
      %v8507 = vld [vmem:[#allocation3 + $0x49] sm:$0xff]
      %v8508 = vld [vmem:[#allocation3 + $0x51] sm:$0xff]
      %v8509 = vld [vmem:[#allocation3 + $0x59] sm:$0xff]
      %v8510 = vld [vmem:[#allocation3 + $0x61] sm:$0xff]
      %v8511 = vld [vmem:[#allocation3 + $0x69] sm:$0xff]
      %v8512 = vld [vmem:[#allocation3 + $0x71] sm:$0xff]
      %v8513 = vld [vmem:[#allocation3 + $0x79] sm:$0xff]
      %v8514 = vpack.c.bf16 %v8499, %v8498
      %v8515 = vpack.c.bf16 %v8501, %v8500
      %v8516 = vpack.c.bf16 %v8503, %v8502
      %v8517 = vpack.c.bf16 %v8505, %v8504
      %v8518 = vpack.c.bf16 %v8507, %v8506
      %v8519 = vpack.c.bf16 %v8509, %v8508
      %v8520 = vpack.c.bf16 %v8511, %v8510
      %v8521 = vpack.c.bf16 %v8513, %v8512
      %s8522 = scalar_lea.vmem %s7, 8
      %v8523 = vld [vmem:[%s8522] sm:$0xf]
      %v8524 = vld [vmem:[%s8522 + $0x4] sm:$0xf]
      %v8527 = vunpack.c.l.b16 %v8523
      %v8528 = vunpack.c.l.b16 %v8524
      %v8529 = vpack.c.b16 %v8528, %v8527
      %v8532 = vsel %vm6259, %v8514, 0
      %v8535 = vsel %vm6259, %v8515, 0
      %v8538 = vsel %vm6259, %v8516, 0
      %v8541 = vsel %vm6259, %v8517, 0
      %v8544 = vsel %vm6259, %v8518, 0
      %v8547 = vsel %vm6259, %v8519, 0
      %v8550 = vsel %vm6259, %v8520, 0
      %v8553 = vsel %vm6259, %v8521, 0
      %8555 = vmatprep.subr.bf16.mxu0 0
      %8556 = vmatpush1.bf16.msra.mxu0 %v8529
      %8557 = vmatprep.subr.bf16.mxu0 0
      %8558 = vmatpush1.bf16.msra.mxu0 0
      %8559 = vmatprep.subr.bf16.mxu0 0
      %8560 = vmatpush1.bf16.msra.mxu0 0
      %8561 = vmatprep.subr.bf16.mxu0 0
      %8562 = vmatpush1.bf16.msra.mxu0 0
      %8563 = vmatprep.subr.bf16.mxu0 0
      %8564 = vmatpush1.bf16.msra.mxu0 0
      %8565 = vmatprep.subr.bf16.mxu0 0
      %8566 = vmatpush1.bf16.msra.mxu0 0
      %8567 = vmatprep.subr.bf16.mxu0 0
      %8568 = vmatpush1.bf16.msra.mxu0 0
      %8569 = vmatprep.subr.bf16.mxu0 0
      %8570 = vmatpush1.bf16.msra.mxu0 0
      %8571 = vmatprep.subr.bf16.mxu0 0
      %8572 = vmatpush1.bf16.msra.mxu0 0
      %8573 = vmatprep.subr.bf16.mxu0 0
      %8574 = vmatpush1.bf16.msra.mxu0 0
      %8575 = vmatprep.subr.bf16.mxu0 0
      %8576 = vmatpush1.bf16.msra.mxu0 0
      %8577 = vmatprep.subr.bf16.mxu0 0
      %8578 = vmatpush1.bf16.msra.mxu0 0
      %8579 = vmatprep.subr.bf16.mxu0 0
      %8580 = vmatpush1.bf16.msra.mxu0 0
      %8581 = vmatprep.subr.bf16.mxu0 0
      %8582 = vmatpush1.bf16.msra.mxu0 0
      %8583 = vmatprep.subr.bf16.mxu0 0
      %8584 = vmatpush1.bf16.msra.mxu0 0
      %8585 = vmatprep.subr.bf16.mxu0 0
      %8586 = vmatpush1.bf16.msra.mxu0 0
      %8587 = vmatprep.mubr.bf16.mxu0 0
      %8588 = vmatmul.mubr.bf16.gmra.mrb[0].mxu0 %v8532
      %v8589 = vpop.f32.mrb[0].mxu0
      %v8590 = vadd.f32 0.0, %v8589
      %v8591 = vpop.f32.mrb[0].mxu0
      %v8592 = vpop.f32.mrb[0].mxu0
      %v8593 = vadd.f32 0.0, %v8592
      %v8594 = vpop.f32.mrb[0].mxu0
      %8595 = vmatprep.mubr.bf16.mxu0 0
      %8596 = vmatmul.mubr.bf16.gmra.mrb[0].mxu0 %v8535
      %v8597 = vpop.f32.mrb[0].mxu0
      %v8598 = vadd.f32 0.0, %v8597
      %v8599 = vpop.f32.mrb[0].mxu0
      %v8600 = vpop.f32.mrb[0].mxu0
      %v8601 = vadd.f32 0.0, %v8600
      %v8602 = vpop.f32.mrb[0].mxu0
      %8603 = vmatprep.mubr.bf16.mxu0 0
      %8604 = vmatmul.mubr.bf16.gmra.mrb[0].mxu0 %v8538
      %v8605 = vpop.f32.mrb[0].mxu0
      %v8606 = vadd.f32 0.0, %v8605
      %v8607 = vpop.f32.mrb[0].mxu0
      %v8608 = vpop.f32.mrb[0].mxu0
      %v8609 = vadd.f32 0.0, %v8608
      %v8610 = vpop.f32.mrb[0].mxu0
      %8611 = vmatprep.mubr.bf16.mxu0 0
      %8612 = vmatmul.mubr.bf16.gmra.mrb[0].mxu0 %v8541
      %v8613 = vpop.f32.mrb[0].mxu0
      %v8614 = vadd.f32 0.0, %v8613
      %v8615 = vpop.f32.mrb[0].mxu0
      %v8616 = vpop.f32.mrb[0].mxu0
      %v8617 = vadd.f32 0.0, %v8616
      %v8618 = vpop.f32.mrb[0].mxu0
      %8619 = vmatprep.mubr.bf16.mxu0 0
      %8620 = vmatmul.mubr.bf16.gmra.mrb[0].mxu0 %v8544
      %v8621 = vpop.f32.mrb[0].mxu0
      %v8622 = vadd.f32 0.0, %v8621
      %v8623 = vpop.f32.mrb[0].mxu0
      %v8624 = vpop.f32.mrb[0].mxu0
      %v8625 = vadd.f32 0.0, %v8624
      %v8626 = vpop.f32.mrb[0].mxu0
      %8627 = vmatprep.mubr.bf16.mxu0 0
      %8628 = vmatmul.mubr.bf16.gmra.mrb[0].mxu0 %v8547
      %v8629 = vpop.f32.mrb[0].mxu0
      %v8630 = vadd.f32 0.0, %v8629
      %v8631 = vpop.f32.mrb[0].mxu0
      %v8632 = vpop.f32.mrb[0].mxu0
      %v8633 = vadd.f32 0.0, %v8632
      %v8634 = vpop.f32.mrb[0].mxu0
      %8635 = vmatprep.mubr.bf16.mxu0 0
      %8636 = vmatmul.mubr.bf16.gmra.mrb[0].mxu0 %v8550
      %v8637 = vpop.f32.mrb[0].mxu0
      %v8638 = vadd.f32 0.0, %v8637
      %v8639 = vpop.f32.mrb[0].mxu0
      %v8640 = vpop.f32.mrb[0].mxu0
      %v8641 = vadd.f32 0.0, %v8640
      %v8642 = vpop.f32.mrb[0].mxu0
      %8643 = vmatprep.mubr.bf16.mxu0 0
      %8644 = vmatmul.mubr.bf16.gmra.mrb[0].mxu0 %v8553
      %v8645 = vpop.f32.mrb[0].mxu0
      %v8646 = vadd.f32 0.0, %v8645
      %v8647 = vpop.f32.mrb[0].mxu0
      %v8648 = vpop.f32.mrb[0].mxu0
      %v8649 = vadd.f32 0.0, %v8648
      %v8650 = vpop.f32.mrb[0].mxu0
      %8651 = vdwg.mxu0
      %v8654 = vunpack.c.l.b16 %v8496
      %v8655 = vunpack.c.l.b16 %v8497
      %v8656 = vpack.c.b16 %v8655, %v8654
      %v8659 = vsel %vm6259, %v8488, 0
      %v8662 = vsel %vm6259, %v8489, 0
      %v8665 = vsel %vm6259, %v8490, 0
      %v8668 = vsel %vm6259, %v8491, 0
      %v8671 = vsel %vm6259, %v8492, 0
      %v8674 = vsel %vm6259, %v8493, 0
      %v8677 = vsel %vm6259, %v8494, 0
      %v8680 = vsel %vm6259, %v8495, 0
      %8682 = vmatprep.subr.bf16.mxu0 0
      %8683 = vmatpush1.bf16.msra.mxu0 %v8656
      %8684 = vmatprep.subr.bf16.mxu0 0
      %8685 = vmatpush1.bf16.msra.mxu0 0
      %8686 = vmatprep.subr.bf16.mxu0 0
      %8687 = vmatpush1.bf16.msra.mxu0 0
      %8688 = vmatprep.subr.bf16.mxu0 0
      %8689 = vmatpush1.bf16.msra.mxu0 0
      %8690 = vmatprep.subr.bf16.mxu0 0
      %8691 = vmatpush1.bf16.msra.mxu0 0
      %8692 = vmatprep.subr.bf16.mxu0 0
      %8693 = vmatpush1.bf16.msra.mxu0 0
      %8694 = vmatprep.subr.bf16.mxu0 0
      %8695 = vmatpush1.bf16.msra.mxu0 0
      %8696 = vmatprep.subr.bf16.mxu0 0
      %8697 = vmatpush1.bf16.msra.mxu0 0
      %8698 = vmatprep.subr.bf16.mxu0 0
      %8699 = vmatpush1.bf16.msra.mxu0 0
      %8700 = vmatprep.subr.bf16.mxu0 0
      %8701 = vmatpush1.bf16.msra.mxu0 0
      %8702 = vmatprep.subr.bf16.mxu0 0
      %8703 = vmatpush1.bf16.msra.mxu0 0
      %8704 = vmatprep.subr.bf16.mxu0 0
      %8705 = vmatpush1.bf16.msra.mxu0 0
      %8706 = vmatprep.subr.bf16.mxu0 0
      %8707 = vmatpush1.bf16.msra.mxu0 0
      %8708 = vmatprep.subr.bf16.mxu0 0
      %8709 = vmatpush1.bf16.msra.mxu0 0
      %8710 = vmatprep.subr.bf16.mxu0 0
      %8711 = vmatpush1.bf16.msra.mxu0 0
      %8712 = vmatprep.subr.bf16.mxu0 0
      %8713 = vmatpush1.bf16.msra.mxu0 0
      %8714 = vmatprep.mubr.bf16.mxu0 0
      %8715 = vmatmul.mubr.bf16.gmra.mrb[0].mxu0 %v8659
      %v8716 = vpop.f32.mrb[0].mxu0
      %v8717 = vadd.f32 %v8590, %v8716
      %v8718 = vpop.f32.mrb[0].mxu0
      %v8719 = vpop.f32.mrb[0].mxu0
      %v8720 = vadd.f32 %v8593, %v8719
      %v8721 = vpop.f32.mrb[0].mxu0
      %8722 = vmatprep.mubr.bf16.mxu0 0
      %8723 = vmatmul.mubr.bf16.gmra.mrb[0].mxu0 %v8662
      %v8724 = vpop.f32.mrb[0].mxu0
      %v8725 = vadd.f32 %v8598, %v8724
      %v8726 = vpop.f32.mrb[0].mxu0
      %v8727 = vpop.f32.mrb[0].mxu0
      %v8728 = vadd.f32 %v8601, %v8727
      %v8729 = vpop.f32.mrb[0].mxu0
      %8730 = vmatprep.mubr.bf16.mxu0 0
      %8731 = vmatmul.mubr.bf16.gmra.mrb[0].mxu0 %v8665
      %v8732 = vpop.f32.mrb[0].mxu0
      %v8733 = vadd.f32 %v8606, %v8732
      %v8734 = vpop.f32.mrb[0].mxu0
      %v8735 = vpop.f32.mrb[0].mxu0
      %v8736 = vadd.f32 %v8609, %v8735
      %v8737 = vpop.f32.mrb[0].mxu0
      %8738 = vmatprep.mubr.bf16.mxu0 0
      %8739 = vmatmul.mubr.bf16.gmra.mrb[0].mxu0 %v8668
      %v8740 = vpop.f32.mrb[0].mxu0
      %v8741 = vadd.f32 %v8614, %v8740
      %v8742 = vpop.f32.mrb[0].mxu0
      %v8743 = vpop.f32.mrb[0].mxu0
      %v8744 = vadd.f32 %v8617, %v8743
      %v8745 = vpop.f32.mrb[0].mxu0
      %8746 = vmatprep.mubr.bf16.mxu0 0
      %8747 = vmatmul.mubr.bf16.gmra.mrb[0].mxu0 %v8671
      %v8748 = vpop.f32.mrb[0].mxu0
      %v8749 = vadd.f32 %v8622, %v8748
      %v8750 = vpop.f32.mrb[0].mxu0
      %v8751 = vpop.f32.mrb[0].mxu0
      %v8752 = vadd.f32 %v8625, %v8751
      %v8753 = vpop.f32.mrb[0].mxu0
      %8754 = vmatprep.mubr.bf16.mxu0 0
      %8755 = vmatmul.mubr.bf16.gmra.mrb[0].mxu0 %v8674
      %v8756 = vpop.f32.mrb[0].mxu0
      %v8757 = vadd.f32 %v8630, %v8756
      %v8758 = vpop.f32.mrb[0].mxu0
      %v8759 = vpop.f32.mrb[0].mxu0
      %v8760 = vadd.f32 %v8633, %v8759
      %v8761 = vpop.f32.mrb[0].mxu0
      %8762 = vmatprep.mubr.bf16.mxu0 0
      %8763 = vmatmul.mubr.bf16.gmra.mrb[0].mxu0 %v8677
      %v8764 = vpop.f32.mrb[0].mxu0
      %v8765 = vadd.f32 %v8638, %v8764
      %v8766 = vpop.f32.mrb[0].mxu0
      %v8767 = vpop.f32.mrb[0].mxu0
      %v8768 = vadd.f32 %v8641, %v8767
      %v8769 = vpop.f32.mrb[0].mxu0
      %8770 = vmatprep.mubr.bf16.mxu0 0
      %8771 = vmatmul.mubr.bf16.gmra.mrb[0].mxu0 %v8680
      %v8772 = vpop.f32.mrb[0].mxu0
      %v8773 = vadd.f32 %v8646, %v8772
      %v8774 = vpop.f32.mrb[0].mxu0
      %v8775 = vpop.f32.mrb[0].mxu0
      %v8776 = vadd.f32 %v8649, %v8775
      %v8777 = vpop.f32.mrb[0].mxu0
      %8778 = vdwg.mxu0
      %v8779 = vld [vmem:[#allocation3 + $0x2] sm:$0xff]
      %v8780 = vld [vmem:[#allocation3 + $0xa] sm:$0xff]
      %v8781 = vld [vmem:[#allocation3 + $0x12] sm:$0xff]
      %v8782 = vld [vmem:[#allocation3 + $0x1a] sm:$0xff]
      %v8783 = vld [vmem:[#allocation3 + $0x22] sm:$0xff]
      %v8784 = vld [vmem:[#allocation3 + $0x2a] sm:$0xff]
      %v8785 = vld [vmem:[#allocation3 + $0x32] sm:$0xff]
      %v8786 = vld [vmem:[#allocation3 + $0x3a] sm:$0xff]
      %v8787 = vld [vmem:[#allocation3 + $0x42] sm:$0xff]
      %v8788 = vld [vmem:[#allocation3 + $0x4a] sm:$0xff]
      %v8789 = vld [vmem:[#allocation3 + $0x52] sm:$0xff]
      %v8790 = vld [vmem:[#allocation3 + $0x5a] sm:$0xff]
      %v8791 = vld [vmem:[#allocation3 + $0x62] sm:$0xff]
      %v8792 = vld [vmem:[#allocation3 + $0x6a] sm:$0xff]
      %v8793 = vld [vmem:[#allocation3 + $0x72] sm:$0xff]
      %v8794 = vld [vmem:[#allocation3 + $0x7a] sm:$0xff]
      %v8795 = vpack.c.bf16 %v8780, %v8779
      %v8796 = vpack.c.bf16 %v8782, %v8781
      %v8797 = vpack.c.bf16 %v8784, %v8783
      %v8798 = vpack.c.bf16 %v8786, %v8785
      %v8799 = vpack.c.bf16 %v8788, %v8787
      %v8800 = vpack.c.bf16 %v8790, %v8789
      %v8801 = vpack.c.bf16 %v8792, %v8791
      %v8802 = vpack.c.bf16 %v8794, %v8793
      %s8803 = scalar_lea.vmem %s7, 16
      %v8804 = vld [vmem:[%s8803] sm:$0xf]
      %v8805 = vld [vmem:[%s8803 + $0x4] sm:$0xf]
      %v8808 = vunpack.c.l.b16 %v8804
      %v8809 = vunpack.c.l.b16 %v8805
      %v8810 = vpack.c.b16 %v8809, %v8808
      %v8813 = vsel %vm6259, %v8795, 0
      %v8816 = vsel %vm6259, %v8796, 0
      %v8819 = vsel %vm6259, %v8797, 0
      %v8822 = vsel %vm6259, %v8798, 0
      %v8825 = vsel %vm6259, %v8799, 0
      %v8828 = vsel %vm6259, %v8800, 0
      %v8831 = vsel %vm6259, %v8801, 0
      %v8834 = vsel %vm6259, %v8802, 0
      %8836 = vmatprep.subr.bf16.mxu0 0
      %8837 = vmatpush1.bf16.msra.mxu0 %v8810
      %8838 = vmatprep.subr.bf16.mxu0 0
      %8839 = vmatpush1.bf16.msra.mxu0 0
      %8840 = vmatprep.subr.bf16.mxu0 0
      %8841 = vmatpush1.bf16.msra.mxu0 0
      %8842 = vmatprep.subr.bf16.mxu0 0
      %8843 = vmatpush1.bf16.msra.mxu0 0
      %8844 = vmatprep.subr.bf16.mxu0 0
      %8845 = vmatpush1.bf16.msra.mxu0 0
      %8846 = vmatprep.subr.bf16.mxu0 0
      %8847 = vmatpush1.bf16.msra.mxu0 0
      %8848 = vmatprep.subr.bf16.mxu0 0
      %8849 = vmatpush1.bf16.msra.mxu0 0
      %8850 = vmatprep.subr.bf16.mxu0 0
      %8851 = vmatpush1.bf16.msra.mxu0 0
      %8852 = vmatprep.subr.bf16.mxu0 0
      %8853 = vmatpush1.bf16.msra.mxu0 0
      %8854 = vmatprep.subr.bf16.mxu0 0
      %8855 = vmatpush1.bf16.msra.mxu0 0
      %8856 = vmatprep.subr.bf16.mxu0 0
      %8857 = vmatpush1.bf16.msra.mxu0 0
      %8858 = vmatprep.subr.bf16.mxu0 0
      %8859 = vmatpush1.bf16.msra.mxu0 0
      %8860 = vmatprep.subr.bf16.mxu0 0
      %8861 = vmatpush1.bf16.msra.mxu0 0
      %8862 = vmatprep.subr.bf16.mxu0 0
      %8863 = vmatpush1.bf16.msra.mxu0 0
      %8864 = vmatprep.subr.bf16.mxu0 0
      %8865 = vmatpush1.bf16.msra.mxu0 0
      %8866 = vmatprep.subr.bf16.mxu0 0
      %8867 = vmatpush1.bf16.msra.mxu0 0
      %8868 = vmatprep.mubr.bf16.mxu0 0
      %8869 = vmatmul.mubr.bf16.gmra.mrb[0].mxu0 %v8813
      %v8870 = vpop.f32.mrb[0].mxu0
      %v8871 = vadd.f32 0.0, %v8870
      %v8872 = vpop.f32.mrb[0].mxu0
      %v8873 = vpop.f32.mrb[0].mxu0
      %v8874 = vadd.f32 0.0, %v8873
      %v8875 = vpop.f32.mrb[0].mxu0
      %8876 = vmatprep.mubr.bf16.mxu0 0
      %8877 = vmatmul.mubr.bf16.gmra.mrb[0].mxu0 %v8816
      %v8878 = vpop.f32.mrb[0].mxu0
      %v8879 = vadd.f32 0.0, %v8878
      %v8880 = vpop.f32.mrb[0].mxu0
      %v8881 = vpop.f32.mrb[0].mxu0
      %v8882 = vadd.f32 0.0, %v8881
      %v8883 = vpop.f32.mrb[0].mxu0
      %8884 = vmatprep.mubr.bf16.mxu0 0
      %8885 = vmatmul.mubr.bf16.gmra.mrb[0].mxu0 %v8819
      %v8886 = vpop.f32.mrb[0].mxu0
      %v8887 = vadd.f32 0.0, %v8886
      %v8888 = vpop.f32.mrb[0].mxu0
      %v8889 = vpop.f32.mrb[0].mxu0
      %v8890 = vadd.f32 0.0, %v8889
      %v8891 = vpop.f32.mrb[0].mxu0
      %8892 = vmatprep.mubr.bf16.mxu0 0
      %8893 = vmatmul.mubr.bf16.gmra.mrb[0].mxu0 %v8822
      %v8894 = vpop.f32.mrb[0].mxu0
      %v8895 = vadd.f32 0.0, %v8894
      %v8896 = vpop.f32.mrb[0].mxu0
      %v8897 = vpop.f32.mrb[0].mxu0
      %v8898 = vadd.f32 0.0, %v8897
      %v8899 = vpop.f32.mrb[0].mxu0
      %8900 = vmatprep.mubr.bf16.mxu0 0
      %8901 = vmatmul.mubr.bf16.gmra.mrb[0].mxu0 %v8825
      %v8902 = vpop.f32.mrb[0].mxu0
      %v8903 = vadd.f32 0.0, %v8902
      %v8904 = vpop.f32.mrb[0].mxu0
      %v8905 = vpop.f32.mrb[0].mxu0
      %v8906 = vadd.f32 0.0, %v8905
      %v8907 = vpop.f32.mrb[0].mxu0
      %8908 = vmatprep.mubr.bf16.mxu0 0
      %8909 = vmatmul.mubr.bf16.gmra.mrb[0].mxu0 %v8828
      %v8910 = vpop.f32.mrb[0].mxu0
      %v8911 = vadd.f32 0.0, %v8910
      %v8912 = vpop.f32.mrb[0].mxu0
      %v8913 = vpop.f32.mrb[0].mxu0
      %v8914 = vadd.f32 0.0, %v8913
      %v8915 = vpop.f32.mrb[0].mxu0
      %8916 = vmatprep.mubr.bf16.mxu0 0
      %8917 = vmatmul.mubr.bf16.gmra.mrb[0].mxu0 %v8831
      %v8918 = vpop.f32.mrb[0].mxu0
      %v8919 = vadd.f32 0.0, %v8918
      %v8920 = vpop.f32.mrb[0].mxu0
      %v8921 = vpop.f32.mrb[0].mxu0
      %v8922 = vadd.f32 0.0, %v8921
      %v8923 = vpop.f32.mrb[0].mxu0
      %8924 = vmatprep.mubr.bf16.mxu0 0
      %8925 = vmatmul.mubr.bf16.gmra.mrb[0].mxu0 %v8834
      %v8926 = vpop.f32.mrb[0].mxu0
      %v8927 = vadd.f32 0.0, %v8926
      %v8928 = vpop.f32.mrb[0].mxu0
      %v8929 = vpop.f32.mrb[0].mxu0
      %v8930 = vadd.f32 0.0, %v8929
      %v8931 = vpop.f32.mrb[0].mxu0
      %8932 = vdwg.mxu0
      %v8933 = vadd.f32 %v8717, %v8871
      %v8934 = vadd.f32 %v8720, %v8874
      %v8935 = vadd.f32 %v8725, %v8879
      %v8936 = vadd.f32 %v8728, %v8882
      %v8937 = vadd.f32 %v8733, %v8887
      %v8938 = vadd.f32 %v8736, %v8890
      %v8939 = vadd.f32 %v8741, %v8895
      %v8940 = vadd.f32 %v8744, %v8898
      %v8941 = vadd.f32 %v8749, %v8903
      %v8942 = vadd.f32 %v8752, %v8906
      %v8943 = vadd.f32 %v8757, %v8911
      %v8944 = vadd.f32 %v8760, %v8914
      %v8945 = vadd.f32 %v8765, %v8919
      %v8946 = vadd.f32 %v8768, %v8922
      %v8947 = vadd.f32 %v8773, %v8927
      %v8948 = vadd.f32 %v8776, %v8930
      %v8949 = vld [vmem:[%s8] sm:$0x1]
      %v8951 = vlaneseq
      %v8952 = vshrl.u32 %v8951, 7
      %v8953 = vsub.s32 0, %v8952
      %v8954 = vrot.slane %v8949, %v8953
      %v8956 = vadd.f32 %v8933, %v8954
      %v8957 = vadd.f32 %v8934, %v8954
      %v8958 = vadd.f32 %v8935, %v8954
      %v8959 = vadd.f32 %v8936, %v8954
      %v8960 = vadd.f32 %v8937, %v8954
      %v8961 = vadd.f32 %v8938, %v8954
      %v8962 = vadd.f32 %v8939, %v8954
      %v8963 = vadd.f32 %v8940, %v8954
      %v8964 = vadd.f32 %v8941, %v8954
      %v8965 = vadd.f32 %v8942, %v8954
      %v8966 = vadd.f32 %v8943, %v8954
      %v8967 = vadd.f32 %v8944, %v8954
      %v8968 = vadd.f32 %v8945, %v8954
      %v8969 = vadd.f32 %v8946, %v8954
      %v8970 = vadd.f32 %v8947, %v8954
      %v8971 = vadd.f32 %v8948, %v8954
      %v8972 = vmax.f32 %v8956, 0.0
      %v8973 = vmax.f32 %v8957, 0.0
      %v8974 = vmax.f32 %v8958, 0.0
      %v8975 = vmax.f32 %v8959, 0.0
      %v8976 = vmax.f32 %v8960, 0.0
      %v8977 = vmax.f32 %v8961, 0.0
      %v8978 = vmax.f32 %v8962, 0.0
      %v8979 = vmax.f32 %v8963, 0.0
      %v8980 = vmax.f32 %v8964, 0.0
      %v8981 = vmax.f32 %v8965, 0.0
      %v8982 = vmax.f32 %v8966, 0.0
      %v8983 = vmax.f32 %v8967, 0.0
      %v8984 = vmax.f32 %v8968, 0.0
      %v8985 = vmax.f32 %v8969, 0.0
      %v8986 = vmax.f32 %v8970, 0.0
      %v8987 = vmax.f32 %v8971, 0.0
      %8988 = vst.msk [vmem:[#allocation2] sm:$0xff] %vm548, %v8972
      %8989 = vst.msk [vmem:[#allocation2 + $0x8] sm:$0xff] %vm548, %v8973
      %8990 = vst.msk [vmem:[#allocation2 + $0x10] sm:$0xff] %vm548, %v8974
      %8991 = vst.msk [vmem:[#allocation2 + $0x18] sm:$0xff] %vm548, %v8975
      %8992 = vst.msk [vmem:[#allocation2 + $0x20] sm:$0xff] %vm548, %v8976
      %8993 = vst.msk [vmem:[#allocation2 + $0x28] sm:$0xff] %vm548, %v8977
      %8994 = vst.msk [vmem:[#allocation2 + $0x30] sm:$0xff] %vm548, %v8978
      %8995 = vst.msk [vmem:[#allocation2 + $0x38] sm:$0xff] %vm548, %v8979
      %8996 = vst.msk [vmem:[#allocation2 + $0x40] sm:$0xff] %vm548, %v8980
      %8997 = vst.msk [vmem:[#allocation2 + $0x48] sm:$0xff] %vm548, %v8981
      %8998 = vst.msk [vmem:[#allocation2 + $0x50] sm:$0xff] %vm548, %v8982
      %8999 = vst.msk [vmem:[#allocation2 + $0x58] sm:$0xff] %vm548, %v8983
      %9000 = vst.msk [vmem:[#allocation2 + $0x60] sm:$0xff] %vm548, %v8984
      %9001 = vst.msk [vmem:[#allocation2 + $0x68] sm:$0xff] %vm548, %v8985
      %9002 = vst.msk [vmem:[#allocation2 + $0x70] sm:$0xff] %vm548, %v8986
      %9003 = vst.msk [vmem:[#allocation2 + $0x78] sm:$0xff] %vm548, %v8987
      %v9004 = vld [vmem:[#allocation2] sm:$0xff]
      %v9005 = vld [vmem:[#allocation2 + $0x8] sm:$0xff]
      %v9006 = vld [vmem:[#allocation2 + $0x10] sm:$0xff]
      %v9007 = vld [vmem:[#allocation2 + $0x18] sm:$0xff]
      %v9008 = vld [vmem:[#allocation2 + $0x20] sm:$0xff]
      %v9009 = vld [vmem:[#allocation2 + $0x28] sm:$0xff]
      %v9010 = vld [vmem:[#allocation2 + $0x30] sm:$0xff]
      %v9011 = vld [vmem:[#allocation2 + $0x38] sm:$0xff]
      %v9012 = vld [vmem:[#allocation2 + $0x40] sm:$0xff]
      %v9013 = vld [vmem:[#allocation2 + $0x48] sm:$0xff]
      %v9014 = vld [vmem:[#allocation2 + $0x50] sm:$0xff]
      %v9015 = vld [vmem:[#allocation2 + $0x58] sm:$0xff]
      %v9016 = vld [vmem:[#allocation2 + $0x60] sm:$0xff]
      %v9017 = vld [vmem:[#allocation2 + $0x68] sm:$0xff]
      %v9018 = vld [vmem:[#allocation2 + $0x70] sm:$0xff]
      %v9019 = vld [vmem:[#allocation2 + $0x78] sm:$0xff]
      %v9020 = vpack.c.bf16 %v9005, %v9004
      %v9021 = vpack.c.bf16 %v9007, %v9006
      %v9022 = vpack.c.bf16 %v9009, %v9008
      %v9023 = vpack.c.bf16 %v9011, %v9010
      %v9024 = vpack.c.bf16 %v9013, %v9012
      %v9025 = vpack.c.bf16 %v9015, %v9014
      %v9026 = vpack.c.bf16 %v9017, %v9016
      %v9027 = vpack.c.bf16 %v9019, %v9018
      %v9028 = vld [vmem:[%s9] sm:$0xf]
      %v9029 = vld [vmem:[%s9 + $0x4] sm:$0xf]
      %v9030 = vld [vmem:[%s9 + $0x8] sm:$0xf]
      %v9031 = vld [vmem:[%s9 + $0xc] sm:$0xf]
      %v9032 = vld [vmem:[%s9 + $0x10] sm:$0xf]
      %v9033 = vld [vmem:[%s9 + $0x14] sm:$0xf]
      %v9034 = vld [vmem:[%s9 + $0x18] sm:$0xf]
      %v9035 = vld [vmem:[%s9 + $0x1c] sm:$0xf]
      %v9036 = vld [vmem:[#allocation2 + $0x1] sm:$0xff]
      %v9037 = vld [vmem:[#allocation2 + $0x9] sm:$0xff]
      %v9038 = vld [vmem:[#allocation2 + $0x11] sm:$0xff]
      %v9039 = vld [vmem:[#allocation2 + $0x19] sm:$0xff]
      %v9040 = vld [vmem:[#allocation2 + $0x21] sm:$0xff]
      %v9041 = vld [vmem:[#allocation2 + $0x29] sm:$0xff]
      %v9042 = vld [vmem:[#allocation2 + $0x31] sm:$0xff]
      %v9043 = vld [vmem:[#allocation2 + $0x39] sm:$0xff]
      %v9044 = vld [vmem:[#allocation2 + $0x41] sm:$0xff]
      %v9045 = vld [vmem:[#allocation2 + $0x49] sm:$0xff]
      %v9046 = vld [vmem:[#allocation2 + $0x51] sm:$0xff]
      %v9047 = vld [vmem:[#allocation2 + $0x59] sm:$0xff]
      %v9048 = vld [vmem:[#allocation2 + $0x61] sm:$0xff]
      %v9049 = vld [vmem:[#allocation2 + $0x69] sm:$0xff]
      %v9050 = vld [vmem:[#allocation2 + $0x71] sm:$0xff]
      %v9051 = vld [vmem:[#allocation2 + $0x79] sm:$0xff]
      %v9052 = vpack.c.bf16 %v9037, %v9036
      %v9053 = vpack.c.bf16 %v9039, %v9038
      %v9054 = vpack.c.bf16 %v9041, %v9040
      %v9055 = vpack.c.bf16 %v9043, %v9042
      %v9056 = vpack.c.bf16 %v9045, %v9044
      %v9057 = vpack.c.bf16 %v9047, %v9046
      %v9058 = vpack.c.bf16 %v9049, %v9048
      %v9059 = vpack.c.bf16 %v9051, %v9050
      %s9060 = scalar_lea.vmem %s9, 32
      %v9061 = vld [vmem:[%s9060] sm:$0xf]
      %v9062 = vld [vmem:[%s9060 + $0x4] sm:$0xf]
      %v9063 = vld [vmem:[%s9060 + $0x8] sm:$0xf]
      %v9064 = vld [vmem:[%s9060 + $0xc] sm:$0xf]
      %v9065 = vld [vmem:[%s9060 + $0x10] sm:$0xf]
      %v9066 = vld [vmem:[%s9060 + $0x14] sm:$0xf]
      %v9067 = vld [vmem:[%s9060 + $0x18] sm:$0xf]
      %v9068 = vld [vmem:[%s9060 + $0x1c] sm:$0xf]
      %v9077 = vunpack.c.l.b16 %v9061
      %v9078 = vunpack.c.l.b16 %v9062
      %v9079 = vunpack.c.l.b16 %v9063
      %v9080 = vunpack.c.l.b16 %v9064
      %v9081 = vunpack.c.l.b16 %v9065
      %v9082 = vunpack.c.l.b16 %v9066
      %v9083 = vunpack.c.l.b16 %v9067
      %v9084 = vunpack.c.l.b16 %v9068
      %v9085 = vpack.c.b16 %v9078, %v9077
      %v9086 = vpack.c.b16 %v9080, %v9079
      %v9087 = vpack.c.b16 %v9082, %v9081
      %v9088 = vpack.c.b16 %v9084, %v9083
      %v9094 = vsel %vm548, %v9052, 0
      %v9097 = vsel %vm548, %v9053, 0
      %v9100 = vsel %vm548, %v9054, 0
      %v9103 = vsel %vm548, %v9055, 0
      %v9106 = vsel %vm548, %v9056, 0
      %v9109 = vsel %vm548, %v9057, 0
      %v9112 = vsel %vm548, %v9058, 0
      %v9115 = vsel %vm548, %v9059, 0
      %9117 = vmatprep.subr.bf16.mxu0 0
      %9118 = vmatpush1.bf16.msra.mxu0 %v9085
      %9119 = vmatprep.subr.bf16.mxu0 0
      %9120 = vmatpush1.bf16.msra.mxu0 %v9086
      %9121 = vmatprep.subr.bf16.mxu0 0
      %9122 = vmatpush1.bf16.msra.mxu0 %v9087
      %9123 = vmatprep.subr.bf16.mxu0 0
      %9124 = vmatpush1.bf16.msra.mxu0 %v9088
      %9125 = vmatprep.subr.bf16.mxu0 0
      %9126 = vmatpush1.bf16.msra.mxu0 0
      %9127 = vmatprep.subr.bf16.mxu0 0
      %9128 = vmatpush1.bf16.msra.mxu0 0
      %9129 = vmatprep.subr.bf16.mxu0 0
      %9130 = vmatpush1.bf16.msra.mxu0 0
      %9131 = vmatprep.subr.bf16.mxu0 0
      %9132 = vmatpush1.bf16.msra.mxu0 0
      %9133 = vmatprep.subr.bf16.mxu0 0
      %9134 = vmatpush1.bf16.msra.mxu0 0
      %9135 = vmatprep.subr.bf16.mxu0 0
      %9136 = vmatpush1.bf16.msra.mxu0 0
      %9137 = vmatprep.subr.bf16.mxu0 0
      %9138 = vmatpush1.bf16.msra.mxu0 0
      %9139 = vmatprep.subr.bf16.mxu0 0
      %9140 = vmatpush1.bf16.msra.mxu0 0
      %9141 = vmatprep.subr.bf16.mxu0 0
      %9142 = vmatpush1.bf16.msra.mxu0 0
      %9143 = vmatprep.subr.bf16.mxu0 0
      %9144 = vmatpush1.bf16.msra.mxu0 0
      %9145 = vmatprep.subr.bf16.mxu0 0
      %9146 = vmatpush1.bf16.msra.mxu0 0
      %9147 = vmatprep.subr.bf16.mxu0 0
      %9148 = vmatpush1.bf16.msra.mxu0 0
      %9149 = vmatprep.mubr.bf16.mxu0 0
      %9150 = vmatmul.mubr.bf16.gmra.mrb[0].mxu0 %v9094
      %v9151 = vpop.f32.mrb[0].mxu0
      %v9152 = vadd.f32 0.0, %v9151
      %v9153 = vpop.f32.mrb[0].mxu0
      %v9154 = vpop.f32.mrb[0].mxu0
      %v9155 = vadd.f32 0.0, %v9154
      %v9156 = vpop.f32.mrb[0].mxu0
      %9157 = vmatprep.mubr.bf16.mxu0 0
      %9158 = vmatmul.mubr.bf16.gmra.mrb[0].mxu0 %v9097
      %v9159 = vpop.f32.mrb[0].mxu0
      %v9160 = vadd.f32 0.0, %v9159
      %v9161 = vpop.f32.mrb[0].mxu0
      %v9162 = vpop.f32.mrb[0].mxu0
      %v9163 = vadd.f32 0.0, %v9162
      %v9164 = vpop.f32.mrb[0].mxu0
      %9165 = vmatprep.mubr.bf16.mxu0 0
      %9166 = vmatmul.mubr.bf16.gmra.mrb[0].mxu0 %v9100
      %v9167 = vpop.f32.mrb[0].mxu0
      %v9168 = vadd.f32 0.0, %v9167
      %v9169 = vpop.f32.mrb[0].mxu0
      %v9170 = vpop.f32.mrb[0].mxu0
      %v9171 = vadd.f32 0.0, %v9170
      %v9172 = vpop.f32.mrb[0].mxu0
      %9173 = vmatprep.mubr.bf16.mxu0 0
      %9174 = vmatmul.mubr.bf16.gmra.mrb[0].mxu0 %v9103
      %v9175 = vpop.f32.mrb[0].mxu0
      %v9176 = vadd.f32 0.0, %v9175
      %v9177 = vpop.f32.mrb[0].mxu0
      %v9178 = vpop.f32.mrb[0].mxu0
      %v9179 = vadd.f32 0.0, %v9178
      %v9180 = vpop.f32.mrb[0].mxu0
      %9181 = vmatprep.mubr.bf16.mxu0 0
      %9182 = vmatmul.mubr.bf16.gmra.mrb[0].mxu0 %v9106
      %v9183 = vpop.f32.mrb[0].mxu0
      %v9184 = vadd.f32 0.0, %v9183
      %v9185 = vpop.f32.mrb[0].mxu0
      %v9186 = vpop.f32.mrb[0].mxu0
      %v9187 = vadd.f32 0.0, %v9186
      %v9188 = vpop.f32.mrb[0].mxu0
      %9189 = vmatprep.mubr.bf16.mxu0 0
      %9190 = vmatmul.mubr.bf16.gmra.mrb[0].mxu0 %v9109
      %v9191 = vpop.f32.mrb[0].mxu0
      %v9192 = vadd.f32 0.0, %v9191
      %v9193 = vpop.f32.mrb[0].mxu0
      %v9194 = vpop.f32.mrb[0].mxu0
      %v9195 = vadd.f32 0.0, %v9194
      %v9196 = vpop.f32.mrb[0].mxu0
      %9197 = vmatprep.mubr.bf16.mxu0 0
      %9198 = vmatmul.mubr.bf16.gmra.mrb[0].mxu0 %v9112
      %v9199 = vpop.f32.mrb[0].mxu0
      %v9200 = vadd.f32 0.0, %v9199
      %v9201 = vpop.f32.mrb[0].mxu0
      %v9202 = vpop.f32.mrb[0].mxu0
      %v9203 = vadd.f32 0.0, %v9202
      %v9204 = vpop.f32.mrb[0].mxu0
      %9205 = vmatprep.mubr.bf16.mxu0 0
      %9206 = vmatmul.mubr.bf16.gmra.mrb[0].mxu0 %v9115
      %v9207 = vpop.f32.mrb[0].mxu0
      %v9208 = vadd.f32 0.0, %v9207
      %v9209 = vpop.f32.mrb[0].mxu0
      %v9210 = vpop.f32.mrb[0].mxu0
      %v9211 = vadd.f32 0.0, %v9210
      %v9212 = vpop.f32.mrb[0].mxu0
      %9213 = vdwg.mxu0
      %v9222 = vunpack.c.l.b16 %v9028
      %v9223 = vunpack.c.l.b16 %v9029
      %v9224 = vunpack.c.l.b16 %v9030
      %v9225 = vunpack.c.l.b16 %v9031
      %v9226 = vunpack.c.l.b16 %v9032
      %v9227 = vunpack.c.l.b16 %v9033
      %v9228 = vunpack.c.l.b16 %v9034
      %v9229 = vunpack.c.l.b16 %v9035
      %v9230 = vpack.c.b16 %v9223, %v9222
      %v9231 = vpack.c.b16 %v9225, %v9224
      %v9232 = vpack.c.b16 %v9227, %v9226
      %v9233 = vpack.c.b16 %v9229, %v9228
      %v9239 = vsel %vm548, %v9020, 0
      %v9242 = vsel %vm548, %v9021, 0
      %v9245 = vsel %vm548, %v9022, 0
      %v9248 = vsel %vm548, %v9023, 0
      %v9251 = vsel %vm548, %v9024, 0
      %v9254 = vsel %vm548, %v9025, 0
      %v9257 = vsel %vm548, %v9026, 0
      %v9260 = vsel %vm548, %v9027, 0
      %9262 = vmatprep.subr.bf16.mxu0 0
      %9263 = vmatpush1.bf16.msra.mxu0 %v9230
      %9264 = vmatprep.subr.bf16.mxu0 0
      %9265 = vmatpush1.bf16.msra.mxu0 %v9231
      %9266 = vmatprep.subr.bf16.mxu0 0
      %9267 = vmatpush1.bf16.msra.mxu0 %v9232
      %9268 = vmatprep.subr.bf16.mxu0 0
      %9269 = vmatpush1.bf16.msra.mxu0 %v9233
      %9270 = vmatprep.subr.bf16.mxu0 0
      %9271 = vmatpush1.bf16.msra.mxu0 0
      %9272 = vmatprep.subr.bf16.mxu0 0
      %9273 = vmatpush1.bf16.msra.mxu0 0
      %9274 = vmatprep.subr.bf16.mxu0 0
      %9275 = vmatpush1.bf16.msra.mxu0 0
      %9276 = vmatprep.subr.bf16.mxu0 0
      %9277 = vmatpush1.bf16.msra.mxu0 0
      %9278 = vmatprep.subr.bf16.mxu0 0
      %9279 = vmatpush1.bf16.msra.mxu0 0
      %9280 = vmatprep.subr.bf16.mxu0 0
      %9281 = vmatpush1.bf16.msra.mxu0 0
      %9282 = vmatprep.subr.bf16.mxu0 0
      %9283 = vmatpush1.bf16.msra.mxu0 0
      %9284 = vmatprep.subr.bf16.mxu0 0
      %9285 = vmatpush1.bf16.msra.mxu0 0
      %9286 = vmatprep.subr.bf16.mxu0 0
      %9287 = vmatpush1.bf16.msra.mxu0 0
      %9288 = vmatprep.subr.bf16.mxu0 0
      %9289 = vmatpush1.bf16.msra.mxu0 0
      %9290 = vmatprep.subr.bf16.mxu0 0
      %9291 = vmatpush1.bf16.msra.mxu0 0
      %9292 = vmatprep.subr.bf16.mxu0 0
      %9293 = vmatpush1.bf16.msra.mxu0 0
      %9294 = vmatprep.mubr.bf16.mxu0 0
      %9295 = vmatmul.mubr.bf16.gmra.mrb[0].mxu0 %v9239
      %v9296 = vpop.f32.mrb[0].mxu0
      %v9297 = vadd.f32 %v9152, %v9296
      %v9298 = vpop.f32.mrb[0].mxu0
      %v9299 = vpop.f32.mrb[0].mxu0
      %v9300 = vadd.f32 %v9155, %v9299
      %v9301 = vpop.f32.mrb[0].mxu0
      %9302 = vmatprep.mubr.bf16.mxu0 0
      %9303 = vmatmul.mubr.bf16.gmra.mrb[0].mxu0 %v9242
      %v9304 = vpop.f32.mrb[0].mxu0
      %v9305 = vadd.f32 %v9160, %v9304
      %v9306 = vpop.f32.mrb[0].mxu0
      %v9307 = vpop.f32.mrb[0].mxu0
      %v9308 = vadd.f32 %v9163, %v9307
      %v9309 = vpop.f32.mrb[0].mxu0
      %9310 = vmatprep.mubr.bf16.mxu0 0
      %9311 = vmatmul.mubr.bf16.gmra.mrb[0].mxu0 %v9245
      %v9312 = vpop.f32.mrb[0].mxu0
      %v9313 = vadd.f32 %v9168, %v9312
      %v9314 = vpop.f32.mrb[0].mxu0
      %v9315 = vpop.f32.mrb[0].mxu0
      %v9316 = vadd.f32 %v9171, %v9315
      %v9317 = vpop.f32.mrb[0].mxu0
      %9318 = vmatprep.mubr.bf16.mxu0 0
      %9319 = vmatmul.mubr.bf16.gmra.mrb[0].mxu0 %v9248
      %v9320 = vpop.f32.mrb[0].mxu0
      %v9321 = vadd.f32 %v9176, %v9320
      %v9322 = vpop.f32.mrb[0].mxu0
      %v9323 = vpop.f32.mrb[0].mxu0
      %v9324 = vadd.f32 %v9179, %v9323
      %v9325 = vpop.f32.mrb[0].mxu0
      %9326 = vmatprep.mubr.bf16.mxu0 0
      %9327 = vmatmul.mubr.bf16.gmra.mrb[0].mxu0 %v9251
      %v9328 = vpop.f32.mrb[0].mxu0
      %v9329 = vadd.f32 %v9184, %v9328
      %v9330 = vpop.f32.mrb[0].mxu0
      %v9331 = vpop.f32.mrb[0].mxu0
      %v9332 = vadd.f32 %v9187, %v9331
      %v9333 = vpop.f32.mrb[0].mxu0
      %9334 = vmatprep.mubr.bf16.mxu0 0
      %9335 = vmatmul.mubr.bf16.gmra.mrb[0].mxu0 %v9254
      %v9336 = vpop.f32.mrb[0].mxu0
      %v9337 = vadd.f32 %v9192, %v9336
      %v9338 = vpop.f32.mrb[0].mxu0
      %v9339 = vpop.f32.mrb[0].mxu0
      %v9340 = vadd.f32 %v9195, %v9339
      %v9341 = vpop.f32.mrb[0].mxu0
      %9342 = vmatprep.mubr.bf16.mxu0 0
      %9343 = vmatmul.mubr.bf16.gmra.mrb[0].mxu0 %v9257
      %v9344 = vpop.f32.mrb[0].mxu0
      %v9345 = vadd.f32 %v9200, %v9344
      %v9346 = vpop.f32.mrb[0].mxu0
      %v9347 = vpop.f32.mrb[0].mxu0
      %v9348 = vadd.f32 %v9203, %v9347
      %v9349 = vpop.f32.mrb[0].mxu0
      %9350 = vmatprep.mubr.bf16.mxu0 0
      %9351 = vmatmul.mubr.bf16.gmra.mrb[0].mxu0 %v9260
      %v9352 = vpop.f32.mrb[0].mxu0
      %v9353 = vadd.f32 %v9208, %v9352
      %v9354 = vpop.f32.mrb[0].mxu0
      %v9355 = vpop.f32.mrb[0].mxu0
      %v9356 = vadd.f32 %v9211, %v9355
      %v9357 = vpop.f32.mrb[0].mxu0
      %9358 = vdwg.mxu0
      %v9359 = vld [vmem:[#allocation2 + $0x2] sm:$0xff]
      %v9360 = vld [vmem:[#allocation2 + $0xa] sm:$0xff]
      %v9361 = vld [vmem:[#allocation2 + $0x12] sm:$0xff]
      %v9362 = vld [vmem:[#allocation2 + $0x1a] sm:$0xff]
      %v9363 = vld [vmem:[#allocation2 + $0x22] sm:$0xff]
      %v9364 = vld [vmem:[#allocation2 + $0x2a] sm:$0xff]
      %v9365 = vld [vmem:[#allocation2 + $0x32] sm:$0xff]
      %v9366 = vld [vmem:[#allocation2 + $0x3a] sm:$0xff]
      %v9367 = vld [vmem:[#allocation2 + $0x42] sm:$0xff]
      %v9368 = vld [vmem:[#allocation2 + $0x4a] sm:$0xff]
      %v9369 = vld [vmem:[#allocation2 + $0x52] sm:$0xff]
      %v9370 = vld [vmem:[#allocation2 + $0x5a] sm:$0xff]
      %v9371 = vld [vmem:[#allocation2 + $0x62] sm:$0xff]
      %v9372 = vld [vmem:[#allocation2 + $0x6a] sm:$0xff]
      %v9373 = vld [vmem:[#allocation2 + $0x72] sm:$0xff]
      %v9374 = vld [vmem:[#allocation2 + $0x7a] sm:$0xff]
      %v9375 = vpack.c.bf16 %v9360, %v9359
      %v9376 = vpack.c.bf16 %v9362, %v9361
      %v9377 = vpack.c.bf16 %v9364, %v9363
      %v9378 = vpack.c.bf16 %v9366, %v9365
      %v9379 = vpack.c.bf16 %v9368, %v9367
      %v9380 = vpack.c.bf16 %v9370, %v9369
      %v9381 = vpack.c.bf16 %v9372, %v9371
      %v9382 = vpack.c.bf16 %v9374, %v9373
      %s9383 = scalar_lea.vmem %s9, 64
      %v9384 = vld [vmem:[%s9383] sm:$0xf]
      %v9385 = vld [vmem:[%s9383 + $0x4] sm:$0xf]
      %v9386 = vld [vmem:[%s9383 + $0x8] sm:$0xf]
      %v9387 = vld [vmem:[%s9383 + $0xc] sm:$0xf]
      %v9388 = vld [vmem:[%s9383 + $0x10] sm:$0xf]
      %v9389 = vld [vmem:[%s9383 + $0x14] sm:$0xf]
      %v9390 = vld [vmem:[%s9383 + $0x18] sm:$0xf]
      %v9391 = vld [vmem:[%s9383 + $0x1c] sm:$0xf]
      %v9400 = vunpack.c.l.b16 %v9384
      %v9401 = vunpack.c.l.b16 %v9385
      %v9402 = vunpack.c.l.b16 %v9386
      %v9403 = vunpack.c.l.b16 %v9387
      %v9404 = vunpack.c.l.b16 %v9388
      %v9405 = vunpack.c.l.b16 %v9389
      %v9406 = vunpack.c.l.b16 %v9390
      %v9407 = vunpack.c.l.b16 %v9391
      %v9408 = vpack.c.b16 %v9401, %v9400
      %v9409 = vpack.c.b16 %v9403, %v9402
      %v9410 = vpack.c.b16 %v9405, %v9404
      %v9411 = vpack.c.b16 %v9407, %v9406
      %v9417 = vsel %vm548, %v9375, 0
      %v9420 = vsel %vm548, %v9376, 0
      %v9423 = vsel %vm548, %v9377, 0
      %v9426 = vsel %vm548, %v9378, 0
      %v9429 = vsel %vm548, %v9379, 0
      %v9432 = vsel %vm548, %v9380, 0
      %v9435 = vsel %vm548, %v9381, 0
      %v9438 = vsel %vm548, %v9382, 0
      %9440 = vmatprep.subr.bf16.mxu0 0
      %9441 = vmatpush1.bf16.msra.mxu0 %v9408
      %9442 = vmatprep.subr.bf16.mxu0 0
      %9443 = vmatpush1.bf16.msra.mxu0 %v9409
      %9444 = vmatprep.subr.bf16.mxu0 0
      %9445 = vmatpush1.bf16.msra.mxu0 %v9410
      %9446 = vmatprep.subr.bf16.mxu0 0
      %9447 = vmatpush1.bf16.msra.mxu0 %v9411
      %9448 = vmatprep.subr.bf16.mxu0 0
      %9449 = vmatpush1.bf16.msra.mxu0 0
      %9450 = vmatprep.subr.bf16.mxu0 0
      %9451 = vmatpush1.bf16.msra.mxu0 0
      %9452 = vmatprep.subr.bf16.mxu0 0
      %9453 = vmatpush1.bf16.msra.mxu0 0
      %9454 = vmatprep.subr.bf16.mxu0 0
      %9455 = vmatpush1.bf16.msra.mxu0 0
      %9456 = vmatprep.subr.bf16.mxu0 0
      %9457 = vmatpush1.bf16.msra.mxu0 0
      %9458 = vmatprep.subr.bf16.mxu0 0
      %9459 = vmatpush1.bf16.msra.mxu0 0
      %9460 = vmatprep.subr.bf16.mxu0 0
      %9461 = vmatpush1.bf16.msra.mxu0 0
      %9462 = vmatprep.subr.bf16.mxu0 0
      %9463 = vmatpush1.bf16.msra.mxu0 0
      %9464 = vmatprep.subr.bf16.mxu0 0
      %9465 = vmatpush1.bf16.msra.mxu0 0
      %9466 = vmatprep.subr.bf16.mxu0 0
      %9467 = vmatpush1.bf16.msra.mxu0 0
      %9468 = vmatprep.subr.bf16.mxu0 0
      %9469 = vmatpush1.bf16.msra.mxu0 0
      %9470 = vmatprep.subr.bf16.mxu0 0
      %9471 = vmatpush1.bf16.msra.mxu0 0
      %9472 = vmatprep.mubr.bf16.mxu0 0
      %9473 = vmatmul.mubr.bf16.gmra.mrb[0].mxu0 %v9417
      %v9474 = vpop.f32.mrb[0].mxu0
      %v9475 = vadd.f32 0.0, %v9474
      %v9476 = vpop.f32.mrb[0].mxu0
      %v9477 = vpop.f32.mrb[0].mxu0
      %v9478 = vadd.f32 0.0, %v9477
      %v9479 = vpop.f32.mrb[0].mxu0
      %9480 = vmatprep.mubr.bf16.mxu0 0
      %9481 = vmatmul.mubr.bf16.gmra.mrb[0].mxu0 %v9420
      %v9482 = vpop.f32.mrb[0].mxu0
      %v9483 = vadd.f32 0.0, %v9482
      %v9484 = vpop.f32.mrb[0].mxu0
      %v9485 = vpop.f32.mrb[0].mxu0
      %v9486 = vadd.f32 0.0, %v9485
      %v9487 = vpop.f32.mrb[0].mxu0
      %9488 = vmatprep.mubr.bf16.mxu0 0
      %9489 = vmatmul.mubr.bf16.gmra.mrb[0].mxu0 %v9423
      %v9490 = vpop.f32.mrb[0].mxu0
      %v9491 = vadd.f32 0.0, %v9490
      %v9492 = vpop.f32.mrb[0].mxu0
      %v9493 = vpop.f32.mrb[0].mxu0
      %v9494 = vadd.f32 0.0, %v9493
      %v9495 = vpop.f32.mrb[0].mxu0
      %9496 = vmatprep.mubr.bf16.mxu0 0
      %9497 = vmatmul.mubr.bf16.gmra.mrb[0].mxu0 %v9426
      %v9498 = vpop.f32.mrb[0].mxu0
      %v9499 = vadd.f32 0.0, %v9498
      %v9500 = vpop.f32.mrb[0].mxu0
      %v9501 = vpop.f32.mrb[0].mxu0
      %v9502 = vadd.f32 0.0, %v9501
      %v9503 = vpop.f32.mrb[0].mxu0
      %9504 = vmatprep.mubr.bf16.mxu0 0
      %9505 = vmatmul.mubr.bf16.gmra.mrb[0].mxu0 %v9429
      %v9506 = vpop.f32.mrb[0].mxu0
      %v9507 = vadd.f32 0.0, %v9506
      %v9508 = vpop.f32.mrb[0].mxu0
      %v9509 = vpop.f32.mrb[0].mxu0
      %v9510 = vadd.f32 0.0, %v9509
      %v9511 = vpop.f32.mrb[0].mxu0
      %9512 = vmatprep.mubr.bf16.mxu0 0
      %9513 = vmatmul.mubr.bf16.gmra.mrb[0].mxu0 %v9432
      %v9514 = vpop.f32.mrb[0].mxu0
      %v9515 = vadd.f32 0.0, %v9514
      %v9516 = vpop.f32.mrb[0].mxu0
      %v9517 = vpop.f32.mrb[0].mxu0
      %v9518 = vadd.f32 0.0, %v9517
      %v9519 = vpop.f32.mrb[0].mxu0
      %9520 = vmatprep.mubr.bf16.mxu0 0
      %9521 = vmatmul.mubr.bf16.gmra.mrb[0].mxu0 %v9435
      %v9522 = vpop.f32.mrb[0].mxu0
      %v9523 = vadd.f32 0.0, %v9522
      %v9524 = vpop.f32.mrb[0].mxu0
      %v9525 = vpop.f32.mrb[0].mxu0
      %v9526 = vadd.f32 0.0, %v9525
      %v9527 = vpop.f32.mrb[0].mxu0
      %9528 = vmatprep.mubr.bf16.mxu0 0
      %9529 = vmatmul.mubr.bf16.gmra.mrb[0].mxu0 %v9438
      %v9530 = vpop.f32.mrb[0].mxu0
      %v9531 = vadd.f32 0.0, %v9530
      %v9532 = vpop.f32.mrb[0].mxu0
      %v9533 = vpop.f32.mrb[0].mxu0
      %v9534 = vadd.f32 0.0, %v9533
      %v9535 = vpop.f32.mrb[0].mxu0
      %9536 = vdwg.mxu0
      %v9537 = vadd.f32 %v9297, %v9475
      %v9538 = vadd.f32 %v9300, %v9478
      %v9539 = vadd.f32 %v9305, %v9483
      %v9540 = vadd.f32 %v9308, %v9486
      %v9541 = vadd.f32 %v9313, %v9491
      %v9542 = vadd.f32 %v9316, %v9494
      %v9543 = vadd.f32 %v9321, %v9499
      %v9544 = vadd.f32 %v9324, %v9502
      %v9545 = vadd.f32 %v9329, %v9507
      %v9546 = vadd.f32 %v9332, %v9510
      %v9547 = vadd.f32 %v9337, %v9515
      %v9548 = vadd.f32 %v9340, %v9518
      %v9549 = vadd.f32 %v9345, %v9523
      %v9550 = vadd.f32 %v9348, %v9526
      %v9551 = vadd.f32 %v9353, %v9531
      %v9552 = vadd.f32 %v9356, %v9534
      %v9553 = vld [vmem:[%s10] sm:$0x1]
      %v9555 = vlaneseq
      %v9556 = vshrl.u32 %v9555, 7
      %v9557 = vsub.s32 0, %v9556
      %v9558 = vrot.slane %v9553, %v9557
      %v9560 = vadd.f32 %v9537, %v9558
      %v9561 = vadd.f32 %v9538, %v9558
      %v9562 = vadd.f32 %v9539, %v9558
      %v9563 = vadd.f32 %v9540, %v9558
      %v9564 = vadd.f32 %v9541, %v9558
      %v9565 = vadd.f32 %v9542, %v9558
      %v9566 = vadd.f32 %v9543, %v9558
      %v9567 = vadd.f32 %v9544, %v9558
      %v9568 = vadd.f32 %v9545, %v9558
      %v9569 = vadd.f32 %v9546, %v9558
      %v9570 = vadd.f32 %v9547, %v9558
      %v9571 = vadd.f32 %v9548, %v9558
      %v9572 = vadd.f32 %v9549, %v9558
      %v9573 = vadd.f32 %v9550, %v9558
      %v9574 = vadd.f32 %v9551, %v9558
      %v9575 = vadd.f32 %v9552, %v9558
      %v9576 = vmax.f32 %v9560, 0.0
      %v9577 = vmax.f32 %v9561, 0.0
      %v9578 = vmax.f32 %v9562, 0.0
      %v9579 = vmax.f32 %v9563, 0.0
      %v9580 = vmax.f32 %v9564, 0.0
      %v9581 = vmax.f32 %v9565, 0.0
      %v9582 = vmax.f32 %v9566, 0.0
      %v9583 = vmax.f32 %v9567, 0.0
      %v9584 = vmax.f32 %v9568, 0.0
      %v9585 = vmax.f32 %v9569, 0.0
      %v9586 = vmax.f32 %v9570, 0.0
      %v9587 = vmax.f32 %v9571, 0.0
      %v9588 = vmax.f32 %v9572, 0.0
      %v9589 = vmax.f32 %v9573, 0.0
      %v9590 = vmax.f32 %v9574, 0.0
      %v9591 = vmax.f32 %v9575, 0.0
      %9592 = vst.msk [vmem:[#allocation3] sm:$0xff] %vm548, %v9576
      %9593 = vst.msk [vmem:[#allocation3 + $0x8] sm:$0xff] %vm548, %v9577
      %9594 = vst.msk [vmem:[#allocation3 + $0x10] sm:$0xff] %vm548, %v9578
      %9595 = vst.msk [vmem:[#allocation3 + $0x18] sm:$0xff] %vm548, %v9579
      %9596 = vst.msk [vmem:[#allocation3 + $0x20] sm:$0xff] %vm548, %v9580
      %9597 = vst.msk [vmem:[#allocation3 + $0x28] sm:$0xff] %vm548, %v9581
      %9598 = vst.msk [vmem:[#allocation3 + $0x30] sm:$0xff] %vm548, %v9582
      %9599 = vst.msk [vmem:[#allocation3 + $0x38] sm:$0xff] %vm548, %v9583
      %9600 = vst.msk [vmem:[#allocation3 + $0x40] sm:$0xff] %vm548, %v9584
      %9601 = vst.msk [vmem:[#allocation3 + $0x48] sm:$0xff] %vm548, %v9585
      %9602 = vst.msk [vmem:[#allocation3 + $0x50] sm:$0xff] %vm548, %v9586
      %9603 = vst.msk [vmem:[#allocation3 + $0x58] sm:$0xff] %vm548, %v9587
      %9604 = vst.msk [vmem:[#allocation3 + $0x60] sm:$0xff] %vm548, %v9588
      %9605 = vst.msk [vmem:[#allocation3 + $0x68] sm:$0xff] %vm548, %v9589
      %9606 = vst.msk [vmem:[#allocation3 + $0x70] sm:$0xff] %vm548, %v9590
      %9607 = vst.msk [vmem:[#allocation3 + $0x78] sm:$0xff] %vm548, %v9591
      %v9608 = vld [vmem:[#allocation3] ss:$2 sm:$0xff]
      %v9609 = vld [vmem:[%s6325] ss:$2 sm:$0xff]
      %v9610 = vld [vmem:[%s6327] ss:$2 sm:$0xff]
      %v9611 = vld [vmem:[%s6329] ss:$2 sm:$0xff]
      %v9612 = vld [vmem:[%s6331] ss:$2 sm:$0xff]
      %v9613 = vld [vmem:[%s6333] ss:$2 sm:$0xff]
      %v9614 = vld [vmem:[%s6335] ss:$2 sm:$0xff]
      %v9615 = vld [vmem:[%s6337] ss:$2 sm:$0xff]
      %v9616 = vld [vmem:[%s6387] ss:$2 sm:$0xff]
      %v9617 = vld [vmem:[%s6389] ss:$2 sm:$0xff]
      %v9618 = vld [vmem:[%s6391] ss:$2 sm:$0xff]
      %v9619 = vld [vmem:[%s6393] ss:$2 sm:$0xff]
      %v9620 = vld [vmem:[%s6395] ss:$2 sm:$0xff]
      %v9621 = vld [vmem:[%s6397] ss:$2 sm:$0xff]
      %v9622 = vld [vmem:[%s6399] ss:$2 sm:$0xff]
      %v9623 = vld [vmem:[%s6401] ss:$2 sm:$0xff]
      %v9624 = vmax.f32 %v9608, %v9616
      %v9625 = vmax.f32 %v9609, %v9617
      %v9626 = vmax.f32 %v9610, %v9618
      %v9627 = vmax.f32 %v9611, %v9619
      %v9628 = vmax.f32 %v9612, %v9620
      %v9629 = vmax.f32 %v9613, %v9621
      %v9630 = vmax.f32 %v9614, %v9622
      %v9631 = vmax.f32 %v9615, %v9623
      %9632 = vst.msk [vmem:[#allocation2] sm:$0xff] %vm548, %v9624
      %9633 = vst.msk [vmem:[#allocation2 + $0x8] sm:$0xff] %vm548, %v9625
      %9634 = vst.msk [vmem:[#allocation2 + $0x10] sm:$0xff] %vm548, %v9626
      %9635 = vst.msk [vmem:[#allocation2 + $0x18] sm:$0xff] %vm548, %v9627
      %9636 = vst.msk [vmem:[#allocation2 + $0x20] sm:$0xff] %vm548, %v9628
      %9637 = vst.msk [vmem:[#allocation2 + $0x28] sm:$0xff] %vm548, %v9629
      %9638 = vst.msk [vmem:[#allocation2 + $0x30] sm:$0xff] %vm548, %v9630
      %9639 = vst.msk [vmem:[#allocation2 + $0x38] sm:$0xff] %vm548, %v9631
      %v9640 = vld [vmem:[#allocation2] ss:$8 sm:$0xf]
      %v9641 = vld [vmem:[#allocation2] ss:$8 sm:$0xf0]
      %v9642 = vor.u32 %v9640, %v9641
      %v9643 = vpack.c.bf16 %v9642, %v9642
      %v9644 = vld [vmem:[%s11] sm:$0xf]
      %v9645 = vld [vmem:[%s11 + $0x4] sm:$0xf]
      %v9646 = vld [vmem:[%s11 + $0x8] sm:$0xf]
      %v9647 = vld [vmem:[%s11 + $0xc] sm:$0xf]
      %v9648 = vld [vmem:[%s11 + $0x10] sm:$0xf]
      %v9649 = vld [vmem:[%s11 + $0x14] sm:$0xf]
      %v9650 = vld [vmem:[%s11 + $0x18] sm:$0xf]
      %v9651 = vld [vmem:[%s11 + $0x1c] sm:$0xf]
      %v9652 = vld [vmem:[%s8408] ss:$8 sm:$0xf]
      %v9653 = vld [vmem:[%s8408] ss:$8 sm:$0xf0]
      %v9654 = vor.u32 %v9652, %v9653
      %v9655 = vpack.c.bf16 %v9654, %v9654
      %s9656 = scalar_lea.vmem %s11, 32
      %v9657 = vld [vmem:[%s9656] sm:$0xf]
      %v9658 = vld [vmem:[%s9656 + $0x4] sm:$0xf]
      %v9659 = vld [vmem:[%s9656 + $0x8] sm:$0xf]
      %v9660 = vld [vmem:[%s9656 + $0xc] sm:$0xf]
      %v9661 = vld [vmem:[%s9656 + $0x10] sm:$0xf]
      %v9662 = vld [vmem:[%s9656 + $0x14] sm:$0xf]
      %v9663 = vld [vmem:[%s9656 + $0x18] sm:$0xf]
      %v9664 = vld [vmem:[%s9656 + $0x1c] sm:$0xf]
      %v9673 = vunpack.c.l.b16 %v9657
      %v9674 = vunpack.c.l.b16 %v9658
      %v9675 = vunpack.c.l.b16 %v9659
      %v9676 = vunpack.c.l.b16 %v9660
      %v9677 = vunpack.c.l.b16 %v9661
      %v9678 = vunpack.c.l.b16 %v9662
      %v9679 = vunpack.c.l.b16 %v9663
      %v9680 = vunpack.c.l.b16 %v9664
      %v9681 = vpack.c.b16 %v9674, %v9673
      %v9682 = vpack.c.b16 %v9676, %v9675
      %v9683 = vpack.c.b16 %v9678, %v9677
      %v9684 = vpack.c.b16 %v9680, %v9679
      %v9690 = vsel %vm548, %v9655, 0
      %9692 = vmatprep.subr.bf16.mxu0 0
      %9693 = vmatpush1.bf16.msra.mxu0 %v9681
      %9694 = vmatprep.subr.bf16.mxu0 0
      %9695 = vmatpush1.bf16.msra.mxu0 %v9682
      %9696 = vmatprep.subr.bf16.mxu0 0
      %9697 = vmatpush1.bf16.msra.mxu0 %v9683
      %9698 = vmatprep.subr.bf16.mxu0 0
      %9699 = vmatpush1.bf16.msra.mxu0 %v9684
      %9700 = vmatprep.subr.bf16.mxu0 0
      %9701 = vmatpush1.bf16.msra.mxu0 0
      %9702 = vmatprep.subr.bf16.mxu0 0
      %9703 = vmatpush1.bf16.msra.mxu0 0
      %9704 = vmatprep.subr.bf16.mxu0 0
      %9705 = vmatpush1.bf16.msra.mxu0 0
      %9706 = vmatprep.subr.bf16.mxu0 0
      %9707 = vmatpush1.bf16.msra.mxu0 0
      %9708 = vmatprep.subr.bf16.mxu0 0
      %9709 = vmatpush1.bf16.msra.mxu0 0
      %9710 = vmatprep.subr.bf16.mxu0 0
      %9711 = vmatpush1.bf16.msra.mxu0 0
      %9712 = vmatprep.subr.bf16.mxu0 0
      %9713 = vmatpush1.bf16.msra.mxu0 0
      %9714 = vmatprep.subr.bf16.mxu0 0
      %9715 = vmatpush1.bf16.msra.mxu0 0
      %9716 = vmatprep.subr.bf16.mxu0 0
      %9717 = vmatpush1.bf16.msra.mxu0 0
      %9718 = vmatprep.subr.bf16.mxu0 0
      %9719 = vmatpush1.bf16.msra.mxu0 0
      %9720 = vmatprep.subr.bf16.mxu0 0
      %9721 = vmatpush1.bf16.msra.mxu0 0
      %9722 = vmatprep.subr.bf16.mxu0 0
      %9723 = vmatpush1.bf16.msra.mxu0 0
      %9724 = vmatprep.mubr.bf16.mxu0 0
      %9725 = vmatmul.mubr.bf16.gmra.mrb[0].mxu0 %v9690
      %v9726 = vpop.f32.mrb[0].mxu0
      %v9727 = vadd.f32 0.0, %v9726
      %v9728 = vpop.f32.mrb[0].mxu0
      %v9729 = vpop.f32.mrb[0].mxu0
      %v9730 = vpop.f32.mrb[0].mxu0
      %9731 = vdwg.mxu0
      %v9740 = vunpack.c.l.b16 %v9644
      %v9741 = vunpack.c.l.b16 %v9645
      %v9742 = vunpack.c.l.b16 %v9646
      %v9743 = vunpack.c.l.b16 %v9647
      %v9744 = vunpack.c.l.b16 %v9648
      %v9745 = vunpack.c.l.b16 %v9649
      %v9746 = vunpack.c.l.b16 %v9650
      %v9747 = vunpack.c.l.b16 %v9651
      %v9748 = vpack.c.b16 %v9741, %v9740
      %v9749 = vpack.c.b16 %v9743, %v9742
      %v9750 = vpack.c.b16 %v9745, %v9744
      %v9751 = vpack.c.b16 %v9747, %v9746
      %v9757 = vsel %vm548, %v9643, 0
      %9759 = vmatprep.subr.bf16.mxu0 0
      %9760 = vmatpush1.bf16.msra.mxu0 %v9748
      %9761 = vmatprep.subr.bf16.mxu0 0
      %9762 = vmatpush1.bf16.msra.mxu0 %v9749
      %9763 = vmatprep.subr.bf16.mxu0 0
      %9764 = vmatpush1.bf16.msra.mxu0 %v9750
      %9765 = vmatprep.subr.bf16.mxu0 0
      %9766 = vmatpush1.bf16.msra.mxu0 %v9751
      %9767 = vmatprep.subr.bf16.mxu0 0
      %9768 = vmatpush1.bf16.msra.mxu0 0
      %9769 = vmatprep.subr.bf16.mxu0 0
      %9770 = vmatpush1.bf16.msra.mxu0 0
      %9771 = vmatprep.subr.bf16.mxu0 0
      %9772 = vmatpush1.bf16.msra.mxu0 0
      %9773 = vmatprep.subr.bf16.mxu0 0
      %9774 = vmatpush1.bf16.msra.mxu0 0
      %9775 = vmatprep.subr.bf16.mxu0 0
      %9776 = vmatpush1.bf16.msra.mxu0 0
      %9777 = vmatprep.subr.bf16.mxu0 0
      %9778 = vmatpush1.bf16.msra.mxu0 0
      %9779 = vmatprep.subr.bf16.mxu0 0
      %9780 = vmatpush1.bf16.msra.mxu0 0
      %9781 = vmatprep.subr.bf16.mxu0 0
      %9782 = vmatpush1.bf16.msra.mxu0 0
      %9783 = vmatprep.subr.bf16.mxu0 0
      %9784 = vmatpush1.bf16.msra.mxu0 0
      %9785 = vmatprep.subr.bf16.mxu0 0
      %9786 = vmatpush1.bf16.msra.mxu0 0
      %9787 = vmatprep.subr.bf16.mxu0 0
      %9788 = vmatpush1.bf16.msra.mxu0 0
      %9789 = vmatprep.subr.bf16.mxu0 0
      %9790 = vmatpush1.bf16.msra.mxu0 0
      %9791 = vmatprep.mubr.bf16.mxu0 0
      %9792 = vmatmul.mubr.bf16.gmra.mrb[0].mxu0 %v9757
      %v9793 = vpop.f32.mrb[0].mxu0
      %v9794 = vadd.f32 %v9727, %v9793
      %v9795 = vpop.f32.mrb[0].mxu0
      %v9796 = vpop.f32.mrb[0].mxu0
      %v9797 = vpop.f32.mrb[0].mxu0
      %9798 = vdwg.mxu0
      %s9799 = scalar_lea.vmem [#allocation2], 2
      %v9800 = vld [vmem:[%s9799] ss:$8 sm:$0xf]
      %v9801 = vld [vmem:[%s9799] ss:$8 sm:$0xf0]
      %v9802 = vor.u32 %v9800, %v9801
      %v9803 = vpack.c.bf16 %v9802, %v9802
      %s9804 = scalar_lea.vmem %s11, 64
      %v9805 = vld [vmem:[%s9804] sm:$0xf]
      %v9806 = vld [vmem:[%s9804 + $0x4] sm:$0xf]
      %v9807 = vld [vmem:[%s9804 + $0x8] sm:$0xf]
      %v9808 = vld [vmem:[%s9804 + $0xc] sm:$0xf]
      %v9809 = vld [vmem:[%s9804 + $0x10] sm:$0xf]
      %v9810 = vld [vmem:[%s9804 + $0x14] sm:$0xf]
      %v9811 = vld [vmem:[%s9804 + $0x18] sm:$0xf]
      %v9812 = vld [vmem:[%s9804 + $0x1c] sm:$0xf]
      %v9821 = vunpack.c.l.b16 %v9805
      %v9822 = vunpack.c.l.b16 %v9806
      %v9823 = vunpack.c.l.b16 %v9807
      %v9824 = vunpack.c.l.b16 %v9808
      %v9825 = vunpack.c.l.b16 %v9809
      %v9826 = vunpack.c.l.b16 %v9810
      %v9827 = vunpack.c.l.b16 %v9811
      %v9828 = vunpack.c.l.b16 %v9812
      %v9829 = vpack.c.b16 %v9822, %v9821
      %v9830 = vpack.c.b16 %v9824, %v9823
      %v9831 = vpack.c.b16 %v9826, %v9825
      %v9832 = vpack.c.b16 %v9828, %v9827
      %v9838 = vsel %vm548, %v9803, 0
      %9840 = vmatprep.subr.bf16.mxu0 0
      %9841 = vmatpush1.bf16.msra.mxu0 %v9829
      %9842 = vmatprep.subr.bf16.mxu0 0
      %9843 = vmatpush1.bf16.msra.mxu0 %v9830
      %9844 = vmatprep.subr.bf16.mxu0 0
      %9845 = vmatpush1.bf16.msra.mxu0 %v9831
      %9846 = vmatprep.subr.bf16.mxu0 0
      %9847 = vmatpush1.bf16.msra.mxu0 %v9832
      %9848 = vmatprep.subr.bf16.mxu0 0
      %9849 = vmatpush1.bf16.msra.mxu0 0
      %9850 = vmatprep.subr.bf16.mxu0 0
      %9851 = vmatpush1.bf16.msra.mxu0 0
      %9852 = vmatprep.subr.bf16.mxu0 0
      %9853 = vmatpush1.bf16.msra.mxu0 0
      %9854 = vmatprep.subr.bf16.mxu0 0
      %9855 = vmatpush1.bf16.msra.mxu0 0
      %9856 = vmatprep.subr.bf16.mxu0 0
      %9857 = vmatpush1.bf16.msra.mxu0 0
      %9858 = vmatprep.subr.bf16.mxu0 0
      %9859 = vmatpush1.bf16.msra.mxu0 0
      %9860 = vmatprep.subr.bf16.mxu0 0
      %9861 = vmatpush1.bf16.msra.mxu0 0
      %9862 = vmatprep.subr.bf16.mxu0 0
      %9863 = vmatpush1.bf16.msra.mxu0 0
      %9864 = vmatprep.subr.bf16.mxu0 0
      %9865 = vmatpush1.bf16.msra.mxu0 0
      %9866 = vmatprep.subr.bf16.mxu0 0
      %9867 = vmatpush1.bf16.msra.mxu0 0
      %9868 = vmatprep.subr.bf16.mxu0 0
      %9869 = vmatpush1.bf16.msra.mxu0 0
      %9870 = vmatprep.subr.bf16.mxu0 0
      %9871 = vmatpush1.bf16.msra.mxu0 0
      %9872 = vmatprep.mubr.bf16.mxu0 0
      %9873 = vmatmul.mubr.bf16.gmra.mrb[0].mxu0 %v9838
      %v9874 = vpop.f32.mrb[0].mxu0
      %v9875 = vadd.f32 0.0, %v9874
      %v9876 = vpop.f32.mrb[0].mxu0
      %v9877 = vpop.f32.mrb[0].mxu0
      %v9878 = vpop.f32.mrb[0].mxu0
      %9879 = vdwg.mxu0
      %v9880 = vadd.f32 %v9794, %v9875
      %s9881 = scalar_lea.vmem [#allocation2], 3
      %v9882 = vld [vmem:[%s9881] ss:$8 sm:$0xf]
      %v9883 = vld [vmem:[%s9881] ss:$8 sm:$0xf0]
      %v9884 = vor.u32 %v9882, %v9883
      %v9885 = vpack.c.bf16 %v9884, %v9884
      %s9886 = scalar_lea.vmem %s11, 96
      %v9887 = vld [vmem:[%s9886] sm:$0xf]
      %v9888 = vld [vmem:[%s9886 + $0x4] sm:$0xf]
      %v9889 = vld [vmem:[%s9886 + $0x8] sm:$0xf]
      %v9890 = vld [vmem:[%s9886 + $0xc] sm:$0xf]
      %v9891 = vld [vmem:[%s9886 + $0x10] sm:$0xf]
      %v9892 = vld [vmem:[%s9886 + $0x14] sm:$0xf]
      %v9893 = vld [vmem:[%s9886 + $0x18] sm:$0xf]
      %v9894 = vld [vmem:[%s9886 + $0x1c] sm:$0xf]
      %v9903 = vunpack.c.l.b16 %v9887
      %v9904 = vunpack.c.l.b16 %v9888
      %v9905 = vunpack.c.l.b16 %v9889
      %v9906 = vunpack.c.l.b16 %v9890
      %v9907 = vunpack.c.l.b16 %v9891
      %v9908 = vunpack.c.l.b16 %v9892
      %v9909 = vunpack.c.l.b16 %v9893
      %v9910 = vunpack.c.l.b16 %v9894
      %v9911 = vpack.c.b16 %v9904, %v9903
      %v9912 = vpack.c.b16 %v9906, %v9905
      %v9913 = vpack.c.b16 %v9908, %v9907
      %v9914 = vpack.c.b16 %v9910, %v9909
      %v9920 = vsel %vm548, %v9885, 0
      %9922 = vmatprep.subr.bf16.mxu0 0
      %9923 = vmatpush1.bf16.msra.mxu0 %v9911
      %9924 = vmatprep.subr.bf16.mxu0 0
      %9925 = vmatpush1.bf16.msra.mxu0 %v9912
      %9926 = vmatprep.subr.bf16.mxu0 0
      %9927 = vmatpush1.bf16.msra.mxu0 %v9913
      %9928 = vmatprep.subr.bf16.mxu0 0
      %9929 = vmatpush1.bf16.msra.mxu0 %v9914
      %9930 = vmatprep.subr.bf16.mxu0 0
      %9931 = vmatpush1.bf16.msra.mxu0 0
      %9932 = vmatprep.subr.bf16.mxu0 0
      %9933 = vmatpush1.bf16.msra.mxu0 0
      %9934 = vmatprep.subr.bf16.mxu0 0
      %9935 = vmatpush1.bf16.msra.mxu0 0
      %9936 = vmatprep.subr.bf16.mxu0 0
      %9937 = vmatpush1.bf16.msra.mxu0 0
      %9938 = vmatprep.subr.bf16.mxu0 0
      %9939 = vmatpush1.bf16.msra.mxu0 0
      %9940 = vmatprep.subr.bf16.mxu0 0
      %9941 = vmatpush1.bf16.msra.mxu0 0
      %9942 = vmatprep.subr.bf16.mxu0 0
      %9943 = vmatpush1.bf16.msra.mxu0 0
      %9944 = vmatprep.subr.bf16.mxu0 0
      %9945 = vmatpush1.bf16.msra.mxu0 0
      %9946 = vmatprep.subr.bf16.mxu0 0
      %9947 = vmatpush1.bf16.msra.mxu0 0
      %9948 = vmatprep.subr.bf16.mxu0 0
      %9949 = vmatpush1.bf16.msra.mxu0 0
      %9950 = vmatprep.subr.bf16.mxu0 0
      %9951 = vmatpush1.bf16.msra.mxu0 0
      %9952 = vmatprep.subr.bf16.mxu0 0
      %9953 = vmatpush1.bf16.msra.mxu0 0
      %9954 = vmatprep.mubr.bf16.mxu0 0
      %9955 = vmatmul.mubr.bf16.gmra.mrb[0].mxu0 %v9920
      %v9956 = vpop.f32.mrb[0].mxu0
      %v9957 = vadd.f32 0.0, %v9956
      %v9958 = vpop.f32.mrb[0].mxu0
      %v9959 = vpop.f32.mrb[0].mxu0
      %v9960 = vpop.f32.mrb[0].mxu0
      %9961 = vdwg.mxu0
      %v9962 = vadd.f32 %v9880, %v9957
      %v9963 = vld [vmem:[%s12] sm:$0x1]
      %v9965 = vlaneseq
      %v9966 = vshrl.u32 %v9965, 7
      %v9967 = vsub.s32 0, %v9966
      %v9968 = vrot.slane %v9963, %v9967
      %v9970 = vadd.f32 %v9962, %v9968
      %v9971 = vmax.f32 %v9970, 0.0
      %9972 = vst.msk [vmem:[#allocation4] sm:$0xff] %vm548, 0.0
      %vm9973 = vcmask 517120
      %9974 = vst.msk [vmem:[#allocation4 + $0x8] sm:$0x3] %vm9973, 0.0
      %9975 = vst.msk [vmem:[#allocation4 + $0x1] sm:$0xff] %vm548, %v9971
      %v9976 = vld [vmem:[#allocation4] sm:$0xff]
      %v9977 = vpack.c.bf16 %v9976, %v9976
      %v9978 = vld [vmem:[%s13] sm:$0xf]
      %v9979 = vld [vmem:[%s13 + $0x4] sm:$0xf]
      %v9980 = vld [vmem:[%s13 + $0x8] sm:$0xf]
      %v9981 = vld [vmem:[%s13 + $0xc] sm:$0xf]
      %v9982 = vld [vmem:[%s13 + $0x10] sm:$0xf]
      %v9983 = vld [vmem:[%s13 + $0x14] sm:$0xf]
      %v9984 = vld [vmem:[%s13 + $0x18] sm:$0xf]
      %v9985 = vld [vmem:[%s13 + $0x1c] sm:$0xf]
      %v9986 = vld [vmem:[#allocation4 + $0x1] sm:$0xff]
      %v9987 = vpack.c.bf16 %v9986, %v9986
      %s9988 = scalar_lea.vmem %s13, 32
      %v9989 = vld [vmem:[%s9988] sm:$0xf]
      %v9990 = vld [vmem:[%s9988 + $0x4] sm:$0xf]
      %v9991 = vld [vmem:[%s9988 + $0x8] sm:$0xf]
      %v9992 = vld [vmem:[%s9988 + $0xc] sm:$0xf]
      %v9993 = vld [vmem:[%s9988 + $0x10] sm:$0xf]
      %v9994 = vld [vmem:[%s9988 + $0x14] sm:$0xf]
      %v9995 = vld [vmem:[%s9988 + $0x18] sm:$0xf]
      %v9996 = vld [vmem:[%s9988 + $0x1c] sm:$0xf]
      %v10005 = vunpack.c.l.b16 %v9989
      %v10006 = vunpack.c.l.b16 %v9990
      %v10007 = vunpack.c.l.b16 %v9991
      %v10008 = vunpack.c.l.b16 %v9992
      %v10009 = vunpack.c.l.b16 %v9993
      %v10010 = vunpack.c.l.b16 %v9994
      %v10011 = vunpack.c.l.b16 %v9995
      %v10012 = vunpack.c.l.b16 %v9996
      %v10013 = vpack.c.b16 %v10006, %v10005
      %v10014 = vpack.c.b16 %v10008, %v10007
      %v10015 = vpack.c.b16 %v10010, %v10009
      %v10016 = vpack.c.b16 %v10012, %v10011
      %v10022 = vsel %vm548, %v9987, 0
      %10024 = vmatprep.subr.bf16.mxu0 0
      %10025 = vmatpush1.bf16.msra.mxu0 %v10013
      %10026 = vmatprep.subr.bf16.mxu0 0
      %10027 = vmatpush1.bf16.msra.mxu0 %v10014
      %10028 = vmatprep.subr.bf16.mxu0 0
      %10029 = vmatpush1.bf16.msra.mxu0 %v10015
      %10030 = vmatprep.subr.bf16.mxu0 0
      %10031 = vmatpush1.bf16.msra.mxu0 %v10016
      %10032 = vmatprep.subr.bf16.mxu0 0
      %10033 = vmatpush1.bf16.msra.mxu0 0
      %10034 = vmatprep.subr.bf16.mxu0 0
      %10035 = vmatpush1.bf16.msra.mxu0 0
      %10036 = vmatprep.subr.bf16.mxu0 0
      %10037 = vmatpush1.bf16.msra.mxu0 0
      %10038 = vmatprep.subr.bf16.mxu0 0
      %10039 = vmatpush1.bf16.msra.mxu0 0
      %10040 = vmatprep.subr.bf16.mxu0 0
      %10041 = vmatpush1.bf16.msra.mxu0 0
      %10042 = vmatprep.subr.bf16.mxu0 0
      %10043 = vmatpush1.bf16.msra.mxu0 0
      %10044 = vmatprep.subr.bf16.mxu0 0
      %10045 = vmatpush1.bf16.msra.mxu0 0
      %10046 = vmatprep.subr.bf16.mxu0 0
      %10047 = vmatpush1.bf16.msra.mxu0 0
      %10048 = vmatprep.subr.bf16.mxu0 0
      %10049 = vmatpush1.bf16.msra.mxu0 0
      %10050 = vmatprep.subr.bf16.mxu0 0
      %10051 = vmatpush1.bf16.msra.mxu0 0
      %10052 = vmatprep.subr.bf16.mxu0 0
      %10053 = vmatpush1.bf16.msra.mxu0 0
      %10054 = vmatprep.subr.bf16.mxu0 0
      %10055 = vmatpush1.bf16.msra.mxu0 0
      %10056 = vmatprep.mubr.bf16.mxu0 0
      %10057 = vmatmul.mubr.bf16.gmra.mrb[0].mxu0 %v10022
      %v10058 = vpop.f32.mrb[0].mxu0
      %v10059 = vadd.f32 0.0, %v10058
      %v10060 = vpop.f32.mrb[0].mxu0
      %v10061 = vpop.f32.mrb[0].mxu0
      %v10062 = vpop.f32.mrb[0].mxu0
      %10063 = vdwg.mxu0
      %v10072 = vunpack.c.l.b16 %v9978
      %v10073 = vunpack.c.l.b16 %v9979
      %v10074 = vunpack.c.l.b16 %v9980
      %v10075 = vunpack.c.l.b16 %v9981
      %v10076 = vunpack.c.l.b16 %v9982
      %v10077 = vunpack.c.l.b16 %v9983
      %v10078 = vunpack.c.l.b16 %v9984
      %v10079 = vunpack.c.l.b16 %v9985
      %v10080 = vpack.c.b16 %v10073, %v10072
      %v10081 = vpack.c.b16 %v10075, %v10074
      %v10082 = vpack.c.b16 %v10077, %v10076
      %v10083 = vpack.c.b16 %v10079, %v10078
      %v10089 = vsel %vm548, %v9977, 0
      %10091 = vmatprep.subr.bf16.mxu0 0
      %10092 = vmatpush1.bf16.msra.mxu0 %v10080
      %10093 = vmatprep.subr.bf16.mxu0 0
      %10094 = vmatpush1.bf16.msra.mxu0 %v10081
      %10095 = vmatprep.subr.bf16.mxu0 0
      %10096 = vmatpush1.bf16.msra.mxu0 %v10082
      %10097 = vmatprep.subr.bf16.mxu0 0
      %10098 = vmatpush1.bf16.msra.mxu0 %v10083
      %10099 = vmatprep.subr.bf16.mxu0 0
      %10100 = vmatpush1.bf16.msra.mxu0 0
      %10101 = vmatprep.subr.bf16.mxu0 0
      %10102 = vmatpush1.bf16.msra.mxu0 0
      %10103 = vmatprep.subr.bf16.mxu0 0
      %10104 = vmatpush1.bf16.msra.mxu0 0
      %10105 = vmatprep.subr.bf16.mxu0 0
      %10106 = vmatpush1.bf16.msra.mxu0 0
      %10107 = vmatprep.subr.bf16.mxu0 0
      %10108 = vmatpush1.bf16.msra.mxu0 0
      %10109 = vmatprep.subr.bf16.mxu0 0
      %10110 = vmatpush1.bf16.msra.mxu0 0
      %10111 = vmatprep.subr.bf16.mxu0 0
      %10112 = vmatpush1.bf16.msra.mxu0 0
      %10113 = vmatprep.subr.bf16.mxu0 0
      %10114 = vmatpush1.bf16.msra.mxu0 0
      %10115 = vmatprep.subr.bf16.mxu0 0
      %10116 = vmatpush1.bf16.msra.mxu0 0
      %10117 = vmatprep.subr.bf16.mxu0 0
      %10118 = vmatpush1.bf16.msra.mxu0 0
      %10119 = vmatprep.subr.bf16.mxu0 0
      %10120 = vmatpush1.bf16.msra.mxu0 0
      %10121 = vmatprep.subr.bf16.mxu0 0
      %10122 = vmatpush1.bf16.msra.mxu0 0
      %10123 = vmatprep.mubr.bf16.mxu0 0
      %10124 = vmatmul.mubr.bf16.gmra.mrb[0].mxu0 %v10089
      %v10125 = vpop.f32.mrb[0].mxu0
      %v10126 = vadd.f32 %v10059, %v10125
      %v10127 = vpop.f32.mrb[0].mxu0
      %v10128 = vpop.f32.mrb[0].mxu0
      %v10129 = vpop.f32.mrb[0].mxu0
      %10130 = vdwg.mxu0
      %v10131 = vld [vmem:[#allocation4 + $0x2] sm:$0xff]
      %v10132 = vpack.c.bf16 %v10131, %v10131
      %s10133 = scalar_lea.vmem %s13, 64
      %v10134 = vld [vmem:[%s10133] sm:$0xf]
      %v10135 = vld [vmem:[%s10133 + $0x4] sm:$0xf]
      %v10136 = vld [vmem:[%s10133 + $0x8] sm:$0xf]
      %v10137 = vld [vmem:[%s10133 + $0xc] sm:$0xf]
      %v10138 = vld [vmem:[%s10133 + $0x10] sm:$0xf]
      %v10139 = vld [vmem:[%s10133 + $0x14] sm:$0xf]
      %v10140 = vld [vmem:[%s10133 + $0x18] sm:$0xf]
      %v10141 = vld [vmem:[%s10133 + $0x1c] sm:$0xf]
      %v10150 = vunpack.c.l.b16 %v10134
      %v10151 = vunpack.c.l.b16 %v10135
      %v10152 = vunpack.c.l.b16 %v10136
      %v10153 = vunpack.c.l.b16 %v10137
      %v10154 = vunpack.c.l.b16 %v10138
      %v10155 = vunpack.c.l.b16 %v10139
      %v10156 = vunpack.c.l.b16 %v10140
      %v10157 = vunpack.c.l.b16 %v10141
      %v10158 = vpack.c.b16 %v10151, %v10150
      %v10159 = vpack.c.b16 %v10153, %v10152
      %v10160 = vpack.c.b16 %v10155, %v10154
      %v10161 = vpack.c.b16 %v10157, %v10156
      %v10167 = vsel %vm548, %v10132, 0
      %10169 = vmatprep.subr.bf16.mxu0 0
      %10170 = vmatpush1.bf16.msra.mxu0 %v10158
      %10171 = vmatprep.subr.bf16.mxu0 0
      %10172 = vmatpush1.bf16.msra.mxu0 %v10159
      %10173 = vmatprep.subr.bf16.mxu0 0
      %10174 = vmatpush1.bf16.msra.mxu0 %v10160
      %10175 = vmatprep.subr.bf16.mxu0 0
      %10176 = vmatpush1.bf16.msra.mxu0 %v10161
      %10177 = vmatprep.subr.bf16.mxu0 0
      %10178 = vmatpush1.bf16.msra.mxu0 0
      %10179 = vmatprep.subr.bf16.mxu0 0
      %10180 = vmatpush1.bf16.msra.mxu0 0
      %10181 = vmatprep.subr.bf16.mxu0 0
      %10182 = vmatpush1.bf16.msra.mxu0 0
      %10183 = vmatprep.subr.bf16.mxu0 0
      %10184 = vmatpush1.bf16.msra.mxu0 0
      %10185 = vmatprep.subr.bf16.mxu0 0
      %10186 = vmatpush1.bf16.msra.mxu0 0
      %10187 = vmatprep.subr.bf16.mxu0 0
      %10188 = vmatpush1.bf16.msra.mxu0 0
      %10189 = vmatprep.subr.bf16.mxu0 0
      %10190 = vmatpush1.bf16.msra.mxu0 0
      %10191 = vmatprep.subr.bf16.mxu0 0
      %10192 = vmatpush1.bf16.msra.mxu0 0
      %10193 = vmatprep.subr.bf16.mxu0 0
      %10194 = vmatpush1.bf16.msra.mxu0 0
      %10195 = vmatprep.subr.bf16.mxu0 0
      %10196 = vmatpush1.bf16.msra.mxu0 0
      %10197 = vmatprep.subr.bf16.mxu0 0
      %10198 = vmatpush1.bf16.msra.mxu0 0
      %10199 = vmatprep.subr.bf16.mxu0 0
      %10200 = vmatpush1.bf16.msra.mxu0 0
      %10201 = vmatprep.mubr.bf16.mxu0 0
      %10202 = vmatmul.mubr.bf16.gmra.mrb[0].mxu0 %v10167
      %v10203 = vpop.f32.mrb[0].mxu0
      %v10204 = vadd.f32 0.0, %v10203
      %v10205 = vpop.f32.mrb[0].mxu0
      %v10206 = vpop.f32.mrb[0].mxu0
      %v10207 = vpop.f32.mrb[0].mxu0
      %10208 = vdwg.mxu0
      %v10209 = vadd.f32 %v10126, %v10204
      %v10210 = vld [vmem:[%s14] sm:$0x1]
      %v10212 = vlaneseq
      %v10213 = vshrl.u32 %v10212, 7
      %v10214 = vsub.s32 0, %v10213
      %v10215 = vrot.slane %v10210, %v10214
      %v10217 = vadd.f32 %v10209, %v10215
      %10218 = vst.msk [vmem:[#allocation4 + $0x1] sm:$0xff] %vm548, %v10217
      %v10219 = vld [vmem:[#allocation4] sm:$0xff]
      %v10220 = vpack.c.bf16 %v10219, %v10219
      %v10221 = vld [vmem:[%s13] sm:$0xf]
      %v10222 = vld [vmem:[%s13 + $0x4] sm:$0xf]
      %v10223 = vld [vmem:[%s13 + $0x8] sm:$0xf]
      %v10224 = vld [vmem:[%s13 + $0xc] sm:$0xf]
      %v10225 = vld [vmem:[%s13 + $0x10] sm:$0xf]
      %v10226 = vld [vmem:[%s13 + $0x14] sm:$0xf]
      %v10227 = vld [vmem:[%s13 + $0x18] sm:$0xf]
      %v10228 = vld [vmem:[%s13 + $0x1c] sm:$0xf]
      %v10229 = vld [vmem:[#allocation4 + $0x1] sm:$0xff]
      %v10230 = vpack.c.bf16 %v10229, %v10229
      %v10231 = vld [vmem:[%s9988] sm:$0xf]
      %v10232 = vld [vmem:[%s9988 + $0x4] sm:$0xf]
      %v10233 = vld [vmem:[%s9988 + $0x8] sm:$0xf]
      %v10234 = vld [vmem:[%s9988 + $0xc] sm:$0xf]
      %v10235 = vld [vmem:[%s9988 + $0x10] sm:$0xf]
      %v10236 = vld [vmem:[%s9988 + $0x14] sm:$0xf]
      %v10237 = vld [vmem:[%s9988 + $0x18] sm:$0xf]
      %v10238 = vld [vmem:[%s9988 + $0x1c] sm:$0xf]
      %v10247 = vunpack.c.l.b16 %v10231
      %v10248 = vunpack.c.l.b16 %v10232
      %v10249 = vunpack.c.l.b16 %v10233
      %v10250 = vunpack.c.l.b16 %v10234
      %v10251 = vunpack.c.l.b16 %v10235
      %v10252 = vunpack.c.l.b16 %v10236
      %v10253 = vunpack.c.l.b16 %v10237
      %v10254 = vunpack.c.l.b16 %v10238
      %v10255 = vpack.c.b16 %v10248, %v10247
      %v10256 = vpack.c.b16 %v10250, %v10249
      %v10257 = vpack.c.b16 %v10252, %v10251
      %v10258 = vpack.c.b16 %v10254, %v10253
      %v10264 = vsel %vm548, %v10230, 0
      %10266 = vmatprep.subr.bf16.mxu0 0
      %10267 = vmatpush1.bf16.msra.mxu0 %v10255
      %10268 = vmatprep.subr.bf16.mxu0 0
      %10269 = vmatpush1.bf16.msra.mxu0 %v10256
      %10270 = vmatprep.subr.bf16.mxu0 0
      %10271 = vmatpush1.bf16.msra.mxu0 %v10257
      %10272 = vmatprep.subr.bf16.mxu0 0
      %10273 = vmatpush1.bf16.msra.mxu0 %v10258
      %10274 = vmatprep.subr.bf16.mxu0 0
      %10275 = vmatpush1.bf16.msra.mxu0 0
      %10276 = vmatprep.subr.bf16.mxu0 0
      %10277 = vmatpush1.bf16.msra.mxu0 0
      %10278 = vmatprep.subr.bf16.mxu0 0
      %10279 = vmatpush1.bf16.msra.mxu0 0
      %10280 = vmatprep.subr.bf16.mxu0 0
      %10281 = vmatpush1.bf16.msra.mxu0 0
      %10282 = vmatprep.subr.bf16.mxu0 0
      %10283 = vmatpush1.bf16.msra.mxu0 0
      %10284 = vmatprep.subr.bf16.mxu0 0
      %10285 = vmatpush1.bf16.msra.mxu0 0
      %10286 = vmatprep.subr.bf16.mxu0 0
      %10287 = vmatpush1.bf16.msra.mxu0 0
      %10288 = vmatprep.subr.bf16.mxu0 0
      %10289 = vmatpush1.bf16.msra.mxu0 0
      %10290 = vmatprep.subr.bf16.mxu0 0
      %10291 = vmatpush1.bf16.msra.mxu0 0
      %10292 = vmatprep.subr.bf16.mxu0 0
      %10293 = vmatpush1.bf16.msra.mxu0 0
      %10294 = vmatprep.subr.bf16.mxu0 0
      %10295 = vmatpush1.bf16.msra.mxu0 0
      %10296 = vmatprep.subr.bf16.mxu0 0
      %10297 = vmatpush1.bf16.msra.mxu0 0
      %10298 = vmatprep.mubr.bf16.mxu0 0
      %10299 = vmatmul.mubr.bf16.gmra.mrb[0].mxu0 %v10264
      %v10300 = vpop.f32.mrb[0].mxu0
      %v10301 = vadd.f32 0.0, %v10300
      %v10302 = vpop.f32.mrb[0].mxu0
      %v10303 = vpop.f32.mrb[0].mxu0
      %v10304 = vpop.f32.mrb[0].mxu0
      %10305 = vdwg.mxu0
      %v10314 = vunpack.c.l.b16 %v10221
      %v10315 = vunpack.c.l.b16 %v10222
      %v10316 = vunpack.c.l.b16 %v10223
      %v10317 = vunpack.c.l.b16 %v10224
      %v10318 = vunpack.c.l.b16 %v10225
      %v10319 = vunpack.c.l.b16 %v10226
      %v10320 = vunpack.c.l.b16 %v10227
      %v10321 = vunpack.c.l.b16 %v10228
      %v10322 = vpack.c.b16 %v10315, %v10314
      %v10323 = vpack.c.b16 %v10317, %v10316
      %v10324 = vpack.c.b16 %v10319, %v10318
      %v10325 = vpack.c.b16 %v10321, %v10320
      %v10331 = vsel %vm548, %v10220, 0
      %10333 = vmatprep.subr.bf16.mxu0 0
      %10334 = vmatpush1.bf16.msra.mxu0 %v10322
      %10335 = vmatprep.subr.bf16.mxu0 0
      %10336 = vmatpush1.bf16.msra.mxu0 %v10323
      %10337 = vmatprep.subr.bf16.mxu0 0
      %10338 = vmatpush1.bf16.msra.mxu0 %v10324
      %10339 = vmatprep.subr.bf16.mxu0 0
      %10340 = vmatpush1.bf16.msra.mxu0 %v10325
      %10341 = vmatprep.subr.bf16.mxu0 0
      %10342 = vmatpush1.bf16.msra.mxu0 0
      %10343 = vmatprep.subr.bf16.mxu0 0
      %10344 = vmatpush1.bf16.msra.mxu0 0
      %10345 = vmatprep.subr.bf16.mxu0 0
      %10346 = vmatpush1.bf16.msra.mxu0 0
      %10347 = vmatprep.subr.bf16.mxu0 0
      %10348 = vmatpush1.bf16.msra.mxu0 0
      %10349 = vmatprep.subr.bf16.mxu0 0
      %10350 = vmatpush1.bf16.msra.mxu0 0
      %10351 = vmatprep.subr.bf16.mxu0 0
      %10352 = vmatpush1.bf16.msra.mxu0 0
      %10353 = vmatprep.subr.bf16.mxu0 0
      %10354 = vmatpush1.bf16.msra.mxu0 0
      %10355 = vmatprep.subr.bf16.mxu0 0
      %10356 = vmatpush1.bf16.msra.mxu0 0
      %10357 = vmatprep.subr.bf16.mxu0 0
      %10358 = vmatpush1.bf16.msra.mxu0 0
      %10359 = vmatprep.subr.bf16.mxu0 0
      %10360 = vmatpush1.bf16.msra.mxu0 0
      %10361 = vmatprep.subr.bf16.mxu0 0
      %10362 = vmatpush1.bf16.msra.mxu0 0
      %10363 = vmatprep.subr.bf16.mxu0 0
      %10364 = vmatpush1.bf16.msra.mxu0 0
      %10365 = vmatprep.mubr.bf16.mxu0 0
      %10366 = vmatmul.mubr.bf16.gmra.mrb[0].mxu0 %v10331
      %v10367 = vpop.f32.mrb[0].mxu0
      %v10368 = vadd.f32 %v10301, %v10367
      %v10369 = vpop.f32.mrb[0].mxu0
      %v10370 = vpop.f32.mrb[0].mxu0
      %v10371 = vpop.f32.mrb[0].mxu0
      %10372 = vdwg.mxu0
      %v10373 = vld [vmem:[#allocation4 + $0x2] sm:$0xff]
      %v10374 = vpack.c.bf16 %v10373, %v10373
      %v10375 = vld [vmem:[%s10133] sm:$0xf]
      %v10376 = vld [vmem:[%s10133 + $0x4] sm:$0xf]
      %v10377 = vld [vmem:[%s10133 + $0x8] sm:$0xf]
      %v10378 = vld [vmem:[%s10133 + $0xc] sm:$0xf]
      %v10379 = vld [vmem:[%s10133 + $0x10] sm:$0xf]
      %v10380 = vld [vmem:[%s10133 + $0x14] sm:$0xf]
      %v10381 = vld [vmem:[%s10133 + $0x18] sm:$0xf]
      %v10382 = vld [vmem:[%s10133 + $0x1c] sm:$0xf]
      %v10391 = vunpack.c.l.b16 %v10375
      %v10392 = vunpack.c.l.b16 %v10376
      %v10393 = vunpack.c.l.b16 %v10377
      %v10394 = vunpack.c.l.b16 %v10378
      %v10395 = vunpack.c.l.b16 %v10379
      %v10396 = vunpack.c.l.b16 %v10380
      %v10397 = vunpack.c.l.b16 %v10381
      %v10398 = vunpack.c.l.b16 %v10382
      %v10399 = vpack.c.b16 %v10392, %v10391
      %v10400 = vpack.c.b16 %v10394, %v10393
      %v10401 = vpack.c.b16 %v10396, %v10395
      %v10402 = vpack.c.b16 %v10398, %v10397
      %v10408 = vsel %vm548, %v10374, 0
      %10410 = vmatprep.subr.bf16.mxu0 0
      %10411 = vmatpush1.bf16.msra.mxu0 %v10399
      %10412 = vmatprep.subr.bf16.mxu0 0
      %10413 = vmatpush1.bf16.msra.mxu0 %v10400
      %10414 = vmatprep.subr.bf16.mxu0 0
      %10415 = vmatpush1.bf16.msra.mxu0 %v10401
      %10416 = vmatprep.subr.bf16.mxu0 0
      %10417 = vmatpush1.bf16.msra.mxu0 %v10402
      %10418 = vmatprep.subr.bf16.mxu0 0
      %10419 = vmatpush1.bf16.msra.mxu0 0
      %10420 = vmatprep.subr.bf16.mxu0 0
      %10421 = vmatpush1.bf16.msra.mxu0 0
      %10422 = vmatprep.subr.bf16.mxu0 0
      %10423 = vmatpush1.bf16.msra.mxu0 0
      %10424 = vmatprep.subr.bf16.mxu0 0
      %10425 = vmatpush1.bf16.msra.mxu0 0
      %10426 = vmatprep.subr.bf16.mxu0 0
      %10427 = vmatpush1.bf16.msra.mxu0 0
      %10428 = vmatprep.subr.bf16.mxu0 0
      %10429 = vmatpush1.bf16.msra.mxu0 0
      %10430 = vmatprep.subr.bf16.mxu0 0
      %10431 = vmatpush1.bf16.msra.mxu0 0
      %10432 = vmatprep.subr.bf16.mxu0 0
      %10433 = vmatpush1.bf16.msra.mxu0 0
      %10434 = vmatprep.subr.bf16.mxu0 0
      %10435 = vmatpush1.bf16.msra.mxu0 0
      %10436 = vmatprep.subr.bf16.mxu0 0
      %10437 = vmatpush1.bf16.msra.mxu0 0
      %10438 = vmatprep.subr.bf16.mxu0 0
      %10439 = vmatpush1.bf16.msra.mxu0 0
      %10440 = vmatprep.subr.bf16.mxu0 0
      %10441 = vmatpush1.bf16.msra.mxu0 0
      %10442 = vmatprep.mubr.bf16.mxu0 0
      %10443 = vmatmul.mubr.bf16.gmra.mrb[0].mxu0 %v10408
      %v10444 = vpop.f32.mrb[0].mxu0
      %v10445 = vadd.f32 0.0, %v10444
      %v10446 = vpop.f32.mrb[0].mxu0
      %v10447 = vpop.f32.mrb[0].mxu0
      %v10448 = vpop.f32.mrb[0].mxu0
      %10449 = vdwg.mxu0
      %v10450 = vadd.f32 %v10368, %v10445
      %v10451 = vld [vmem:[%s14] sm:$0x1]
      %v10453 = vlaneseq
      %v10454 = vshrl.u32 %v10453, 7
      %v10455 = vsub.s32 0, %v10454
      %v10456 = vrot.slane %v10451, %v10455
      %v10458 = vadd.f32 %v10450, %v10456
      %10459 = vst.msk [vmem:[#allocation4 + $0x1] sm:$0xff] %vm548, %v10458
      %v10460 = vld [vmem:[#allocation4] sm:$0xff]
      %v10461 = vpack.c.bf16 %v10460, %v10460
      %v10462 = vld [vmem:[%s15] sm:$0xf]
      %v10463 = vld [vmem:[%s15 + $0x4] sm:$0xf]
      %v10464 = vld [vmem:[%s15 + $0x8] sm:$0xf]
      %v10465 = vld [vmem:[%s15 + $0xc] sm:$0xf]
      %v10466 = vld [vmem:[%s15 + $0x10] sm:$0xf]
      %v10467 = vld [vmem:[%s15 + $0x14] sm:$0xf]
      %v10468 = vld [vmem:[%s15 + $0x18] sm:$0xf]
      %v10469 = vld [vmem:[%s15 + $0x1c] sm:$0xf]
      %v10470 = vld [vmem:[#allocation4 + $0x1] sm:$0xff]
      %v10471 = vpack.c.bf16 %v10470, %v10470
      %s10472 = scalar_lea.vmem %s15, 32
      %v10473 = vld [vmem:[%s10472] sm:$0xf]
      %v10474 = vld [vmem:[%s10472 + $0x4] sm:$0xf]
      %v10475 = vld [vmem:[%s10472 + $0x8] sm:$0xf]
      %v10476 = vld [vmem:[%s10472 + $0xc] sm:$0xf]
      %v10477 = vld [vmem:[%s10472 + $0x10] sm:$0xf]
      %v10478 = vld [vmem:[%s10472 + $0x14] sm:$0xf]
      %v10479 = vld [vmem:[%s10472 + $0x18] sm:$0xf]
      %v10480 = vld [vmem:[%s10472 + $0x1c] sm:$0xf]
      %v10489 = vunpack.c.l.b16 %v10473
      %v10490 = vunpack.c.l.b16 %v10474
      %v10491 = vunpack.c.l.b16 %v10475
      %v10492 = vunpack.c.l.b16 %v10476
      %v10493 = vunpack.c.l.b16 %v10477
      %v10494 = vunpack.c.l.b16 %v10478
      %v10495 = vunpack.c.l.b16 %v10479
      %v10496 = vunpack.c.l.b16 %v10480
      %v10497 = vpack.c.b16 %v10490, %v10489
      %v10498 = vpack.c.b16 %v10492, %v10491
      %v10499 = vpack.c.b16 %v10494, %v10493
      %v10500 = vpack.c.b16 %v10496, %v10495
      %v10506 = vsel %vm548, %v10471, 0
      %10508 = vmatprep.subr.bf16.mxu0 0
      %10509 = vmatpush1.bf16.msra.mxu0 %v10497
      %10510 = vmatprep.subr.bf16.mxu0 0
      %10511 = vmatpush1.bf16.msra.mxu0 %v10498
      %10512 = vmatprep.subr.bf16.mxu0 0
      %10513 = vmatpush1.bf16.msra.mxu0 %v10499
      %10514 = vmatprep.subr.bf16.mxu0 0
      %10515 = vmatpush1.bf16.msra.mxu0 %v10500
      %10516 = vmatprep.subr.bf16.mxu0 0
      %10517 = vmatpush1.bf16.msra.mxu0 0
      %10518 = vmatprep.subr.bf16.mxu0 0
      %10519 = vmatpush1.bf16.msra.mxu0 0
      %10520 = vmatprep.subr.bf16.mxu0 0
      %10521 = vmatpush1.bf16.msra.mxu0 0
      %10522 = vmatprep.subr.bf16.mxu0 0
      %10523 = vmatpush1.bf16.msra.mxu0 0
      %10524 = vmatprep.subr.bf16.mxu0 0
      %10525 = vmatpush1.bf16.msra.mxu0 0
      %10526 = vmatprep.subr.bf16.mxu0 0
      %10527 = vmatpush1.bf16.msra.mxu0 0
      %10528 = vmatprep.subr.bf16.mxu0 0
      %10529 = vmatpush1.bf16.msra.mxu0 0
      %10530 = vmatprep.subr.bf16.mxu0 0
      %10531 = vmatpush1.bf16.msra.mxu0 0
      %10532 = vmatprep.subr.bf16.mxu0 0
      %10533 = vmatpush1.bf16.msra.mxu0 0
      %10534 = vmatprep.subr.bf16.mxu0 0
      %10535 = vmatpush1.bf16.msra.mxu0 0
      %10536 = vmatprep.subr.bf16.mxu0 0
      %10537 = vmatpush1.bf16.msra.mxu0 0
      %10538 = vmatprep.subr.bf16.mxu0 0
      %10539 = vmatpush1.bf16.msra.mxu0 0
      %10540 = vmatprep.mubr.bf16.mxu0 0
      %10541 = vmatmul.mubr.bf16.gmra.mrb[0].mxu0 %v10506
      %v10542 = vpop.f32.mrb[0].mxu0
      %v10543 = vadd.f32 0.0, %v10542
      %v10544 = vpop.f32.mrb[0].mxu0
      %v10545 = vpop.f32.mrb[0].mxu0
      %v10546 = vpop.f32.mrb[0].mxu0
      %10547 = vdwg.mxu0
      %v10556 = vunpack.c.l.b16 %v10462
      %v10557 = vunpack.c.l.b16 %v10463
      %v10558 = vunpack.c.l.b16 %v10464
      %v10559 = vunpack.c.l.b16 %v10465
      %v10560 = vunpack.c.l.b16 %v10466
      %v10561 = vunpack.c.l.b16 %v10467
      %v10562 = vunpack.c.l.b16 %v10468
      %v10563 = vunpack.c.l.b16 %v10469
      %v10564 = vpack.c.b16 %v10557, %v10556
      %v10565 = vpack.c.b16 %v10559, %v10558
      %v10566 = vpack.c.b16 %v10561, %v10560
      %v10567 = vpack.c.b16 %v10563, %v10562
      %v10573 = vsel %vm548, %v10461, 0
      %10575 = vmatprep.subr.bf16.mxu0 0
      %10576 = vmatpush1.bf16.msra.mxu0 %v10564
      %10577 = vmatprep.subr.bf16.mxu0 0
      %10578 = vmatpush1.bf16.msra.mxu0 %v10565
      %10579 = vmatprep.subr.bf16.mxu0 0
      %10580 = vmatpush1.bf16.msra.mxu0 %v10566
      %10581 = vmatprep.subr.bf16.mxu0 0
      %10582 = vmatpush1.bf16.msra.mxu0 %v10567
      %10583 = vmatprep.subr.bf16.mxu0 0
      %10584 = vmatpush1.bf16.msra.mxu0 0
      %10585 = vmatprep.subr.bf16.mxu0 0
      %10586 = vmatpush1.bf16.msra.mxu0 0
      %10587 = vmatprep.subr.bf16.mxu0 0
      %10588 = vmatpush1.bf16.msra.mxu0 0
      %10589 = vmatprep.subr.bf16.mxu0 0
      %10590 = vmatpush1.bf16.msra.mxu0 0
      %10591 = vmatprep.subr.bf16.mxu0 0
      %10592 = vmatpush1.bf16.msra.mxu0 0
      %10593 = vmatprep.subr.bf16.mxu0 0
      %10594 = vmatpush1.bf16.msra.mxu0 0
      %10595 = vmatprep.subr.bf16.mxu0 0
      %10596 = vmatpush1.bf16.msra.mxu0 0
      %10597 = vmatprep.subr.bf16.mxu0 0
      %10598 = vmatpush1.bf16.msra.mxu0 0
      %10599 = vmatprep.subr.bf16.mxu0 0
      %10600 = vmatpush1.bf16.msra.mxu0 0
      %10601 = vmatprep.subr.bf16.mxu0 0
      %10602 = vmatpush1.bf16.msra.mxu0 0
      %10603 = vmatprep.subr.bf16.mxu0 0
      %10604 = vmatpush1.bf16.msra.mxu0 0
      %10605 = vmatprep.subr.bf16.mxu0 0
      %10606 = vmatpush1.bf16.msra.mxu0 0
      %10607 = vmatprep.mubr.bf16.mxu0 0
      %10608 = vmatmul.mubr.bf16.gmra.mrb[0].mxu0 %v10573
      %v10609 = vpop.f32.mrb[0].mxu0
      %v10610 = vadd.f32 %v10543, %v10609
      %v10611 = vpop.f32.mrb[0].mxu0
      %v10612 = vpop.f32.mrb[0].mxu0
      %v10613 = vpop.f32.mrb[0].mxu0
      %10614 = vdwg.mxu0
      %v10615 = vld [vmem:[#allocation4 + $0x2] sm:$0xff]
      %v10616 = vpack.c.bf16 %v10615, %v10615
      %s10617 = scalar_lea.vmem %s15, 64
      %v10618 = vld [vmem:[%s10617] sm:$0xf]
      %v10619 = vld [vmem:[%s10617 + $0x4] sm:$0xf]
      %v10620 = vld [vmem:[%s10617 + $0x8] sm:$0xf]
      %v10621 = vld [vmem:[%s10617 + $0xc] sm:$0xf]
      %v10622 = vld [vmem:[%s10617 + $0x10] sm:$0xf]
      %v10623 = vld [vmem:[%s10617 + $0x14] sm:$0xf]
      %v10624 = vld [vmem:[%s10617 + $0x18] sm:$0xf]
      %v10625 = vld [vmem:[%s10617 + $0x1c] sm:$0xf]
      %v10634 = vunpack.c.l.b16 %v10618
      %v10635 = vunpack.c.l.b16 %v10619
      %v10636 = vunpack.c.l.b16 %v10620
      %v10637 = vunpack.c.l.b16 %v10621
      %v10638 = vunpack.c.l.b16 %v10622
      %v10639 = vunpack.c.l.b16 %v10623
      %v10640 = vunpack.c.l.b16 %v10624
      %v10641 = vunpack.c.l.b16 %v10625
      %v10642 = vpack.c.b16 %v10635, %v10634
      %v10643 = vpack.c.b16 %v10637, %v10636
      %v10644 = vpack.c.b16 %v10639, %v10638
      %v10645 = vpack.c.b16 %v10641, %v10640
      %v10651 = vsel %vm548, %v10616, 0
      %10653 = vmatprep.subr.bf16.mxu0 0
      %10654 = vmatpush1.bf16.msra.mxu0 %v10642
      %10655 = vmatprep.subr.bf16.mxu0 0
      %10656 = vmatpush1.bf16.msra.mxu0 %v10643
      %10657 = vmatprep.subr.bf16.mxu0 0
      %10658 = vmatpush1.bf16.msra.mxu0 %v10644
      %10659 = vmatprep.subr.bf16.mxu0 0
      %10660 = vmatpush1.bf16.msra.mxu0 %v10645
      %10661 = vmatprep.subr.bf16.mxu0 0
      %10662 = vmatpush1.bf16.msra.mxu0 0
      %10663 = vmatprep.subr.bf16.mxu0 0
      %10664 = vmatpush1.bf16.msra.mxu0 0
      %10665 = vmatprep.subr.bf16.mxu0 0
      %10666 = vmatpush1.bf16.msra.mxu0 0
      %10667 = vmatprep.subr.bf16.mxu0 0
      %10668 = vmatpush1.bf16.msra.mxu0 0
      %10669 = vmatprep.subr.bf16.mxu0 0
      %10670 = vmatpush1.bf16.msra.mxu0 0
      %10671 = vmatprep.subr.bf16.mxu0 0
      %10672 = vmatpush1.bf16.msra.mxu0 0
      %10673 = vmatprep.subr.bf16.mxu0 0
      %10674 = vmatpush1.bf16.msra.mxu0 0
      %10675 = vmatprep.subr.bf16.mxu0 0
      %10676 = vmatpush1.bf16.msra.mxu0 0
      %10677 = vmatprep.subr.bf16.mxu0 0
      %10678 = vmatpush1.bf16.msra.mxu0 0
      %10679 = vmatprep.subr.bf16.mxu0 0
      %10680 = vmatpush1.bf16.msra.mxu0 0
      %10681 = vmatprep.subr.bf16.mxu0 0
      %10682 = vmatpush1.bf16.msra.mxu0 0
      %10683 = vmatprep.subr.bf16.mxu0 0
      %10684 = vmatpush1.bf16.msra.mxu0 0
      %10685 = vmatprep.mubr.bf16.mxu0 0
      %10686 = vmatmul.mubr.bf16.gmra.mrb[0].mxu0 %v10651
      %v10687 = vpop.f32.mrb[0].mxu0
      %v10688 = vadd.f32 0.0, %v10687
      %v10689 = vpop.f32.mrb[0].mxu0
      %v10690 = vpop.f32.mrb[0].mxu0
      %v10691 = vpop.f32.mrb[0].mxu0
      %10692 = vdwg.mxu0
      %v10693 = vadd.f32 %v10610, %v10688
      %v10694 = vld [vmem:[%s16] sm:$0x1]
      %v10696 = vlaneseq
      %v10697 = vshrl.u32 %v10696, 7
      %v10698 = vsub.s32 0, %v10697
      %v10699 = vrot.slane %v10694, %v10698
      %v10701 = vadd.f32 %v10693, %v10699
      %10702 = vst [vmem:[%s546] sm:$0xff] %v10701
      %p10703 = scmp.lt.s32.totalorder %s28, 1
      %s10704 = scalar_select %p10703, %s28, 1
      %s10705 = smul.addr %s10704, 8
      %s10706 = scalar_lea.vmem %s17, %s10705
      // Predicated region
      $region89: #{pt5_forward.1} parent=87 // pred_check
        %p10707 = pneg %p408
      $region90: #{pt5_forward.1} parent=87 // pred_check_branch
        %10709 = sbr.rel (%p10707) target = $region92
      $region91: #{pt5_forward.1} parent=87 // pred_region
        _
      $region92: #{pt5_forward.1} parent=87 // pred_fallthru
        _
    $region88: #{pt5_forward.1} parent=5 // pred_fallthru
      _
    %p10710 = scmp.le.s32.totalorder 2, %s23
    // Predicated region
    $region93: #{pt5_forward.1} parent=5 // pred_check
      %p10711 = pneg %p10710
    $region94: #{pt5_forward.1} parent=5 // pred_check_branch
      %10713 = sbr.rel (%p10711) target = $region96
    $region95: #{pt5_forward.1} parent=5 // pred_region
      %s10714 = ssub.s32 %s23, 2
      // Predicated region
      $region97: #{pt5_forward.1} parent=95 // pred_check
        %p10715 = pneg %p414
      $region98: #{pt5_forward.1} parent=95 // pred_check_branch
        %10717 = sbr.rel (%p10715) target = $region100
      $region99: #{pt5_forward.1} parent=95 // pred_region
        %p10718 = scmp.lt.s32.totalorder %s29, 1
        %s10719 = scalar_select %p10718, %s29, 1
        %s10720 = smul.addr %s10719, 8
        %s10721 = scalar_lea.vmem %s17, %s10720
      $region100: #{pt5_forward.1} parent=95 // pred_fallthru
        _
    $region96: #{pt5_forward.1} parent=5 // pred_fallthru
      _
  $region6: #{pt5_forward.1} parent=0 // loop_footer
    %s27 = sadd.s32 1, %s23
  $region7: #{pt5_forward.1} parent=0 // loop_footer_branch
    %22 = sbr.rel target = $region3
  $region8: #{pt5_forward.1} parent=0 // loop_exit
    _

</llo_original>
